<compile_context>
chip_gen: v7x
topology: tpu7x:2x2x1
jax: 0.10.0
libtpu: 0.0.40
codegen_flags: <defaults>
</compile_context>

<pallas_src>
import jax
import jax.numpy as jnp
from jax.experimental import pallas as pl
from jax.experimental.pallas import tpu as pltpu

IN_FEATS = 128 * 3 * 3     # 1152
H1 = 3072
H2 = 2048
NUM_CLASSES = 10
BN_EPS = 1e-5
DROP_P = 0.5               # f.dropout default (training=True default)

TN1 = 768                  # H1 column tile: W1 tile 1152x768 bf16 = 1.77 MB,
                           #                 W2 panel 768x2048 bf16 = 3.15 MB
N1_TILES = H1 // TN1       # 4 grid steps, ~4.9 MB streamed per step


def _pick_vmem_limit():
    """Scoped-VMEM limit per generation: half of physical, capped at 64 MiB."""
    try:
        info = pltpu.get_tpu_info()
        cap = int(getattr(info, "vmem_capacity_bytes", 64 * 1024 * 1024))
    except Exception:  # conservative fallback (works on every generation)
        cap = 64 * 1024 * 1024
    return int(min(cap // 2, 64 * 1024 * 1024))


_VMEM_LIMIT = _pick_vmem_limit()


def _bn_relu(h, bnp_ref):
    """h: (B, n) f32; bnp_ref rows = [linear bias, bn gamma, bn beta]."""
    h = h + bnp_ref[0:1, :]                                     # linear bias
    mu = jnp.mean(h, axis=0, keepdims=True)                     # batch mean
    var = jnp.mean(jnp.square(h - mu), axis=0, keepdims=True)   # biased var
    h = (h - mu) * jax.lax.rsqrt(var + BN_EPS)
    h = h * bnp_ref[1:2, :] + bnp_ref[2:3, :]                   # gamma, beta
    return jnp.maximum(h, 0.0)                                  # ReLU


def _svhn_fused_kernel(x_ref, w1_ref, bnp1_ref, mask_ref,
                       w2_ref, bnp2_ref, w3_ref, b3_ref,
                       o_ref, acc_ref):
    i = pl.program_id(0)
    last = pl.num_programs(0) - 1

    @pl.when(i == 0)
    def _init():
        acc_ref[...] = jnp.zeros_like(acc_ref)

    # ---- layer 1 on this column tile: linear1 + bn1 + relu + dropout -------
    x = x_ref[...].astype(jnp.bfloat16)          # in-kernel cast (free VPU)
    h = jnp.dot(x, w1_ref[...], preferred_element_type=jnp.float32)
    h = _bn_relu(h, bnp1_ref)
    h = h * mask_ref[...].astype(jnp.float32)    # inverted dropout (0 or 2)

    # ---- layer 2 partial K-accumulation on the matching W2 row panel -------
    acc_ref[...] += jnp.dot(h.astype(jnp.bfloat16), w2_ref[...],
                            preferred_element_type=jnp.float32)

    # ---- epilogue: bn2 + relu + linear3 + log_softmax -----------------------
    @pl.when(i == last)
    def _finalize():
        h2 = _bn_relu(acc_ref[...], bnp2_ref)
        logits = jnp.dot(h2.astype(jnp.bfloat16), w3_ref[...],
                         preferred_element_type=jnp.float32) + b3_ref[...]
        m = jnp.max(logits, axis=1, keepdims=True)
        z = logits - m
        lse = jnp.log(jnp.sum(jnp.exp(z), axis=1, keepdims=True))
        o_ref[...] = z - lse


def _svhn_fused_forward(x, w1, bnp1, mask, w2, bnp2, w3, b3):
    B = x.shape[0]
    return pl.pallas_call(
        _svhn_fused_kernel,
        out_shape=jax.ShapeDtypeStruct((B, NUM_CLASSES), jnp.float32),
        grid=(N1_TILES,),
        in_specs=[
            # x: whole array, resident across the grid (fetched once, f32)
            pl.BlockSpec((B, IN_FEATS), lambda i: (0, 0)),
            # W1 column tile / packed bn1 params / dropout-mask column tile
            pl.BlockSpec((IN_FEATS, TN1), lambda i: (0, i)),
            pl.BlockSpec((3, TN1), lambda i: (0, i)),
            pl.BlockSpec((B, TN1), lambda i: (0, i)),
            # W2 row panel matching this H1 tile (uniform per-step streaming)
            pl.BlockSpec((TN1, H2), lambda i: (i, 0)),
            # small resident tensors for the epilogue
            pl.BlockSpec((3, H2), lambda i: (0, 0)),
            pl.BlockSpec((H2, NUM_CLASSES), lambda i: (0, 0)),
            pl.BlockSpec((1, NUM_CLASSES), lambda i: (0, 0)),
        ],
        out_specs=pl.BlockSpec((B, NUM_CLASSES), lambda i: (0, 0)),
        scratch_shapes=[
            pltpu.VMEM((B, H2), jnp.float32),    # layer-2 logits accumulator
        ],
        compiler_params=pltpu.CompilerParams(
            # K-reduction with a resident accumulator -> sequential grid
            dimension_semantics=("arbitrary",),
            vmem_limit_bytes=_VMEM_LIMIT,
        ),
    )(x, w1, bnp1, mask, w2, bnp2, w3, b3)


def init_params(key):
    """Kernel-ready parameter layout.

    From a PyTorch state dict this corresponds to:
      w{k}   = linear{k}.weight.T  (cast to bf16)
      bnp{k} = stack([linear{k}.bias, bn{k}.weight, bn{k}.bias])  (f32)
      b3     = linear3.bias.reshape(1, 10)                        (f32)
    """
    ks = jax.random.split(key, 3)
    w1 = jax.random.normal(ks[0], (IN_FEATS, H1), jnp.float32) * 0.02
    w2 = jax.random.normal(ks[1], (H1, H2), jnp.float32) * 0.02
    w3 = jax.random.normal(ks[2], (H2, NUM_CLASSES), jnp.float32) * 0.02
    return {
        "w1": w1.astype(jnp.bfloat16),
        "bnp1": jnp.stack([jnp.zeros((H1,), jnp.float32),    # linear1 bias
                           jnp.ones((H1,), jnp.float32),     # bn1 gamma
                           jnp.zeros((H1,), jnp.float32)]),  # bn1 beta
        "w2": w2.astype(jnp.bfloat16),
        "bnp2": jnp.stack([jnp.zeros((H2,), jnp.float32),
                           jnp.ones((H2,), jnp.float32),
                           jnp.zeros((H2,), jnp.float32)]),
        "w3": w3.astype(jnp.bfloat16),
        "b3": jnp.zeros((1, NUM_CLASSES), jnp.float32),
    }


@jax.jit
def svhn_label_predictor(params, x, dropout_key):
    B = x.shape[0]
    # inverted dropout mask, P(keep) = 1 - p = 0.5, pre-scaled by 1/(1-p).
    # Values are {0, 2} -> exact in bf16 (halves the mask DMA bytes).
    keep = jax.random.bernoulli(dropout_key, 1.0 - DROP_P, (B, H1))
    mask = (keep.astype(jnp.float32) * (1.0 / (1.0 - DROP_P))).astype(jnp.bfloat16)
    return _svhn_fused_forward(
        x,
        params["w1"], params["bnp1"], mask,
        params["w2"], params["bnp2"],
        params["w3"], params["b3"])


def _reference_forward(params, x, mask):
    """Pure-JAX f32 reference with identical (bf16-stored) weights and mask."""
    def bn_relu(h, bnp):
        h = h + bnp[0]
        mu = jnp.mean(h, axis=0, keepdims=True)
        var = jnp.mean(jnp.square(h - mu), axis=0, keepdims=True)
        h = (h - mu) / jnp.sqrt(var + BN_EPS)
        return jnp.maximum(h * bnp[1] + bnp[2], 0.0)

    with jax.default_matmul_precision("highest"):
        w1 = params["w1"].astype(jnp.float32)
        w2 = params["w2"].astype(jnp.float32)
        w3 = params["w3"].astype(jnp.float32)
        h1 = bn_relu(x @ w1, params["bnp1"]) * mask.astype(jnp.float32)
        h2 = bn_relu(h1 @ w2, params["bnp2"])
        logits = h2 @ w3 + params["b3"]
        return jax.nn.log_softmax(logits, axis=1)


if __name__ == "__main__":
    key = jax.random.PRNGKey(0)
    k_param, k_x, k_drop = jax.random.split(key, 3)

    params = init_params(k_param)
    # x: flattened SVHN feature maps (batch, 128*3*3)
    B = 8
    x = jax.random.normal(k_x, (B, IN_FEATS), jnp.float32)

    out = svhn_label_predictor(params, x, k_drop)
    jax.block_until_ready(out)

    assert out.shape == (B, NUM_CLASSES)
    assert out.dtype == jnp.float32
    # log_softmax rows must sum (in prob space) to ~1
    assert bool(jnp.all(jnp.abs(jnp.sum(jnp.exp(out), axis=1) - 1.0) < 1e-3))

    # compare against pure-JAX f32 reference using the same dropout mask
    keep = jax.random.bernoulli(k_drop, 1.0 - DROP_P, (B, H1))
    mask = (keep.astype(jnp.float32) * (1.0 / (1.0 - DROP_P))).astype(jnp.bfloat16)
    ref = _reference_forward(params, x, mask)
    jax.block_until_ready(ref)
    max_err = float(jnp.max(jnp.abs(out - ref)))
    assert max_err < 5e-2, f"max |kernel - ref| = {max_err}"

    print("KERNEL_OK")
</pallas_src>

<mosaic_0001>
module attributes {stable_mosaic.version = 11 : i64} {
  func.func @_svhn_fused_kernel(%arg0: i32, %arg1: memref<8x1152xf32, #tpu.memory_space<vmem>>, %arg2: memref<1152x768xbf16, #tpu.memory_space<vmem>>, %arg3: memref<3x768xf32, #tpu.memory_space<vmem>>, %arg4: memref<8x768xbf16, #tpu.memory_space<vmem>>, %arg5: memref<768x2048xbf16, #tpu.memory_space<vmem>>, %arg6: memref<3x2048xf32, #tpu.memory_space<vmem>>, %arg7: memref<2048x10xbf16, #tpu.memory_space<vmem>>, %arg8: memref<1x10xf32, #tpu.memory_space<vmem>>, %arg9: memref<8x10xf32, #tpu.memory_space<vmem>>, %arg10: memref<8x2048xf32, #tpu.memory_space<vmem>>) attributes {dimension_semantics = [#tpu.dimension_semantics<arbitrary>], iteration_bounds = array<i64: 4>, scalar_prefetch = 0 : i64, scratch_operands = 1 : i64, tpu.core_type = #tpu.core_type<tc>, window_params = [{pipeline_mode = #tpu.pipeline_mode<synchronous>, transform_indices = @transform_0, window_bounds = array<i64: 8, 1152>}, {transform_indices = @transform_1, window_bounds = array<i64: 1152, 768>}, {transform_indices = @transform_2, window_bounds = array<i64: 3, 768>}, {transform_indices = @transform_3, window_bounds = array<i64: 8, 768>}, {transform_indices = @transform_4, window_bounds = array<i64: 768, 2048>}, {pipeline_mode = #tpu.pipeline_mode<synchronous>, transform_indices = @transform_5, window_bounds = array<i64: 3, 2048>}, {pipeline_mode = #tpu.pipeline_mode<synchronous>, transform_indices = @transform_6, window_bounds = array<i64: 2048, 10>}, {pipeline_mode = #tpu.pipeline_mode<synchronous>, transform_indices = @transform_7, window_bounds = array<i64: 1, 10>}, {pipeline_mode = #tpu.pipeline_mode<synchronous>, transform_indices = @transform_8, window_bounds = array<i64: 8, 10>}]} {
    %c0_i32 = arith.constant 0 : i32
    %0 = arith.cmpi eq, %arg0, %c0_i32 : i32
    %1 = arith.extui %0 : i1 to i32
    %c0_i32_0 = arith.constant 0 : i32
    %2 = arith.cmpi ne, %1, %c0_i32_0 : i32
    scf.if %2 {
      %cst_24 = arith.constant 0.000000e+00 : f32
      %48 = vector.broadcast %cst_24 : f32 to vector<8x2048xf32>
      %c0_25 = arith.constant 0 : index
      %c0_26 = arith.constant 0 : index
      %49 = vector.load %arg10[%c0_25, %c0_26] : memref<8x2048xf32, #tpu.memory_space<vmem>>, vector<8x2048xf32>
      tpu.vector_store %arg10[%c0_25, %c0_26], %48 {strides = array<i32>} : memref<8x2048xf32, #tpu.memory_space<vmem>>, vector<8x2048xf32>,
    } else {
    }
    %c0 = arith.constant 0 : index
    %c0_1 = arith.constant 0 : index
    %3 = vector.load %arg1[%c0, %c0_1] : memref<8x1152xf32, #tpu.memory_space<vmem>>, vector<8x1152xf32>
    %4 = arith.truncf %3 : vector<8x1152xf32> to vector<8x1152xbf16>
    %c0_2 = arith.constant 0 : index
    %c0_3 = arith.constant 0 : index
    %5 = vector.load %arg2[%c0_2, %c0_3] : memref<1152x768xbf16, #tpu.memory_space<vmem>>, vector<1152x768xbf16>
    %cst = arith.constant dense<0.000000e+00> : vector<8x768xf32>
    %6 = tpu.matmul %4, %5, %cst {dimension_numbers = #tpu.dot_dimension_numbers<[1], [0], [0], [1], [0, 0, 1, 1], [], []>} : vector<8x1152xbf16>, vector<1152x768xbf16>, vector<8x768xf32> -> vector<8x768xf32>
    %c0_4 = arith.constant 0 : index
    %c0_5 = arith.constant 0 : index
    %7 = vector.load %arg3[%c0_4, %c0_5] : memref<3x768xf32, #tpu.memory_space<vmem>>, vector<1x768xf32>
    %8 = vector.broadcast %7 : vector<1x768xf32> to vector<8x768xf32>
    %9 = arith.addf %6, %8 : vector<8x768xf32>
    %cst_6 = arith.constant dense<0.000000e+00> : vector<768xf32>
    %10 = vector.multi_reduction <add>, %9, %cst_6 [0] : vector<8x768xf32> to vector<768xf32>
    %11 = vector.shape_cast %10 : vector<768xf32> to vector<1x768xf32>
    %cst_7 = arith.constant 8.000000e+00 : f32
    %12 = vector.broadcast %cst_7 : f32 to vector<1x768xf32>
    %13 = arith.divf %11, %12 : vector<1x768xf32>
    %14 = vector.broadcast %13 : vector<1x768xf32> to vector<8x768xf32>
    %15 = arith.subf %9, %14 : vector<8x768xf32>
    %16 = arith.mulf %15, %15 : vector<8x768xf32>
    %cst_8 = arith.constant dense<0.000000e+00> : vector<768xf32>
    %17 = vector.multi_reduction <add>, %16, %cst_8 [0] : vector<8x768xf32> to vector<768xf32>
    %18 = vector.shape_cast %17 : vector<768xf32> to vector<1x768xf32>
    %cst_9 = arith.constant 8.000000e+00 : f32
    %19 = vector.broadcast %cst_9 : f32 to vector<1x768xf32>
    %20 = arith.divf %18, %19 : vector<1x768xf32>
    %21 = vector.broadcast %13 : vector<1x768xf32> to vector<8x768xf32>
    %22 = arith.subf %9, %21 : vector<8x768xf32>
    %cst_10 = arith.constant 9.99999974E-6 : f32
    %23 = vector.broadcast %cst_10 : f32 to vector<1x768xf32>
    %24 = arith.addf %20, %23 : vector<1x768xf32>
    %25 = math.rsqrt %24 : vector<1x768xf32>
    %26 = vector.broadcast %25 : vector<1x768xf32> to vector<8x768xf32>
    %27 = arith.mulf %22, %26 : vector<8x768xf32>
    %c1 = arith.constant 1 : index
    %c0_11 = arith.constant 0 : index
    %28 = vector.load %arg3[%c1, %c0_11] : memref<3x768xf32, #tpu.memory_space<vmem>>, vector<1x768xf32>
    %29 = vector.broadcast %28 : vector<1x768xf32> to vector<8x768xf32>
    %30 = arith.mulf %27, %29 : vector<8x768xf32>
    %c2 = arith.constant 2 : index
    %c0_12 = arith.constant 0 : index
    %31 = vector.load %arg3[%c2, %c0_12] : memref<3x768xf32, #tpu.memory_space<vmem>>, vector<1x768xf32>
    %32 = vector.broadcast %31 : vector<1x768xf32> to vector<8x768xf32>
    %33 = arith.addf %30, %32 : vector<8x768xf32>
    %cst_13 = arith.constant 0.000000e+00 : f32
    %34 = vector.broadcast %cst_13 : f32 to vector<8x768xf32>
    %35 = arith.maximumf %33, %34 : vector<8x768xf32>
    %c0_14 = arith.constant 0 : index
    %c0_15 = arith.constant 0 : index
    %36 = vector.load %arg4[%c0_14, %c0_15] : memref<8x768xbf16, #tpu.memory_space<vmem>>, vector<8x768xbf16>
    %37 = arith.extf %36 : vector<8x768xbf16> to vector<8x768xf32>
    %38 = arith.mulf %35, %37 : vector<8x768xf32>
    %c0_16 = arith.constant 0 : index
    %c0_17 = arith.constant 0 : index
    %39 = vector.load %arg10[%c0_16, %c0_17] : memref<8x2048xf32, #tpu.memory_space<vmem>>, vector<8x2048xf32>
    %40 = arith.truncf %38 : vector<8x768xf32> to vector<8x768xbf16>
    %c0_18 = arith.constant 0 : index
    %c0_19 = arith.constant 0 : index
    %41 = vector.load %arg5[%c0_18, %c0_19] : memref<768x2048xbf16, #tpu.memory_space<vmem>>, vector<768x2048xbf16>
    %cst_20 = arith.constant dense<0.000000e+00> : vector<8x2048xf32>
    %42 = tpu.matmul %40, %41, %cst_20 {dimension_numbers = #tpu.dot_dimension_numbers<[1], [0], [0], [1], [0, 0, 1, 1], [], []>} : vector<8x768xbf16>, vector<768x2048xbf16>, vector<8x2048xf32> -> vector<8x2048xf32>
    %43 = arith.addf %39, %42 : vector<8x2048xf32>
    %c0_21 = arith.constant 0 : index
    %c0_22 = arith.constant 0 : index
    %44 = vector.load %arg10[%c0_21, %c0_22] : memref<8x2048xf32, #tpu.memory_space<vmem>>, vector<8x2048xf32>
    tpu.vector_store %arg10[%c0_21, %c0_22], %43 {strides = array<i32>} : memref<8x2048xf32, #tpu.memory_space<vmem>>, vector<8x2048xf32>,
    %c3_i32 = arith.constant 3 : i32
    %45 = arith.cmpi eq, %arg0, %c3_i32 : i32
    %46 = arith.extui %45 : i1 to i32
    %c0_i32_23 = arith.constant 0 : i32
    %47 = arith.cmpi ne, %46, %c0_i32_23 : i32
    scf.if %47 {
      %c0_24 = arith.constant 0 : index
      %c0_25 = arith.constant 0 : index
      %48 = vector.load %arg10[%c0_24, %c0_25] : memref<8x2048xf32, #tpu.memory_space<vmem>>, vector<8x2048xf32>
      %c0_26 = arith.constant 0 : index
      %c0_27 = arith.constant 0 : index
      %49 = vector.load %arg6[%c0_26, %c0_27] : memref<3x2048xf32, #tpu.memory_space<vmem>>, vector<1x2048xf32>
      %50 = vector.broadcast %49 : vector<1x2048xf32> to vector<8x2048xf32>
      %51 = arith.addf %48, %50 : vector<8x2048xf32>
      %cst_28 = arith.constant dense<0.000000e+00> : vector<2048xf32>
      %52 = vector.multi_reduction <add>, %51, %cst_28 [0] : vector<8x2048xf32> to vector<2048xf32>
      %53 = vector.shape_cast %52 : vector<2048xf32> to vector<1x2048xf32>
      %cst_29 = arith.constant 8.000000e+00 : f32
      %54 = vector.broadcast %cst_29 : f32 to vector<1x2048xf32>
      %55 = arith.divf %53, %54 : vector<1x2048xf32>
      %56 = vector.broadcast %55 : vector<1x2048xf32> to vector<8x2048xf32>
      %57 = arith.subf %51, %56 : vector<8x2048xf32>
      %58 = arith.mulf %57, %57 : vector<8x2048xf32>
      %cst_30 = arith.constant dense<0.000000e+00> : vector<2048xf32>
      %59 = vector.multi_reduction <add>, %58, %cst_30 [0] : vector<8x2048xf32> to vector<2048xf32>
      %60 = vector.shape_cast %59 : vector<2048xf32> to vector<1x2048xf32>
      %cst_31 = arith.constant 8.000000e+00 : f32
      %61 = vector.broadcast %cst_31 : f32 to vector<1x2048xf32>
      %62 = arith.divf %60, %61 : vector<1x2048xf32>
      %63 = vector.broadcast %55 : vector<1x2048xf32> to vector<8x2048xf32>
      %64 = arith.subf %51, %63 : vector<8x2048xf32>
      %cst_32 = arith.constant 9.99999974E-6 : f32
      %65 = vector.broadcast %cst_32 : f32 to vector<1x2048xf32>
      %66 = arith.addf %62, %65 : vector<1x2048xf32>
      %67 = math.rsqrt %66 : vector<1x2048xf32>
      %68 = vector.broadcast %67 : vector<1x2048xf32> to vector<8x2048xf32>
      %69 = arith.mulf %64, %68 : vector<8x2048xf32>
      %c1_33 = arith.constant 1 : index
      %c0_34 = arith.constant 0 : index
      %70 = vector.load %arg6[%c1_33, %c0_34] : memref<3x2048xf32, #tpu.memory_space<vmem>>, vector<1x2048xf32>
      %71 = vector.broadcast %70 : vector<1x2048xf32> to vector<8x2048xf32>
      %72 = arith.mulf %69, %71 : vector<8x2048xf32>
      %c2_35 = arith.constant 2 : index
      %c0_36 = arith.constant 0 : index
      %73 = vector.load %arg6[%c2_35, %c0_36] : memref<3x2048xf32, #tpu.memory_space<vmem>>, vector<1x2048xf32>
      %74 = vector.broadcast %73 : vector<1x2048xf32> to vector<8x2048xf32>
      %75 = arith.addf %72, %74 : vector<8x2048xf32>
      %cst_37 = arith.constant 0.000000e+00 : f32
      %76 = vector.broadcast %cst_37 : f32 to vector<8x2048xf32>
      %77 = arith.maximumf %75, %76 : vector<8x2048xf32>
      %78 = arith.truncf %77 : vector<8x2048xf32> to vector<8x2048xbf16>
      %c0_38 = arith.constant 0 : index
      %c0_39 = arith.constant 0 : index
      %79 = vector.load %arg7[%c0_38, %c0_39] : memref<2048x10xbf16, #tpu.memory_space<vmem>>, vector<2048x10xbf16>
      %cst_40 = arith.constant dense<0.000000e+00> : vector<8x10xf32>
      %80 = tpu.matmul %78, %79, %cst_40 {dimension_numbers = #tpu.dot_dimension_numbers<[1], [0], [0], [1], [0, 0, 1, 1], [], []>} : vector<8x2048xbf16>, vector<2048x10xbf16>, vector<8x10xf32> -> vector<8x10xf32>
      %c0_41 = arith.constant 0 : index
      %c0_42 = arith.constant 0 : index
      %81 = vector.load %arg8[%c0_41, %c0_42] : memref<1x10xf32, #tpu.memory_space<vmem>>, vector<1x10xf32>
      %82 = vector.broadcast %81 : vector<1x10xf32> to vector<8x10xf32>
      %83 = arith.addf %80, %82 : vector<8x10xf32>
      %cst_43 = arith.constant dense<0xFF800000> : vector<8xf32>
      %84 = vector.multi_reduction <maximumf>, %83, %cst_43 [1] : vector<8x10xf32> to vector<8xf32>
      %85 = vector.shape_cast %84 : vector<8xf32> to vector<8x1xf32>
      %86 = vector.broadcast %85 : vector<8x1xf32> to vector<8x10xf32>
      %87 = arith.subf %83, %86 : vector<8x10xf32>
      %88 = math.exp %87 : vector<8x10xf32>
      %cst_44 = arith.constant dense<0.000000e+00> : vector<8xf32>
      %89 = vector.multi_reduction <add>, %88, %cst_44 [1] : vector<8x10xf32> to vector<8xf32>
      %90 = vector.shape_cast %89 : vector<8xf32> to vector<8x1xf32>
      %91 = math.log %90 : vector<8x1xf32>
      %92 = vector.broadcast %91 : vector<8x1xf32> to vector<8x10xf32>
      %93 = arith.subf %87, %92 : vector<8x10xf32>
      %c0_45 = arith.constant 0 : index
      %c0_46 = arith.constant 0 : index
      %94 = vector.load %arg9[%c0_45, %c0_46] : memref<8x10xf32, #tpu.memory_space<vmem>>, vector<8x10xf32>
      tpu.vector_store %arg9[%c0_45, %c0_46], %93 {strides = array<i32>} : memref<8x10xf32, #tpu.memory_space<vmem>>, vector<8x10xf32>,
    } else {
    }
    return
  }
  func.func @transform_0(%arg0: i32) -> (i32, i32) {
    %c0_i32 = arith.constant 0 : i32
    %c0_i32_0 = arith.constant 0 : i32
    %c0_i32_1 = arith.constant 0 : i32
    return %c0_i32, %c0_i32_0 : i32, i32
  }
  func.func @transform_1(%arg0: i32) -> (i32, i32) {
    %c0_i32 = arith.constant 0 : i32
    %c0_i32_0 = arith.constant 0 : i32
    return %c0_i32, %arg0 : i32, i32
  }
  func.func @transform_2(%arg0: i32) -> (i32, i32) {
    %c0_i32 = arith.constant 0 : i32
    %c0_i32_0 = arith.constant 0 : i32
    return %c0_i32, %arg0 : i32, i32
  }
  func.func @transform_3(%arg0: i32) -> (i32, i32) {
    %c0_i32 = arith.constant 0 : i32
    %c0_i32_0 = arith.constant 0 : i32
    return %c0_i32, %arg0 : i32, i32
  }
  func.func @transform_4(%arg0: i32) -> (i32, i32) {
    %c0_i32 = arith.constant 0 : i32
    %c0_i32_0 = arith.constant 0 : i32
    return %arg0, %c0_i32 : i32, i32
  }
  func.func @transform_5(%arg0: i32) -> (i32, i32) {
    %c0_i32 = arith.constant 0 : i32
    %c0_i32_0 = arith.constant 0 : i32
    %c0_i32_1 = arith.constant 0 : i32
    return %c0_i32, %c0_i32_0 : i32, i32
  }
  func.func @transform_6(%arg0: i32) -> (i32, i32) {
    %c0_i32 = arith.constant 0 : i32
    %c0_i32_0 = arith.constant 0 : i32
    %c0_i32_1 = arith.constant 0 : i32
    return %c0_i32, %c0_i32_0 : i32, i32
  }
  func.func @transform_7(%arg0: i32) -> (i32, i32) {
    %c0_i32 = arith.constant 0 : i32
    %c0_i32_0 = arith.constant 0 : i32
    %c0_i32_1 = arith.constant 0 : i32
    return %c0_i32, %c0_i32_0 : i32, i32
  }
  func.func @transform_8(%arg0: i32) -> (i32, i32) {
    %c0_i32 = arith.constant 0 : i32
    %c0_i32_0 = arith.constant 0 : i32
    %c0_i32_1 = arith.constant 0 : i32
    return %c0_i32, %c0_i32_0 : i32, i32
  }
}

</mosaic_0001>

<llo_original>
// kernel: svhn_label_predictor.1
$region0: #{svhn_label_predictor.1}
  #allocation0 [shape = 'u32[]', space=smem, size = 0x4, offset = 0x4, fixed_abs, tag = 'smem constant byte address 0x4 - core index']
  #allocation1 [shape = 'u32[144,128]{1,0:T(1,128)}', space=vmem, size = 0x12000, scoped, tag = 'internal scratch']
  #allocation2 [shape = 'f32[8,2048]{1,0:T(8,128)}', space=vmem, size = 0x10000, scoped, tag = 'scratch operand']
  %s0 = inlined_call_operand.hbm [shape: f32[8,1152], index: 0, kind: input, shape index: {}]
  %s1 = inlined_call_operand.hbm [shape: bf16[1152,3072], index: 1, kind: input, shape index: {}]
  %s2 = inlined_call_operand.hbm [shape: f32[3,3072], index: 2, kind: input, shape index: {}]
  %s3 = inlined_call_operand.vmem [shape: bf16[8,3072], index: 3, kind: input, shape index: {}]
  %s4 = inlined_call_operand.hbm [shape: bf16[3072,2048], index: 4, kind: input, shape index: {}]
  %s5 = inlined_call_operand.hbm [shape: f32[3,2048], index: 5, kind: input, shape index: {}]
  %s6 = inlined_call_operand.vmem [shape: bf16[2048,10], index: 6, kind: input, shape index: {}]
  %s7 = inlined_call_operand.hbm [shape: f32[1,10], index: 7, kind: input, shape index: {}]
  %s8 = inlined_call_operand.hbm [shape: f32[8,10], index: 8, kind: output, shape index: {}]
  %s9 = sld [smem:[#allocation0]]
  $region97: #{svhn_label_predictor.1} parent=0
    _
  %s11 = ssub.s32 1, %s9
  %s12 = scalar_select 0, %s11, %s9
  $region1: #{svhn_label_predictor.1} parent=0
    #allocation3 [shape = 'u8[36864]{0}', space=vmem, size = 0x9000, scoped, tag = 'input window, operand 0, single buffered']
    #allocation4 [shape = 's32[2]{0}', space=sflag, size = 0x8, scoped, tag = 'scoped memory for svhn_label_predictor.1']
    #allocation5 [shape = 's32[2]{0}', space=sflag, size = 0x8, scoped, tag = 'scoped memory for svhn_label_predictor.1']
    #allocation6 [shape = 'u8[3538944]{0}', space=vmem, size = 0x360000, scoped, tag = 'input window, operand 1']
    #allocation7 [shape = 's32[2]{0}', space=sflag, size = 0x8, scoped, tag = 'scoped memory for svhn_label_predictor.1']
    #allocation8 [shape = 'u8[24576]{0}', space=vmem, size = 0x6000, scoped, tag = 'input window, operand 2']
    #allocation9 [shape = 'u8[6291456]{0}', space=vmem, size = 0x600000, scoped, tag = 'input window, operand 4']
    #allocation10 [shape = 's32[2]{0}', space=sflag, size = 0x8, scoped, tag = 'scoped memory for svhn_label_predictor.1']
    #allocation11 [shape = 'u8[32768]{0}', space=vmem, size = 0x8000, scoped, tag = 'input window, operand 5, single buffered']
    #allocation12 [shape = 'u8[512]{0}', space=vmem, size = 0x400, scoped, tag = 'input window, operand 7, single buffered']
    #allocation13 [shape = 's32[1]{0}', space=sflag, size = 0x4, scoped, tag = 'scoped memory for svhn_label_predictor.1']
    #allocation14 [shape = 'u8[4096]{0}', space=vmem, size = 0x1000, scoped, tag = 'output window, operand 0, single buffered']
    %13 = vsyncpa [#allocation4], 0
    %14 = vsyncpa [#allocation7], 0
    %s15 = scalar_lea.sflag [#allocation7], 1
    %16 = vsyncpa %s15, 0
    %17 = vsyncpa [#allocation10], 0
    %s18 = scalar_lea.sflag [#allocation10], 1
    %19 = vsyncpa %s18, 0
    %20 = vsyncpa [#allocation13], 0
    %21 = vsyncpa [#allocation5], 0
    loop: start=0, step=1, limit=6
    $region2: #{svhn_label_predictor.1} parent=1 // loop_pre_header
      _
    $region3: #{svhn_label_predictor.1} parent=1 // loop_header
      %s23 = sphi 0, %s27
      %p24 = scmp.ge.s32.totalorder %s23, 6
      %s31 = sphi 0, %s31
      %s33 = sphi 0, %s31
      %s34 = sphi 0, %s33
      %s48 = sphi 0, %s34
      %s54 = sphi 0, %s56
      %s57 = sphi 0, %s54
      %s58 = sphi 0, %s57
      %s74 = sphi 0, %s58
      %s80 = sphi 0, %s82
      %s83 = sphi 0, %s80
      %s84 = sphi 0, %s83
      %s100 = sphi 0, %s84
      %s106 = sphi 0, %s108
      %s109 = sphi 0, %s106
      %s110 = sphi 0, %s109
      %s126 = sphi 0, %s110
      %s132 = sphi 0, %s134
      %s135 = sphi 0, %s132
      %s136 = sphi 0, %s135
      %s152 = sphi 0, %s136
      %s156 = sphi 0, %s156
      %s158 = sphi 0, %s156
      %s159 = sphi 0, %s158
      %s173 = sphi 0, %s159
      %s177 = sphi 0, %s177
      %s179 = sphi 0, %s177
      %s180 = sphi 0, %s179
      %s194 = sphi 0, %s180
      %s198 = sphi 0, %s198
      %s200 = sphi 0, %s198
      %s201 = sphi 0, %s200
      %s215 = sphi 0, %s201
      %s219 = sphi 0, %s219
      %s221 = sphi 0, %s219
      %s222 = sphi 0, %s221
      %s236 = sphi 0, %s222
    $region4: #{svhn_label_predictor.1} parent=1 // loop_header_branch
      %26 = sbr.rel (%p24) target = $region8
    $region5: #{svhn_label_predictor.1} parent=1 // loop_body
      %s28 = ssub.s32 %s23, 1
      %s29 = ssub.s32 %s23, 2
      %s30 = sadd.s32 %s23, 1
      %s32 = sadd.s32 %s31, 1
      %p35 = scmp.eq.s32.totalorder %s23, 3
      %p36 = scmp.ne.s32.totalorder %s31, %s33
      %p37 = scmp.eq.s32.totalorder %s23, 0
      %p38 = por %p36, %p37
      %p39 = scmp.ne.s32.totalorder %s31, %s33
      %p40 = scmp.eq.s32.totalorder %s28, 3
      %p41 = por %p39, %p40
      %p42 = scmp.ne.s32.totalorder %s33, %s34
      %p43 = scmp.eq.s32.totalorder %s28, 0
      %p44 = por %p42, %p43
      %p45 = scmp.ne.s32.totalorder %s33, %s34
      %p46 = scmp.eq.s32.totalorder %s29, 3
      %p47 = por %p45, %p46
      %p49 = scmp.ne.s32.totalorder %s34, %s48
      %p50 = scmp.eq.s32.totalorder %s29, 0
      %p51 = por %p49, %p50
      %s52 = ssub.s32 %s23, %s30
      %p53 = scmp.eq.s32.totalorder %s52, 0
      %s55 = sadd.s32 %s54, 1
      %s56 = scalar_select %p53, %s54, %s55
      %p59 = pneg %p53
      %p60 = scmp.eq.s32.totalorder %s23, 3
      %p61 = por %p59, %p60
      %p62 = scmp.ne.s32.totalorder %s54, %s57
      %p63 = scmp.eq.s32.totalorder %s23, 0
      %p64 = por %p62, %p63
      %p65 = scmp.ne.s32.totalorder %s54, %s57
      %p66 = scmp.eq.s32.totalorder %s28, 3
      %p67 = por %p65, %p66
      %p68 = scmp.ne.s32.totalorder %s57, %s58
      %p69 = scmp.eq.s32.totalorder %s28, 0
      %p70 = por %p68, %p69
      %p71 = scmp.ne.s32.totalorder %s57, %s58
      %p72 = scmp.eq.s32.totalorder %s29, 3
      %p73 = por %p71, %p72
      %p75 = scmp.ne.s32.totalorder %s58, %s74
      %p76 = scmp.eq.s32.totalorder %s29, 0
      %p77 = por %p75, %p76
      %s78 = ssub.s32 %s23, %s30
      %p79 = scmp.eq.s32.totalorder %s78, 0
      %s81 = sadd.s32 %s80, 1
      %s82 = scalar_select %p79, %s80, %s81
      %p85 = pneg %p79
      %p86 = scmp.eq.s32.totalorder %s23, 3
      %p87 = por %p85, %p86
      %p88 = scmp.ne.s32.totalorder %s80, %s83
      %p89 = scmp.eq.s32.totalorder %s23, 0
      %p90 = por %p88, %p89
      %p91 = scmp.ne.s32.totalorder %s80, %s83
      %p92 = scmp.eq.s32.totalorder %s28, 3
      %p93 = por %p91, %p92
      %p94 = scmp.ne.s32.totalorder %s83, %s84
      %p95 = scmp.eq.s32.totalorder %s28, 0
      %p96 = por %p94, %p95
      %p97 = scmp.ne.s32.totalorder %s83, %s84
      %p98 = scmp.eq.s32.totalorder %s29, 3
      %p99 = por %p97, %p98
      %p101 = scmp.ne.s32.totalorder %s84, %s100
      %p102 = scmp.eq.s32.totalorder %s29, 0
      %p103 = por %p101, %p102
      %s104 = ssub.s32 %s23, %s30
      %p105 = scmp.eq.s32.totalorder %s104, 0
      %s107 = sadd.s32 %s106, 1
      %s108 = scalar_select %p105, %s106, %s107
      %p111 = pneg %p105
      %p112 = scmp.eq.s32.totalorder %s23, 3
      %p113 = por %p111, %p112
      %p114 = scmp.ne.s32.totalorder %s106, %s109
      %p115 = scmp.eq.s32.totalorder %s23, 0
      %p116 = por %p114, %p115
      %p117 = scmp.ne.s32.totalorder %s106, %s109
      %p118 = scmp.eq.s32.totalorder %s28, 3
      %p119 = por %p117, %p118
      %p120 = scmp.ne.s32.totalorder %s109, %s110
      %p121 = scmp.eq.s32.totalorder %s28, 0
      %p122 = por %p120, %p121
      %p123 = scmp.ne.s32.totalorder %s109, %s110
      %p124 = scmp.eq.s32.totalorder %s29, 3
      %p125 = por %p123, %p124
      %p127 = scmp.ne.s32.totalorder %s110, %s126
      %p128 = scmp.eq.s32.totalorder %s29, 0
      %p129 = por %p127, %p128
      %s130 = ssub.s32 %s23, %s30
      %p131 = scmp.eq.s32.totalorder %s130, 0
      %s133 = sadd.s32 %s132, 1
      %s134 = scalar_select %p131, %s132, %s133
      %p137 = pneg %p131
      %p138 = scmp.eq.s32.totalorder %s23, 3
      %p139 = por %p137, %p138
      %p140 = scmp.ne.s32.totalorder %s132, %s135
      %p141 = scmp.eq.s32.totalorder %s23, 0
      %p142 = por %p140, %p141
      %p143 = scmp.ne.s32.totalorder %s132, %s135
      %p144 = scmp.eq.s32.totalorder %s28, 3
      %p145 = por %p143, %p144
      %p146 = scmp.ne.s32.totalorder %s135, %s136
      %p147 = scmp.eq.s32.totalorder %s28, 0
      %p148 = por %p146, %p147
      %p149 = scmp.ne.s32.totalorder %s135, %s136
      %p150 = scmp.eq.s32.totalorder %s29, 3
      %p151 = por %p149, %p150
      %p153 = scmp.ne.s32.totalorder %s136, %s152
      %p154 = scmp.eq.s32.totalorder %s29, 0
      %p155 = por %p153, %p154
      %s157 = sadd.s32 %s156, 1
      %p160 = scmp.eq.s32.totalorder %s23, 3
      %p161 = scmp.ne.s32.totalorder %s156, %s158
      %p162 = scmp.eq.s32.totalorder %s23, 0
      %p163 = por %p161, %p162
      %p164 = scmp.ne.s32.totalorder %s156, %s158
      %p165 = scmp.eq.s32.totalorder %s28, 3
      %p166 = por %p164, %p165
      %p167 = scmp.ne.s32.totalorder %s158, %s159
      %p168 = scmp.eq.s32.totalorder %s28, 0
      %p169 = por %p167, %p168
      %p170 = scmp.ne.s32.totalorder %s158, %s159
      %p171 = scmp.eq.s32.totalorder %s29, 3
      %p172 = por %p170, %p171
      %p174 = scmp.ne.s32.totalorder %s159, %s173
      %p175 = scmp.eq.s32.totalorder %s29, 0
      %p176 = por %p174, %p175
      %s178 = sadd.s32 %s177, 1
      %p181 = scmp.eq.s32.totalorder %s23, 3
      %p182 = scmp.ne.s32.totalorder %s177, %s179
      %p183 = scmp.eq.s32.totalorder %s23, 0
      %p184 = por %p182, %p183
      %p185 = scmp.ne.s32.totalorder %s177, %s179
      %p186 = scmp.eq.s32.totalorder %s28, 3
      %p187 = por %p185, %p186
      %p188 = scmp.ne.s32.totalorder %s179, %s180
      %p189 = scmp.eq.s32.totalorder %s28, 0
      %p190 = por %p188, %p189
      %p191 = scmp.ne.s32.totalorder %s179, %s180
      %p192 = scmp.eq.s32.totalorder %s29, 3
      %p193 = por %p191, %p192
      %p195 = scmp.ne.s32.totalorder %s180, %s194
      %p196 = scmp.eq.s32.totalorder %s29, 0
      %p197 = por %p195, %p196
      %s199 = sadd.s32 %s198, 1
      %p202 = scmp.eq.s32.totalorder %s23, 3
      %p203 = scmp.ne.s32.totalorder %s198, %s200
      %p204 = scmp.eq.s32.totalorder %s23, 0
      %p205 = por %p203, %p204
      %p206 = scmp.ne.s32.totalorder %s198, %s200
      %p207 = scmp.eq.s32.totalorder %s28, 3
      %p208 = por %p206, %p207
      %p209 = scmp.ne.s32.totalorder %s200, %s201
      %p210 = scmp.eq.s32.totalorder %s28, 0
      %p211 = por %p209, %p210
      %p212 = scmp.ne.s32.totalorder %s200, %s201
      %p213 = scmp.eq.s32.totalorder %s29, 3
      %p214 = por %p212, %p213
      %p216 = scmp.ne.s32.totalorder %s201, %s215
      %p217 = scmp.eq.s32.totalorder %s29, 0
      %p218 = por %p216, %p217
      %s220 = sadd.s32 %s219, 1
      %p223 = scmp.eq.s32.totalorder %s23, 3
      %p224 = scmp.ne.s32.totalorder %s219, %s221
      %p225 = scmp.eq.s32.totalorder %s23, 0
      %p226 = por %p224, %p225
      %p227 = scmp.ne.s32.totalorder %s219, %s221
      %p228 = scmp.eq.s32.totalorder %s28, 3
      %p229 = por %p227, %p228
      %p230 = scmp.ne.s32.totalorder %s221, %s222
      %p231 = scmp.eq.s32.totalorder %s28, 0
      %p232 = por %p230, %p231
      %p233 = scmp.ne.s32.totalorder %s221, %s222
      %p234 = scmp.eq.s32.totalorder %s29, 3
      %p235 = por %p233, %p234
      %p237 = scmp.ne.s32.totalorder %s222, %s236
      %p238 = scmp.eq.s32.totalorder %s29, 0
      %p239 = por %p237, %p238
      %p240 = scmp.le.s32.totalorder 1, %s23
      %p241 = scmp.lt.s32.totalorder %s23, 5
      %p242 = pnand %p240, %p241
      %p243 = pneg %p242
      // Predicated region
      $region9: #{svhn_label_predictor.1} parent=5 // pred_check
        _
      $region10: #{svhn_label_predictor.1} parent=5 // pred_check_branch
        %245 = sbr.rel (%p242) target = $region12
      $region11: #{svhn_label_predictor.1} parent=5 // pred_region
        %s246 = ssub.s32 %s23, 1
        // Predicated region
        $region13: #{svhn_label_predictor.1} parent=11 // pred_check
          %p247 = pneg %p44
        $region14: #{svhn_label_predictor.1} parent=11 // pred_check_branch
          %249 = sbr.rel (%p247) target = $region16
        $region15: #{svhn_label_predictor.1} parent=11 // pred_region
          %s251 = ssub.s32 1152, 1152
          %252 = vsyncadd [#allocation4], %s251
          %s254 = sshll.u32 [#allocation3], 4
          %s255 = int_to_ptr.vmem [resolvable:$true] %s254
          %257 = dma.hbm_to_vmem [thread:$0]  %s0, 1152, %s255, [#allocation4]
        $region16: #{svhn_label_predictor.1} parent=11 // pred_fallthru
          _
        // Predicated region
        $region17: #{svhn_label_predictor.1} parent=11 // pred_check
          %p258 = pneg %p169
        $region18: #{svhn_label_predictor.1} parent=11 // pred_check_branch
          %260 = sbr.rel (%p258) target = $region20
        $region19: #{svhn_label_predictor.1} parent=11 // pred_region
          %s262 = ssub.s32 1024, 1024
          %263 = vsyncadd [#allocation10], %s262
          %s265 = sshll.u32 [#allocation11], 4
          %s266 = int_to_ptr.vmem [resolvable:$true] %s265
          %268 = dma.hbm_to_vmem [thread:$0]  %s5, 1024, %s266, [#allocation10]
        $region20: #{svhn_label_predictor.1} parent=11 // pred_fallthru
          _
        // Predicated region
        $region21: #{svhn_label_predictor.1} parent=11 // pred_check
          %p269 = pneg %p190
        $region22: #{svhn_label_predictor.1} parent=11 // pred_check_branch
          %271 = sbr.rel (%p269) target = $region24
        $region23: #{svhn_label_predictor.1} parent=11 // pred_region
          _
        $region24: #{svhn_label_predictor.1} parent=11 // pred_fallthru
          _
        // Predicated region
        $region25: #{svhn_label_predictor.1} parent=11 // pred_check
          %p272 = pneg %p211
        $region26: #{svhn_label_predictor.1} parent=11 // pred_check_branch
          %274 = sbr.rel (%p272) target = $region28
        $region27: #{svhn_label_predictor.1} parent=11 // pred_region
          %s276 = ssub.s32 16, 16
          %277 = vsyncadd [#allocation13], %s276
          %s279 = sshll.u32 [#allocation12], 4
          %s280 = int_to_ptr.vmem [resolvable:$true] %s279
          %282 = dma.hbm_to_vmem [thread:$0]  %s7, 16, %s280, [#allocation13]
        $region28: #{svhn_label_predictor.1} parent=11 // pred_fallthru
          _
      $region12: #{svhn_label_predictor.1} parent=5 // pred_fallthru
        _
      %p283 = scmp.lt.s32.totalorder %s23, 4
      // Predicated region
      $region29: #{svhn_label_predictor.1} parent=5 // pred_check
        %p284 = pneg %p283
      $region30: #{svhn_label_predictor.1} parent=5 // pred_check_branch
        %286 = sbr.rel (%p284) target = $region32
      $region31: #{svhn_label_predictor.1} parent=5 // pred_region
        // Predicated region
        $region33: #{svhn_label_predictor.1} parent=31 // pred_check
          %p287 = pneg %p64
        $region34: #{svhn_label_predictor.1} parent=31 // pred_check_branch
          %289 = sbr.rel (%p287) target = $region36
        $region35: #{svhn_label_predictor.1} parent=31 // pred_region
          %s290 = sand.u32 %s23, 1
          %s291 = scalar_lea.sflag [#allocation7], %s290
          %s292 = sand.u32 %s54, 1
          %s293 = smul.addr %s292, 3456
          %s294 = scalar_lea.vmem [#allocation6], %s293
          %s295 = smul.u32 6, %s23
          %s297 = ssub.s32 55296, 55296
          %298 = vsyncadd %s291, %s297
          %s299 = smul.addr %s295, 64
          %s300 = scalar_lea.hbm %s1, %s299
          %s301 = sshll.u32 %s294, 4
          %s302 = int_to_ptr.vmem [resolvable:$true] %s301
          %307 = dma.hbm_to_vmem [thread:$0]  %s300, 55296, %s302, %s291, 1536, 384, 24
        $region36: #{svhn_label_predictor.1} parent=31 // pred_fallthru
          _
        // Predicated region
        $region37: #{svhn_label_predictor.1} parent=31 // pred_check
          %p308 = pneg %p90
        $region38: #{svhn_label_predictor.1} parent=31 // pred_check_branch
          %310 = sbr.rel (%p308) target = $region40
        $region39: #{svhn_label_predictor.1} parent=31 // pred_region
          %s311 = sand.u32 %s23, 1
          %s312 = scalar_lea.sflag [#allocation7], %s311
          %s313 = sand.u32 %s80, 1
          %s314 = smul.addr %s313, 24
          %s315 = scalar_lea.vmem [#allocation8], %s314
          %s316 = smul.u32 6, %s23
          %s318 = ssub.s32 384, 384
          %319 = vsyncadd %s312, %s318
          %s320 = smul.addr %s316, 64
          %s321 = scalar_lea.hbm %s2, %s320
          %s323 = sshll.u32 %s315, 4
          %s324 = int_to_ptr.vmem [resolvable:$true] %s323
          %326 = dma.hbm_to_vmem [thread:$0]  %s321, 384, %s324, %s312
        $region40: #{svhn_label_predictor.1} parent=31 // pred_fallthru
          _
        // Predicated region
        $region41: #{svhn_label_predictor.1} parent=31 // pred_check
          %p327 = pneg %p116
        $region42: #{svhn_label_predictor.1} parent=31 // pred_check_branch
          %329 = sbr.rel (%p327) target = $region44
        $region43: #{svhn_label_predictor.1} parent=31 // pred_region
          %s330 = smul.u32 6, %s23
          %p331 = scmp.lt.s32.totalorder %s330, 23
          %s332 = scalar_select %p331, %s330, 23
          %s333 = smul.addr %s332, 4
          %s334 = scalar_lea.vmem %s3, %s333
          %s335 = smul.u32 6, %s23
        $region44: #{svhn_label_predictor.1} parent=31 // pred_fallthru
          _
        // Predicated region
        $region45: #{svhn_label_predictor.1} parent=31 // pred_check
          %p336 = pneg %p142
        $region46: #{svhn_label_predictor.1} parent=31 // pred_check_branch
          %338 = sbr.rel (%p336) target = $region48
        $region47: #{svhn_label_predictor.1} parent=31 // pred_region
          %s339 = sand.u32 %s23, 1
          %s340 = scalar_lea.sflag [#allocation10], %s339
          %s341 = sand.u32 %s132, 1
          %s342 = smul.addr %s341, 6144
          %s343 = scalar_lea.vmem [#allocation9], %s342
          %s344 = smul.u32 96, %s23
          %s346 = ssub.s32 98304, 98304
          %347 = vsyncadd %s340, %s346
          %s348 = smul.addr %s344, 16
          %s349 = smul.addr %s348, 64
          %s350 = scalar_lea.hbm %s4, %s349
          %s351 = sshll.u32 %s343, 4
          %s352 = int_to_ptr.vmem [resolvable:$true] %s351
          %357 = dma.hbm_to_vmem [thread:$0]  %s350, 98304, %s352, %s340, 1024, 1024, 64
        $region48: #{svhn_label_predictor.1} parent=31 // pred_fallthru
          _
      $region32: #{svhn_label_predictor.1} parent=5 // pred_fallthru
        _
      %p358 = scmp.le.s32.totalorder 1, %s23
      %p359 = scmp.lt.s32.totalorder %s23, 5
      %p360 = pnand %p358, %p359
      %p361 = pneg %p360
      // Predicated region
      $region49: #{svhn_label_predictor.1} parent=5 // pred_check
        _
      $region50: #{svhn_label_predictor.1} parent=5 // pred_check_branch
        %363 = sbr.rel (%p360) target = $region52
      $region51: #{svhn_label_predictor.1} parent=5 // pred_region
        %s364 = ssub.s32 %s23, 1
        // Predicated region
        $region53: #{svhn_label_predictor.1} parent=51 // pred_check
          %p365 = pneg %p44
        $region54: #{svhn_label_predictor.1} parent=51 // pred_check_branch
          %367 = sbr.rel (%p365) target = $region56
        $region55: #{svhn_label_predictor.1} parent=51 // pred_region
          %368 = dma.done [#allocation4], 1152
        $region56: #{svhn_label_predictor.1} parent=51 // pred_fallthru
          _
        %s369 = sand.u32 %s28, 1
        %s370 = scalar_lea.sflag [#allocation7], %s369
        %s371 = sand.u32 %s57, 1
        %s372 = smul.addr %s371, 3456
        %s373 = scalar_lea.vmem [#allocation6], %s372
        // Predicated region
        $region57: #{svhn_label_predictor.1} parent=51 // pred_check
          %p374 = pneg %p70
        $region58: #{svhn_label_predictor.1} parent=51 // pred_check_branch
          %376 = sbr.rel (%p374) target = $region60
        $region59: #{svhn_label_predictor.1} parent=51 // pred_region
          %377 = dma.done %s370, 55296
        $region60: #{svhn_label_predictor.1} parent=51 // pred_fallthru
          _
        %s378 = sand.u32 %s28, 1
        %s379 = scalar_lea.sflag [#allocation7], %s378
        %s380 = sand.u32 %s83, 1
        %s381 = smul.addr %s380, 24
        %s382 = scalar_lea.vmem [#allocation8], %s381
        // Predicated region
        $region61: #{svhn_label_predictor.1} parent=51 // pred_check
          %p383 = pneg %p96
        $region62: #{svhn_label_predictor.1} parent=51 // pred_check_branch
          %385 = sbr.rel (%p383) target = $region64
        $region63: #{svhn_label_predictor.1} parent=51 // pred_region
          %386 = dma.done %s379, 384
        $region64: #{svhn_label_predictor.1} parent=51 // pred_fallthru
          _
        %s387 = sand.u32 %s28, 1
        %s388 = scalar_lea.sflag [#allocation10], %s387
        %s389 = sand.u32 %s135, 1
        %s390 = smul.addr %s389, 6144
        %s391 = scalar_lea.vmem [#allocation9], %s390
        // Predicated region
        $region65: #{svhn_label_predictor.1} parent=51 // pred_check
          %p392 = pneg %p148
        $region66: #{svhn_label_predictor.1} parent=51 // pred_check_branch
          %394 = sbr.rel (%p392) target = $region68
        $region67: #{svhn_label_predictor.1} parent=51 // pred_region
          %395 = dma.done %s388, 98304
        $region68: #{svhn_label_predictor.1} parent=51 // pred_fallthru
          _
        // Predicated region
        $region69: #{svhn_label_predictor.1} parent=51 // pred_check
          %p396 = pneg %p169
        $region70: #{svhn_label_predictor.1} parent=51 // pred_check_branch
          %398 = sbr.rel (%p396) target = $region72
        $region71: #{svhn_label_predictor.1} parent=51 // pred_region
          %399 = dma.done [#allocation10], 1024
        $region72: #{svhn_label_predictor.1} parent=51 // pred_fallthru
          _
        // Predicated region
        $region73: #{svhn_label_predictor.1} parent=51 // pred_check
          %p400 = pneg %p211
        $region74: #{svhn_label_predictor.1} parent=51 // pred_check_branch
          %402 = sbr.rel (%p400) target = $region76
        $region75: #{svhn_label_predictor.1} parent=51 // pred_region
          %403 = dma.done [#allocation13], 16
        $region76: #{svhn_label_predictor.1} parent=51 // pred_fallthru
          _
        %p404 = pneg %p44
        %p405 = pneg %p41
        %s406 = sand.u32 %s28, 1
        %s407 = scalar_lea.sflag [#allocation7], %s406
        %s408 = sand.u32 %s57, 1
        %s409 = smul.addr %s408, 3456
        %s410 = scalar_lea.vmem [#allocation6], %s409
        %p411 = pneg %p70
        %p412 = pneg %p67
        %s413 = sand.u32 %s28, 1
        %s414 = scalar_lea.sflag [#allocation7], %s413
        %s415 = sand.u32 %s83, 1
        %s416 = smul.addr %s415, 24
        %s417 = scalar_lea.vmem [#allocation8], %s416
        %p418 = pneg %p96
        %p419 = pneg %p93
        %s420 = smul.u32 6, %s28
        %p421 = scmp.lt.s32.totalorder %s420, 23
        %s422 = scalar_select %p421, %s420, 23
        %s423 = smul.addr %s422, 4
        %s424 = scalar_lea.vmem %s3, %s423
        %p425 = pneg %p122
        %p426 = pneg %p119
        %s427 = sand.u32 %s28, 1
        %s428 = scalar_lea.sflag [#allocation10], %s427
        %s429 = sand.u32 %s135, 1
        %s430 = smul.addr %s429, 6144
        %s431 = scalar_lea.vmem [#allocation9], %s430
        %p432 = pneg %p148
        %p433 = pneg %p145
        %p434 = pneg %p169
        %p435 = pneg %p166
        %p436 = pneg %p190
        %p437 = pneg %p187
        %p438 = pneg %p211
        %p439 = pneg %p208
        %p440 = pneg %p232
        %p441 = pneg %p229
        %s442 = smul.u32 6, %s28
        %s443 = smul.u32 6, %s28
        %s444 = smul.u32 6, %s28
        %p445 = scmp.lt.s32.totalorder %s444, 23
        %s446 = scalar_select %p445, %s444, 23
        %s447 = smul.addr %s446, 4
        %s448 = scalar_lea.vmem %s3, %s447
        %s449 = smul.u32 6, %s28
        %s450 = smul.u32 96, %s28
        %p452 = scmp.eq.s32.totalorder %s28, 0
        // Predicated region
        $region77: #{svhn_label_predictor.1} parent=51 // pred_check
          %p453 = pneg %p452
        $region78: #{svhn_label_predictor.1} parent=51 // pred_check_branch
          %455 = sbr.rel (%p453) target = $region80
        $region79: #{svhn_label_predictor.1} parent=51 // pred_region
          %456 = vst [vmem:[#allocation2] sm:$0xff] 0.0
          %457 = vst [vmem:[#allocation2 + $0x8] sm:$0xff] 0.0
          %458 = vst [vmem:[#allocation2 + $0x10] sm:$0xff] 0.0
          %459 = vst [vmem:[#allocation2 + $0x18] sm:$0xff] 0.0
          %460 = vst [vmem:[#allocation2 + $0x20] sm:$0xff] 0.0
          %461 = vst [vmem:[#allocation2 + $0x28] sm:$0xff] 0.0
          %462 = vst [vmem:[#allocation2 + $0x30] sm:$0xff] 0.0
          %463 = vst [vmem:[#allocation2 + $0x38] sm:$0xff] 0.0
          %464 = vst [vmem:[#allocation2 + $0x40] sm:$0xff] 0.0
          %465 = vst [vmem:[#allocation2 + $0x48] sm:$0xff] 0.0
          %466 = vst [vmem:[#allocation2 + $0x50] sm:$0xff] 0.0
          %467 = vst [vmem:[#allocation2 + $0x58] sm:$0xff] 0.0
          %468 = vst [vmem:[#allocation2 + $0x60] sm:$0xff] 0.0
          %469 = vst [vmem:[#allocation2 + $0x68] sm:$0xff] 0.0
          %470 = vst [vmem:[#allocation2 + $0x70] sm:$0xff] 0.0
          %471 = vst [vmem:[#allocation2 + $0x78] sm:$0xff] 0.0
        $region80: #{svhn_label_predictor.1} parent=51 // pred_fallthru
          _
        %v472 = vld [vmem:[#allocation3] sm:$0xff]
        %v473 = vld [vmem:[#allocation3 + $0x8] sm:$0xff]
        %v474 = vld [vmem:[#allocation3 + $0x10] sm:$0xff]
        %v475 = vld [vmem:[#allocation3 + $0x18] sm:$0xff]
        %v476 = vld [vmem:[#allocation3 + $0x20] sm:$0xff]
        %v477 = vld [vmem:[#allocation3 + $0x28] sm:$0xff]
        %v478 = vld [vmem:[#allocation3 + $0x30] sm:$0xff]
        %v479 = vld [vmem:[#allocation3 + $0x38] sm:$0xff]
        %v480 = vld [vmem:[#allocation3 + $0x40] sm:$0xff]
        %v481 = vpack.c.bf16 %v472, %v472
        %v482 = vpack.c.bf16 %v473, %v473
        %v483 = vpack.c.bf16 %v474, %v474
        %v484 = vpack.c.bf16 %v475, %v475
        %v485 = vpack.c.bf16 %v476, %v476
        %v486 = vpack.c.bf16 %v477, %v477
        %v487 = vpack.c.bf16 %v478, %v478
        %v488 = vpack.c.bf16 %v479, %v479
        %v489 = vpack.c.bf16 %v480, %v480
        %v490 = vld [vmem:[%s373] sm:$0xff]
        %v491 = vld [vmem:[%s373 + $0x8] sm:$0xff]
        %v492 = vld [vmem:[%s373 + $0x10] sm:$0xff]
        %v493 = vld [vmem:[%s373 + $0x18] sm:$0xff]
        %v494 = vld [vmem:[%s373 + $0x20] sm:$0xff]
        %v495 = vld [vmem:[%s373 + $0x28] sm:$0xff]
        %v496 = vld [vmem:[%s373 + $0x30] sm:$0xff]
        %v497 = vld [vmem:[%s373 + $0x38] sm:$0xff]
        %v498 = vld [vmem:[%s373 + $0x40] sm:$0xff]
        %v499 = vld [vmem:[%s373 + $0x48] sm:$0xff]
        %v500 = vld [vmem:[%s373 + $0x50] sm:$0xff]
        %v501 = vld [vmem:[%s373 + $0x58] sm:$0xff]
        %v502 = vld [vmem:[%s373 + $0x60] sm:$0xff]
        %v503 = vld [vmem:[%s373 + $0x68] sm:$0xff]
        %v504 = vld [vmem:[%s373 + $0x70] sm:$0xff]
        %v505 = vld [vmem:[%s373 + $0x78] sm:$0xff]
        %v506 = vld [vmem:[%s373 + $0x80] sm:$0xff]
        %v507 = vld [vmem:[%s373 + $0x88] sm:$0xff]
        %v508 = vld [vmem:[%s373 + $0x90] sm:$0xff]
        %v509 = vld [vmem:[%s373 + $0x98] sm:$0xff]
        %v510 = vld [vmem:[%s373 + $0xa0] sm:$0xff]
        %v511 = vld [vmem:[%s373 + $0xa8] sm:$0xff]
        %v512 = vld [vmem:[%s373 + $0xb0] sm:$0xff]
        %v513 = vld [vmem:[%s373 + $0xb8] sm:$0xff]
        %v514 = vld [vmem:[%s373 + $0xc0] sm:$0xff]
        %v515 = vld [vmem:[%s373 + $0xc8] sm:$0xff]
        %v516 = vld [vmem:[%s373 + $0xd0] sm:$0xff]
        %v517 = vld [vmem:[%s373 + $0xd8] sm:$0xff]
        %v518 = vld [vmem:[%s373 + $0xe0] sm:$0xff]
        %v519 = vld [vmem:[%s373 + $0xe8] sm:$0xff]
        %v520 = vld [vmem:[%s373 + $0xf0] sm:$0xff]
        %v521 = vld [vmem:[%s373 + $0xf8] sm:$0xff]
        %v522 = vld [vmem:[%s373 + $0x100] sm:$0xff]
        %v523 = vld [vmem:[%s373 + $0x108] sm:$0xff]
        %v524 = vld [vmem:[%s373 + $0x110] sm:$0xff]
        %v525 = vld [vmem:[%s373 + $0x118] sm:$0xff]
        %v526 = vld [vmem:[%s373 + $0x120] sm:$0xff]
        %v527 = vld [vmem:[%s373 + $0x128] sm:$0xff]
        %v528 = vld [vmem:[%s373 + $0x130] sm:$0xff]
        %v529 = vld [vmem:[%s373 + $0x138] sm:$0xff]
        %v530 = vld [vmem:[%s373 + $0x140] sm:$0xff]
        %v531 = vld [vmem:[%s373 + $0x148] sm:$0xff]
        %v532 = vld [vmem:[%s373 + $0x150] sm:$0xff]
        %v533 = vld [vmem:[%s373 + $0x158] sm:$0xff]
        %v534 = vld [vmem:[%s373 + $0x160] sm:$0xff]
        %v535 = vld [vmem:[%s373 + $0x168] sm:$0xff]
        %v536 = vld [vmem:[%s373 + $0x170] sm:$0xff]
        %v537 = vld [vmem:[%s373 + $0x178] sm:$0xff]
        %v538 = vld [vmem:[%s373 + $0x180] sm:$0xff]
        %v539 = vld [vmem:[%s373 + $0x188] sm:$0xff]
        %v540 = vld [vmem:[%s373 + $0x190] sm:$0xff]
        %v541 = vld [vmem:[%s373 + $0x198] sm:$0xff]
        %v542 = vld [vmem:[%s373 + $0x1a0] sm:$0xff]
        %v543 = vld [vmem:[%s373 + $0x1a8] sm:$0xff]
        %v544 = vld [vmem:[%s373 + $0x1b0] sm:$0xff]
        %v545 = vld [vmem:[%s373 + $0x1b8] sm:$0xff]
        %v546 = vld [vmem:[%s373 + $0x1c0] sm:$0xff]
        %v547 = vld [vmem:[%s373 + $0x1c8] sm:$0xff]
        %v548 = vld [vmem:[%s373 + $0x1d0] sm:$0xff]
        %v549 = vld [vmem:[%s373 + $0x1d8] sm:$0xff]
        %v550 = vld [vmem:[%s373 + $0x1e0] sm:$0xff]
        %v551 = vld [vmem:[%s373 + $0x1e8] sm:$0xff]
        %v552 = vld [vmem:[%s373 + $0x1f0] sm:$0xff]
        %v553 = vld [vmem:[%s373 + $0x1f8] sm:$0xff]
        %v554 = vld [vmem:[%s373 + $0x200] sm:$0xff]
        %v555 = vld [vmem:[%s373 + $0x208] sm:$0xff]
        %v556 = vld [vmem:[%s373 + $0x210] sm:$0xff]
        %v557 = vld [vmem:[%s373 + $0x218] sm:$0xff]
        %v558 = vld [vmem:[%s373 + $0x220] sm:$0xff]
        %v559 = vld [vmem:[%s373 + $0x228] sm:$0xff]
        %v560 = vld [vmem:[%s373 + $0x230] sm:$0xff]
        %v561 = vld [vmem:[%s373 + $0x238] sm:$0xff]
        %v562 = vld [vmem:[%s373 + $0x240] sm:$0xff]
        %v563 = vld [vmem:[%s373 + $0x248] sm:$0xff]
        %v564 = vld [vmem:[%s373 + $0x250] sm:$0xff]
        %v565 = vld [vmem:[%s373 + $0x258] sm:$0xff]
        %v566 = vld [vmem:[%s373 + $0x260] sm:$0xff]
        %v567 = vld [vmem:[%s373 + $0x268] sm:$0xff]
        %v568 = vld [vmem:[%s373 + $0x270] sm:$0xff]
        %v569 = vld [vmem:[%s373 + $0x278] sm:$0xff]
        %v570 = vld [vmem:[%s373 + $0x280] sm:$0xff]
        %v571 = vld [vmem:[%s373 + $0x288] sm:$0xff]
        %v572 = vld [vmem:[%s373 + $0x290] sm:$0xff]
        %v573 = vld [vmem:[%s373 + $0x298] sm:$0xff]
        %v574 = vld [vmem:[%s373 + $0x2a0] sm:$0xff]
        %v575 = vld [vmem:[%s373 + $0x2a8] sm:$0xff]
        %v576 = vld [vmem:[%s373 + $0x2b0] sm:$0xff]
        %v577 = vld [vmem:[%s373 + $0x2b8] sm:$0xff]
        %v578 = vld [vmem:[%s373 + $0x2c0] sm:$0xff]
        %v579 = vld [vmem:[%s373 + $0x2c8] sm:$0xff]
        %v580 = vld [vmem:[%s373 + $0x2d0] sm:$0xff]
        %v581 = vld [vmem:[%s373 + $0x2d8] sm:$0xff]
        %v582 = vld [vmem:[%s373 + $0x2e0] sm:$0xff]
        %v583 = vld [vmem:[%s373 + $0x2e8] sm:$0xff]
        %v584 = vld [vmem:[%s373 + $0x2f0] sm:$0xff]
        %v585 = vld [vmem:[%s373 + $0x2f8] sm:$0xff]
        %v586 = vld [vmem:[%s373 + $0x300] sm:$0xff]
        %v587 = vld [vmem:[%s373 + $0x308] sm:$0xff]
        %v588 = vld [vmem:[%s373 + $0x310] sm:$0xff]
        %v589 = vld [vmem:[%s373 + $0x318] sm:$0xff]
        %v590 = vld [vmem:[%s373 + $0x320] sm:$0xff]
        %v591 = vld [vmem:[%s373 + $0x328] sm:$0xff]
        %v592 = vld [vmem:[%s373 + $0x330] sm:$0xff]
        %v593 = vld [vmem:[%s373 + $0x338] sm:$0xff]
        %v594 = vld [vmem:[%s373 + $0x340] sm:$0xff]
        %v595 = vld [vmem:[%s373 + $0x348] sm:$0xff]
        %v596 = vld [vmem:[%s373 + $0x350] sm:$0xff]
        %v597 = vld [vmem:[%s373 + $0x358] sm:$0xff]
        %v598 = vld [vmem:[%s373 + $0x360] sm:$0xff]
        %v599 = vld [vmem:[%s373 + $0x368] sm:$0xff]
        %v600 = vld [vmem:[%s373 + $0x370] sm:$0xff]
        %v601 = vld [vmem:[%s373 + $0x378] sm:$0xff]
        %v602 = vld [vmem:[%s373 + $0x380] sm:$0xff]
        %v603 = vld [vmem:[%s373 + $0x388] sm:$0xff]
        %v604 = vld [vmem:[%s373 + $0x390] sm:$0xff]
        %v605 = vld [vmem:[%s373 + $0x398] sm:$0xff]
        %v606 = vld [vmem:[%s373 + $0x3a0] sm:$0xff]
        %v607 = vld [vmem:[%s373 + $0x3a8] sm:$0xff]
        %v608 = vld [vmem:[%s373 + $0x3b0] sm:$0xff]
        %v609 = vld [vmem:[%s373 + $0x3b8] sm:$0xff]
        %v610 = vld [vmem:[%s373 + $0x3c0] sm:$0xff]
        %v611 = vld [vmem:[%s373 + $0x3c8] sm:$0xff]
        %v612 = vld [vmem:[%s373 + $0x3d0] sm:$0xff]
        %v613 = vld [vmem:[%s373 + $0x3d8] sm:$0xff]
        %v614 = vld [vmem:[%s373 + $0x3e0] sm:$0xff]
        %v615 = vld [vmem:[%s373 + $0x3e8] sm:$0xff]
        %v616 = vld [vmem:[%s373 + $0x3f0] sm:$0xff]
        %v617 = vld [vmem:[%s373 + $0x3f8] sm:$0xff]
        %v618 = vld [vmem:[%s373 + $0x400] sm:$0xff]
        %v619 = vld [vmem:[%s373 + $0x408] sm:$0xff]
        %v620 = vld [vmem:[%s373 + $0x410] sm:$0xff]
        %v621 = vld [vmem:[%s373 + $0x418] sm:$0xff]
        %v622 = vld [vmem:[%s373 + $0x420] sm:$0xff]
        %v623 = vld [vmem:[%s373 + $0x428] sm:$0xff]
        %v624 = vld [vmem:[%s373 + $0x430] sm:$0xff]
        %v625 = vld [vmem:[%s373 + $0x438] sm:$0xff]
        %v626 = vld [vmem:[%s373 + $0x440] sm:$0xff]
        %v627 = vld [vmem:[%s373 + $0x448] sm:$0xff]
        %v628 = vld [vmem:[%s373 + $0x450] sm:$0xff]
        %v629 = vld [vmem:[%s373 + $0x458] sm:$0xff]
        %v630 = vld [vmem:[%s373 + $0x460] sm:$0xff]
        %v631 = vld [vmem:[%s373 + $0x468] sm:$0xff]
        %v632 = vld [vmem:[%s373 + $0x470] sm:$0xff]
        %v633 = vld [vmem:[%s373 + $0x478] sm:$0xff]
        %v634 = vld [vmem:[%s373 + $0x480] sm:$0xff]
        %v635 = vld [vmem:[%s373 + $0x488] sm:$0xff]
        %v636 = vld [vmem:[%s373 + $0x490] sm:$0xff]
        %v637 = vld [vmem:[%s373 + $0x498] sm:$0xff]
        %v638 = vld [vmem:[%s373 + $0x4a0] sm:$0xff]
        %v639 = vld [vmem:[%s373 + $0x4a8] sm:$0xff]
        %v640 = vld [vmem:[%s373 + $0x4b0] sm:$0xff]
        %v641 = vld [vmem:[%s373 + $0x4b8] sm:$0xff]
        %v642 = vld [vmem:[%s373 + $0x4c0] sm:$0xff]
        %v643 = vld [vmem:[%s373 + $0x4c8] sm:$0xff]
        %v644 = vld [vmem:[%s373 + $0x4d0] sm:$0xff]
        %v645 = vld [vmem:[%s373 + $0x4d8] sm:$0xff]
        %v646 = vld [vmem:[%s373 + $0x4e0] sm:$0xff]
        %v647 = vld [vmem:[%s373 + $0x4e8] sm:$0xff]
        %v648 = vld [vmem:[%s373 + $0x4f0] sm:$0xff]
        %v649 = vld [vmem:[%s373 + $0x4f8] sm:$0xff]
        %v650 = vld [vmem:[%s373 + $0x500] sm:$0xff]
        %v651 = vld [vmem:[%s373 + $0x508] sm:$0xff]
        %v652 = vld [vmem:[%s373 + $0x510] sm:$0xff]
        %v653 = vld [vmem:[%s373 + $0x518] sm:$0xff]
        %v654 = vld [vmem:[%s373 + $0x520] sm:$0xff]
        %v655 = vld [vmem:[%s373 + $0x528] sm:$0xff]
        %v656 = vld [vmem:[%s373 + $0x530] sm:$0xff]
        %v657 = vld [vmem:[%s373 + $0x538] sm:$0xff]
        %v658 = vld [vmem:[%s373 + $0x540] sm:$0xff]
        %v659 = vld [vmem:[%s373 + $0x548] sm:$0xff]
        %v660 = vld [vmem:[%s373 + $0x550] sm:$0xff]
        %v661 = vld [vmem:[%s373 + $0x558] sm:$0xff]
        %v662 = vld [vmem:[%s373 + $0x560] sm:$0xff]
        %v663 = vld [vmem:[%s373 + $0x568] sm:$0xff]
        %v664 = vld [vmem:[%s373 + $0x570] sm:$0xff]
        %v665 = vld [vmem:[%s373 + $0x578] sm:$0xff]
        %v666 = vld [vmem:[%s373 + $0x580] sm:$0xff]
        %v667 = vld [vmem:[%s373 + $0x588] sm:$0xff]
        %v668 = vld [vmem:[%s373 + $0x590] sm:$0xff]
        %v669 = vld [vmem:[%s373 + $0x598] sm:$0xff]
        %v670 = vld [vmem:[%s373 + $0x5a0] sm:$0xff]
        %v671 = vld [vmem:[%s373 + $0x5a8] sm:$0xff]
        %v672 = vld [vmem:[%s373 + $0x5b0] sm:$0xff]
        %v673 = vld [vmem:[%s373 + $0x5b8] sm:$0xff]
        %v674 = vld [vmem:[%s373 + $0x5c0] sm:$0xff]
        %v675 = vld [vmem:[%s373 + $0x5c8] sm:$0xff]
        %v676 = vld [vmem:[%s373 + $0x5d0] sm:$0xff]
        %v677 = vld [vmem:[%s373 + $0x5d8] sm:$0xff]
        %v678 = vld [vmem:[%s373 + $0x5e0] sm:$0xff]
        %v679 = vld [vmem:[%s373 + $0x5e8] sm:$0xff]
        %v680 = vld [vmem:[%s373 + $0x5f0] sm:$0xff]
        %v681 = vld [vmem:[%s373 + $0x5f8] sm:$0xff]
        %v682 = vld [vmem:[%s373 + $0x600] sm:$0xff]
        %v683 = vld [vmem:[%s373 + $0x608] sm:$0xff]
        %v684 = vld [vmem:[%s373 + $0x610] sm:$0xff]
        %v685 = vld [vmem:[%s373 + $0x618] sm:$0xff]
        %v686 = vld [vmem:[%s373 + $0x620] sm:$0xff]
        %v687 = vld [vmem:[%s373 + $0x628] sm:$0xff]
        %v688 = vld [vmem:[%s373 + $0x630] sm:$0xff]
        %v689 = vld [vmem:[%s373 + $0x638] sm:$0xff]
        %v690 = vld [vmem:[%s373 + $0x640] sm:$0xff]
        %v691 = vld [vmem:[%s373 + $0x648] sm:$0xff]
        %v692 = vld [vmem:[%s373 + $0x650] sm:$0xff]
        %v693 = vld [vmem:[%s373 + $0x658] sm:$0xff]
        %v694 = vld [vmem:[%s373 + $0x660] sm:$0xff]
        %v695 = vld [vmem:[%s373 + $0x668] sm:$0xff]
        %v696 = vld [vmem:[%s373 + $0x670] sm:$0xff]
        %v697 = vld [vmem:[%s373 + $0x678] sm:$0xff]
        %v698 = vld [vmem:[%s373 + $0x680] sm:$0xff]
        %v699 = vld [vmem:[%s373 + $0x688] sm:$0xff]
        %v700 = vld [vmem:[%s373 + $0x690] sm:$0xff]
        %v701 = vld [vmem:[%s373 + $0x698] sm:$0xff]
        %v702 = vld [vmem:[%s373 + $0x6a0] sm:$0xff]
        %v703 = vld [vmem:[%s373 + $0x6a8] sm:$0xff]
        %v704 = vld [vmem:[%s373 + $0x6b0] sm:$0xff]
        %v705 = vld [vmem:[%s373 + $0x6b8] sm:$0xff]
        %v706 = vld [vmem:[%s373 + $0x6c0] sm:$0xff]
        %v707 = vld [vmem:[%s373 + $0x6c8] sm:$0xff]
        %v708 = vld [vmem:[%s373 + $0x6d0] sm:$0xff]
        %v709 = vld [vmem:[%s373 + $0x6d8] sm:$0xff]
        %v710 = vld [vmem:[%s373 + $0x6e0] sm:$0xff]
        %v711 = vld [vmem:[%s373 + $0x6e8] sm:$0xff]
        %v712 = vld [vmem:[%s373 + $0x6f0] sm:$0xff]
        %v713 = vld [vmem:[%s373 + $0x6f8] sm:$0xff]
        %v714 = vld [vmem:[%s373 + $0x700] sm:$0xff]
        %v715 = vld [vmem:[%s373 + $0x708] sm:$0xff]
        %v716 = vld [vmem:[%s373 + $0x710] sm:$0xff]
        %v717 = vld [vmem:[%s373 + $0x718] sm:$0xff]
        %v718 = vld [vmem:[%s373 + $0x720] sm:$0xff]
        %v719 = vld [vmem:[%s373 + $0x728] sm:$0xff]
        %v720 = vld [vmem:[%s373 + $0x730] sm:$0xff]
        %v721 = vld [vmem:[%s373 + $0x738] sm:$0xff]
        %v722 = vld [vmem:[%s373 + $0x740] sm:$0xff]
        %v723 = vld [vmem:[%s373 + $0x748] sm:$0xff]
        %v724 = vld [vmem:[%s373 + $0x750] sm:$0xff]
        %v725 = vld [vmem:[%s373 + $0x758] sm:$0xff]
        %v726 = vld [vmem:[%s373 + $0x760] sm:$0xff]
        %v727 = vld [vmem:[%s373 + $0x768] sm:$0xff]
        %v728 = vld [vmem:[%s373 + $0x770] sm:$0xff]
        %v729 = vld [vmem:[%s373 + $0x778] sm:$0xff]
        %v730 = vld [vmem:[%s373 + $0x780] sm:$0xff]
        %v731 = vld [vmem:[%s373 + $0x788] sm:$0xff]
        %v732 = vld [vmem:[%s373 + $0x790] sm:$0xff]
        %v733 = vld [vmem:[%s373 + $0x798] sm:$0xff]
        %v734 = vld [vmem:[%s373 + $0x7a0] sm:$0xff]
        %v735 = vld [vmem:[%s373 + $0x7a8] sm:$0xff]
        %v736 = vld [vmem:[%s373 + $0x7b0] sm:$0xff]
        %v737 = vld [vmem:[%s373 + $0x7b8] sm:$0xff]
        %v738 = vld [vmem:[%s373 + $0x7c0] sm:$0xff]
        %v739 = vld [vmem:[%s373 + $0x7c8] sm:$0xff]
        %v740 = vld [vmem:[%s373 + $0x7d0] sm:$0xff]
        %v741 = vld [vmem:[%s373 + $0x7d8] sm:$0xff]
        %v742 = vld [vmem:[%s373 + $0x7e0] sm:$0xff]
        %v743 = vld [vmem:[%s373 + $0x7e8] sm:$0xff]
        %v744 = vld [vmem:[%s373 + $0x7f0] sm:$0xff]
        %v745 = vld [vmem:[%s373 + $0x7f8] sm:$0xff]
        %v746 = vld [vmem:[%s373 + $0x800] sm:$0xff]
        %v747 = vld [vmem:[%s373 + $0x808] sm:$0xff]
        %v748 = vld [vmem:[%s373 + $0x810] sm:$0xff]
        %v749 = vld [vmem:[%s373 + $0x818] sm:$0xff]
        %v750 = vld [vmem:[%s373 + $0x820] sm:$0xff]
        %v751 = vld [vmem:[%s373 + $0x828] sm:$0xff]
        %v752 = vld [vmem:[%s373 + $0x830] sm:$0xff]
        %v753 = vld [vmem:[%s373 + $0x838] sm:$0xff]
        %v754 = vld [vmem:[%s373 + $0x840] sm:$0xff]
        %v755 = vld [vmem:[%s373 + $0x848] sm:$0xff]
        %v756 = vld [vmem:[%s373 + $0x850] sm:$0xff]
        %v757 = vld [vmem:[%s373 + $0x858] sm:$0xff]
        %v758 = vld [vmem:[%s373 + $0x860] sm:$0xff]
        %v759 = vld [vmem:[%s373 + $0x868] sm:$0xff]
        %v760 = vld [vmem:[%s373 + $0x870] sm:$0xff]
        %v761 = vld [vmem:[%s373 + $0x878] sm:$0xff]
        %v762 = vld [vmem:[%s373 + $0x880] sm:$0xff]
        %v763 = vld [vmem:[%s373 + $0x888] sm:$0xff]
        %v764 = vld [vmem:[%s373 + $0x890] sm:$0xff]
        %v765 = vld [vmem:[%s373 + $0x898] sm:$0xff]
        %v766 = vld [vmem:[%s373 + $0x8a0] sm:$0xff]
        %v767 = vld [vmem:[%s373 + $0x8a8] sm:$0xff]
        %v768 = vld [vmem:[%s373 + $0x8b0] sm:$0xff]
        %v769 = vld [vmem:[%s373 + $0x8b8] sm:$0xff]
        %v770 = vld [vmem:[%s373 + $0x8c0] sm:$0xff]
        %v771 = vld [vmem:[%s373 + $0x8c8] sm:$0xff]
        %v772 = vld [vmem:[%s373 + $0x8d0] sm:$0xff]
        %v773 = vld [vmem:[%s373 + $0x8d8] sm:$0xff]
        %v774 = vld [vmem:[%s373 + $0x8e0] sm:$0xff]
        %v775 = vld [vmem:[%s373 + $0x8e8] sm:$0xff]
        %v776 = vld [vmem:[%s373 + $0x8f0] sm:$0xff]
        %v777 = vld [vmem:[%s373 + $0x8f8] sm:$0xff]
        %v778 = vld [vmem:[%s373 + $0x900] sm:$0xff]
        %v779 = vld [vmem:[%s373 + $0x908] sm:$0xff]
        %v780 = vld [vmem:[%s373 + $0x910] sm:$0xff]
        %v781 = vld [vmem:[%s373 + $0x918] sm:$0xff]
        %v782 = vld [vmem:[%s373 + $0x920] sm:$0xff]
        %v783 = vld [vmem:[%s373 + $0x928] sm:$0xff]
        %v784 = vld [vmem:[%s373 + $0x930] sm:$0xff]
        %v785 = vld [vmem:[%s373 + $0x938] sm:$0xff]
        %v786 = vld [vmem:[%s373 + $0x940] sm:$0xff]
        %v787 = vld [vmem:[%s373 + $0x948] sm:$0xff]
        %v788 = vld [vmem:[%s373 + $0x950] sm:$0xff]
        %v789 = vld [vmem:[%s373 + $0x958] sm:$0xff]
        %v790 = vld [vmem:[%s373 + $0x960] sm:$0xff]
        %v791 = vld [vmem:[%s373 + $0x968] sm:$0xff]
        %v792 = vld [vmem:[%s373 + $0x970] sm:$0xff]
        %v793 = vld [vmem:[%s373 + $0x978] sm:$0xff]
        %v794 = vld [vmem:[%s373 + $0x980] sm:$0xff]
        %v795 = vld [vmem:[%s373 + $0x988] sm:$0xff]
        %v796 = vld [vmem:[%s373 + $0x990] sm:$0xff]
        %v797 = vld [vmem:[%s373 + $0x998] sm:$0xff]
        %v798 = vld [vmem:[%s373 + $0x9a0] sm:$0xff]
        %v799 = vld [vmem:[%s373 + $0x9a8] sm:$0xff]
        %v800 = vld [vmem:[%s373 + $0x9b0] sm:$0xff]
        %v801 = vld [vmem:[%s373 + $0x9b8] sm:$0xff]
        %v802 = vld [vmem:[%s373 + $0x9c0] sm:$0xff]
        %v803 = vld [vmem:[%s373 + $0x9c8] sm:$0xff]
        %v804 = vld [vmem:[%s373 + $0x9d0] sm:$0xff]
        %v805 = vld [vmem:[%s373 + $0x9d8] sm:$0xff]
        %v806 = vld [vmem:[%s373 + $0x9e0] sm:$0xff]
        %v807 = vld [vmem:[%s373 + $0x9e8] sm:$0xff]
        %v808 = vld [vmem:[%s373 + $0x9f0] sm:$0xff]
        %v809 = vld [vmem:[%s373 + $0x9f8] sm:$0xff]
        %v810 = vld [vmem:[%s373 + $0xa00] sm:$0xff]
        %v811 = vld [vmem:[%s373 + $0xa08] sm:$0xff]
        %v812 = vld [vmem:[%s373 + $0xa10] sm:$0xff]
        %v813 = vld [vmem:[%s373 + $0xa18] sm:$0xff]
        %v814 = vld [vmem:[%s373 + $0xa20] sm:$0xff]
        %v815 = vld [vmem:[%s373 + $0xa28] sm:$0xff]
        %v816 = vld [vmem:[%s373 + $0xa30] sm:$0xff]
        %v817 = vld [vmem:[%s373 + $0xa38] sm:$0xff]
        %v818 = vld [vmem:[%s373 + $0xa40] sm:$0xff]
        %v819 = vld [vmem:[%s373 + $0xa48] sm:$0xff]
        %v820 = vld [vmem:[%s373 + $0xa50] sm:$0xff]
        %v821 = vld [vmem:[%s373 + $0xa58] sm:$0xff]
        %v822 = vld [vmem:[%s373 + $0xa60] sm:$0xff]
        %v823 = vld [vmem:[%s373 + $0xa68] sm:$0xff]
        %v824 = vld [vmem:[%s373 + $0xa70] sm:$0xff]
        %v825 = vld [vmem:[%s373 + $0xa78] sm:$0xff]
        %v826 = vld [vmem:[%s373 + $0xa80] sm:$0xff]
        %v827 = vld [vmem:[%s373 + $0xa88] sm:$0xff]
        %v828 = vld [vmem:[%s373 + $0xa90] sm:$0xff]
        %v829 = vld [vmem:[%s373 + $0xa98] sm:$0xff]
        %v830 = vld [vmem:[%s373 + $0xaa0] sm:$0xff]
        %v831 = vld [vmem:[%s373 + $0xaa8] sm:$0xff]
        %v832 = vld [vmem:[%s373 + $0xab0] sm:$0xff]
        %v833 = vld [vmem:[%s373 + $0xab8] sm:$0xff]
        %v834 = vld [vmem:[%s373 + $0xac0] sm:$0xff]
        %v835 = vld [vmem:[%s373 + $0xac8] sm:$0xff]
        %v836 = vld [vmem:[%s373 + $0xad0] sm:$0xff]
        %v837 = vld [vmem:[%s373 + $0xad8] sm:$0xff]
        %v838 = vld [vmem:[%s373 + $0xae0] sm:$0xff]
        %v839 = vld [vmem:[%s373 + $0xae8] sm:$0xff]
        %v840 = vld [vmem:[%s373 + $0xaf0] sm:$0xff]
        %v841 = vld [vmem:[%s373 + $0xaf8] sm:$0xff]
        %v842 = vld [vmem:[%s373 + $0xb00] sm:$0xff]
        %v843 = vld [vmem:[%s373 + $0xb08] sm:$0xff]
        %v844 = vld [vmem:[%s373 + $0xb10] sm:$0xff]
        %v845 = vld [vmem:[%s373 + $0xb18] sm:$0xff]
        %v846 = vld [vmem:[%s373 + $0xb20] sm:$0xff]
        %v847 = vld [vmem:[%s373 + $0xb28] sm:$0xff]
        %v848 = vld [vmem:[%s373 + $0xb30] sm:$0xff]
        %v849 = vld [vmem:[%s373 + $0xb38] sm:$0xff]
        %v850 = vld [vmem:[%s373 + $0xb40] sm:$0xff]
        %v851 = vld [vmem:[%s373 + $0xb48] sm:$0xff]
        %v852 = vld [vmem:[%s373 + $0xb50] sm:$0xff]
        %v853 = vld [vmem:[%s373 + $0xb58] sm:$0xff]
        %v854 = vld [vmem:[%s373 + $0xb60] sm:$0xff]
        %v855 = vld [vmem:[%s373 + $0xb68] sm:$0xff]
        %v856 = vld [vmem:[%s373 + $0xb70] sm:$0xff]
        %v857 = vld [vmem:[%s373 + $0xb78] sm:$0xff]
        %v858 = vld [vmem:[%s373 + $0xb80] sm:$0xff]
        %v859 = vld [vmem:[%s373 + $0xb88] sm:$0xff]
        %v860 = vld [vmem:[%s373 + $0xb90] sm:$0xff]
        %v861 = vld [vmem:[%s373 + $0xb98] sm:$0xff]
        %v862 = vld [vmem:[%s373 + $0xba0] sm:$0xff]
        %v863 = vld [vmem:[%s373 + $0xba8] sm:$0xff]
        %v864 = vld [vmem:[%s373 + $0xbb0] sm:$0xff]
        %v865 = vld [vmem:[%s373 + $0xbb8] sm:$0xff]
        %v866 = vld [vmem:[%s373 + $0xbc0] sm:$0xff]
        %v867 = vld [vmem:[%s373 + $0xbc8] sm:$0xff]
        %v868 = vld [vmem:[%s373 + $0xbd0] sm:$0xff]
        %v869 = vld [vmem:[%s373 + $0xbd8] sm:$0xff]
        %v870 = vld [vmem:[%s373 + $0xbe0] sm:$0xff]
        %v871 = vld [vmem:[%s373 + $0xbe8] sm:$0xff]
        %v872 = vld [vmem:[%s373 + $0xbf0] sm:$0xff]
        %v873 = vld [vmem:[%s373 + $0xbf8] sm:$0xff]
        %v874 = vld [vmem:[%s373 + $0xc00] sm:$0xff]
        %v875 = vld [vmem:[%s373 + $0xc08] sm:$0xff]
        %v876 = vld [vmem:[%s373 + $0xc10] sm:$0xff]
        %v877 = vld [vmem:[%s373 + $0xc18] sm:$0xff]
        %v878 = vld [vmem:[%s373 + $0xc20] sm:$0xff]
        %v879 = vld [vmem:[%s373 + $0xc28] sm:$0xff]
        %v880 = vld [vmem:[%s373 + $0xc30] sm:$0xff]
        %v881 = vld [vmem:[%s373 + $0xc38] sm:$0xff]
        %v882 = vld [vmem:[%s373 + $0xc40] sm:$0xff]
        %v883 = vld [vmem:[%s373 + $0xc48] sm:$0xff]
        %v884 = vld [vmem:[%s373 + $0xc50] sm:$0xff]
        %v885 = vld [vmem:[%s373 + $0xc58] sm:$0xff]
        %v886 = vld [vmem:[%s373 + $0xc60] sm:$0xff]
        %v887 = vld [vmem:[%s373 + $0xc68] sm:$0xff]
        %v888 = vld [vmem:[%s373 + $0xc70] sm:$0xff]
        %v889 = vld [vmem:[%s373 + $0xc78] sm:$0xff]
        %v890 = vld [vmem:[%s373 + $0xc80] sm:$0xff]
        %v891 = vld [vmem:[%s373 + $0xc88] sm:$0xff]
        %v892 = vld [vmem:[%s373 + $0xc90] sm:$0xff]
        %v893 = vld [vmem:[%s373 + $0xc98] sm:$0xff]
        %v894 = vld [vmem:[%s373 + $0xca0] sm:$0xff]
        %v895 = vld [vmem:[%s373 + $0xca8] sm:$0xff]
        %v896 = vld [vmem:[%s373 + $0xcb0] sm:$0xff]
        %v897 = vld [vmem:[%s373 + $0xcb8] sm:$0xff]
        %v898 = vld [vmem:[%s373 + $0xcc0] sm:$0xff]
        %v899 = vld [vmem:[%s373 + $0xcc8] sm:$0xff]
        %v900 = vld [vmem:[%s373 + $0xcd0] sm:$0xff]
        %v901 = vld [vmem:[%s373 + $0xcd8] sm:$0xff]
        %v902 = vld [vmem:[%s373 + $0xce0] sm:$0xff]
        %v903 = vld [vmem:[%s373 + $0xce8] sm:$0xff]
        %v904 = vld [vmem:[%s373 + $0xcf0] sm:$0xff]
        %v905 = vld [vmem:[%s373 + $0xcf8] sm:$0xff]
        %v906 = vld [vmem:[%s373 + $0xd00] sm:$0xff]
        %v907 = vld [vmem:[%s373 + $0xd08] sm:$0xff]
        %v908 = vld [vmem:[%s373 + $0xd10] sm:$0xff]
        %v909 = vld [vmem:[%s373 + $0xd18] sm:$0xff]
        %v910 = vld [vmem:[%s373 + $0xd20] sm:$0xff]
        %v911 = vld [vmem:[%s373 + $0xd28] sm:$0xff]
        %v912 = vld [vmem:[%s373 + $0xd30] sm:$0xff]
        %v913 = vld [vmem:[%s373 + $0xd38] sm:$0xff]
        %v914 = vld [vmem:[%s373 + $0xd40] sm:$0xff]
        %v915 = vld [vmem:[%s373 + $0xd48] sm:$0xff]
        %v916 = vld [vmem:[%s373 + $0xd50] sm:$0xff]
        %v917 = vld [vmem:[%s373 + $0xd58] sm:$0xff]
        %v918 = vld [vmem:[%s373 + $0xd60] sm:$0xff]
        %v919 = vld [vmem:[%s373 + $0xd68] sm:$0xff]
        %v920 = vld [vmem:[%s373 + $0xd70] sm:$0xff]
        %v921 = vld [vmem:[%s373 + $0xd78] sm:$0xff]
        %v922 = vld [vmem:[%s382] ss:$4 sm:$0x3f]
        %v924 = vlaneseq
        %v925 = vshrl.u32 %v924, 7
        %v926 = vsub.s32 0, %v925
        %v927 = vrot.slane %v922, %v926
        %v928 = vlaneseq
        %v929 = vshrl.u32 %v928, 7
        %v930 = vsub.s32 1, %v929
        %v931 = vrot.slane %v922, %v930
        %v932 = vlaneseq
        %v933 = vshrl.u32 %v932, 7
        %v934 = vsub.s32 2, %v933
        %v935 = vrot.slane %v922, %v934
        %v936 = vlaneseq
        %v937 = vshrl.u32 %v936, 7
        %v938 = vsub.s32 3, %v937
        %v939 = vrot.slane %v922, %v938
        %v940 = vlaneseq
        %v941 = vshrl.u32 %v940, 7
        %v942 = vsub.s32 4, %v941
        %v943 = vrot.slane %v922, %v942
        %v944 = vlaneseq
        %v945 = vshrl.u32 %v944, 7
        %v946 = vsub.s32 5, %v945
        %v947 = vrot.slane %v922, %v946
        %v1386 = vunpack.c.l.b16 %v490
        %v1387 = vunpack.c.h.b16 %v490
        %v1388 = vunpack.c.l.b16 %v491
        %v1389 = vunpack.c.h.b16 %v491
        %v1390 = vunpack.c.l.b16 %v492
        %v1391 = vunpack.c.h.b16 %v492
        %v1392 = vunpack.c.l.b16 %v493
        %v1393 = vunpack.c.h.b16 %v493
        %v1394 = vunpack.c.l.b16 %v494
        %v1395 = vunpack.c.h.b16 %v494
        %v1396 = vunpack.c.l.b16 %v495
        %v1397 = vunpack.c.h.b16 %v495
        %v1398 = vunpack.c.l.b16 %v496
        %v1399 = vunpack.c.h.b16 %v496
        %v1400 = vunpack.c.l.b16 %v497
        %v1401 = vunpack.c.h.b16 %v497
        %v1402 = vunpack.c.l.b16 %v498
        %v1403 = vunpack.c.h.b16 %v498
        %v1404 = vunpack.c.l.b16 %v499
        %v1405 = vunpack.c.h.b16 %v499
        %v1406 = vunpack.c.l.b16 %v500
        %v1407 = vunpack.c.h.b16 %v500
        %v1408 = vunpack.c.l.b16 %v501
        %v1409 = vunpack.c.h.b16 %v501
        %v1410 = vunpack.c.l.b16 %v502
        %v1411 = vunpack.c.h.b16 %v502
        %v1412 = vunpack.c.l.b16 %v503
        %v1413 = vunpack.c.h.b16 %v503
        %v1414 = vunpack.c.l.b16 %v504
        %v1415 = vunpack.c.h.b16 %v504
        %v1416 = vunpack.c.l.b16 %v505
        %v1417 = vunpack.c.h.b16 %v505
        %v1418 = vunpack.c.l.b16 %v506
        %v1419 = vunpack.c.h.b16 %v506
        %v1420 = vunpack.c.l.b16 %v507
        %v1421 = vunpack.c.h.b16 %v507
        %v1422 = vunpack.c.l.b16 %v508
        %v1423 = vunpack.c.h.b16 %v508
        %v1424 = vunpack.c.l.b16 %v509
        %v1425 = vunpack.c.h.b16 %v509
        %v1426 = vunpack.c.l.b16 %v510
        %v1427 = vunpack.c.h.b16 %v510
        %v1428 = vunpack.c.l.b16 %v511
        %v1429 = vunpack.c.h.b16 %v511
        %v1430 = vunpack.c.l.b16 %v512
        %v1431 = vunpack.c.h.b16 %v512
        %v1432 = vunpack.c.l.b16 %v513
        %v1433 = vunpack.c.h.b16 %v513
        %v1434 = vunpack.c.l.b16 %v514
        %v1435 = vunpack.c.h.b16 %v514
        %v1436 = vunpack.c.l.b16 %v515
        %v1437 = vunpack.c.h.b16 %v515
        %v1438 = vunpack.c.l.b16 %v516
        %v1439 = vunpack.c.h.b16 %v516
        %v1440 = vunpack.c.l.b16 %v517
        %v1441 = vunpack.c.h.b16 %v517
        %v1442 = vunpack.c.l.b16 %v518
        %v1443 = vunpack.c.h.b16 %v518
        %v1444 = vunpack.c.l.b16 %v519
        %v1445 = vunpack.c.h.b16 %v519
        %v1446 = vunpack.c.l.b16 %v520
        %v1447 = vunpack.c.h.b16 %v520
        %v1448 = vunpack.c.l.b16 %v521
        %v1449 = vunpack.c.h.b16 %v521
        %v1450 = vunpack.c.l.b16 %v522
        %v1451 = vunpack.c.h.b16 %v522
        %v1452 = vunpack.c.l.b16 %v523
        %v1453 = vunpack.c.h.b16 %v523
        %v1454 = vunpack.c.l.b16 %v524
        %v1455 = vunpack.c.h.b16 %v524
        %v1456 = vunpack.c.l.b16 %v525
        %v1457 = vunpack.c.h.b16 %v525
        %v1458 = vunpack.c.l.b16 %v526
        %v1459 = vunpack.c.h.b16 %v526
        %v1460 = vunpack.c.l.b16 %v527
        %v1461 = vunpack.c.h.b16 %v527
        %v1462 = vunpack.c.l.b16 %v528
        %v1463 = vunpack.c.h.b16 %v528
        %v1464 = vunpack.c.l.b16 %v529
        %v1465 = vunpack.c.h.b16 %v529
        %v1466 = vunpack.c.l.b16 %v530
        %v1467 = vunpack.c.h.b16 %v530
        %v1468 = vunpack.c.l.b16 %v531
        %v1469 = vunpack.c.h.b16 %v531
        %v1470 = vunpack.c.l.b16 %v532
        %v1471 = vunpack.c.h.b16 %v532
        %v1472 = vunpack.c.l.b16 %v533
        %v1473 = vunpack.c.h.b16 %v533
        %v1474 = vunpack.c.l.b16 %v534
        %v1475 = vunpack.c.h.b16 %v534
        %v1476 = vunpack.c.l.b16 %v535
        %v1477 = vunpack.c.h.b16 %v535
        %v1478 = vunpack.c.l.b16 %v536
        %v1479 = vunpack.c.h.b16 %v536
        %v1480 = vunpack.c.l.b16 %v537
        %v1481 = vunpack.c.h.b16 %v537
        %v1482 = vunpack.c.l.b16 %v538
        %v1483 = vunpack.c.h.b16 %v538
        %v1484 = vunpack.c.l.b16 %v539
        %v1485 = vunpack.c.h.b16 %v539
        %v1486 = vunpack.c.l.b16 %v540
        %v1487 = vunpack.c.h.b16 %v540
        %v1488 = vunpack.c.l.b16 %v541
        %v1489 = vunpack.c.h.b16 %v541
        %v1490 = vunpack.c.l.b16 %v542
        %v1491 = vunpack.c.h.b16 %v542
        %v1492 = vunpack.c.l.b16 %v543
        %v1493 = vunpack.c.h.b16 %v543
        %v1494 = vunpack.c.l.b16 %v544
        %v1495 = vunpack.c.h.b16 %v544
        %v1496 = vunpack.c.l.b16 %v545
        %v1497 = vunpack.c.h.b16 %v545
        %v1498 = vunpack.c.l.b16 %v546
        %v1499 = vunpack.c.h.b16 %v546
        %v1500 = vunpack.c.l.b16 %v547
        %v1501 = vunpack.c.h.b16 %v547
        %v1502 = vunpack.c.l.b16 %v548
        %v1503 = vunpack.c.h.b16 %v548
        %v1504 = vunpack.c.l.b16 %v549
        %v1505 = vunpack.c.h.b16 %v549
        %v1506 = vunpack.c.l.b16 %v550
        %v1507 = vunpack.c.h.b16 %v550
        %v1508 = vunpack.c.l.b16 %v551
        %v1509 = vunpack.c.h.b16 %v551
        %v1510 = vunpack.c.l.b16 %v552
        %v1511 = vunpack.c.h.b16 %v552
        %v1512 = vunpack.c.l.b16 %v553
        %v1513 = vunpack.c.h.b16 %v553
        %v1514 = vunpack.c.l.b16 %v554
        %v1515 = vunpack.c.h.b16 %v554
        %v1516 = vunpack.c.l.b16 %v555
        %v1517 = vunpack.c.h.b16 %v555
        %v1518 = vunpack.c.l.b16 %v556
        %v1519 = vunpack.c.h.b16 %v556
        %v1520 = vunpack.c.l.b16 %v557
        %v1521 = vunpack.c.h.b16 %v557
        %v1522 = vunpack.c.l.b16 %v558
        %v1523 = vunpack.c.h.b16 %v558
        %v1524 = vunpack.c.l.b16 %v559
        %v1525 = vunpack.c.h.b16 %v559
        %v1526 = vunpack.c.l.b16 %v560
        %v1527 = vunpack.c.h.b16 %v560
        %v1528 = vunpack.c.l.b16 %v561
        %v1529 = vunpack.c.h.b16 %v561
        %v1530 = vunpack.c.l.b16 %v562
        %v1531 = vunpack.c.h.b16 %v562
        %v1532 = vunpack.c.l.b16 %v563
        %v1533 = vunpack.c.h.b16 %v563
        %v1534 = vunpack.c.l.b16 %v564
        %v1535 = vunpack.c.h.b16 %v564
        %v1536 = vunpack.c.l.b16 %v565
        %v1537 = vunpack.c.h.b16 %v565
        %v1538 = vunpack.c.l.b16 %v566
        %v1539 = vunpack.c.h.b16 %v566
        %v1540 = vunpack.c.l.b16 %v567
        %v1541 = vunpack.c.h.b16 %v567
        %v1542 = vunpack.c.l.b16 %v568
        %v1543 = vunpack.c.h.b16 %v568
        %v1544 = vunpack.c.l.b16 %v569
        %v1545 = vunpack.c.h.b16 %v569
        %v1546 = vunpack.c.l.b16 %v570
        %v1547 = vunpack.c.h.b16 %v570
        %v1548 = vunpack.c.l.b16 %v571
        %v1549 = vunpack.c.h.b16 %v571
        %v1550 = vunpack.c.l.b16 %v572
        %v1551 = vunpack.c.h.b16 %v572
        %v1552 = vunpack.c.l.b16 %v573
        %v1553 = vunpack.c.h.b16 %v573
        %v1554 = vunpack.c.l.b16 %v574
        %v1555 = vunpack.c.h.b16 %v574
        %v1556 = vunpack.c.l.b16 %v575
        %v1557 = vunpack.c.h.b16 %v575
        %v1558 = vunpack.c.l.b16 %v576
        %v1559 = vunpack.c.h.b16 %v576
        %v1560 = vunpack.c.l.b16 %v577
        %v1561 = vunpack.c.h.b16 %v577
        %v1562 = vunpack.c.l.b16 %v578
        %v1563 = vunpack.c.h.b16 %v578
        %v1564 = vunpack.c.l.b16 %v579
        %v1565 = vunpack.c.h.b16 %v579
        %v1566 = vunpack.c.l.b16 %v580
        %v1567 = vunpack.c.h.b16 %v580
        %v1568 = vunpack.c.l.b16 %v581
        %v1569 = vunpack.c.h.b16 %v581
        %v1570 = vunpack.c.l.b16 %v582
        %v1571 = vunpack.c.h.b16 %v582
        %v1572 = vunpack.c.l.b16 %v583
        %v1573 = vunpack.c.h.b16 %v583
        %v1574 = vunpack.c.l.b16 %v584
        %v1575 = vunpack.c.h.b16 %v584
        %v1576 = vunpack.c.l.b16 %v585
        %v1577 = vunpack.c.h.b16 %v585
        %v1578 = vunpack.c.l.b16 %v586
        %v1579 = vunpack.c.h.b16 %v586
        %v1580 = vunpack.c.l.b16 %v587
        %v1581 = vunpack.c.h.b16 %v587
        %v1582 = vunpack.c.l.b16 %v588
        %v1583 = vunpack.c.h.b16 %v588
        %v1584 = vunpack.c.l.b16 %v589
        %v1585 = vunpack.c.h.b16 %v589
        %v1586 = vunpack.c.l.b16 %v590
        %v1587 = vunpack.c.h.b16 %v590
        %v1588 = vunpack.c.l.b16 %v591
        %v1589 = vunpack.c.h.b16 %v591
        %v1590 = vunpack.c.l.b16 %v592
        %v1591 = vunpack.c.h.b16 %v592
        %v1592 = vunpack.c.l.b16 %v593
        %v1593 = vunpack.c.h.b16 %v593
        %v1594 = vunpack.c.l.b16 %v594
        %v1595 = vunpack.c.h.b16 %v594
        %v1596 = vunpack.c.l.b16 %v595
        %v1597 = vunpack.c.h.b16 %v595
        %v1598 = vunpack.c.l.b16 %v596
        %v1599 = vunpack.c.h.b16 %v596
        %v1600 = vunpack.c.l.b16 %v597
        %v1601 = vunpack.c.h.b16 %v597
        %v1602 = vunpack.c.l.b16 %v598
        %v1603 = vunpack.c.h.b16 %v598
        %v1604 = vunpack.c.l.b16 %v599
        %v1605 = vunpack.c.h.b16 %v599
        %v1606 = vunpack.c.l.b16 %v600
        %v1607 = vunpack.c.h.b16 %v600
        %v1608 = vunpack.c.l.b16 %v601
        %v1609 = vunpack.c.h.b16 %v601
        %v1610 = vunpack.c.l.b16 %v602
        %v1611 = vunpack.c.h.b16 %v602
        %v1612 = vunpack.c.l.b16 %v603
        %v1613 = vunpack.c.h.b16 %v603
        %v1614 = vunpack.c.l.b16 %v604
        %v1615 = vunpack.c.h.b16 %v604
        %v1616 = vunpack.c.l.b16 %v605
        %v1617 = vunpack.c.h.b16 %v605
        %v1618 = vunpack.c.l.b16 %v606
        %v1619 = vunpack.c.h.b16 %v606
        %v1620 = vunpack.c.l.b16 %v607
        %v1621 = vunpack.c.h.b16 %v607
        %v1622 = vunpack.c.l.b16 %v608
        %v1623 = vunpack.c.h.b16 %v608
        %v1624 = vunpack.c.l.b16 %v609
        %v1625 = vunpack.c.h.b16 %v609
        %v1626 = vunpack.c.l.b16 %v610
        %v1627 = vunpack.c.h.b16 %v610
        %v1628 = vunpack.c.l.b16 %v611
        %v1629 = vunpack.c.h.b16 %v611
        %v1630 = vunpack.c.l.b16 %v612
        %v1631 = vunpack.c.h.b16 %v612
        %v1632 = vunpack.c.l.b16 %v613
        %v1633 = vunpack.c.h.b16 %v613
        %v1634 = vunpack.c.l.b16 %v614
        %v1635 = vunpack.c.h.b16 %v614
        %v1636 = vunpack.c.l.b16 %v615
        %v1637 = vunpack.c.h.b16 %v615
        %v1638 = vunpack.c.l.b16 %v616
        %v1639 = vunpack.c.h.b16 %v616
        %v1640 = vunpack.c.l.b16 %v617
        %v1641 = vunpack.c.h.b16 %v617
        %v1642 = vunpack.c.l.b16 %v618
        %v1643 = vunpack.c.h.b16 %v618
        %v1644 = vunpack.c.l.b16 %v619
        %v1645 = vunpack.c.h.b16 %v619
        %v1646 = vunpack.c.l.b16 %v620
        %v1647 = vunpack.c.h.b16 %v620
        %v1648 = vunpack.c.l.b16 %v621
        %v1649 = vunpack.c.h.b16 %v621
        %v1650 = vunpack.c.l.b16 %v622
        %v1651 = vunpack.c.h.b16 %v622
        %v1652 = vunpack.c.l.b16 %v623
        %v1653 = vunpack.c.h.b16 %v623
        %v1654 = vunpack.c.l.b16 %v624
        %v1655 = vunpack.c.h.b16 %v624
        %v1656 = vunpack.c.l.b16 %v625
        %v1657 = vunpack.c.h.b16 %v625
        %v1658 = vunpack.c.l.b16 %v626
        %v1659 = vunpack.c.h.b16 %v626
        %v1660 = vunpack.c.l.b16 %v627
        %v1661 = vunpack.c.h.b16 %v627
        %v1662 = vunpack.c.l.b16 %v628
        %v1663 = vunpack.c.h.b16 %v628
        %v1664 = vunpack.c.l.b16 %v629
        %v1665 = vunpack.c.h.b16 %v629
        %v1666 = vunpack.c.l.b16 %v630
        %v1667 = vunpack.c.h.b16 %v630
        %v1668 = vunpack.c.l.b16 %v631
        %v1669 = vunpack.c.h.b16 %v631
        %v1670 = vunpack.c.l.b16 %v632
        %v1671 = vunpack.c.h.b16 %v632
        %v1672 = vunpack.c.l.b16 %v633
        %v1673 = vunpack.c.h.b16 %v633
        %v1674 = vunpack.c.l.b16 %v634
        %v1675 = vunpack.c.h.b16 %v634
        %v1676 = vunpack.c.l.b16 %v635
        %v1677 = vunpack.c.h.b16 %v635
        %v1678 = vunpack.c.l.b16 %v636
        %v1679 = vunpack.c.h.b16 %v636
        %v1680 = vunpack.c.l.b16 %v637
        %v1681 = vunpack.c.h.b16 %v637
        %v1682 = vunpack.c.l.b16 %v638
        %v1683 = vunpack.c.h.b16 %v638
        %v1684 = vunpack.c.l.b16 %v639
        %v1685 = vunpack.c.h.b16 %v639
        %v1686 = vunpack.c.l.b16 %v640
        %v1687 = vunpack.c.h.b16 %v640
        %v1688 = vunpack.c.l.b16 %v641
        %v1689 = vunpack.c.h.b16 %v641
        %v1690 = vunpack.c.l.b16 %v642
        %v1691 = vunpack.c.h.b16 %v642
        %v1692 = vunpack.c.l.b16 %v643
        %v1693 = vunpack.c.h.b16 %v643
        %v1694 = vunpack.c.l.b16 %v644
        %v1695 = vunpack.c.h.b16 %v644
        %v1696 = vunpack.c.l.b16 %v645
        %v1697 = vunpack.c.h.b16 %v645
        %v1698 = vunpack.c.l.b16 %v646
        %v1699 = vunpack.c.h.b16 %v646
        %v1700 = vunpack.c.l.b16 %v647
        %v1701 = vunpack.c.h.b16 %v647
        %v1702 = vunpack.c.l.b16 %v648
        %v1703 = vunpack.c.h.b16 %v648
        %v1704 = vunpack.c.l.b16 %v649
        %v1705 = vunpack.c.h.b16 %v649
        %v1706 = vunpack.c.l.b16 %v650
        %v1707 = vunpack.c.h.b16 %v650
        %v1708 = vunpack.c.l.b16 %v651
        %v1709 = vunpack.c.h.b16 %v651
        %v1710 = vunpack.c.l.b16 %v652
        %v1711 = vunpack.c.h.b16 %v652
        %v1712 = vunpack.c.l.b16 %v653
        %v1713 = vunpack.c.h.b16 %v653
        %v1714 = vunpack.c.l.b16 %v654
        %v1715 = vunpack.c.h.b16 %v654
        %v1716 = vunpack.c.l.b16 %v655
        %v1717 = vunpack.c.h.b16 %v655
        %v1718 = vunpack.c.l.b16 %v656
        %v1719 = vunpack.c.h.b16 %v656
        %v1720 = vunpack.c.l.b16 %v657
        %v1721 = vunpack.c.h.b16 %v657
        %v1722 = vunpack.c.l.b16 %v658
        %v1723 = vunpack.c.h.b16 %v658
        %v1724 = vunpack.c.l.b16 %v659
        %v1725 = vunpack.c.h.b16 %v659
        %v1726 = vunpack.c.l.b16 %v660
        %v1727 = vunpack.c.h.b16 %v660
        %v1728 = vunpack.c.l.b16 %v661
        %v1729 = vunpack.c.h.b16 %v661
        %v1730 = vunpack.c.l.b16 %v662
        %v1731 = vunpack.c.h.b16 %v662
        %v1732 = vunpack.c.l.b16 %v663
        %v1733 = vunpack.c.h.b16 %v663
        %v1734 = vunpack.c.l.b16 %v664
        %v1735 = vunpack.c.h.b16 %v664
        %v1736 = vunpack.c.l.b16 %v665
        %v1737 = vunpack.c.h.b16 %v665
        %v1738 = vunpack.c.l.b16 %v666
        %v1739 = vunpack.c.h.b16 %v666
        %v1740 = vunpack.c.l.b16 %v667
        %v1741 = vunpack.c.h.b16 %v667
        %v1742 = vunpack.c.l.b16 %v668
        %v1743 = vunpack.c.h.b16 %v668
        %v1744 = vunpack.c.l.b16 %v669
        %v1745 = vunpack.c.h.b16 %v669
        %v1746 = vunpack.c.l.b16 %v670
        %v1747 = vunpack.c.h.b16 %v670
        %v1748 = vunpack.c.l.b16 %v671
        %v1749 = vunpack.c.h.b16 %v671
        %v1750 = vunpack.c.l.b16 %v672
        %v1751 = vunpack.c.h.b16 %v672
        %v1752 = vunpack.c.l.b16 %v673
        %v1753 = vunpack.c.h.b16 %v673
        %v1754 = vunpack.c.l.b16 %v674
        %v1755 = vunpack.c.h.b16 %v674
        %v1756 = vunpack.c.l.b16 %v675
        %v1757 = vunpack.c.h.b16 %v675
        %v1758 = vunpack.c.l.b16 %v676
        %v1759 = vunpack.c.h.b16 %v676
        %v1760 = vunpack.c.l.b16 %v677
        %v1761 = vunpack.c.h.b16 %v677
        %v1762 = vunpack.c.l.b16 %v678
        %v1763 = vunpack.c.h.b16 %v678
        %v1764 = vunpack.c.l.b16 %v679
        %v1765 = vunpack.c.h.b16 %v679
        %v1766 = vunpack.c.l.b16 %v680
        %v1767 = vunpack.c.h.b16 %v680
        %v1768 = vunpack.c.l.b16 %v681
        %v1769 = vunpack.c.h.b16 %v681
        %v1770 = vunpack.c.l.b16 %v682
        %v1771 = vunpack.c.h.b16 %v682
        %v1772 = vunpack.c.l.b16 %v683
        %v1773 = vunpack.c.h.b16 %v683
        %v1774 = vunpack.c.l.b16 %v684
        %v1775 = vunpack.c.h.b16 %v684
        %v1776 = vunpack.c.l.b16 %v685
        %v1777 = vunpack.c.h.b16 %v685
        %v1778 = vunpack.c.l.b16 %v686
        %v1779 = vunpack.c.h.b16 %v686
        %v1780 = vunpack.c.l.b16 %v687
        %v1781 = vunpack.c.h.b16 %v687
        %v1782 = vunpack.c.l.b16 %v688
        %v1783 = vunpack.c.h.b16 %v688
        %v1784 = vunpack.c.l.b16 %v689
        %v1785 = vunpack.c.h.b16 %v689
        %v1786 = vunpack.c.l.b16 %v690
        %v1787 = vunpack.c.h.b16 %v690
        %v1788 = vunpack.c.l.b16 %v691
        %v1789 = vunpack.c.h.b16 %v691
        %v1790 = vunpack.c.l.b16 %v692
        %v1791 = vunpack.c.h.b16 %v692
        %v1792 = vunpack.c.l.b16 %v693
        %v1793 = vunpack.c.h.b16 %v693
        %v1794 = vunpack.c.l.b16 %v694
        %v1795 = vunpack.c.h.b16 %v694
        %v1796 = vunpack.c.l.b16 %v695
        %v1797 = vunpack.c.h.b16 %v695
        %v1798 = vunpack.c.l.b16 %v696
        %v1799 = vunpack.c.h.b16 %v696
        %v1800 = vunpack.c.l.b16 %v697
        %v1801 = vunpack.c.h.b16 %v697
        %v1802 = vunpack.c.l.b16 %v698
        %v1803 = vunpack.c.h.b16 %v698
        %v1804 = vunpack.c.l.b16 %v699
        %v1805 = vunpack.c.h.b16 %v699
        %v1806 = vunpack.c.l.b16 %v700
        %v1807 = vunpack.c.h.b16 %v700
        %v1808 = vunpack.c.l.b16 %v701
        %v1809 = vunpack.c.h.b16 %v701
        %v1810 = vunpack.c.l.b16 %v702
        %v1811 = vunpack.c.h.b16 %v702
        %v1812 = vunpack.c.l.b16 %v703
        %v1813 = vunpack.c.h.b16 %v703
        %v1814 = vunpack.c.l.b16 %v704
        %v1815 = vunpack.c.h.b16 %v704
        %v1816 = vunpack.c.l.b16 %v705
        %v1817 = vunpack.c.h.b16 %v705
        %v1818 = vunpack.c.l.b16 %v706
        %v1819 = vunpack.c.h.b16 %v706
        %v1820 = vunpack.c.l.b16 %v707
        %v1821 = vunpack.c.h.b16 %v707
        %v1822 = vunpack.c.l.b16 %v708
        %v1823 = vunpack.c.h.b16 %v708
        %v1824 = vunpack.c.l.b16 %v709
        %v1825 = vunpack.c.h.b16 %v709
        %v1826 = vunpack.c.l.b16 %v710
        %v1827 = vunpack.c.h.b16 %v710
        %v1828 = vunpack.c.l.b16 %v711
        %v1829 = vunpack.c.h.b16 %v711
        %v1830 = vunpack.c.l.b16 %v712
        %v1831 = vunpack.c.h.b16 %v712
        %v1832 = vunpack.c.l.b16 %v713
        %v1833 = vunpack.c.h.b16 %v713
        %v1834 = vunpack.c.l.b16 %v714
        %v1835 = vunpack.c.h.b16 %v714
        %v1836 = vunpack.c.l.b16 %v715
        %v1837 = vunpack.c.h.b16 %v715
        %v1838 = vunpack.c.l.b16 %v716
        %v1839 = vunpack.c.h.b16 %v716
        %v1840 = vunpack.c.l.b16 %v717
        %v1841 = vunpack.c.h.b16 %v717
        %v1842 = vunpack.c.l.b16 %v718
        %v1843 = vunpack.c.h.b16 %v718
        %v1844 = vunpack.c.l.b16 %v719
        %v1845 = vunpack.c.h.b16 %v719
        %v1846 = vunpack.c.l.b16 %v720
        %v1847 = vunpack.c.h.b16 %v720
        %v1848 = vunpack.c.l.b16 %v721
        %v1849 = vunpack.c.h.b16 %v721
        %v1850 = vunpack.c.l.b16 %v722
        %v1851 = vunpack.c.h.b16 %v722
        %v1852 = vunpack.c.l.b16 %v723
        %v1853 = vunpack.c.h.b16 %v723
        %v1854 = vunpack.c.l.b16 %v724
        %v1855 = vunpack.c.h.b16 %v724
        %v1856 = vunpack.c.l.b16 %v725
        %v1857 = vunpack.c.h.b16 %v725
        %v1858 = vunpack.c.l.b16 %v726
        %v1859 = vunpack.c.h.b16 %v726
        %v1860 = vunpack.c.l.b16 %v727
        %v1861 = vunpack.c.h.b16 %v727
        %v1862 = vunpack.c.l.b16 %v728
        %v1863 = vunpack.c.h.b16 %v728
        %v1864 = vunpack.c.l.b16 %v729
        %v1865 = vunpack.c.h.b16 %v729
        %v1866 = vunpack.c.l.b16 %v730
        %v1867 = vunpack.c.h.b16 %v730
        %v1868 = vunpack.c.l.b16 %v731
        %v1869 = vunpack.c.h.b16 %v731
        %v1870 = vunpack.c.l.b16 %v732
        %v1871 = vunpack.c.h.b16 %v732
        %v1872 = vunpack.c.l.b16 %v733
        %v1873 = vunpack.c.h.b16 %v733
        %v1874 = vunpack.c.l.b16 %v734
        %v1875 = vunpack.c.h.b16 %v734
        %v1876 = vunpack.c.l.b16 %v735
        %v1877 = vunpack.c.h.b16 %v735
        %v1878 = vunpack.c.l.b16 %v736
        %v1879 = vunpack.c.h.b16 %v736
        %v1880 = vunpack.c.l.b16 %v737
        %v1881 = vunpack.c.h.b16 %v737
        %v1882 = vunpack.c.l.b16 %v738
        %v1883 = vunpack.c.h.b16 %v738
        %v1884 = vunpack.c.l.b16 %v739
        %v1885 = vunpack.c.h.b16 %v739
        %v1886 = vunpack.c.l.b16 %v740
        %v1887 = vunpack.c.h.b16 %v740
        %v1888 = vunpack.c.l.b16 %v741
        %v1889 = vunpack.c.h.b16 %v741
        %v1890 = vunpack.c.l.b16 %v742
        %v1891 = vunpack.c.h.b16 %v742
        %v1892 = vunpack.c.l.b16 %v743
        %v1893 = vunpack.c.h.b16 %v743
        %v1894 = vunpack.c.l.b16 %v744
        %v1895 = vunpack.c.h.b16 %v744
        %v1896 = vunpack.c.l.b16 %v745
        %v1897 = vunpack.c.h.b16 %v745
        %v1898 = vunpack.c.l.b16 %v746
        %v1899 = vunpack.c.h.b16 %v746
        %v1900 = vunpack.c.l.b16 %v747
        %v1901 = vunpack.c.h.b16 %v747
        %v1902 = vunpack.c.l.b16 %v748
        %v1903 = vunpack.c.h.b16 %v748
        %v1904 = vunpack.c.l.b16 %v749
        %v1905 = vunpack.c.h.b16 %v749
        %v1906 = vunpack.c.l.b16 %v750
        %v1907 = vunpack.c.h.b16 %v750
        %v1908 = vunpack.c.l.b16 %v751
        %v1909 = vunpack.c.h.b16 %v751
        %v1910 = vunpack.c.l.b16 %v752
        %v1911 = vunpack.c.h.b16 %v752
        %v1912 = vunpack.c.l.b16 %v753
        %v1913 = vunpack.c.h.b16 %v753
        %v1914 = vunpack.c.l.b16 %v754
        %v1915 = vunpack.c.h.b16 %v754
        %v1916 = vunpack.c.l.b16 %v755
        %v1917 = vunpack.c.h.b16 %v755
        %v1918 = vunpack.c.l.b16 %v756
        %v1919 = vunpack.c.h.b16 %v756
        %v1920 = vunpack.c.l.b16 %v757
        %v1921 = vunpack.c.h.b16 %v757
        %v1922 = vunpack.c.l.b16 %v758
        %v1923 = vunpack.c.h.b16 %v758
        %v1924 = vunpack.c.l.b16 %v759
        %v1925 = vunpack.c.h.b16 %v759
        %v1926 = vunpack.c.l.b16 %v760
        %v1927 = vunpack.c.h.b16 %v760
        %v1928 = vunpack.c.l.b16 %v761
        %v1929 = vunpack.c.h.b16 %v761
        %v1930 = vunpack.c.l.b16 %v762
        %v1931 = vunpack.c.h.b16 %v762
        %v1932 = vunpack.c.l.b16 %v763
        %v1933 = vunpack.c.h.b16 %v763
        %v1934 = vunpack.c.l.b16 %v764
        %v1935 = vunpack.c.h.b16 %v764
        %v1936 = vunpack.c.l.b16 %v765
        %v1937 = vunpack.c.h.b16 %v765
        %v1938 = vunpack.c.l.b16 %v766
        %v1939 = vunpack.c.h.b16 %v766
        %v1940 = vunpack.c.l.b16 %v767
        %v1941 = vunpack.c.h.b16 %v767
        %v1942 = vunpack.c.l.b16 %v768
        %v1943 = vunpack.c.h.b16 %v768
        %v1944 = vunpack.c.l.b16 %v769
        %v1945 = vunpack.c.h.b16 %v769
        %v1946 = vunpack.c.l.b16 %v770
        %v1947 = vunpack.c.h.b16 %v770
        %v1948 = vunpack.c.l.b16 %v771
        %v1949 = vunpack.c.h.b16 %v771
        %v1950 = vunpack.c.l.b16 %v772
        %v1951 = vunpack.c.h.b16 %v772
        %v1952 = vunpack.c.l.b16 %v773
        %v1953 = vunpack.c.h.b16 %v773
        %v1954 = vunpack.c.l.b16 %v774
        %v1955 = vunpack.c.h.b16 %v774
        %v1956 = vunpack.c.l.b16 %v775
        %v1957 = vunpack.c.h.b16 %v775
        %v1958 = vunpack.c.l.b16 %v776
        %v1959 = vunpack.c.h.b16 %v776
        %v1960 = vunpack.c.l.b16 %v777
        %v1961 = vunpack.c.h.b16 %v777
        %v1962 = vunpack.c.l.b16 %v778
        %v1963 = vunpack.c.h.b16 %v778
        %v1964 = vunpack.c.l.b16 %v779
        %v1965 = vunpack.c.h.b16 %v779
        %v1966 = vunpack.c.l.b16 %v780
        %v1967 = vunpack.c.h.b16 %v780
        %v1968 = vunpack.c.l.b16 %v781
        %v1969 = vunpack.c.h.b16 %v781
        %v1970 = vunpack.c.l.b16 %v782
        %v1971 = vunpack.c.h.b16 %v782
        %v1972 = vunpack.c.l.b16 %v783
        %v1973 = vunpack.c.h.b16 %v783
        %v1974 = vunpack.c.l.b16 %v784
        %v1975 = vunpack.c.h.b16 %v784
        %v1976 = vunpack.c.l.b16 %v785
        %v1977 = vunpack.c.h.b16 %v785
        %v1978 = vunpack.c.l.b16 %v786
        %v1979 = vunpack.c.h.b16 %v786
        %v1980 = vunpack.c.l.b16 %v787
        %v1981 = vunpack.c.h.b16 %v787
        %v1982 = vunpack.c.l.b16 %v788
        %v1983 = vunpack.c.h.b16 %v788
        %v1984 = vunpack.c.l.b16 %v789
        %v1985 = vunpack.c.h.b16 %v789
        %v1986 = vunpack.c.l.b16 %v790
        %v1987 = vunpack.c.h.b16 %v790
        %v1988 = vunpack.c.l.b16 %v791
        %v1989 = vunpack.c.h.b16 %v791
        %v1990 = vunpack.c.l.b16 %v792
        %v1991 = vunpack.c.h.b16 %v792
        %v1992 = vunpack.c.l.b16 %v793
        %v1993 = vunpack.c.h.b16 %v793
        %v1994 = vunpack.c.l.b16 %v794
        %v1995 = vunpack.c.h.b16 %v794
        %v1996 = vunpack.c.l.b16 %v795
        %v1997 = vunpack.c.h.b16 %v795
        %v1998 = vunpack.c.l.b16 %v796
        %v1999 = vunpack.c.h.b16 %v796
        %v2000 = vunpack.c.l.b16 %v797
        %v2001 = vunpack.c.h.b16 %v797
        %v2002 = vunpack.c.l.b16 %v798
        %v2003 = vunpack.c.h.b16 %v798
        %v2004 = vunpack.c.l.b16 %v799
        %v2005 = vunpack.c.h.b16 %v799
        %v2006 = vunpack.c.l.b16 %v800
        %v2007 = vunpack.c.h.b16 %v800
        %v2008 = vunpack.c.l.b16 %v801
        %v2009 = vunpack.c.h.b16 %v801
        %v2010 = vunpack.c.l.b16 %v802
        %v2011 = vunpack.c.h.b16 %v802
        %v2012 = vunpack.c.l.b16 %v803
        %v2013 = vunpack.c.h.b16 %v803
        %v2014 = vunpack.c.l.b16 %v804
        %v2015 = vunpack.c.h.b16 %v804
        %v2016 = vunpack.c.l.b16 %v805
        %v2017 = vunpack.c.h.b16 %v805
        %v2018 = vunpack.c.l.b16 %v806
        %v2019 = vunpack.c.h.b16 %v806
        %v2020 = vunpack.c.l.b16 %v807
        %v2021 = vunpack.c.h.b16 %v807
        %v2022 = vunpack.c.l.b16 %v808
        %v2023 = vunpack.c.h.b16 %v808
        %v2024 = vunpack.c.l.b16 %v809
        %v2025 = vunpack.c.h.b16 %v809
        %v2026 = vunpack.c.l.b16 %v810
        %v2027 = vunpack.c.h.b16 %v810
        %v2028 = vunpack.c.l.b16 %v811
        %v2029 = vunpack.c.h.b16 %v811
        %v2030 = vunpack.c.l.b16 %v812
        %v2031 = vunpack.c.h.b16 %v812
        %v2032 = vunpack.c.l.b16 %v813
        %v2033 = vunpack.c.h.b16 %v813
        %v2034 = vunpack.c.l.b16 %v814
        %v2035 = vunpack.c.h.b16 %v814
        %v2036 = vunpack.c.l.b16 %v815
        %v2037 = vunpack.c.h.b16 %v815
        %v2038 = vunpack.c.l.b16 %v816
        %v2039 = vunpack.c.h.b16 %v816
        %v2040 = vunpack.c.l.b16 %v817
        %v2041 = vunpack.c.h.b16 %v817
        %v2042 = vunpack.c.l.b16 %v818
        %v2043 = vunpack.c.h.b16 %v818
        %v2044 = vunpack.c.l.b16 %v819
        %v2045 = vunpack.c.h.b16 %v819
        %v2046 = vunpack.c.l.b16 %v820
        %v2047 = vunpack.c.h.b16 %v820
        %v2048 = vunpack.c.l.b16 %v821
        %v2049 = vunpack.c.h.b16 %v821
        %v2050 = vunpack.c.l.b16 %v822
        %v2051 = vunpack.c.h.b16 %v822
        %v2052 = vunpack.c.l.b16 %v823
        %v2053 = vunpack.c.h.b16 %v823
        %v2054 = vunpack.c.l.b16 %v824
        %v2055 = vunpack.c.h.b16 %v824
        %v2056 = vunpack.c.l.b16 %v825
        %v2057 = vunpack.c.h.b16 %v825
        %v2058 = vunpack.c.l.b16 %v826
        %v2059 = vunpack.c.h.b16 %v826
        %v2060 = vunpack.c.l.b16 %v827
        %v2061 = vunpack.c.h.b16 %v827
        %v2062 = vunpack.c.l.b16 %v828
        %v2063 = vunpack.c.h.b16 %v828
        %v2064 = vunpack.c.l.b16 %v829
        %v2065 = vunpack.c.h.b16 %v829
        %v2066 = vunpack.c.l.b16 %v830
        %v2067 = vunpack.c.h.b16 %v830
        %v2068 = vunpack.c.l.b16 %v831
        %v2069 = vunpack.c.h.b16 %v831
        %v2070 = vunpack.c.l.b16 %v832
        %v2071 = vunpack.c.h.b16 %v832
        %v2072 = vunpack.c.l.b16 %v833
        %v2073 = vunpack.c.h.b16 %v833
        %v2074 = vunpack.c.l.b16 %v834
        %v2075 = vunpack.c.h.b16 %v834
        %v2076 = vunpack.c.l.b16 %v835
        %v2077 = vunpack.c.h.b16 %v835
        %v2078 = vunpack.c.l.b16 %v836
        %v2079 = vunpack.c.h.b16 %v836
        %v2080 = vunpack.c.l.b16 %v837
        %v2081 = vunpack.c.h.b16 %v837
        %v2082 = vunpack.c.l.b16 %v838
        %v2083 = vunpack.c.h.b16 %v838
        %v2084 = vunpack.c.l.b16 %v839
        %v2085 = vunpack.c.h.b16 %v839
        %v2086 = vunpack.c.l.b16 %v840
        %v2087 = vunpack.c.h.b16 %v840
        %v2088 = vunpack.c.l.b16 %v841
        %v2089 = vunpack.c.h.b16 %v841
        %v2090 = vunpack.c.l.b16 %v842
        %v2091 = vunpack.c.h.b16 %v842
        %v2092 = vunpack.c.l.b16 %v843
        %v2093 = vunpack.c.h.b16 %v843
        %v2094 = vunpack.c.l.b16 %v844
        %v2095 = vunpack.c.h.b16 %v844
        %v2096 = vunpack.c.l.b16 %v845
        %v2097 = vunpack.c.h.b16 %v845
        %v2098 = vunpack.c.l.b16 %v846
        %v2099 = vunpack.c.h.b16 %v846
        %v2100 = vunpack.c.l.b16 %v847
        %v2101 = vunpack.c.h.b16 %v847
        %v2102 = vunpack.c.l.b16 %v848
        %v2103 = vunpack.c.h.b16 %v848
        %v2104 = vunpack.c.l.b16 %v849
        %v2105 = vunpack.c.h.b16 %v849
        %v2106 = vunpack.c.l.b16 %v850
        %v2107 = vunpack.c.h.b16 %v850
        %v2108 = vunpack.c.l.b16 %v851
        %v2109 = vunpack.c.h.b16 %v851
        %v2110 = vunpack.c.l.b16 %v852
        %v2111 = vunpack.c.h.b16 %v852
        %v2112 = vunpack.c.l.b16 %v853
        %v2113 = vunpack.c.h.b16 %v853
        %v2114 = vunpack.c.l.b16 %v854
        %v2115 = vunpack.c.h.b16 %v854
        %v2116 = vunpack.c.l.b16 %v855
        %v2117 = vunpack.c.h.b16 %v855
        %v2118 = vunpack.c.l.b16 %v856
        %v2119 = vunpack.c.h.b16 %v856
        %v2120 = vunpack.c.l.b16 %v857
        %v2121 = vunpack.c.h.b16 %v857
        %v2122 = vunpack.c.l.b16 %v858
        %v2123 = vunpack.c.h.b16 %v858
        %v2124 = vunpack.c.l.b16 %v859
        %v2125 = vunpack.c.h.b16 %v859
        %v2126 = vunpack.c.l.b16 %v860
        %v2127 = vunpack.c.h.b16 %v860
        %v2128 = vunpack.c.l.b16 %v861
        %v2129 = vunpack.c.h.b16 %v861
        %v2130 = vunpack.c.l.b16 %v862
        %v2131 = vunpack.c.h.b16 %v862
        %v2132 = vunpack.c.l.b16 %v863
        %v2133 = vunpack.c.h.b16 %v863
        %v2134 = vunpack.c.l.b16 %v864
        %v2135 = vunpack.c.h.b16 %v864
        %v2136 = vunpack.c.l.b16 %v865
        %v2137 = vunpack.c.h.b16 %v865
        %v2138 = vunpack.c.l.b16 %v866
        %v2139 = vunpack.c.h.b16 %v866
        %v2140 = vunpack.c.l.b16 %v867
        %v2141 = vunpack.c.h.b16 %v867
        %v2142 = vunpack.c.l.b16 %v868
        %v2143 = vunpack.c.h.b16 %v868
        %v2144 = vunpack.c.l.b16 %v869
        %v2145 = vunpack.c.h.b16 %v869
        %v2146 = vunpack.c.l.b16 %v870
        %v2147 = vunpack.c.h.b16 %v870
        %v2148 = vunpack.c.l.b16 %v871
        %v2149 = vunpack.c.h.b16 %v871
        %v2150 = vunpack.c.l.b16 %v872
        %v2151 = vunpack.c.h.b16 %v872
        %v2152 = vunpack.c.l.b16 %v873
        %v2153 = vunpack.c.h.b16 %v873
        %v2154 = vunpack.c.l.b16 %v874
        %v2155 = vunpack.c.h.b16 %v874
        %v2156 = vunpack.c.l.b16 %v875
        %v2157 = vunpack.c.h.b16 %v875
        %v2158 = vunpack.c.l.b16 %v876
        %v2159 = vunpack.c.h.b16 %v876
        %v2160 = vunpack.c.l.b16 %v877
        %v2161 = vunpack.c.h.b16 %v877
        %v2162 = vunpack.c.l.b16 %v878
        %v2163 = vunpack.c.h.b16 %v878
        %v2164 = vunpack.c.l.b16 %v879
        %v2165 = vunpack.c.h.b16 %v879
        %v2166 = vunpack.c.l.b16 %v880
        %v2167 = vunpack.c.h.b16 %v880
        %v2168 = vunpack.c.l.b16 %v881
        %v2169 = vunpack.c.h.b16 %v881
        %v2170 = vunpack.c.l.b16 %v882
        %v2171 = vunpack.c.h.b16 %v882
        %v2172 = vunpack.c.l.b16 %v883
        %v2173 = vunpack.c.h.b16 %v883
        %v2174 = vunpack.c.l.b16 %v884
        %v2175 = vunpack.c.h.b16 %v884
        %v2176 = vunpack.c.l.b16 %v885
        %v2177 = vunpack.c.h.b16 %v885
        %v2178 = vunpack.c.l.b16 %v886
        %v2179 = vunpack.c.h.b16 %v886
        %v2180 = vunpack.c.l.b16 %v887
        %v2181 = vunpack.c.h.b16 %v887
        %v2182 = vunpack.c.l.b16 %v888
        %v2183 = vunpack.c.h.b16 %v888
        %v2184 = vunpack.c.l.b16 %v889
        %v2185 = vunpack.c.h.b16 %v889
        %v2186 = vunpack.c.l.b16 %v890
        %v2187 = vunpack.c.h.b16 %v890
        %v2188 = vunpack.c.l.b16 %v891
        %v2189 = vunpack.c.h.b16 %v891
        %v2190 = vunpack.c.l.b16 %v892
        %v2191 = vunpack.c.h.b16 %v892
        %v2192 = vunpack.c.l.b16 %v893
        %v2193 = vunpack.c.h.b16 %v893
        %v2194 = vunpack.c.l.b16 %v894
        %v2195 = vunpack.c.h.b16 %v894
        %v2196 = vunpack.c.l.b16 %v895
        %v2197 = vunpack.c.h.b16 %v895
        %v2198 = vunpack.c.l.b16 %v896
        %v2199 = vunpack.c.h.b16 %v896
        %v2200 = vunpack.c.l.b16 %v897
        %v2201 = vunpack.c.h.b16 %v897
        %v2202 = vunpack.c.l.b16 %v898
        %v2203 = vunpack.c.h.b16 %v898
        %v2204 = vunpack.c.l.b16 %v899
        %v2205 = vunpack.c.h.b16 %v899
        %v2206 = vunpack.c.l.b16 %v900
        %v2207 = vunpack.c.h.b16 %v900
        %v2208 = vunpack.c.l.b16 %v901
        %v2209 = vunpack.c.h.b16 %v901
        %v2210 = vunpack.c.l.b16 %v902
        %v2211 = vunpack.c.h.b16 %v902
        %v2212 = vunpack.c.l.b16 %v903
        %v2213 = vunpack.c.h.b16 %v903
        %v2214 = vunpack.c.l.b16 %v904
        %v2215 = vunpack.c.h.b16 %v904
        %v2216 = vunpack.c.l.b16 %v905
        %v2217 = vunpack.c.h.b16 %v905
        %v2218 = vunpack.c.l.b16 %v906
        %v2219 = vunpack.c.h.b16 %v906
        %v2220 = vunpack.c.l.b16 %v907
        %v2221 = vunpack.c.h.b16 %v907
        %v2222 = vunpack.c.l.b16 %v908
        %v2223 = vunpack.c.h.b16 %v908
        %v2224 = vunpack.c.l.b16 %v909
        %v2225 = vunpack.c.h.b16 %v909
        %v2226 = vunpack.c.l.b16 %v910
        %v2227 = vunpack.c.h.b16 %v910
        %v2228 = vunpack.c.l.b16 %v911
        %v2229 = vunpack.c.h.b16 %v911
        %v2230 = vunpack.c.l.b16 %v912
        %v2231 = vunpack.c.h.b16 %v912
        %v2232 = vunpack.c.l.b16 %v913
        %v2233 = vunpack.c.h.b16 %v913
        %v2234 = vunpack.c.l.b16 %v914
        %v2235 = vunpack.c.h.b16 %v914
        %v2236 = vunpack.c.l.b16 %v915
        %v2237 = vunpack.c.h.b16 %v915
        %v2238 = vunpack.c.l.b16 %v916
        %v2239 = vunpack.c.h.b16 %v916
        %v2240 = vunpack.c.l.b16 %v917
        %v2241 = vunpack.c.h.b16 %v917
        %v2242 = vunpack.c.l.b16 %v918
        %v2243 = vunpack.c.h.b16 %v918
        %v2244 = vunpack.c.l.b16 %v919
        %v2245 = vunpack.c.h.b16 %v919
        %v2246 = vunpack.c.l.b16 %v920
        %v2247 = vunpack.c.h.b16 %v920
        %v2248 = vunpack.c.l.b16 %v921
        %v2249 = vunpack.c.h.b16 %v921
        %v2250 = vpack.c.b16 %v1392, %v1386
        %v2251 = vpack.c.b16 %v1393, %v1387
        %v2252 = vpack.c.b16 %v1394, %v1388
        %v2253 = vpack.c.b16 %v1395, %v1389
        %v2254 = vpack.c.b16 %v1396, %v1390
        %v2255 = vpack.c.b16 %v1397, %v1391
        %v2256 = vpack.c.b16 %v1404, %v1398
        %v2257 = vpack.c.b16 %v1405, %v1399
        %v2258 = vpack.c.b16 %v1406, %v1400
        %v2259 = vpack.c.b16 %v1407, %v1401
        %v2260 = vpack.c.b16 %v1408, %v1402
        %v2261 = vpack.c.b16 %v1409, %v1403
        %v2262 = vpack.c.b16 %v1416, %v1410
        %v2263 = vpack.c.b16 %v1417, %v1411
        %v2264 = vpack.c.b16 %v1418, %v1412
        %v2265 = vpack.c.b16 %v1419, %v1413
        %v2266 = vpack.c.b16 %v1420, %v1414
        %v2267 = vpack.c.b16 %v1421, %v1415
        %v2268 = vpack.c.b16 %v1428, %v1422
        %v2269 = vpack.c.b16 %v1429, %v1423
        %v2270 = vpack.c.b16 %v1430, %v1424
        %v2271 = vpack.c.b16 %v1431, %v1425
        %v2272 = vpack.c.b16 %v1432, %v1426
        %v2273 = vpack.c.b16 %v1433, %v1427
        %v2274 = vpack.c.b16 %v1440, %v1434
        %v2275 = vpack.c.b16 %v1441, %v1435
        %v2276 = vpack.c.b16 %v1442, %v1436
        %v2277 = vpack.c.b16 %v1443, %v1437
        %v2278 = vpack.c.b16 %v1444, %v1438
        %v2279 = vpack.c.b16 %v1445, %v1439
        %v2280 = vpack.c.b16 %v1452, %v1446
        %v2281 = vpack.c.b16 %v1453, %v1447
        %v2282 = vpack.c.b16 %v1454, %v1448
        %v2283 = vpack.c.b16 %v1455, %v1449
        %v2284 = vpack.c.b16 %v1456, %v1450
        %v2285 = vpack.c.b16 %v1457, %v1451
        %v2286 = vpack.c.b16 %v1464, %v1458
        %v2287 = vpack.c.b16 %v1465, %v1459
        %v2288 = vpack.c.b16 %v1466, %v1460
        %v2289 = vpack.c.b16 %v1467, %v1461
        %v2290 = vpack.c.b16 %v1468, %v1462
        %v2291 = vpack.c.b16 %v1469, %v1463
        %v2292 = vpack.c.b16 %v1476, %v1470
        %v2293 = vpack.c.b16 %v1477, %v1471
        %v2294 = vpack.c.b16 %v1478, %v1472
        %v2295 = vpack.c.b16 %v1479, %v1473
        %v2296 = vpack.c.b16 %v1480, %v1474
        %v2297 = vpack.c.b16 %v1481, %v1475
        %v2298 = vpack.c.b16 %v1488, %v1482
        %v2299 = vpack.c.b16 %v1489, %v1483
        %v2300 = vpack.c.b16 %v1490, %v1484
        %v2301 = vpack.c.b16 %v1491, %v1485
        %v2302 = vpack.c.b16 %v1492, %v1486
        %v2303 = vpack.c.b16 %v1493, %v1487
        %v2304 = vpack.c.b16 %v1500, %v1494
        %v2305 = vpack.c.b16 %v1501, %v1495
        %v2306 = vpack.c.b16 %v1502, %v1496
        %v2307 = vpack.c.b16 %v1503, %v1497
        %v2308 = vpack.c.b16 %v1504, %v1498
        %v2309 = vpack.c.b16 %v1505, %v1499
        %v2310 = vpack.c.b16 %v1512, %v1506
        %v2311 = vpack.c.b16 %v1513, %v1507
        %v2312 = vpack.c.b16 %v1514, %v1508
        %v2313 = vpack.c.b16 %v1515, %v1509
        %v2314 = vpack.c.b16 %v1516, %v1510
        %v2315 = vpack.c.b16 %v1517, %v1511
        %v2316 = vpack.c.b16 %v1524, %v1518
        %v2317 = vpack.c.b16 %v1525, %v1519
        %v2318 = vpack.c.b16 %v1526, %v1520
        %v2319 = vpack.c.b16 %v1527, %v1521
        %v2320 = vpack.c.b16 %v1528, %v1522
        %v2321 = vpack.c.b16 %v1529, %v1523
        %v2322 = vpack.c.b16 %v1536, %v1530
        %v2323 = vpack.c.b16 %v1537, %v1531
        %v2324 = vpack.c.b16 %v1538, %v1532
        %v2325 = vpack.c.b16 %v1539, %v1533
        %v2326 = vpack.c.b16 %v1540, %v1534
        %v2327 = vpack.c.b16 %v1541, %v1535
        %v2328 = vpack.c.b16 %v1548, %v1542
        %v2329 = vpack.c.b16 %v1549, %v1543
        %v2330 = vpack.c.b16 %v1550, %v1544
        %v2331 = vpack.c.b16 %v1551, %v1545
        %v2332 = vpack.c.b16 %v1552, %v1546
        %v2333 = vpack.c.b16 %v1553, %v1547
        %v2334 = vpack.c.b16 %v1560, %v1554
        %v2335 = vpack.c.b16 %v1561, %v1555
        %v2336 = vpack.c.b16 %v1562, %v1556
        %v2337 = vpack.c.b16 %v1563, %v1557
        %v2338 = vpack.c.b16 %v1564, %v1558
        %v2339 = vpack.c.b16 %v1565, %v1559
        %v2340 = vpack.c.b16 %v1572, %v1566
        %v2341 = vpack.c.b16 %v1573, %v1567
        %v2342 = vpack.c.b16 %v1574, %v1568
        %v2343 = vpack.c.b16 %v1575, %v1569
        %v2344 = vpack.c.b16 %v1576, %v1570
        %v2345 = vpack.c.b16 %v1577, %v1571
        %v2346 = vpack.c.b16 %v1584, %v1578
        %v2347 = vpack.c.b16 %v1585, %v1579
        %v2348 = vpack.c.b16 %v1586, %v1580
        %v2349 = vpack.c.b16 %v1587, %v1581
        %v2350 = vpack.c.b16 %v1588, %v1582
        %v2351 = vpack.c.b16 %v1589, %v1583
        %v2352 = vpack.c.b16 %v1596, %v1590
        %v2353 = vpack.c.b16 %v1597, %v1591
        %v2354 = vpack.c.b16 %v1598, %v1592
        %v2355 = vpack.c.b16 %v1599, %v1593
        %v2356 = vpack.c.b16 %v1600, %v1594
        %v2357 = vpack.c.b16 %v1601, %v1595
        %v2358 = vpack.c.b16 %v1608, %v1602
        %v2359 = vpack.c.b16 %v1609, %v1603
        %v2360 = vpack.c.b16 %v1610, %v1604
        %v2361 = vpack.c.b16 %v1611, %v1605
        %v2362 = vpack.c.b16 %v1612, %v1606
        %v2363 = vpack.c.b16 %v1613, %v1607
        %v2364 = vpack.c.b16 %v1620, %v1614
        %v2365 = vpack.c.b16 %v1621, %v1615
        %v2366 = vpack.c.b16 %v1622, %v1616
        %v2367 = vpack.c.b16 %v1623, %v1617
        %v2368 = vpack.c.b16 %v1624, %v1618
        %v2369 = vpack.c.b16 %v1625, %v1619
        %v2370 = vpack.c.b16 %v1632, %v1626
        %v2371 = vpack.c.b16 %v1633, %v1627
        %v2372 = vpack.c.b16 %v1634, %v1628
        %v2373 = vpack.c.b16 %v1635, %v1629
        %v2374 = vpack.c.b16 %v1636, %v1630
        %v2375 = vpack.c.b16 %v1637, %v1631
        %v2376 = vpack.c.b16 %v1644, %v1638
        %v2377 = vpack.c.b16 %v1645, %v1639
        %v2378 = vpack.c.b16 %v1646, %v1640
        %v2379 = vpack.c.b16 %v1647, %v1641
        %v2380 = vpack.c.b16 %v1648, %v1642
        %v2381 = vpack.c.b16 %v1649, %v1643
        %v2382 = vpack.c.b16 %v1656, %v1650
        %v2383 = vpack.c.b16 %v1657, %v1651
        %v2384 = vpack.c.b16 %v1658, %v1652
        %v2385 = vpack.c.b16 %v1659, %v1653
        %v2386 = vpack.c.b16 %v1660, %v1654
        %v2387 = vpack.c.b16 %v1661, %v1655
        %v2388 = vpack.c.b16 %v1668, %v1662
        %v2389 = vpack.c.b16 %v1669, %v1663
        %v2390 = vpack.c.b16 %v1670, %v1664
        %v2391 = vpack.c.b16 %v1671, %v1665
        %v2392 = vpack.c.b16 %v1672, %v1666
        %v2393 = vpack.c.b16 %v1673, %v1667
        %v2394 = vpack.c.b16 %v1680, %v1674
        %v2395 = vpack.c.b16 %v1681, %v1675
        %v2396 = vpack.c.b16 %v1682, %v1676
        %v2397 = vpack.c.b16 %v1683, %v1677
        %v2398 = vpack.c.b16 %v1684, %v1678
        %v2399 = vpack.c.b16 %v1685, %v1679
        %v2400 = vpack.c.b16 %v1692, %v1686
        %v2401 = vpack.c.b16 %v1693, %v1687
        %v2402 = vpack.c.b16 %v1694, %v1688
        %v2403 = vpack.c.b16 %v1695, %v1689
        %v2404 = vpack.c.b16 %v1696, %v1690
        %v2405 = vpack.c.b16 %v1697, %v1691
        %v2406 = vpack.c.b16 %v1704, %v1698
        %v2407 = vpack.c.b16 %v1705, %v1699
        %v2408 = vpack.c.b16 %v1706, %v1700
        %v2409 = vpack.c.b16 %v1707, %v1701
        %v2410 = vpack.c.b16 %v1708, %v1702
        %v2411 = vpack.c.b16 %v1709, %v1703
        %v2412 = vpack.c.b16 %v1716, %v1710
        %v2413 = vpack.c.b16 %v1717, %v1711
        %v2414 = vpack.c.b16 %v1718, %v1712
        %v2415 = vpack.c.b16 %v1719, %v1713
        %v2416 = vpack.c.b16 %v1720, %v1714
        %v2417 = vpack.c.b16 %v1721, %v1715
        %v2418 = vpack.c.b16 %v1728, %v1722
        %v2419 = vpack.c.b16 %v1729, %v1723
        %v2420 = vpack.c.b16 %v1730, %v1724
        %v2421 = vpack.c.b16 %v1731, %v1725
        %v2422 = vpack.c.b16 %v1732, %v1726
        %v2423 = vpack.c.b16 %v1733, %v1727
        %v2424 = vpack.c.b16 %v1740, %v1734
        %v2425 = vpack.c.b16 %v1741, %v1735
        %v2426 = vpack.c.b16 %v1742, %v1736
        %v2427 = vpack.c.b16 %v1743, %v1737
        %v2428 = vpack.c.b16 %v1744, %v1738
        %v2429 = vpack.c.b16 %v1745, %v1739
        %v2430 = vpack.c.b16 %v1752, %v1746
        %v2431 = vpack.c.b16 %v1753, %v1747
        %v2432 = vpack.c.b16 %v1754, %v1748
        %v2433 = vpack.c.b16 %v1755, %v1749
        %v2434 = vpack.c.b16 %v1756, %v1750
        %v2435 = vpack.c.b16 %v1757, %v1751
        %v2436 = vpack.c.b16 %v1764, %v1758
        %v2437 = vpack.c.b16 %v1765, %v1759
        %v2438 = vpack.c.b16 %v1766, %v1760
        %v2439 = vpack.c.b16 %v1767, %v1761
        %v2440 = vpack.c.b16 %v1768, %v1762
        %v2441 = vpack.c.b16 %v1769, %v1763
        %v2442 = vpack.c.b16 %v1776, %v1770
        %v2443 = vpack.c.b16 %v1777, %v1771
        %v2444 = vpack.c.b16 %v1778, %v1772
        %v2445 = vpack.c.b16 %v1779, %v1773
        %v2446 = vpack.c.b16 %v1780, %v1774
        %v2447 = vpack.c.b16 %v1781, %v1775
        %v2448 = vpack.c.b16 %v1788, %v1782
        %v2449 = vpack.c.b16 %v1789, %v1783
        %v2450 = vpack.c.b16 %v1790, %v1784
        %v2451 = vpack.c.b16 %v1791, %v1785
        %v2452 = vpack.c.b16 %v1792, %v1786
        %v2453 = vpack.c.b16 %v1793, %v1787
        %v2454 = vpack.c.b16 %v1800, %v1794
        %v2455 = vpack.c.b16 %v1801, %v1795
        %v2456 = vpack.c.b16 %v1802, %v1796
        %v2457 = vpack.c.b16 %v1803, %v1797
        %v2458 = vpack.c.b16 %v1804, %v1798
        %v2459 = vpack.c.b16 %v1805, %v1799
        %v2460 = vpack.c.b16 %v1812, %v1806
        %v2461 = vpack.c.b16 %v1813, %v1807
        %v2462 = vpack.c.b16 %v1814, %v1808
        %v2463 = vpack.c.b16 %v1815, %v1809
        %v2464 = vpack.c.b16 %v1816, %v1810
        %v2465 = vpack.c.b16 %v1817, %v1811
        %v2466 = vpack.c.b16 %v1824, %v1818
        %v2467 = vpack.c.b16 %v1825, %v1819
        %v2468 = vpack.c.b16 %v1826, %v1820
        %v2469 = vpack.c.b16 %v1827, %v1821
        %v2470 = vpack.c.b16 %v1828, %v1822
        %v2471 = vpack.c.b16 %v1829, %v1823
        %v2472 = vpack.c.b16 %v1836, %v1830
        %v2473 = vpack.c.b16 %v1837, %v1831
        %v2474 = vpack.c.b16 %v1838, %v1832
        %v2475 = vpack.c.b16 %v1839, %v1833
        %v2476 = vpack.c.b16 %v1840, %v1834
        %v2477 = vpack.c.b16 %v1841, %v1835
        %v2478 = vpack.c.b16 %v1848, %v1842
        %v2479 = vpack.c.b16 %v1849, %v1843
        %v2480 = vpack.c.b16 %v1850, %v1844
        %v2481 = vpack.c.b16 %v1851, %v1845
        %v2482 = vpack.c.b16 %v1852, %v1846
        %v2483 = vpack.c.b16 %v1853, %v1847
        %v2484 = vpack.c.b16 %v1860, %v1854
        %v2485 = vpack.c.b16 %v1861, %v1855
        %v2486 = vpack.c.b16 %v1862, %v1856
        %v2487 = vpack.c.b16 %v1863, %v1857
        %v2488 = vpack.c.b16 %v1864, %v1858
        %v2489 = vpack.c.b16 %v1865, %v1859
        %v2490 = vpack.c.b16 %v1872, %v1866
        %v2491 = vpack.c.b16 %v1873, %v1867
        %v2492 = vpack.c.b16 %v1874, %v1868
        %v2493 = vpack.c.b16 %v1875, %v1869
        %v2494 = vpack.c.b16 %v1876, %v1870
        %v2495 = vpack.c.b16 %v1877, %v1871
        %v2496 = vpack.c.b16 %v1884, %v1878
        %v2497 = vpack.c.b16 %v1885, %v1879
        %v2498 = vpack.c.b16 %v1886, %v1880
        %v2499 = vpack.c.b16 %v1887, %v1881
        %v2500 = vpack.c.b16 %v1888, %v1882
        %v2501 = vpack.c.b16 %v1889, %v1883
        %v2502 = vpack.c.b16 %v1896, %v1890
        %v2503 = vpack.c.b16 %v1897, %v1891
        %v2504 = vpack.c.b16 %v1898, %v1892
        %v2505 = vpack.c.b16 %v1899, %v1893
        %v2506 = vpack.c.b16 %v1900, %v1894
        %v2507 = vpack.c.b16 %v1901, %v1895
        %v2508 = vpack.c.b16 %v1908, %v1902
        %v2509 = vpack.c.b16 %v1909, %v1903
        %v2510 = vpack.c.b16 %v1910, %v1904
        %v2511 = vpack.c.b16 %v1911, %v1905
        %v2512 = vpack.c.b16 %v1912, %v1906
        %v2513 = vpack.c.b16 %v1913, %v1907
        %v2514 = vpack.c.b16 %v1920, %v1914
        %v2515 = vpack.c.b16 %v1921, %v1915
        %v2516 = vpack.c.b16 %v1922, %v1916
        %v2517 = vpack.c.b16 %v1923, %v1917
        %v2518 = vpack.c.b16 %v1924, %v1918
        %v2519 = vpack.c.b16 %v1925, %v1919
        %v2520 = vpack.c.b16 %v1932, %v1926
        %v2521 = vpack.c.b16 %v1933, %v1927
        %v2522 = vpack.c.b16 %v1934, %v1928
        %v2523 = vpack.c.b16 %v1935, %v1929
        %v2524 = vpack.c.b16 %v1936, %v1930
        %v2525 = vpack.c.b16 %v1937, %v1931
        %v2526 = vpack.c.b16 %v1944, %v1938
        %v2527 = vpack.c.b16 %v1945, %v1939
        %v2528 = vpack.c.b16 %v1946, %v1940
        %v2529 = vpack.c.b16 %v1947, %v1941
        %v2530 = vpack.c.b16 %v1948, %v1942
        %v2531 = vpack.c.b16 %v1949, %v1943
        %v2532 = vpack.c.b16 %v1956, %v1950
        %v2533 = vpack.c.b16 %v1957, %v1951
        %v2534 = vpack.c.b16 %v1958, %v1952
        %v2535 = vpack.c.b16 %v1959, %v1953
        %v2536 = vpack.c.b16 %v1960, %v1954
        %v2537 = vpack.c.b16 %v1961, %v1955
        %v2538 = vpack.c.b16 %v1968, %v1962
        %v2539 = vpack.c.b16 %v1969, %v1963
        %v2540 = vpack.c.b16 %v1970, %v1964
        %v2541 = vpack.c.b16 %v1971, %v1965
        %v2542 = vpack.c.b16 %v1972, %v1966
        %v2543 = vpack.c.b16 %v1973, %v1967
        %v2544 = vpack.c.b16 %v1980, %v1974
        %v2545 = vpack.c.b16 %v1981, %v1975
        %v2546 = vpack.c.b16 %v1982, %v1976
        %v2547 = vpack.c.b16 %v1983, %v1977
        %v2548 = vpack.c.b16 %v1984, %v1978
        %v2549 = vpack.c.b16 %v1985, %v1979
        %v2550 = vpack.c.b16 %v1992, %v1986
        %v2551 = vpack.c.b16 %v1993, %v1987
        %v2552 = vpack.c.b16 %v1994, %v1988
        %v2553 = vpack.c.b16 %v1995, %v1989
        %v2554 = vpack.c.b16 %v1996, %v1990
        %v2555 = vpack.c.b16 %v1997, %v1991
        %v2556 = vpack.c.b16 %v2004, %v1998
        %v2557 = vpack.c.b16 %v2005, %v1999
        %v2558 = vpack.c.b16 %v2006, %v2000
        %v2559 = vpack.c.b16 %v2007, %v2001
        %v2560 = vpack.c.b16 %v2008, %v2002
        %v2561 = vpack.c.b16 %v2009, %v2003
        %v2562 = vpack.c.b16 %v2016, %v2010
        %v2563 = vpack.c.b16 %v2017, %v2011
        %v2564 = vpack.c.b16 %v2018, %v2012
        %v2565 = vpack.c.b16 %v2019, %v2013
        %v2566 = vpack.c.b16 %v2020, %v2014
        %v2567 = vpack.c.b16 %v2021, %v2015
        %v2568 = vpack.c.b16 %v2028, %v2022
        %v2569 = vpack.c.b16 %v2029, %v2023
        %v2570 = vpack.c.b16 %v2030, %v2024
        %v2571 = vpack.c.b16 %v2031, %v2025
        %v2572 = vpack.c.b16 %v2032, %v2026
        %v2573 = vpack.c.b16 %v2033, %v2027
        %v2574 = vpack.c.b16 %v2040, %v2034
        %v2575 = vpack.c.b16 %v2041, %v2035
        %v2576 = vpack.c.b16 %v2042, %v2036
        %v2577 = vpack.c.b16 %v2043, %v2037
        %v2578 = vpack.c.b16 %v2044, %v2038
        %v2579 = vpack.c.b16 %v2045, %v2039
        %v2580 = vpack.c.b16 %v2052, %v2046
        %v2581 = vpack.c.b16 %v2053, %v2047
        %v2582 = vpack.c.b16 %v2054, %v2048
        %v2583 = vpack.c.b16 %v2055, %v2049
        %v2584 = vpack.c.b16 %v2056, %v2050
        %v2585 = vpack.c.b16 %v2057, %v2051
        %v2586 = vpack.c.b16 %v2064, %v2058
        %v2587 = vpack.c.b16 %v2065, %v2059
        %v2588 = vpack.c.b16 %v2066, %v2060
        %v2589 = vpack.c.b16 %v2067, %v2061
        %v2590 = vpack.c.b16 %v2068, %v2062
        %v2591 = vpack.c.b16 %v2069, %v2063
        %v2592 = vpack.c.b16 %v2076, %v2070
        %v2593 = vpack.c.b16 %v2077, %v2071
        %v2594 = vpack.c.b16 %v2078, %v2072
        %v2595 = vpack.c.b16 %v2079, %v2073
        %v2596 = vpack.c.b16 %v2080, %v2074
        %v2597 = vpack.c.b16 %v2081, %v2075
        %v2598 = vpack.c.b16 %v2088, %v2082
        %v2599 = vpack.c.b16 %v2089, %v2083
        %v2600 = vpack.c.b16 %v2090, %v2084
        %v2601 = vpack.c.b16 %v2091, %v2085
        %v2602 = vpack.c.b16 %v2092, %v2086
        %v2603 = vpack.c.b16 %v2093, %v2087
        %v2604 = vpack.c.b16 %v2100, %v2094
        %v2605 = vpack.c.b16 %v2101, %v2095
        %v2606 = vpack.c.b16 %v2102, %v2096
        %v2607 = vpack.c.b16 %v2103, %v2097
        %v2608 = vpack.c.b16 %v2104, %v2098
        %v2609 = vpack.c.b16 %v2105, %v2099
        %v2610 = vpack.c.b16 %v2112, %v2106
        %v2611 = vpack.c.b16 %v2113, %v2107
        %v2612 = vpack.c.b16 %v2114, %v2108
        %v2613 = vpack.c.b16 %v2115, %v2109
        %v2614 = vpack.c.b16 %v2116, %v2110
        %v2615 = vpack.c.b16 %v2117, %v2111
        %v2616 = vpack.c.b16 %v2124, %v2118
        %v2617 = vpack.c.b16 %v2125, %v2119
        %v2618 = vpack.c.b16 %v2126, %v2120
        %v2619 = vpack.c.b16 %v2127, %v2121
        %v2620 = vpack.c.b16 %v2128, %v2122
        %v2621 = vpack.c.b16 %v2129, %v2123
        %v2622 = vpack.c.b16 %v2136, %v2130
        %v2623 = vpack.c.b16 %v2137, %v2131
        %v2624 = vpack.c.b16 %v2138, %v2132
        %v2625 = vpack.c.b16 %v2139, %v2133
        %v2626 = vpack.c.b16 %v2140, %v2134
        %v2627 = vpack.c.b16 %v2141, %v2135
        %v2628 = vpack.c.b16 %v2148, %v2142
        %v2629 = vpack.c.b16 %v2149, %v2143
        %v2630 = vpack.c.b16 %v2150, %v2144
        %v2631 = vpack.c.b16 %v2151, %v2145
        %v2632 = vpack.c.b16 %v2152, %v2146
        %v2633 = vpack.c.b16 %v2153, %v2147
        %v2634 = vpack.c.b16 %v2160, %v2154
        %v2635 = vpack.c.b16 %v2161, %v2155
        %v2636 = vpack.c.b16 %v2162, %v2156
        %v2637 = vpack.c.b16 %v2163, %v2157
        %v2638 = vpack.c.b16 %v2164, %v2158
        %v2639 = vpack.c.b16 %v2165, %v2159
        %v2640 = vpack.c.b16 %v2172, %v2166
        %v2641 = vpack.c.b16 %v2173, %v2167
        %v2642 = vpack.c.b16 %v2174, %v2168
        %v2643 = vpack.c.b16 %v2175, %v2169
        %v2644 = vpack.c.b16 %v2176, %v2170
        %v2645 = vpack.c.b16 %v2177, %v2171
        %v2646 = vpack.c.b16 %v2184, %v2178
        %v2647 = vpack.c.b16 %v2185, %v2179
        %v2648 = vpack.c.b16 %v2186, %v2180
        %v2649 = vpack.c.b16 %v2187, %v2181
        %v2650 = vpack.c.b16 %v2188, %v2182
        %v2651 = vpack.c.b16 %v2189, %v2183
        %v2652 = vpack.c.b16 %v2196, %v2190
        %v2653 = vpack.c.b16 %v2197, %v2191
        %v2654 = vpack.c.b16 %v2198, %v2192
        %v2655 = vpack.c.b16 %v2199, %v2193
        %v2656 = vpack.c.b16 %v2200, %v2194
        %v2657 = vpack.c.b16 %v2201, %v2195
        %v2658 = vpack.c.b16 %v2208, %v2202
        %v2659 = vpack.c.b16 %v2209, %v2203
        %v2660 = vpack.c.b16 %v2210, %v2204
        %v2661 = vpack.c.b16 %v2211, %v2205
        %v2662 = vpack.c.b16 %v2212, %v2206
        %v2663 = vpack.c.b16 %v2213, %v2207
        %v2664 = vpack.c.b16 %v2220, %v2214
        %v2665 = vpack.c.b16 %v2221, %v2215
        %v2666 = vpack.c.b16 %v2222, %v2216
        %v2667 = vpack.c.b16 %v2223, %v2217
        %v2668 = vpack.c.b16 %v2224, %v2218
        %v2669 = vpack.c.b16 %v2225, %v2219
        %v2670 = vpack.c.b16 %v2232, %v2226
        %v2671 = vpack.c.b16 %v2233, %v2227
        %v2672 = vpack.c.b16 %v2234, %v2228
        %v2673 = vpack.c.b16 %v2235, %v2229
        %v2674 = vpack.c.b16 %v2236, %v2230
        %v2675 = vpack.c.b16 %v2237, %v2231
        %v2676 = vpack.c.b16 %v2244, %v2238
        %v2677 = vpack.c.b16 %v2245, %v2239
        %v2678 = vpack.c.b16 %v2246, %v2240
        %v2679 = vpack.c.b16 %v2247, %v2241
        %v2680 = vpack.c.b16 %v2248, %v2242
        %v2681 = vpack.c.b16 %v2249, %v2243
        %3114 = vmatprep.subr.bf16.mxu0 %v2251
        %3115 = vmatpush1.bf16.msra.mxu0 %v2250
        %3116 = vmatprep.subr.bf16.mxu0 %v2257
        %3117 = vmatpush1.bf16.msra.mxu0 %v2256
        %3118 = vmatprep.subr.bf16.mxu0 %v2263
        %3119 = vmatpush1.bf16.msra.mxu0 %v2262
        %3120 = vmatprep.subr.bf16.mxu0 %v2269
        %3121 = vmatpush1.bf16.msra.mxu0 %v2268
        %3122 = vmatprep.subr.bf16.mxu0 %v2275
        %3123 = vmatpush1.bf16.msra.mxu0 %v2274
        %3124 = vmatprep.subr.bf16.mxu0 %v2281
        %3125 = vmatpush1.bf16.msra.mxu0 %v2280
        %3126 = vmatprep.subr.bf16.mxu0 %v2287
        %3127 = vmatpush1.bf16.msra.mxu0 %v2286
        %3128 = vmatprep.subr.bf16.mxu0 %v2293
        %3129 = vmatpush1.bf16.msra.mxu0 %v2292
        %3130 = vmatprep.subr.bf16.mxu0 %v2299
        %3131 = vmatpush1.bf16.msra.mxu0 %v2298
        %3132 = vmatprep.subr.bf16.mxu0 %v2305
        %3133 = vmatpush1.bf16.msra.mxu0 %v2304
        %3134 = vmatprep.subr.bf16.mxu0 %v2311
        %3135 = vmatpush1.bf16.msra.mxu0 %v2310
        %3136 = vmatprep.subr.bf16.mxu0 %v2317
        %3137 = vmatpush1.bf16.msra.mxu0 %v2316
        %3138 = vmatprep.subr.bf16.mxu0 %v2323
        %3139 = vmatpush1.bf16.msra.mxu0 %v2322
        %3140 = vmatprep.subr.bf16.mxu0 %v2329
        %3141 = vmatpush1.bf16.msra.mxu0 %v2328
        %3142 = vmatprep.subr.bf16.mxu0 %v2335
        %3143 = vmatpush1.bf16.msra.mxu0 %v2334
        %3144 = vmatprep.subr.bf16.mxu0 %v2341
        %3145 = vmatpush1.bf16.msra.mxu0 %v2340
        %3146 = vmatprep.mubr.bf16.mxu0 %v482
        %3147 = vmatmul.mubr.bf16.gmra.mrb[0].mxu0 %v481
        %v3148 = vpop.f32.mrb[0].mxu0
        %v3149 = vadd.f32 %v927, %v3148
        %v3150 = vpop.f32.mrb[0].mxu0
        %v3151 = vadd.f32 %v931, %v3150
        %v3152 = vpop.f32.mrb[0].mxu0
        %v3153 = vpop.f32.mrb[0].mxu0
        %3154 = vdwg.mxu0
        %3155 = vmatprep.subr.bf16.mxu0 %v2347
        %3156 = vmatpush1.bf16.msra.mxu0 %v2346
        %3157 = vmatprep.subr.bf16.mxu0 %v2353
        %3158 = vmatpush1.bf16.msra.mxu0 %v2352
        %3159 = vmatprep.subr.bf16.mxu0 %v2359
        %3160 = vmatpush1.bf16.msra.mxu0 %v2358
        %3161 = vmatprep.subr.bf16.mxu0 %v2365
        %3162 = vmatpush1.bf16.msra.mxu0 %v2364
        %3163 = vmatprep.subr.bf16.mxu0 %v2371
        %3164 = vmatpush1.bf16.msra.mxu0 %v2370
        %3165 = vmatprep.subr.bf16.mxu0 %v2377
        %3166 = vmatpush1.bf16.msra.mxu0 %v2376
        %3167 = vmatprep.subr.bf16.mxu0 %v2383
        %3168 = vmatpush1.bf16.msra.mxu0 %v2382
        %3169 = vmatprep.subr.bf16.mxu0 %v2389
        %3170 = vmatpush1.bf16.msra.mxu0 %v2388
        %3171 = vmatprep.subr.bf16.mxu0 %v2395
        %3172 = vmatpush1.bf16.msra.mxu0 %v2394
        %3173 = vmatprep.subr.bf16.mxu0 %v2401
        %3174 = vmatpush1.bf16.msra.mxu0 %v2400
        %3175 = vmatprep.subr.bf16.mxu0 %v2407
        %3176 = vmatpush1.bf16.msra.mxu0 %v2406
        %3177 = vmatprep.subr.bf16.mxu0 %v2413
        %3178 = vmatpush1.bf16.msra.mxu0 %v2412
        %3179 = vmatprep.subr.bf16.mxu0 %v2419
        %3180 = vmatpush1.bf16.msra.mxu0 %v2418
        %3181 = vmatprep.subr.bf16.mxu0 %v2425
        %3182 = vmatpush1.bf16.msra.mxu0 %v2424
        %3183 = vmatprep.subr.bf16.mxu0 %v2431
        %3184 = vmatpush1.bf16.msra.mxu0 %v2430
        %3185 = vmatprep.subr.bf16.mxu0 %v2437
        %3186 = vmatpush1.bf16.msra.mxu0 %v2436
        %3187 = vmatprep.mubr.bf16.mxu0 %v484
        %3188 = vmatmul.mubr.bf16.gmra.mrb[0].mxu0 %v483
        %v3189 = vpop.f32.mrb[0].mxu0
        %v3190 = vadd.f32 %v3149, %v3189
        %v3191 = vpop.f32.mrb[0].mxu0
        %v3192 = vadd.f32 %v3151, %v3191
        %v3193 = vpop.f32.mrb[0].mxu0
        %v3194 = vpop.f32.mrb[0].mxu0
        %3195 = vdwg.mxu0
        %3196 = vmatprep.subr.bf16.mxu0 %v2443
        %3197 = vmatpush1.bf16.msra.mxu0 %v2442
        %3198 = vmatprep.subr.bf16.mxu0 %v2449
        %3199 = vmatpush1.bf16.msra.mxu0 %v2448
        %3200 = vmatprep.subr.bf16.mxu0 %v2455
        %3201 = vmatpush1.bf16.msra.mxu0 %v2454
        %3202 = vmatprep.subr.bf16.mxu0 %v2461
        %3203 = vmatpush1.bf16.msra.mxu0 %v2460
        %3204 = vmatprep.subr.bf16.mxu0 %v2467
        %3205 = vmatpush1.bf16.msra.mxu0 %v2466
        %3206 = vmatprep.subr.bf16.mxu0 %v2473
        %3207 = vmatpush1.bf16.msra.mxu0 %v2472
        %3208 = vmatprep.subr.bf16.mxu0 %v2479
        %3209 = vmatpush1.bf16.msra.mxu0 %v2478
        %3210 = vmatprep.subr.bf16.mxu0 %v2485
        %3211 = vmatpush1.bf16.msra.mxu0 %v2484
        %3212 = vmatprep.subr.bf16.mxu0 %v2491
        %3213 = vmatpush1.bf16.msra.mxu0 %v2490
        %3214 = vmatprep.subr.bf16.mxu0 %v2497
        %3215 = vmatpush1.bf16.msra.mxu0 %v2496
        %3216 = vmatprep.subr.bf16.mxu0 %v2503
        %3217 = vmatpush1.bf16.msra.mxu0 %v2502
        %3218 = vmatprep.subr.bf16.mxu0 %v2509
        %3219 = vmatpush1.bf16.msra.mxu0 %v2508
        %3220 = vmatprep.subr.bf16.mxu0 %v2515
        %3221 = vmatpush1.bf16.msra.mxu0 %v2514
        %3222 = vmatprep.subr.bf16.mxu0 %v2521
        %3223 = vmatpush1.bf16.msra.mxu0 %v2520
        %3224 = vmatprep.subr.bf16.mxu0 %v2527
        %3225 = vmatpush1.bf16.msra.mxu0 %v2526
        %3226 = vmatprep.subr.bf16.mxu0 %v2533
        %3227 = vmatpush1.bf16.msra.mxu0 %v2532
        %3228 = vmatprep.mubr.bf16.mxu0 %v486
        %3229 = vmatmul.mubr.bf16.gmra.mrb[0].mxu0 %v485
        %v3230 = vpop.f32.mrb[0].mxu0
        %v3231 = vadd.f32 %v3190, %v3230
        %v3232 = vpop.f32.mrb[0].mxu0
        %v3233 = vadd.f32 %v3192, %v3232
        %v3234 = vpop.f32.mrb[0].mxu0
        %v3235 = vpop.f32.mrb[0].mxu0
        %3236 = vdwg.mxu0
        %3237 = vmatprep.subr.bf16.mxu0 %v2539
        %3238 = vmatpush1.bf16.msra.mxu0 %v2538
        %3239 = vmatprep.subr.bf16.mxu0 %v2545
        %3240 = vmatpush1.bf16.msra.mxu0 %v2544
        %3241 = vmatprep.subr.bf16.mxu0 %v2551
        %3242 = vmatpush1.bf16.msra.mxu0 %v2550
        %3243 = vmatprep.subr.bf16.mxu0 %v2557
        %3244 = vmatpush1.bf16.msra.mxu0 %v2556
        %3245 = vmatprep.subr.bf16.mxu0 %v2563
        %3246 = vmatpush1.bf16.msra.mxu0 %v2562
        %3247 = vmatprep.subr.bf16.mxu0 %v2569
        %3248 = vmatpush1.bf16.msra.mxu0 %v2568
        %3249 = vmatprep.subr.bf16.mxu0 %v2575
        %3250 = vmatpush1.bf16.msra.mxu0 %v2574
        %3251 = vmatprep.subr.bf16.mxu0 %v2581
        %3252 = vmatpush1.bf16.msra.mxu0 %v2580
        %3253 = vmatprep.subr.bf16.mxu0 %v2587
        %3254 = vmatpush1.bf16.msra.mxu0 %v2586
        %3255 = vmatprep.subr.bf16.mxu0 %v2593
        %3256 = vmatpush1.bf16.msra.mxu0 %v2592
        %3257 = vmatprep.subr.bf16.mxu0 %v2599
        %3258 = vmatpush1.bf16.msra.mxu0 %v2598
        %3259 = vmatprep.subr.bf16.mxu0 %v2605
        %3260 = vmatpush1.bf16.msra.mxu0 %v2604
        %3261 = vmatprep.subr.bf16.mxu0 %v2611
        %3262 = vmatpush1.bf16.msra.mxu0 %v2610
        %3263 = vmatprep.subr.bf16.mxu0 %v2617
        %3264 = vmatpush1.bf16.msra.mxu0 %v2616
        %3265 = vmatprep.subr.bf16.mxu0 %v2623
        %3266 = vmatpush1.bf16.msra.mxu0 %v2622
        %3267 = vmatprep.subr.bf16.mxu0 %v2629
        %3268 = vmatpush1.bf16.msra.mxu0 %v2628
        %3269 = vmatprep.mubr.bf16.mxu0 %v488
        %3270 = vmatmul.mubr.bf16.gmra.mrb[0].mxu0 %v487
        %v3271 = vpop.f32.mrb[0].mxu0
        %v3272 = vadd.f32 %v3231, %v3271
        %v3273 = vpop.f32.mrb[0].mxu0
        %v3274 = vadd.f32 %v3233, %v3273
        %v3275 = vpop.f32.mrb[0].mxu0
        %v3276 = vpop.f32.mrb[0].mxu0
        %3277 = vdwg.mxu0
        %3278 = vmatprep.subr.bf16.mxu0 %v2635
        %3279 = vmatpush1.bf16.msra.mxu0 %v2634
        %3280 = vmatprep.subr.bf16.mxu0 %v2641
        %3281 = vmatpush1.bf16.msra.mxu0 %v2640
        %3282 = vmatprep.subr.bf16.mxu0 %v2647
        %3283 = vmatpush1.bf16.msra.mxu0 %v2646
        %3284 = vmatprep.subr.bf16.mxu0 %v2653
        %3285 = vmatpush1.bf16.msra.mxu0 %v2652
        %3286 = vmatprep.subr.bf16.mxu0 %v2659
        %3287 = vmatpush1.bf16.msra.mxu0 %v2658
        %3288 = vmatprep.subr.bf16.mxu0 %v2665
        %3289 = vmatpush1.bf16.msra.mxu0 %v2664
        %3290 = vmatprep.subr.bf16.mxu0 %v2671
        %3291 = vmatpush1.bf16.msra.mxu0 %v2670
        %3292 = vmatprep.subr.bf16.mxu0 %v2677
        %3293 = vmatpush1.bf16.msra.mxu0 %v2676
        %3294 = vmatprep.subr.bf16.mxu0 0
        %3295 = vmatpush1.bf16.msra.mxu0 0
        %3296 = vmatprep.subr.bf16.mxu0 0
        %3297 = vmatpush1.bf16.msra.mxu0 0
        %3298 = vmatprep.subr.bf16.mxu0 0
        %3299 = vmatpush1.bf16.msra.mxu0 0
        %3300 = vmatprep.subr.bf16.mxu0 0
        %3301 = vmatpush1.bf16.msra.mxu0 0
        %3302 = vmatprep.subr.bf16.mxu0 0
        %3303 = vmatpush1.bf16.msra.mxu0 0
        %3304 = vmatprep.subr.bf16.mxu0 0
        %3305 = vmatpush1.bf16.msra.mxu0 0
        %3306 = vmatprep.subr.bf16.mxu0 0
        %3307 = vmatpush1.bf16.msra.mxu0 0
        %3308 = vmatprep.subr.bf16.mxu0 0
        %3309 = vmatpush1.bf16.msra.mxu0 0
        %3310 = vmatprep.mubr.bf16.mxu0 0
        %3311 = vmatmul.mubr.bf16.gmra.mrb[0].mxu0 %v489
        %v3312 = vpop.f32.mrb[0].mxu0
        %v3313 = vadd.f32 %v3272, %v3312
        %v3314 = vpop.f32.mrb[0].mxu0
        %v3315 = vadd.f32 %v3274, %v3314
        %v3316 = vpop.f32.mrb[0].mxu0
        %v3317 = vpop.f32.mrb[0].mxu0
        %3318 = vdwg.mxu0
        %3319 = vmatprep.subr.bf16.mxu0 %v2253
        %3320 = vmatpush1.bf16.msra.mxu0 %v2252
        %3321 = vmatprep.subr.bf16.mxu0 %v2259
        %3322 = vmatpush1.bf16.msra.mxu0 %v2258
        %3323 = vmatprep.subr.bf16.mxu0 %v2265
        %3324 = vmatpush1.bf16.msra.mxu0 %v2264
        %3325 = vmatprep.subr.bf16.mxu0 %v2271
        %3326 = vmatpush1.bf16.msra.mxu0 %v2270
        %3327 = vmatprep.subr.bf16.mxu0 %v2277
        %3328 = vmatpush1.bf16.msra.mxu0 %v2276
        %3329 = vmatprep.subr.bf16.mxu0 %v2283
        %3330 = vmatpush1.bf16.msra.mxu0 %v2282
        %3331 = vmatprep.subr.bf16.mxu0 %v2289
        %3332 = vmatpush1.bf16.msra.mxu0 %v2288
        %3333 = vmatprep.subr.bf16.mxu0 %v2295
        %3334 = vmatpush1.bf16.msra.mxu0 %v2294
        %3335 = vmatprep.subr.bf16.mxu0 %v2301
        %3336 = vmatpush1.bf16.msra.mxu0 %v2300
        %3337 = vmatprep.subr.bf16.mxu0 %v2307
        %3338 = vmatpush1.bf16.msra.mxu0 %v2306
        %3339 = vmatprep.subr.bf16.mxu0 %v2313
        %3340 = vmatpush1.bf16.msra.mxu0 %v2312
        %3341 = vmatprep.subr.bf16.mxu0 %v2319
        %3342 = vmatpush1.bf16.msra.mxu0 %v2318
        %3343 = vmatprep.subr.bf16.mxu0 %v2325
        %3344 = vmatpush1.bf16.msra.mxu0 %v2324
        %3345 = vmatprep.subr.bf16.mxu0 %v2331
        %3346 = vmatpush1.bf16.msra.mxu0 %v2330
        %3347 = vmatprep.subr.bf16.mxu0 %v2337
        %3348 = vmatpush1.bf16.msra.mxu0 %v2336
        %3349 = vmatprep.subr.bf16.mxu0 %v2343
        %3350 = vmatpush1.bf16.msra.mxu0 %v2342
        %3351 = vmatprep.mubr.bf16.mxu0 %v482
        %3352 = vmatmul.mubr.bf16.gmra.mrb[0].mxu0 %v481
        %v3353 = vpop.f32.mrb[0].mxu0
        %v3354 = vadd.f32 %v935, %v3353
        %v3355 = vpop.f32.mrb[0].mxu0
        %v3356 = vadd.f32 %v939, %v3355
        %v3357 = vpop.f32.mrb[0].mxu0
        %v3358 = vpop.f32.mrb[0].mxu0
        %3359 = vdwg.mxu0
        %3360 = vmatprep.subr.bf16.mxu0 %v2349
        %3361 = vmatpush1.bf16.msra.mxu0 %v2348
        %3362 = vmatprep.subr.bf16.mxu0 %v2355
        %3363 = vmatpush1.bf16.msra.mxu0 %v2354
        %3364 = vmatprep.subr.bf16.mxu0 %v2361
        %3365 = vmatpush1.bf16.msra.mxu0 %v2360
        %3366 = vmatprep.subr.bf16.mxu0 %v2367
        %3367 = vmatpush1.bf16.msra.mxu0 %v2366
        %3368 = vmatprep.subr.bf16.mxu0 %v2373
        %3369 = vmatpush1.bf16.msra.mxu0 %v2372
        %3370 = vmatprep.subr.bf16.mxu0 %v2379
        %3371 = vmatpush1.bf16.msra.mxu0 %v2378
        %3372 = vmatprep.subr.bf16.mxu0 %v2385
        %3373 = vmatpush1.bf16.msra.mxu0 %v2384
        %3374 = vmatprep.subr.bf16.mxu0 %v2391
        %3375 = vmatpush1.bf16.msra.mxu0 %v2390
        %3376 = vmatprep.subr.bf16.mxu0 %v2397
        %3377 = vmatpush1.bf16.msra.mxu0 %v2396
        %3378 = vmatprep.subr.bf16.mxu0 %v2403
        %3379 = vmatpush1.bf16.msra.mxu0 %v2402
        %3380 = vmatprep.subr.bf16.mxu0 %v2409
        %3381 = vmatpush1.bf16.msra.mxu0 %v2408
        %3382 = vmatprep.subr.bf16.mxu0 %v2415
        %3383 = vmatpush1.bf16.msra.mxu0 %v2414
        %3384 = vmatprep.subr.bf16.mxu0 %v2421
        %3385 = vmatpush1.bf16.msra.mxu0 %v2420
        %3386 = vmatprep.subr.bf16.mxu0 %v2427
        %3387 = vmatpush1.bf16.msra.mxu0 %v2426
        %3388 = vmatprep.subr.bf16.mxu0 %v2433
        %3389 = vmatpush1.bf16.msra.mxu0 %v2432
        %3390 = vmatprep.subr.bf16.mxu0 %v2439
        %3391 = vmatpush1.bf16.msra.mxu0 %v2438
        %3392 = vmatprep.mubr.bf16.mxu0 %v484
        %3393 = vmatmul.mubr.bf16.gmra.mrb[0].mxu0 %v483
        %v3394 = vpop.f32.mrb[0].mxu0
        %v3395 = vadd.f32 %v3354, %v3394
        %v3396 = vpop.f32.mrb[0].mxu0
        %v3397 = vadd.f32 %v3356, %v3396
        %v3398 = vpop.f32.mrb[0].mxu0
        %v3399 = vpop.f32.mrb[0].mxu0
        %3400 = vdwg.mxu0
        %3401 = vmatprep.subr.bf16.mxu0 %v2445
        %3402 = vmatpush1.bf16.msra.mxu0 %v2444
        %3403 = vmatprep.subr.bf16.mxu0 %v2451
        %3404 = vmatpush1.bf16.msra.mxu0 %v2450
        %3405 = vmatprep.subr.bf16.mxu0 %v2457
        %3406 = vmatpush1.bf16.msra.mxu0 %v2456
        %3407 = vmatprep.subr.bf16.mxu0 %v2463
        %3408 = vmatpush1.bf16.msra.mxu0 %v2462
        %3409 = vmatprep.subr.bf16.mxu0 %v2469
        %3410 = vmatpush1.bf16.msra.mxu0 %v2468
        %3411 = vmatprep.subr.bf16.mxu0 %v2475
        %3412 = vmatpush1.bf16.msra.mxu0 %v2474
        %3413 = vmatprep.subr.bf16.mxu0 %v2481
        %3414 = vmatpush1.bf16.msra.mxu0 %v2480
        %3415 = vmatprep.subr.bf16.mxu0 %v2487
        %3416 = vmatpush1.bf16.msra.mxu0 %v2486
        %3417 = vmatprep.subr.bf16.mxu0 %v2493
        %3418 = vmatpush1.bf16.msra.mxu0 %v2492
        %3419 = vmatprep.subr.bf16.mxu0 %v2499
        %3420 = vmatpush1.bf16.msra.mxu0 %v2498
        %3421 = vmatprep.subr.bf16.mxu0 %v2505
        %3422 = vmatpush1.bf16.msra.mxu0 %v2504
        %3423 = vmatprep.subr.bf16.mxu0 %v2511
        %3424 = vmatpush1.bf16.msra.mxu0 %v2510
        %3425 = vmatprep.subr.bf16.mxu0 %v2517
        %3426 = vmatpush1.bf16.msra.mxu0 %v2516
        %3427 = vmatprep.subr.bf16.mxu0 %v2523
        %3428 = vmatpush1.bf16.msra.mxu0 %v2522
        %3429 = vmatprep.subr.bf16.mxu0 %v2529
        %3430 = vmatpush1.bf16.msra.mxu0 %v2528
        %3431 = vmatprep.subr.bf16.mxu0 %v2535
        %3432 = vmatpush1.bf16.msra.mxu0 %v2534
        %3433 = vmatprep.mubr.bf16.mxu0 %v486
        %3434 = vmatmul.mubr.bf16.gmra.mrb[0].mxu0 %v485
        %v3435 = vpop.f32.mrb[0].mxu0
        %v3436 = vadd.f32 %v3395, %v3435
        %v3437 = vpop.f32.mrb[0].mxu0
        %v3438 = vadd.f32 %v3397, %v3437
        %v3439 = vpop.f32.mrb[0].mxu0
        %v3440 = vpop.f32.mrb[0].mxu0
        %3441 = vdwg.mxu0
        %3442 = vmatprep.subr.bf16.mxu0 %v2541
        %3443 = vmatpush1.bf16.msra.mxu0 %v2540
        %3444 = vmatprep.subr.bf16.mxu0 %v2547
        %3445 = vmatpush1.bf16.msra.mxu0 %v2546
        %3446 = vmatprep.subr.bf16.mxu0 %v2553
        %3447 = vmatpush1.bf16.msra.mxu0 %v2552
        %3448 = vmatprep.subr.bf16.mxu0 %v2559
        %3449 = vmatpush1.bf16.msra.mxu0 %v2558
        %3450 = vmatprep.subr.bf16.mxu0 %v2565
        %3451 = vmatpush1.bf16.msra.mxu0 %v2564
        %3452 = vmatprep.subr.bf16.mxu0 %v2571
        %3453 = vmatpush1.bf16.msra.mxu0 %v2570
        %3454 = vmatprep.subr.bf16.mxu0 %v2577
        %3455 = vmatpush1.bf16.msra.mxu0 %v2576
        %3456 = vmatprep.subr.bf16.mxu0 %v2583
        %3457 = vmatpush1.bf16.msra.mxu0 %v2582
        %3458 = vmatprep.subr.bf16.mxu0 %v2589
        %3459 = vmatpush1.bf16.msra.mxu0 %v2588
        %3460 = vmatprep.subr.bf16.mxu0 %v2595
        %3461 = vmatpush1.bf16.msra.mxu0 %v2594
        %3462 = vmatprep.subr.bf16.mxu0 %v2601
        %3463 = vmatpush1.bf16.msra.mxu0 %v2600
        %3464 = vmatprep.subr.bf16.mxu0 %v2607
        %3465 = vmatpush1.bf16.msra.mxu0 %v2606
        %3466 = vmatprep.subr.bf16.mxu0 %v2613
        %3467 = vmatpush1.bf16.msra.mxu0 %v2612
        %3468 = vmatprep.subr.bf16.mxu0 %v2619
        %3469 = vmatpush1.bf16.msra.mxu0 %v2618
        %3470 = vmatprep.subr.bf16.mxu0 %v2625
        %3471 = vmatpush1.bf16.msra.mxu0 %v2624
        %3472 = vmatprep.subr.bf16.mxu0 %v2631
        %3473 = vmatpush1.bf16.msra.mxu0 %v2630
        %3474 = vmatprep.mubr.bf16.mxu0 %v488
        %3475 = vmatmul.mubr.bf16.gmra.mrb[0].mxu0 %v487
        %v3476 = vpop.f32.mrb[0].mxu0
        %v3477 = vadd.f32 %v3436, %v3476
        %v3478 = vpop.f32.mrb[0].mxu0
        %v3479 = vadd.f32 %v3438, %v3478
        %v3480 = vpop.f32.mrb[0].mxu0
        %v3481 = vpop.f32.mrb[0].mxu0
        %3482 = vdwg.mxu0
        %3483 = vmatprep.subr.bf16.mxu0 %v2637
        %3484 = vmatpush1.bf16.msra.mxu0 %v2636
        %3485 = vmatprep.subr.bf16.mxu0 %v2643
        %3486 = vmatpush1.bf16.msra.mxu0 %v2642
        %3487 = vmatprep.subr.bf16.mxu0 %v2649
        %3488 = vmatpush1.bf16.msra.mxu0 %v2648
        %3489 = vmatprep.subr.bf16.mxu0 %v2655
        %3490 = vmatpush1.bf16.msra.mxu0 %v2654
        %3491 = vmatprep.subr.bf16.mxu0 %v2661
        %3492 = vmatpush1.bf16.msra.mxu0 %v2660
        %3493 = vmatprep.subr.bf16.mxu0 %v2667
        %3494 = vmatpush1.bf16.msra.mxu0 %v2666
        %3495 = vmatprep.subr.bf16.mxu0 %v2673
        %3496 = vmatpush1.bf16.msra.mxu0 %v2672
        %3497 = vmatprep.subr.bf16.mxu0 %v2679
        %3498 = vmatpush1.bf16.msra.mxu0 %v2678
        %3499 = vmatprep.subr.bf16.mxu0 0
        %3500 = vmatpush1.bf16.msra.mxu0 0
        %3501 = vmatprep.subr.bf16.mxu0 0
        %3502 = vmatpush1.bf16.msra.mxu0 0
        %3503 = vmatprep.subr.bf16.mxu0 0
        %3504 = vmatpush1.bf16.msra.mxu0 0
        %3505 = vmatprep.subr.bf16.mxu0 0
        %3506 = vmatpush1.bf16.msra.mxu0 0
        %3507 = vmatprep.subr.bf16.mxu0 0
        %3508 = vmatpush1.bf16.msra.mxu0 0
        %3509 = vmatprep.subr.bf16.mxu0 0
        %3510 = vmatpush1.bf16.msra.mxu0 0
        %3511 = vmatprep.subr.bf16.mxu0 0
        %3512 = vmatpush1.bf16.msra.mxu0 0
        %3513 = vmatprep.subr.bf16.mxu0 0
        %3514 = vmatpush1.bf16.msra.mxu0 0
        %3515 = vmatprep.mubr.bf16.mxu0 0
        %3516 = vmatmul.mubr.bf16.gmra.mrb[0].mxu0 %v489
        %v3517 = vpop.f32.mrb[0].mxu0
        %v3518 = vadd.f32 %v3477, %v3517
        %v3519 = vpop.f32.mrb[0].mxu0
        %v3520 = vadd.f32 %v3479, %v3519
        %v3521 = vpop.f32.mrb[0].mxu0
        %v3522 = vpop.f32.mrb[0].mxu0
        %3523 = vdwg.mxu0
        %3524 = vmatprep.subr.bf16.mxu0 %v2255
        %3525 = vmatpush1.bf16.msra.mxu0 %v2254
        %3526 = vmatprep.subr.bf16.mxu0 %v2261
        %3527 = vmatpush1.bf16.msra.mxu0 %v2260
        %3528 = vmatprep.subr.bf16.mxu0 %v2267
        %3529 = vmatpush1.bf16.msra.mxu0 %v2266
        %3530 = vmatprep.subr.bf16.mxu0 %v2273
        %3531 = vmatpush1.bf16.msra.mxu0 %v2272
        %3532 = vmatprep.subr.bf16.mxu0 %v2279
        %3533 = vmatpush1.bf16.msra.mxu0 %v2278
        %3534 = vmatprep.subr.bf16.mxu0 %v2285
        %3535 = vmatpush1.bf16.msra.mxu0 %v2284
        %3536 = vmatprep.subr.bf16.mxu0 %v2291
        %3537 = vmatpush1.bf16.msra.mxu0 %v2290
        %3538 = vmatprep.subr.bf16.mxu0 %v2297
        %3539 = vmatpush1.bf16.msra.mxu0 %v2296
        %3540 = vmatprep.subr.bf16.mxu0 %v2303
        %3541 = vmatpush1.bf16.msra.mxu0 %v2302
        %3542 = vmatprep.subr.bf16.mxu0 %v2309
        %3543 = vmatpush1.bf16.msra.mxu0 %v2308
        %3544 = vmatprep.subr.bf16.mxu0 %v2315
        %3545 = vmatpush1.bf16.msra.mxu0 %v2314
        %3546 = vmatprep.subr.bf16.mxu0 %v2321
        %3547 = vmatpush1.bf16.msra.mxu0 %v2320
        %3548 = vmatprep.subr.bf16.mxu0 %v2327
        %3549 = vmatpush1.bf16.msra.mxu0 %v2326
        %3550 = vmatprep.subr.bf16.mxu0 %v2333
        %3551 = vmatpush1.bf16.msra.mxu0 %v2332
        %3552 = vmatprep.subr.bf16.mxu0 %v2339
        %3553 = vmatpush1.bf16.msra.mxu0 %v2338
        %3554 = vmatprep.subr.bf16.mxu0 %v2345
        %3555 = vmatpush1.bf16.msra.mxu0 %v2344
        %3556 = vmatprep.mubr.bf16.mxu0 %v482
        %3557 = vmatmul.mubr.bf16.gmra.mrb[0].mxu0 %v481
        %v3558 = vpop.f32.mrb[0].mxu0
        %v3559 = vadd.f32 %v943, %v3558
        %v3560 = vpop.f32.mrb[0].mxu0
        %v3561 = vadd.f32 %v947, %v3560
        %v3562 = vpop.f32.mrb[0].mxu0
        %v3563 = vpop.f32.mrb[0].mxu0
        %3564 = vdwg.mxu0
        %3565 = vmatprep.subr.bf16.mxu0 %v2351
        %3566 = vmatpush1.bf16.msra.mxu0 %v2350
        %3567 = vmatprep.subr.bf16.mxu0 %v2357
        %3568 = vmatpush1.bf16.msra.mxu0 %v2356
        %3569 = vmatprep.subr.bf16.mxu0 %v2363
        %3570 = vmatpush1.bf16.msra.mxu0 %v2362
        %3571 = vmatprep.subr.bf16.mxu0 %v2369
        %3572 = vmatpush1.bf16.msra.mxu0 %v2368
        %3573 = vmatprep.subr.bf16.mxu0 %v2375
        %3574 = vmatpush1.bf16.msra.mxu0 %v2374
        %3575 = vmatprep.subr.bf16.mxu0 %v2381
        %3576 = vmatpush1.bf16.msra.mxu0 %v2380
        %3577 = vmatprep.subr.bf16.mxu0 %v2387
        %3578 = vmatpush1.bf16.msra.mxu0 %v2386
        %3579 = vmatprep.subr.bf16.mxu0 %v2393
        %3580 = vmatpush1.bf16.msra.mxu0 %v2392
        %3581 = vmatprep.subr.bf16.mxu0 %v2399
        %3582 = vmatpush1.bf16.msra.mxu0 %v2398
        %3583 = vmatprep.subr.bf16.mxu0 %v2405
        %3584 = vmatpush1.bf16.msra.mxu0 %v2404
        %3585 = vmatprep.subr.bf16.mxu0 %v2411
        %3586 = vmatpush1.bf16.msra.mxu0 %v2410
        %3587 = vmatprep.subr.bf16.mxu0 %v2417
        %3588 = vmatpush1.bf16.msra.mxu0 %v2416
        %3589 = vmatprep.subr.bf16.mxu0 %v2423
        %3590 = vmatpush1.bf16.msra.mxu0 %v2422
        %3591 = vmatprep.subr.bf16.mxu0 %v2429
        %3592 = vmatpush1.bf16.msra.mxu0 %v2428
        %3593 = vmatprep.subr.bf16.mxu0 %v2435
        %3594 = vmatpush1.bf16.msra.mxu0 %v2434
        %3595 = vmatprep.subr.bf16.mxu0 %v2441
        %3596 = vmatpush1.bf16.msra.mxu0 %v2440
        %3597 = vmatprep.mubr.bf16.mxu0 %v484
        %3598 = vmatmul.mubr.bf16.gmra.mrb[0].mxu0 %v483
        %v3599 = vpop.f32.mrb[0].mxu0
        %v3600 = vadd.f32 %v3559, %v3599
        %v3601 = vpop.f32.mrb[0].mxu0
        %v3602 = vadd.f32 %v3561, %v3601
        %v3603 = vpop.f32.mrb[0].mxu0
        %v3604 = vpop.f32.mrb[0].mxu0
        %3605 = vdwg.mxu0
        %3606 = vmatprep.subr.bf16.mxu0 %v2447
        %3607 = vmatpush1.bf16.msra.mxu0 %v2446
        %3608 = vmatprep.subr.bf16.mxu0 %v2453
        %3609 = vmatpush1.bf16.msra.mxu0 %v2452
        %3610 = vmatprep.subr.bf16.mxu0 %v2459
        %3611 = vmatpush1.bf16.msra.mxu0 %v2458
        %3612 = vmatprep.subr.bf16.mxu0 %v2465
        %3613 = vmatpush1.bf16.msra.mxu0 %v2464
        %3614 = vmatprep.subr.bf16.mxu0 %v2471
        %3615 = vmatpush1.bf16.msra.mxu0 %v2470
        %3616 = vmatprep.subr.bf16.mxu0 %v2477
        %3617 = vmatpush1.bf16.msra.mxu0 %v2476
        %3618 = vmatprep.subr.bf16.mxu0 %v2483
        %3619 = vmatpush1.bf16.msra.mxu0 %v2482
        %3620 = vmatprep.subr.bf16.mxu0 %v2489
        %3621 = vmatpush1.bf16.msra.mxu0 %v2488
        %3622 = vmatprep.subr.bf16.mxu0 %v2495
        %3623 = vmatpush1.bf16.msra.mxu0 %v2494
        %3624 = vmatprep.subr.bf16.mxu0 %v2501
        %3625 = vmatpush1.bf16.msra.mxu0 %v2500
        %3626 = vmatprep.subr.bf16.mxu0 %v2507
        %3627 = vmatpush1.bf16.msra.mxu0 %v2506
        %3628 = vmatprep.subr.bf16.mxu0 %v2513
        %3629 = vmatpush1.bf16.msra.mxu0 %v2512
        %3630 = vmatprep.subr.bf16.mxu0 %v2519
        %3631 = vmatpush1.bf16.msra.mxu0 %v2518
        %3632 = vmatprep.subr.bf16.mxu0 %v2525
        %3633 = vmatpush1.bf16.msra.mxu0 %v2524
        %3634 = vmatprep.subr.bf16.mxu0 %v2531
        %3635 = vmatpush1.bf16.msra.mxu0 %v2530
        %3636 = vmatprep.subr.bf16.mxu0 %v2537
        %3637 = vmatpush1.bf16.msra.mxu0 %v2536
        %3638 = vmatprep.mubr.bf16.mxu0 %v486
        %3639 = vmatmul.mubr.bf16.gmra.mrb[0].mxu0 %v485
        %v3640 = vpop.f32.mrb[0].mxu0
        %v3641 = vadd.f32 %v3600, %v3640
        %v3642 = vpop.f32.mrb[0].mxu0
        %v3643 = vadd.f32 %v3602, %v3642
        %v3644 = vpop.f32.mrb[0].mxu0
        %v3645 = vpop.f32.mrb[0].mxu0
        %3646 = vdwg.mxu0
        %3647 = vmatprep.subr.bf16.mxu0 %v2543
        %3648 = vmatpush1.bf16.msra.mxu0 %v2542
        %3649 = vmatprep.subr.bf16.mxu0 %v2549
        %3650 = vmatpush1.bf16.msra.mxu0 %v2548
        %3651 = vmatprep.subr.bf16.mxu0 %v2555
        %3652 = vmatpush1.bf16.msra.mxu0 %v2554
        %3653 = vmatprep.subr.bf16.mxu0 %v2561
        %3654 = vmatpush1.bf16.msra.mxu0 %v2560
        %3655 = vmatprep.subr.bf16.mxu0 %v2567
        %3656 = vmatpush1.bf16.msra.mxu0 %v2566
        %3657 = vmatprep.subr.bf16.mxu0 %v2573
        %3658 = vmatpush1.bf16.msra.mxu0 %v2572
        %3659 = vmatprep.subr.bf16.mxu0 %v2579
        %3660 = vmatpush1.bf16.msra.mxu0 %v2578
        %3661 = vmatprep.subr.bf16.mxu0 %v2585
        %3662 = vmatpush1.bf16.msra.mxu0 %v2584
        %3663 = vmatprep.subr.bf16.mxu0 %v2591
        %3664 = vmatpush1.bf16.msra.mxu0 %v2590
        %3665 = vmatprep.subr.bf16.mxu0 %v2597
        %3666 = vmatpush1.bf16.msra.mxu0 %v2596
        %3667 = vmatprep.subr.bf16.mxu0 %v2603
        %3668 = vmatpush1.bf16.msra.mxu0 %v2602
        %3669 = vmatprep.subr.bf16.mxu0 %v2609
        %3670 = vmatpush1.bf16.msra.mxu0 %v2608
        %3671 = vmatprep.subr.bf16.mxu0 %v2615
        %3672 = vmatpush1.bf16.msra.mxu0 %v2614
        %3673 = vmatprep.subr.bf16.mxu0 %v2621
        %3674 = vmatpush1.bf16.msra.mxu0 %v2620
        %3675 = vmatprep.subr.bf16.mxu0 %v2627
        %3676 = vmatpush1.bf16.msra.mxu0 %v2626
        %3677 = vmatprep.subr.bf16.mxu0 %v2633
        %3678 = vmatpush1.bf16.msra.mxu0 %v2632
        %3679 = vmatprep.mubr.bf16.mxu0 %v488
        %3680 = vmatmul.mubr.bf16.gmra.mrb[0].mxu0 %v487
        %v3681 = vpop.f32.mrb[0].mxu0
        %v3682 = vadd.f32 %v3641, %v3681
        %v3683 = vpop.f32.mrb[0].mxu0
        %v3684 = vadd.f32 %v3643, %v3683
        %v3685 = vpop.f32.mrb[0].mxu0
        %v3686 = vpop.f32.mrb[0].mxu0
        %3687 = vdwg.mxu0
        %3688 = vmatprep.subr.bf16.mxu0 %v2639
        %3689 = vmatpush1.bf16.msra.mxu0 %v2638
        %3690 = vmatprep.subr.bf16.mxu0 %v2645
        %3691 = vmatpush1.bf16.msra.mxu0 %v2644
        %3692 = vmatprep.subr.bf16.mxu0 %v2651
        %3693 = vmatpush1.bf16.msra.mxu0 %v2650
        %3694 = vmatprep.subr.bf16.mxu0 %v2657
        %3695 = vmatpush1.bf16.msra.mxu0 %v2656
        %3696 = vmatprep.subr.bf16.mxu0 %v2663
        %3697 = vmatpush1.bf16.msra.mxu0 %v2662
        %3698 = vmatprep.subr.bf16.mxu0 %v2669
        %3699 = vmatpush1.bf16.msra.mxu0 %v2668
        %3700 = vmatprep.subr.bf16.mxu0 %v2675
        %3701 = vmatpush1.bf16.msra.mxu0 %v2674
        %3702 = vmatprep.subr.bf16.mxu0 %v2681
        %3703 = vmatpush1.bf16.msra.mxu0 %v2680
        %3704 = vmatprep.subr.bf16.mxu0 0
        %3705 = vmatpush1.bf16.msra.mxu0 0
        %3706 = vmatprep.subr.bf16.mxu0 0
        %3707 = vmatpush1.bf16.msra.mxu0 0
        %3708 = vmatprep.subr.bf16.mxu0 0
        %3709 = vmatpush1.bf16.msra.mxu0 0
        %3710 = vmatprep.subr.bf16.mxu0 0
        %3711 = vmatpush1.bf16.msra.mxu0 0
        %3712 = vmatprep.subr.bf16.mxu0 0
        %3713 = vmatpush1.bf16.msra.mxu0 0
        %3714 = vmatprep.subr.bf16.mxu0 0
        %3715 = vmatpush1.bf16.msra.mxu0 0
        %3716 = vmatprep.subr.bf16.mxu0 0
        %3717 = vmatpush1.bf16.msra.mxu0 0
        %3718 = vmatprep.subr.bf16.mxu0 0
        %3719 = vmatpush1.bf16.msra.mxu0 0
        %3720 = vmatprep.mubr.bf16.mxu0 0
        %3721 = vmatmul.mubr.bf16.gmra.mrb[0].mxu0 %v489
        %v3722 = vpop.f32.mrb[0].mxu0
        %v3723 = vadd.f32 %v3682, %v3722
        %v3724 = vpop.f32.mrb[0].mxu0
        %v3725 = vadd.f32 %v3684, %v3724
        %v3726 = vpop.f32.mrb[0].mxu0
        %v3727 = vpop.f32.mrb[0].mxu0
        %3728 = vdwg.mxu0
        %v3729 = vrot.slane %v3313, 4
        %v3730 = vadd.f32 %v3313, %v3729
        %v3731 = vrot.slane %v3730, 2
        %v3732 = vadd.f32 %v3730, %v3731
        %v3733 = vrot.slane %v3732, 1
        %v3734 = vadd.f32 %v3732, %v3733
        %v3735 = vrot.slane %v3315, 4
        %v3736 = vadd.f32 %v3315, %v3735
        %v3737 = vrot.slane %v3736, 2
        %v3738 = vadd.f32 %v3736, %v3737
        %v3739 = vrot.slane %v3738, 1
        %v3740 = vadd.f32 %v3738, %v3739
        %v3741 = vrot.slane %v3518, 4
        %v3742 = vadd.f32 %v3518, %v3741
        %v3743 = vrot.slane %v3742, 2
        %v3744 = vadd.f32 %v3742, %v3743
        %v3745 = vrot.slane %v3744, 1
        %v3746 = vadd.f32 %v3744, %v3745
        %v3747 = vrot.slane %v3520, 4
        %v3748 = vadd.f32 %v3520, %v3747
        %v3749 = vrot.slane %v3748, 2
        %v3750 = vadd.f32 %v3748, %v3749
        %v3751 = vrot.slane %v3750, 1
        %v3752 = vadd.f32 %v3750, %v3751
        %v3753 = vrot.slane %v3723, 4
        %v3754 = vadd.f32 %v3723, %v3753
        %v3755 = vrot.slane %v3754, 2
        %v3756 = vadd.f32 %v3754, %v3755
        %v3757 = vrot.slane %v3756, 1
        %v3758 = vadd.f32 %v3756, %v3757
        %v3759 = vrot.slane %v3725, 4
        %v3760 = vadd.f32 %v3725, %v3759
        %v3761 = vrot.slane %v3760, 2
        %v3762 = vadd.f32 %v3760, %v3761
        %v3763 = vrot.slane %v3762, 1
        %v3764 = vadd.f32 %v3762, %v3763
        %v3765 = vrcp.pop 8.0
        %v3766 = vmul.f32 %v3734, %v3765
        %v3767 = vmul.f32 %v3740, %v3765
        %v3768 = vmul.f32 %v3746, %v3765
        %v3769 = vmul.f32 %v3752, %v3765
        %v3770 = vmul.f32 %v3758, %v3765
        %v3771 = vmul.f32 %v3764, %v3765
        %v3772 = vsub.f32 %v3313, %v3766
        %v3773 = vsub.f32 %v3315, %v3767
        %v3774 = vsub.f32 %v3518, %v3768
        %v3775 = vsub.f32 %v3520, %v3769
        %v3776 = vsub.f32 %v3723, %v3770
        %v3777 = vsub.f32 %v3725, %v3771
        %v3778 = vmul.f32 %v3772, %v3772
        %v3779 = vmul.f32 %v3773, %v3773
        %v3780 = vmul.f32 %v3774, %v3774
        %v3781 = vmul.f32 %v3775, %v3775
        %v3782 = vmul.f32 %v3776, %v3776
        %v3783 = vmul.f32 %v3777, %v3777
        %v3784 = vrot.slane %v3778, 4
        %v3785 = vadd.f32 %v3778, %v3784
        %v3786 = vrot.slane %v3785, 2
        %v3787 = vadd.f32 %v3785, %v3786
        %v3788 = vrot.slane %v3787, 1
        %v3789 = vadd.f32 %v3787, %v3788
        %v3790 = vrot.slane %v3779, 4
        %v3791 = vadd.f32 %v3779, %v3790
        %v3792 = vrot.slane %v3791, 2
        %v3793 = vadd.f32 %v3791, %v3792
        %v3794 = vrot.slane %v3793, 1
        %v3795 = vadd.f32 %v3793, %v3794
        %v3796 = vrot.slane %v3780, 4
        %v3797 = vadd.f32 %v3780, %v3796
        %v3798 = vrot.slane %v3797, 2
        %v3799 = vadd.f32 %v3797, %v3798
        %v3800 = vrot.slane %v3799, 1
        %v3801 = vadd.f32 %v3799, %v3800
        %v3802 = vrot.slane %v3781, 4
        %v3803 = vadd.f32 %v3781, %v3802
        %v3804 = vrot.slane %v3803, 2
        %v3805 = vadd.f32 %v3803, %v3804
        %v3806 = vrot.slane %v3805, 1
        %v3807 = vadd.f32 %v3805, %v3806
        %v3808 = vrot.slane %v3782, 4
        %v3809 = vadd.f32 %v3782, %v3808
        %v3810 = vrot.slane %v3809, 2
        %v3811 = vadd.f32 %v3809, %v3810
        %v3812 = vrot.slane %v3811, 1
        %v3813 = vadd.f32 %v3811, %v3812
        %v3814 = vrot.slane %v3783, 4
        %v3815 = vadd.f32 %v3783, %v3814
        %v3816 = vrot.slane %v3815, 2
        %v3817 = vadd.f32 %v3815, %v3816
        %v3818 = vrot.slane %v3817, 1
        %v3819 = vadd.f32 %v3817, %v3818
        %v3820 = vmul.f32 %v3789, %v3765
        %v3821 = vmul.f32 %v3795, %v3765
        %v3822 = vmul.f32 %v3801, %v3765
        %v3823 = vmul.f32 %v3807, %v3765
        %v3824 = vmul.f32 %v3813, %v3765
        %v3825 = vmul.f32 %v3819, %v3765
        %v3826 = vadd.f32 %v3820, 1e-05
        %v3827 = vadd.f32 %v3821, 1e-05
        %v3828 = vadd.f32 %v3822, 1e-05
        %v3829 = vadd.f32 %v3823, 1e-05
        %v3830 = vadd.f32 %v3824, 1e-05
        %v3831 = vadd.f32 %v3825, 1e-05
        %v3832 = vrsqrt.pop %v3826
        %v3833 = vrsqrt.pop %v3827
        %v3834 = vrsqrt.pop %v3828
        %v3835 = vrsqrt.pop %v3829
        %v3836 = vrsqrt.pop %v3830
        %v3837 = vrsqrt.pop %v3831
        %v3838 = vmul.f32 %v3772, %v3832
        %v3839 = vmul.f32 %v3773, %v3833
        %v3840 = vmul.f32 %v3774, %v3834
        %v3841 = vmul.f32 %v3775, %v3835
        %v3842 = vmul.f32 %v3776, %v3836
        %v3843 = vmul.f32 %v3777, %v3837
        %s3844 = scalar_lea.vmem %s382, 1 [#allocation8]
        %v3845 = vld [vmem:[%s3844] ss:$4 sm:$0x3f]
        %v3847 = vlaneseq
        %v3848 = vshrl.u32 %v3847, 7
        %v3849 = vsub.s32 0, %v3848
        %v3850 = vrot.slane %v3845, %v3849
        %v3851 = vlaneseq
        %v3852 = vshrl.u32 %v3851, 7
        %v3853 = vsub.s32 1, %v3852
        %v3854 = vrot.slane %v3845, %v3853
        %v3855 = vlaneseq
        %v3856 = vshrl.u32 %v3855, 7
        %v3857 = vsub.s32 2, %v3856
        %v3858 = vrot.slane %v3845, %v3857
        %v3859 = vlaneseq
        %v3860 = vshrl.u32 %v3859, 7
        %v3861 = vsub.s32 3, %v3860
        %v3862 = vrot.slane %v3845, %v3861
        %v3863 = vlaneseq
        %v3864 = vshrl.u32 %v3863, 7
        %v3865 = vsub.s32 4, %v3864
        %v3866 = vrot.slane %v3845, %v3865
        %v3867 = vlaneseq
        %v3868 = vshrl.u32 %v3867, 7
        %v3869 = vsub.s32 5, %v3868
        %v3870 = vrot.slane %v3845, %v3869
        %v3877 = vmul.f32 %v3838, %v3850
        %v3878 = vmul.f32 %v3839, %v3854
        %v3879 = vmul.f32 %v3840, %v3858
        %v3880 = vmul.f32 %v3841, %v3862
        %v3881 = vmul.f32 %v3842, %v3866
        %v3882 = vmul.f32 %v3843, %v3870
        %s3883 = scalar_lea.vmem %s382, 2 [#allocation8]
        %v3884 = vld [vmem:[%s3883] ss:$4 sm:$0x3f]
        %v3886 = vlaneseq
        %v3887 = vshrl.u32 %v3886, 7
        %v3888 = vsub.s32 0, %v3887
        %v3889 = vrot.slane %v3884, %v3888
        %v3890 = vlaneseq
        %v3891 = vshrl.u32 %v3890, 7
        %v3892 = vsub.s32 1, %v3891
        %v3893 = vrot.slane %v3884, %v3892
        %v3894 = vlaneseq
        %v3895 = vshrl.u32 %v3894, 7
        %v3896 = vsub.s32 2, %v3895
        %v3897 = vrot.slane %v3884, %v3896
        %v3898 = vlaneseq
        %v3899 = vshrl.u32 %v3898, 7
        %v3900 = vsub.s32 3, %v3899
        %v3901 = vrot.slane %v3884, %v3900
        %v3902 = vlaneseq
        %v3903 = vshrl.u32 %v3902, 7
        %v3904 = vsub.s32 4, %v3903
        %v3905 = vrot.slane %v3884, %v3904
        %v3906 = vlaneseq
        %v3907 = vshrl.u32 %v3906, 7
        %v3908 = vsub.s32 5, %v3907
        %v3909 = vrot.slane %v3884, %v3908
        %v3916 = vadd.f32 %v3877, %v3889
        %v3917 = vadd.f32 %v3878, %v3893
        %v3918 = vadd.f32 %v3879, %v3897
        %v3919 = vadd.f32 %v3880, %v3901
        %v3920 = vadd.f32 %v3881, %v3905
        %v3921 = vadd.f32 %v3882, %v3909
        %v3922 = vmax.f32 %v3916, 0.0
        %v3923 = vmax.f32 %v3917, 0.0
        %v3924 = vmax.f32 %v3918, 0.0
        %v3925 = vmax.f32 %v3919, 0.0
        %v3926 = vmax.f32 %v3920, 0.0
        %v3927 = vmax.f32 %v3921, 0.0
        %v3928 = vld [vmem:[%s448] sm:$0xff]
        %v3929 = vld [vmem:[%s448 + $0x8] sm:$0xff]
        %v3930 = vld [vmem:[%s448 + $0x10] sm:$0xff]
        %v3931 = vunpack.c.l.bf16 %v3928
        %v3932 = vunpack.c.h.bf16 %v3928
        %v3933 = vunpack.c.l.bf16 %v3929
        %v3934 = vunpack.c.h.bf16 %v3929
        %v3935 = vunpack.c.l.bf16 %v3930
        %v3936 = vunpack.c.h.bf16 %v3930
        %v3937 = vmul.f32 %v3922, %v3931
        %v3938 = vmul.f32 %v3923, %v3932
        %v3939 = vmul.f32 %v3924, %v3933
        %v3940 = vmul.f32 %v3925, %v3934
        %v3941 = vmul.f32 %v3926, %v3935
        %v3942 = vmul.f32 %v3927, %v3936
        %v3943 = vld [vmem:[#allocation2] sm:$0xff]
        %v3944 = vld [vmem:[#allocation2 + $0x8] sm:$0xff]
        %v3945 = vld [vmem:[#allocation2 + $0x10] sm:$0xff]
        %v3946 = vld [vmem:[#allocation2 + $0x18] sm:$0xff]
        %v3947 = vld [vmem:[#allocation2 + $0x20] sm:$0xff]
        %v3948 = vld [vmem:[#allocation2 + $0x28] sm:$0xff]
        %v3949 = vld [vmem:[#allocation2 + $0x30] sm:$0xff]
        %v3950 = vld [vmem:[#allocation2 + $0x38] sm:$0xff]
        %v3951 = vld [vmem:[#allocation2 + $0x40] sm:$0xff]
        %v3952 = vld [vmem:[#allocation2 + $0x48] sm:$0xff]
        %v3953 = vld [vmem:[#allocation2 + $0x50] sm:$0xff]
        %v3954 = vld [vmem:[#allocation2 + $0x58] sm:$0xff]
        %v3955 = vld [vmem:[#allocation2 + $0x60] sm:$0xff]
        %v3956 = vld [vmem:[#allocation2 + $0x68] sm:$0xff]
        %v3957 = vld [vmem:[#allocation2 + $0x70] sm:$0xff]
        %v3958 = vld [vmem:[#allocation2 + $0x78] sm:$0xff]
        %v3959 = vpack.c.bf16 %v3937, %v3937
        %v3960 = vpack.c.bf16 %v3938, %v3938
        %v3961 = vpack.c.bf16 %v3939, %v3939
        %v3962 = vpack.c.bf16 %v3940, %v3940
        %v3963 = vpack.c.bf16 %v3941, %v3941
        %v3964 = vpack.c.bf16 %v3942, %v3942
        %v3965 = vld [vmem:[%s391] sm:$0xff]
        %v3966 = vld [vmem:[%s391 + $0x8] sm:$0xff]
        %v3967 = vld [vmem:[%s391 + $0x10] sm:$0xff]
        %v3968 = vld [vmem:[%s391 + $0x18] sm:$0xff]
        %v3969 = vld [vmem:[%s391 + $0x20] sm:$0xff]
        %v3970 = vld [vmem:[%s391 + $0x28] sm:$0xff]
        %v3971 = vld [vmem:[%s391 + $0x30] sm:$0xff]
        %v3972 = vld [vmem:[%s391 + $0x38] sm:$0xff]
        %v3973 = vld [vmem:[%s391 + $0x40] sm:$0xff]
        %v3974 = vld [vmem:[%s391 + $0x48] sm:$0xff]
        %v3975 = vld [vmem:[%s391 + $0x50] sm:$0xff]
        %v3976 = vld [vmem:[%s391 + $0x58] sm:$0xff]
        %v3977 = vld [vmem:[%s391 + $0x60] sm:$0xff]
        %v3978 = vld [vmem:[%s391 + $0x68] sm:$0xff]
        %v3979 = vld [vmem:[%s391 + $0x70] sm:$0xff]
        %v3980 = vld [vmem:[%s391 + $0x78] sm:$0xff]
        %v3981 = vld [vmem:[%s391 + $0x80] sm:$0xff]
        %v3982 = vld [vmem:[%s391 + $0x88] sm:$0xff]
        %v3983 = vld [vmem:[%s391 + $0x90] sm:$0xff]
        %v3984 = vld [vmem:[%s391 + $0x98] sm:$0xff]
        %v3985 = vld [vmem:[%s391 + $0xa0] sm:$0xff]
        %v3986 = vld [vmem:[%s391 + $0xa8] sm:$0xff]
        %v3987 = vld [vmem:[%s391 + $0xb0] sm:$0xff]
        %v3988 = vld [vmem:[%s391 + $0xb8] sm:$0xff]
        %v3989 = vld [vmem:[%s391 + $0xc0] sm:$0xff]
        %v3990 = vld [vmem:[%s391 + $0xc8] sm:$0xff]
        %v3991 = vld [vmem:[%s391 + $0xd0] sm:$0xff]
        %v3992 = vld [vmem:[%s391 + $0xd8] sm:$0xff]
        %v3993 = vld [vmem:[%s391 + $0xe0] sm:$0xff]
        %v3994 = vld [vmem:[%s391 + $0xe8] sm:$0xff]
        %v3995 = vld [vmem:[%s391 + $0xf0] sm:$0xff]
        %v3996 = vld [vmem:[%s391 + $0xf8] sm:$0xff]
        %v3997 = vld [vmem:[%s391 + $0x100] sm:$0xff]
        %v3998 = vld [vmem:[%s391 + $0x108] sm:$0xff]
        %v3999 = vld [vmem:[%s391 + $0x110] sm:$0xff]
        %v4000 = vld [vmem:[%s391 + $0x118] sm:$0xff]
        %v4001 = vld [vmem:[%s391 + $0x120] sm:$0xff]
        %v4002 = vld [vmem:[%s391 + $0x128] sm:$0xff]
        %v4003 = vld [vmem:[%s391 + $0x130] sm:$0xff]
        %v4004 = vld [vmem:[%s391 + $0x138] sm:$0xff]
        %v4005 = vld [vmem:[%s391 + $0x140] sm:$0xff]
        %v4006 = vld [vmem:[%s391 + $0x148] sm:$0xff]
        %v4007 = vld [vmem:[%s391 + $0x150] sm:$0xff]
        %v4008 = vld [vmem:[%s391 + $0x158] sm:$0xff]
        %v4009 = vld [vmem:[%s391 + $0x160] sm:$0xff]
        %v4010 = vld [vmem:[%s391 + $0x168] sm:$0xff]
        %v4011 = vld [vmem:[%s391 + $0x170] sm:$0xff]
        %v4012 = vld [vmem:[%s391 + $0x178] sm:$0xff]
        %v4013 = vld [vmem:[%s391 + $0x180] sm:$0xff]
        %v4014 = vld [vmem:[%s391 + $0x188] sm:$0xff]
        %v4015 = vld [vmem:[%s391 + $0x190] sm:$0xff]
        %v4016 = vld [vmem:[%s391 + $0x198] sm:$0xff]
        %v4017 = vld [vmem:[%s391 + $0x1a0] sm:$0xff]
        %v4018 = vld [vmem:[%s391 + $0x1a8] sm:$0xff]
        %v4019 = vld [vmem:[%s391 + $0x1b0] sm:$0xff]
        %v4020 = vld [vmem:[%s391 + $0x1b8] sm:$0xff]
        %v4021 = vld [vmem:[%s391 + $0x1c0] sm:$0xff]
        %v4022 = vld [vmem:[%s391 + $0x1c8] sm:$0xff]
        %v4023 = vld [vmem:[%s391 + $0x1d0] sm:$0xff]
        %v4024 = vld [vmem:[%s391 + $0x1d8] sm:$0xff]
        %v4025 = vld [vmem:[%s391 + $0x1e0] sm:$0xff]
        %v4026 = vld [vmem:[%s391 + $0x1e8] sm:$0xff]
        %v4027 = vld [vmem:[%s391 + $0x1f0] sm:$0xff]
        %v4028 = vld [vmem:[%s391 + $0x1f8] sm:$0xff]
        %v4029 = vld [vmem:[%s391 + $0x200] sm:$0xff]
        %v4030 = vld [vmem:[%s391 + $0x208] sm:$0xff]
        %v4031 = vld [vmem:[%s391 + $0x210] sm:$0xff]
        %v4032 = vld [vmem:[%s391 + $0x218] sm:$0xff]
        %v4033 = vld [vmem:[%s391 + $0x220] sm:$0xff]
        %v4034 = vld [vmem:[%s391 + $0x228] sm:$0xff]
        %v4035 = vld [vmem:[%s391 + $0x230] sm:$0xff]
        %v4036 = vld [vmem:[%s391 + $0x238] sm:$0xff]
        %v4037 = vld [vmem:[%s391 + $0x240] sm:$0xff]
        %v4038 = vld [vmem:[%s391 + $0x248] sm:$0xff]
        %v4039 = vld [vmem:[%s391 + $0x250] sm:$0xff]
        %v4040 = vld [vmem:[%s391 + $0x258] sm:$0xff]
        %v4041 = vld [vmem:[%s391 + $0x260] sm:$0xff]
        %v4042 = vld [vmem:[%s391 + $0x268] sm:$0xff]
        %v4043 = vld [vmem:[%s391 + $0x270] sm:$0xff]
        %v4044 = vld [vmem:[%s391 + $0x278] sm:$0xff]
        %v4045 = vld [vmem:[%s391 + $0x280] sm:$0xff]
        %v4046 = vld [vmem:[%s391 + $0x288] sm:$0xff]
        %v4047 = vld [vmem:[%s391 + $0x290] sm:$0xff]
        %v4048 = vld [vmem:[%s391 + $0x298] sm:$0xff]
        %v4049 = vld [vmem:[%s391 + $0x2a0] sm:$0xff]
        %v4050 = vld [vmem:[%s391 + $0x2a8] sm:$0xff]
        %v4051 = vld [vmem:[%s391 + $0x2b0] sm:$0xff]
        %v4052 = vld [vmem:[%s391 + $0x2b8] sm:$0xff]
        %v4053 = vld [vmem:[%s391 + $0x2c0] sm:$0xff]
        %v4054 = vld [vmem:[%s391 + $0x2c8] sm:$0xff]
        %v4055 = vld [vmem:[%s391 + $0x2d0] sm:$0xff]
        %v4056 = vld [vmem:[%s391 + $0x2d8] sm:$0xff]
        %v4057 = vld [vmem:[%s391 + $0x2e0] sm:$0xff]
        %v4058 = vld [vmem:[%s391 + $0x2e8] sm:$0xff]
        %v4059 = vld [vmem:[%s391 + $0x2f0] sm:$0xff]
        %v4060 = vld [vmem:[%s391 + $0x2f8] sm:$0xff]
        %v4061 = vld [vmem:[%s391 + $0x300] sm:$0xff]
        %v4062 = vld [vmem:[%s391 + $0x308] sm:$0xff]
        %v4063 = vld [vmem:[%s391 + $0x310] sm:$0xff]
        %v4064 = vld [vmem:[%s391 + $0x318] sm:$0xff]
        %v4065 = vld [vmem:[%s391 + $0x320] sm:$0xff]
        %v4066 = vld [vmem:[%s391 + $0x328] sm:$0xff]
        %v4067 = vld [vmem:[%s391 + $0x330] sm:$0xff]
        %v4068 = vld [vmem:[%s391 + $0x338] sm:$0xff]
        %v4069 = vld [vmem:[%s391 + $0x340] sm:$0xff]
        %v4070 = vld [vmem:[%s391 + $0x348] sm:$0xff]
        %v4071 = vld [vmem:[%s391 + $0x350] sm:$0xff]
        %v4072 = vld [vmem:[%s391 + $0x358] sm:$0xff]
        %v4073 = vld [vmem:[%s391 + $0x360] sm:$0xff]
        %v4074 = vld [vmem:[%s391 + $0x368] sm:$0xff]
        %v4075 = vld [vmem:[%s391 + $0x370] sm:$0xff]
        %v4076 = vld [vmem:[%s391 + $0x378] sm:$0xff]
        %v4077 = vld [vmem:[%s391 + $0x380] sm:$0xff]
        %v4078 = vld [vmem:[%s391 + $0x388] sm:$0xff]
        %v4079 = vld [vmem:[%s391 + $0x390] sm:$0xff]
        %v4080 = vld [vmem:[%s391 + $0x398] sm:$0xff]
        %v4081 = vld [vmem:[%s391 + $0x3a0] sm:$0xff]
        %v4082 = vld [vmem:[%s391 + $0x3a8] sm:$0xff]
        %v4083 = vld [vmem:[%s391 + $0x3b0] sm:$0xff]
        %v4084 = vld [vmem:[%s391 + $0x3b8] sm:$0xff]
        %v4085 = vld [vmem:[%s391 + $0x3c0] sm:$0xff]
        %v4086 = vld [vmem:[%s391 + $0x3c8] sm:$0xff]
        %v4087 = vld [vmem:[%s391 + $0x3d0] sm:$0xff]
        %v4088 = vld [vmem:[%s391 + $0x3d8] sm:$0xff]
        %v4089 = vld [vmem:[%s391 + $0x3e0] sm:$0xff]
        %v4090 = vld [vmem:[%s391 + $0x3e8] sm:$0xff]
        %v4091 = vld [vmem:[%s391 + $0x3f0] sm:$0xff]
        %v4092 = vld [vmem:[%s391 + $0x3f8] sm:$0xff]
        %v4093 = vld [vmem:[%s391 + $0x400] sm:$0xff]
        %v4094 = vld [vmem:[%s391 + $0x408] sm:$0xff]
        %v4095 = vld [vmem:[%s391 + $0x410] sm:$0xff]
        %v4096 = vld [vmem:[%s391 + $0x418] sm:$0xff]
        %v4097 = vld [vmem:[%s391 + $0x420] sm:$0xff]
        %v4098 = vld [vmem:[%s391 + $0x428] sm:$0xff]
        %v4099 = vld [vmem:[%s391 + $0x430] sm:$0xff]
        %v4100 = vld [vmem:[%s391 + $0x438] sm:$0xff]
        %v4101 = vld [vmem:[%s391 + $0x440] sm:$0xff]
        %v4102 = vld [vmem:[%s391 + $0x448] sm:$0xff]
        %v4103 = vld [vmem:[%s391 + $0x450] sm:$0xff]
        %v4104 = vld [vmem:[%s391 + $0x458] sm:$0xff]
        %v4105 = vld [vmem:[%s391 + $0x460] sm:$0xff]
        %v4106 = vld [vmem:[%s391 + $0x468] sm:$0xff]
        %v4107 = vld [vmem:[%s391 + $0x470] sm:$0xff]
        %v4108 = vld [vmem:[%s391 + $0x478] sm:$0xff]
        %v4109 = vld [vmem:[%s391 + $0x480] sm:$0xff]
        %v4110 = vld [vmem:[%s391 + $0x488] sm:$0xff]
        %v4111 = vld [vmem:[%s391 + $0x490] sm:$0xff]
        %v4112 = vld [vmem:[%s391 + $0x498] sm:$0xff]
        %v4113 = vld [vmem:[%s391 + $0x4a0] sm:$0xff]
        %v4114 = vld [vmem:[%s391 + $0x4a8] sm:$0xff]
        %v4115 = vld [vmem:[%s391 + $0x4b0] sm:$0xff]
        %v4116 = vld [vmem:[%s391 + $0x4b8] sm:$0xff]
        %v4117 = vld [vmem:[%s391 + $0x4c0] sm:$0xff]
        %v4118 = vld [vmem:[%s391 + $0x4c8] sm:$0xff]
        %v4119 = vld [vmem:[%s391 + $0x4d0] sm:$0xff]
        %v4120 = vld [vmem:[%s391 + $0x4d8] sm:$0xff]
        %v4121 = vld [vmem:[%s391 + $0x4e0] sm:$0xff]
        %v4122 = vld [vmem:[%s391 + $0x4e8] sm:$0xff]
        %v4123 = vld [vmem:[%s391 + $0x4f0] sm:$0xff]
        %v4124 = vld [vmem:[%s391 + $0x4f8] sm:$0xff]
        %v4125 = vld [vmem:[%s391 + $0x500] sm:$0xff]
        %v4126 = vld [vmem:[%s391 + $0x508] sm:$0xff]
        %v4127 = vld [vmem:[%s391 + $0x510] sm:$0xff]
        %v4128 = vld [vmem:[%s391 + $0x518] sm:$0xff]
        %v4129 = vld [vmem:[%s391 + $0x520] sm:$0xff]
        %v4130 = vld [vmem:[%s391 + $0x528] sm:$0xff]
        %v4131 = vld [vmem:[%s391 + $0x530] sm:$0xff]
        %v4132 = vld [vmem:[%s391 + $0x538] sm:$0xff]
        %v4133 = vld [vmem:[%s391 + $0x540] sm:$0xff]
        %v4134 = vld [vmem:[%s391 + $0x548] sm:$0xff]
        %v4135 = vld [vmem:[%s391 + $0x550] sm:$0xff]
        %v4136 = vld [vmem:[%s391 + $0x558] sm:$0xff]
        %v4137 = vld [vmem:[%s391 + $0x560] sm:$0xff]
        %v4138 = vld [vmem:[%s391 + $0x568] sm:$0xff]
        %v4139 = vld [vmem:[%s391 + $0x570] sm:$0xff]
        %v4140 = vld [vmem:[%s391 + $0x578] sm:$0xff]
        %v4141 = vld [vmem:[%s391 + $0x580] sm:$0xff]
        %v4142 = vld [vmem:[%s391 + $0x588] sm:$0xff]
        %v4143 = vld [vmem:[%s391 + $0x590] sm:$0xff]
        %v4144 = vld [vmem:[%s391 + $0x598] sm:$0xff]
        %v4145 = vld [vmem:[%s391 + $0x5a0] sm:$0xff]
        %v4146 = vld [vmem:[%s391 + $0x5a8] sm:$0xff]
        %v4147 = vld [vmem:[%s391 + $0x5b0] sm:$0xff]
        %v4148 = vld [vmem:[%s391 + $0x5b8] sm:$0xff]
        %v4149 = vld [vmem:[%s391 + $0x5c0] sm:$0xff]
        %v4150 = vld [vmem:[%s391 + $0x5c8] sm:$0xff]
        %v4151 = vld [vmem:[%s391 + $0x5d0] sm:$0xff]
        %v4152 = vld [vmem:[%s391 + $0x5d8] sm:$0xff]
        %v4153 = vld [vmem:[%s391 + $0x5e0] sm:$0xff]
        %v4154 = vld [vmem:[%s391 + $0x5e8] sm:$0xff]
        %v4155 = vld [vmem:[%s391 + $0x5f0] sm:$0xff]
        %v4156 = vld [vmem:[%s391 + $0x5f8] sm:$0xff]
        %v4157 = vld [vmem:[%s391 + $0x600] sm:$0xff]
        %v4158 = vld [vmem:[%s391 + $0x608] sm:$0xff]
        %v4159 = vld [vmem:[%s391 + $0x610] sm:$0xff]
        %v4160 = vld [vmem:[%s391 + $0x618] sm:$0xff]
        %v4161 = vld [vmem:[%s391 + $0x620] sm:$0xff]
        %v4162 = vld [vmem:[%s391 + $0x628] sm:$0xff]
        %v4163 = vld [vmem:[%s391 + $0x630] sm:$0xff]
        %v4164 = vld [vmem:[%s391 + $0x638] sm:$0xff]
        %v4165 = vld [vmem:[%s391 + $0x640] sm:$0xff]
        %v4166 = vld [vmem:[%s391 + $0x648] sm:$0xff]
        %v4167 = vld [vmem:[%s391 + $0x650] sm:$0xff]
        %v4168 = vld [vmem:[%s391 + $0x658] sm:$0xff]
        %v4169 = vld [vmem:[%s391 + $0x660] sm:$0xff]
        %v4170 = vld [vmem:[%s391 + $0x668] sm:$0xff]
        %v4171 = vld [vmem:[%s391 + $0x670] sm:$0xff]
        %v4172 = vld [vmem:[%s391 + $0x678] sm:$0xff]
        %v4173 = vld [vmem:[%s391 + $0x680] sm:$0xff]
        %v4174 = vld [vmem:[%s391 + $0x688] sm:$0xff]
        %v4175 = vld [vmem:[%s391 + $0x690] sm:$0xff]
        %v4176 = vld [vmem:[%s391 + $0x698] sm:$0xff]
        %v4177 = vld [vmem:[%s391 + $0x6a0] sm:$0xff]
        %v4178 = vld [vmem:[%s391 + $0x6a8] sm:$0xff]
        %v4179 = vld [vmem:[%s391 + $0x6b0] sm:$0xff]
        %v4180 = vld [vmem:[%s391 + $0x6b8] sm:$0xff]
        %v4181 = vld [vmem:[%s391 + $0x6c0] sm:$0xff]
        %v4182 = vld [vmem:[%s391 + $0x6c8] sm:$0xff]
        %v4183 = vld [vmem:[%s391 + $0x6d0] sm:$0xff]
        %v4184 = vld [vmem:[%s391 + $0x6d8] sm:$0xff]
        %v4185 = vld [vmem:[%s391 + $0x6e0] sm:$0xff]
        %v4186 = vld [vmem:[%s391 + $0x6e8] sm:$0xff]
        %v4187 = vld [vmem:[%s391 + $0x6f0] sm:$0xff]
        %v4188 = vld [vmem:[%s391 + $0x6f8] sm:$0xff]
        %v4189 = vld [vmem:[%s391 + $0x700] sm:$0xff]
        %v4190 = vld [vmem:[%s391 + $0x708] sm:$0xff]
        %v4191 = vld [vmem:[%s391 + $0x710] sm:$0xff]
        %v4192 = vld [vmem:[%s391 + $0x718] sm:$0xff]
        %v4193 = vld [vmem:[%s391 + $0x720] sm:$0xff]
        %v4194 = vld [vmem:[%s391 + $0x728] sm:$0xff]
        %v4195 = vld [vmem:[%s391 + $0x730] sm:$0xff]
        %v4196 = vld [vmem:[%s391 + $0x738] sm:$0xff]
        %v4197 = vld [vmem:[%s391 + $0x740] sm:$0xff]
        %v4198 = vld [vmem:[%s391 + $0x748] sm:$0xff]
        %v4199 = vld [vmem:[%s391 + $0x750] sm:$0xff]
        %v4200 = vld [vmem:[%s391 + $0x758] sm:$0xff]
        %v4201 = vld [vmem:[%s391 + $0x760] sm:$0xff]
        %v4202 = vld [vmem:[%s391 + $0x768] sm:$0xff]
        %v4203 = vld [vmem:[%s391 + $0x770] sm:$0xff]
        %v4204 = vld [vmem:[%s391 + $0x778] sm:$0xff]
        %v4205 = vld [vmem:[%s391 + $0x780] sm:$0xff]
        %v4206 = vld [vmem:[%s391 + $0x788] sm:$0xff]
        %v4207 = vld [vmem:[%s391 + $0x790] sm:$0xff]
        %v4208 = vld [vmem:[%s391 + $0x798] sm:$0xff]
        %v4209 = vld [vmem:[%s391 + $0x7a0] sm:$0xff]
        %v4210 = vld [vmem:[%s391 + $0x7a8] sm:$0xff]
        %v4211 = vld [vmem:[%s391 + $0x7b0] sm:$0xff]
        %v4212 = vld [vmem:[%s391 + $0x7b8] sm:$0xff]
        %v4213 = vld [vmem:[%s391 + $0x7c0] sm:$0xff]
        %v4214 = vld [vmem:[%s391 + $0x7c8] sm:$0xff]
        %v4215 = vld [vmem:[%s391 + $0x7d0] sm:$0xff]
        %v4216 = vld [vmem:[%s391 + $0x7d8] sm:$0xff]
        %v4217 = vld [vmem:[%s391 + $0x7e0] sm:$0xff]
        %v4218 = vld [vmem:[%s391 + $0x7e8] sm:$0xff]
        %v4219 = vld [vmem:[%s391 + $0x7f0] sm:$0xff]
        %v4220 = vld [vmem:[%s391 + $0x7f8] sm:$0xff]
        %v4221 = vld [vmem:[%s391 + $0x800] sm:$0xff]
        %v4222 = vld [vmem:[%s391 + $0x808] sm:$0xff]
        %v4223 = vld [vmem:[%s391 + $0x810] sm:$0xff]
        %v4224 = vld [vmem:[%s391 + $0x818] sm:$0xff]
        %v4225 = vld [vmem:[%s391 + $0x820] sm:$0xff]
        %v4226 = vld [vmem:[%s391 + $0x828] sm:$0xff]
        %v4227 = vld [vmem:[%s391 + $0x830] sm:$0xff]
        %v4228 = vld [vmem:[%s391 + $0x838] sm:$0xff]
        %v4229 = vld [vmem:[%s391 + $0x840] sm:$0xff]
        %v4230 = vld [vmem:[%s391 + $0x848] sm:$0xff]
        %v4231 = vld [vmem:[%s391 + $0x850] sm:$0xff]
        %v4232 = vld [vmem:[%s391 + $0x858] sm:$0xff]
        %v4233 = vld [vmem:[%s391 + $0x860] sm:$0xff]
        %v4234 = vld [vmem:[%s391 + $0x868] sm:$0xff]
        %v4235 = vld [vmem:[%s391 + $0x870] sm:$0xff]
        %v4236 = vld [vmem:[%s391 + $0x878] sm:$0xff]
        %v4237 = vld [vmem:[%s391 + $0x880] sm:$0xff]
        %v4238 = vld [vmem:[%s391 + $0x888] sm:$0xff]
        %v4239 = vld [vmem:[%s391 + $0x890] sm:$0xff]
        %v4240 = vld [vmem:[%s391 + $0x898] sm:$0xff]
        %v4241 = vld [vmem:[%s391 + $0x8a0] sm:$0xff]
        %v4242 = vld [vmem:[%s391 + $0x8a8] sm:$0xff]
        %v4243 = vld [vmem:[%s391 + $0x8b0] sm:$0xff]
        %v4244 = vld [vmem:[%s391 + $0x8b8] sm:$0xff]
        %v4245 = vld [vmem:[%s391 + $0x8c0] sm:$0xff]
        %v4246 = vld [vmem:[%s391 + $0x8c8] sm:$0xff]
        %v4247 = vld [vmem:[%s391 + $0x8d0] sm:$0xff]
        %v4248 = vld [vmem:[%s391 + $0x8d8] sm:$0xff]
        %v4249 = vld [vmem:[%s391 + $0x8e0] sm:$0xff]
        %v4250 = vld [vmem:[%s391 + $0x8e8] sm:$0xff]
        %v4251 = vld [vmem:[%s391 + $0x8f0] sm:$0xff]
        %v4252 = vld [vmem:[%s391 + $0x8f8] sm:$0xff]
        %v4253 = vld [vmem:[%s391 + $0x900] sm:$0xff]
        %v4254 = vld [vmem:[%s391 + $0x908] sm:$0xff]
        %v4255 = vld [vmem:[%s391 + $0x910] sm:$0xff]
        %v4256 = vld [vmem:[%s391 + $0x918] sm:$0xff]
        %v4257 = vld [vmem:[%s391 + $0x920] sm:$0xff]
        %v4258 = vld [vmem:[%s391 + $0x928] sm:$0xff]
        %v4259 = vld [vmem:[%s391 + $0x930] sm:$0xff]
        %v4260 = vld [vmem:[%s391 + $0x938] sm:$0xff]
        %v4261 = vld [vmem:[%s391 + $0x940] sm:$0xff]
        %v4262 = vld [vmem:[%s391 + $0x948] sm:$0xff]
        %v4263 = vld [vmem:[%s391 + $0x950] sm:$0xff]
        %v4264 = vld [vmem:[%s391 + $0x958] sm:$0xff]
        %v4265 = vld [vmem:[%s391 + $0x960] sm:$0xff]
        %v4266 = vld [vmem:[%s391 + $0x968] sm:$0xff]
        %v4267 = vld [vmem:[%s391 + $0x970] sm:$0xff]
        %v4268 = vld [vmem:[%s391 + $0x978] sm:$0xff]
        %v4269 = vld [vmem:[%s391 + $0x980] sm:$0xff]
        %v4270 = vld [vmem:[%s391 + $0x988] sm:$0xff]
        %v4271 = vld [vmem:[%s391 + $0x990] sm:$0xff]
        %v4272 = vld [vmem:[%s391 + $0x998] sm:$0xff]
        %v4273 = vld [vmem:[%s391 + $0x9a0] sm:$0xff]
        %v4274 = vld [vmem:[%s391 + $0x9a8] sm:$0xff]
        %v4275 = vld [vmem:[%s391 + $0x9b0] sm:$0xff]
        %v4276 = vld [vmem:[%s391 + $0x9b8] sm:$0xff]
        %v4277 = vld [vmem:[%s391 + $0x9c0] sm:$0xff]
        %v4278 = vld [vmem:[%s391 + $0x9c8] sm:$0xff]
        %v4279 = vld [vmem:[%s391 + $0x9d0] sm:$0xff]
        %v4280 = vld [vmem:[%s391 + $0x9d8] sm:$0xff]
        %v4281 = vld [vmem:[%s391 + $0x9e0] sm:$0xff]
        %v4282 = vld [vmem:[%s391 + $0x9e8] sm:$0xff]
        %v4283 = vld [vmem:[%s391 + $0x9f0] sm:$0xff]
        %v4284 = vld [vmem:[%s391 + $0x9f8] sm:$0xff]
        %v4285 = vld [vmem:[%s391 + $0xa00] sm:$0xff]
        %v4286 = vld [vmem:[%s391 + $0xa08] sm:$0xff]
        %v4287 = vld [vmem:[%s391 + $0xa10] sm:$0xff]
        %v4288 = vld [vmem:[%s391 + $0xa18] sm:$0xff]
        %v4289 = vld [vmem:[%s391 + $0xa20] sm:$0xff]
        %v4290 = vld [vmem:[%s391 + $0xa28] sm:$0xff]
        %v4291 = vld [vmem:[%s391 + $0xa30] sm:$0xff]
        %v4292 = vld [vmem:[%s391 + $0xa38] sm:$0xff]
        %v4293 = vld [vmem:[%s391 + $0xa40] sm:$0xff]
        %v4294 = vld [vmem:[%s391 + $0xa48] sm:$0xff]
        %v4295 = vld [vmem:[%s391 + $0xa50] sm:$0xff]
        %v4296 = vld [vmem:[%s391 + $0xa58] sm:$0xff]
        %v4297 = vld [vmem:[%s391 + $0xa60] sm:$0xff]
        %v4298 = vld [vmem:[%s391 + $0xa68] sm:$0xff]
        %v4299 = vld [vmem:[%s391 + $0xa70] sm:$0xff]
        %v4300 = vld [vmem:[%s391 + $0xa78] sm:$0xff]
        %v4301 = vld [vmem:[%s391 + $0xa80] sm:$0xff]
        %v4302 = vld [vmem:[%s391 + $0xa88] sm:$0xff]
        %v4303 = vld [vmem:[%s391 + $0xa90] sm:$0xff]
        %v4304 = vld [vmem:[%s391 + $0xa98] sm:$0xff]
        %v4305 = vld [vmem:[%s391 + $0xaa0] sm:$0xff]
        %v4306 = vld [vmem:[%s391 + $0xaa8] sm:$0xff]
        %v4307 = vld [vmem:[%s391 + $0xab0] sm:$0xff]
        %v4308 = vld [vmem:[%s391 + $0xab8] sm:$0xff]
        %v4309 = vld [vmem:[%s391 + $0xac0] sm:$0xff]
        %v4310 = vld [vmem:[%s391 + $0xac8] sm:$0xff]
        %v4311 = vld [vmem:[%s391 + $0xad0] sm:$0xff]
        %v4312 = vld [vmem:[%s391 + $0xad8] sm:$0xff]
        %v4313 = vld [vmem:[%s391 + $0xae0] sm:$0xff]
        %v4314 = vld [vmem:[%s391 + $0xae8] sm:$0xff]
        %v4315 = vld [vmem:[%s391 + $0xaf0] sm:$0xff]
        %v4316 = vld [vmem:[%s391 + $0xaf8] sm:$0xff]
        %v4317 = vld [vmem:[%s391 + $0xb00] sm:$0xff]
        %v4318 = vld [vmem:[%s391 + $0xb08] sm:$0xff]
        %v4319 = vld [vmem:[%s391 + $0xb10] sm:$0xff]
        %v4320 = vld [vmem:[%s391 + $0xb18] sm:$0xff]
        %v4321 = vld [vmem:[%s391 + $0xb20] sm:$0xff]
        %v4322 = vld [vmem:[%s391 + $0xb28] sm:$0xff]
        %v4323 = vld [vmem:[%s391 + $0xb30] sm:$0xff]
        %v4324 = vld [vmem:[%s391 + $0xb38] sm:$0xff]
        %v4325 = vld [vmem:[%s391 + $0xb40] sm:$0xff]
        %v4326 = vld [vmem:[%s391 + $0xb48] sm:$0xff]
        %v4327 = vld [vmem:[%s391 + $0xb50] sm:$0xff]
        %v4328 = vld [vmem:[%s391 + $0xb58] sm:$0xff]
        %v4329 = vld [vmem:[%s391 + $0xb60] sm:$0xff]
        %v4330 = vld [vmem:[%s391 + $0xb68] sm:$0xff]
        %v4331 = vld [vmem:[%s391 + $0xb70] sm:$0xff]
        %v4332 = vld [vmem:[%s391 + $0xb78] sm:$0xff]
        %v4333 = vld [vmem:[%s391 + $0xb80] sm:$0xff]
        %v4334 = vld [vmem:[%s391 + $0xb88] sm:$0xff]
        %v4335 = vld [vmem:[%s391 + $0xb90] sm:$0xff]
        %v4336 = vld [vmem:[%s391 + $0xb98] sm:$0xff]
        %v4337 = vld [vmem:[%s391 + $0xba0] sm:$0xff]
        %v4338 = vld [vmem:[%s391 + $0xba8] sm:$0xff]
        %v4339 = vld [vmem:[%s391 + $0xbb0] sm:$0xff]
        %v4340 = vld [vmem:[%s391 + $0xbb8] sm:$0xff]
        %v4341 = vld [vmem:[%s391 + $0xbc0] sm:$0xff]
        %v4342 = vld [vmem:[%s391 + $0xbc8] sm:$0xff]
        %v4343 = vld [vmem:[%s391 + $0xbd0] sm:$0xff]
        %v4344 = vld [vmem:[%s391 + $0xbd8] sm:$0xff]
        %v4345 = vld [vmem:[%s391 + $0xbe0] sm:$0xff]
        %v4346 = vld [vmem:[%s391 + $0xbe8] sm:$0xff]
        %v4347 = vld [vmem:[%s391 + $0xbf0] sm:$0xff]
        %v4348 = vld [vmem:[%s391 + $0xbf8] sm:$0xff]
        %v4349 = vld [vmem:[%s391 + $0xc00] sm:$0xff]
        %v4350 = vld [vmem:[%s391 + $0xc08] sm:$0xff]
        %v4351 = vld [vmem:[%s391 + $0xc10] sm:$0xff]
        %v4352 = vld [vmem:[%s391 + $0xc18] sm:$0xff]
        %v4353 = vld [vmem:[%s391 + $0xc20] sm:$0xff]
        %v4354 = vld [vmem:[%s391 + $0xc28] sm:$0xff]
        %v4355 = vld [vmem:[%s391 + $0xc30] sm:$0xff]
        %v4356 = vld [vmem:[%s391 + $0xc38] sm:$0xff]
        %v4357 = vld [vmem:[%s391 + $0xc40] sm:$0xff]
        %v4358 = vld [vmem:[%s391 + $0xc48] sm:$0xff]
        %v4359 = vld [vmem:[%s391 + $0xc50] sm:$0xff]
        %v4360 = vld [vmem:[%s391 + $0xc58] sm:$0xff]
        %v4361 = vld [vmem:[%s391 + $0xc60] sm:$0xff]
        %v4362 = vld [vmem:[%s391 + $0xc68] sm:$0xff]
        %v4363 = vld [vmem:[%s391 + $0xc70] sm:$0xff]
        %v4364 = vld [vmem:[%s391 + $0xc78] sm:$0xff]
        %v4365 = vld [vmem:[%s391 + $0xc80] sm:$0xff]
        %v4366 = vld [vmem:[%s391 + $0xc88] sm:$0xff]
        %v4367 = vld [vmem:[%s391 + $0xc90] sm:$0xff]
        %v4368 = vld [vmem:[%s391 + $0xc98] sm:$0xff]
        %v4369 = vld [vmem:[%s391 + $0xca0] sm:$0xff]
        %v4370 = vld [vmem:[%s391 + $0xca8] sm:$0xff]
        %v4371 = vld [vmem:[%s391 + $0xcb0] sm:$0xff]
        %v4372 = vld [vmem:[%s391 + $0xcb8] sm:$0xff]
        %v4373 = vld [vmem:[%s391 + $0xcc0] sm:$0xff]
        %v4374 = vld [vmem:[%s391 + $0xcc8] sm:$0xff]
        %v4375 = vld [vmem:[%s391 + $0xcd0] sm:$0xff]
        %v4376 = vld [vmem:[%s391 + $0xcd8] sm:$0xff]
        %v4377 = vld [vmem:[%s391 + $0xce0] sm:$0xff]
        %v4378 = vld [vmem:[%s391 + $0xce8] sm:$0xff]
        %v4379 = vld [vmem:[%s391 + $0xcf0] sm:$0xff]
        %v4380 = vld [vmem:[%s391 + $0xcf8] sm:$0xff]
        %v4381 = vld [vmem:[%s391 + $0xd00] sm:$0xff]
        %v4382 = vld [vmem:[%s391 + $0xd08] sm:$0xff]
        %v4383 = vld [vmem:[%s391 + $0xd10] sm:$0xff]
        %v4384 = vld [vmem:[%s391 + $0xd18] sm:$0xff]
        %v4385 = vld [vmem:[%s391 + $0xd20] sm:$0xff]
        %v4386 = vld [vmem:[%s391 + $0xd28] sm:$0xff]
        %v4387 = vld [vmem:[%s391 + $0xd30] sm:$0xff]
        %v4388 = vld [vmem:[%s391 + $0xd38] sm:$0xff]
        %v4389 = vld [vmem:[%s391 + $0xd40] sm:$0xff]
        %v4390 = vld [vmem:[%s391 + $0xd48] sm:$0xff]
        %v4391 = vld [vmem:[%s391 + $0xd50] sm:$0xff]
        %v4392 = vld [vmem:[%s391 + $0xd58] sm:$0xff]
        %v4393 = vld [vmem:[%s391 + $0xd60] sm:$0xff]
        %v4394 = vld [vmem:[%s391 + $0xd68] sm:$0xff]
        %v4395 = vld [vmem:[%s391 + $0xd70] sm:$0xff]
        %v4396 = vld [vmem:[%s391 + $0xd78] sm:$0xff]
        %v4397 = vld [vmem:[%s391 + $0xd80] sm:$0xff]
        %v4398 = vld [vmem:[%s391 + $0xd88] sm:$0xff]
        %v4399 = vld [vmem:[%s391 + $0xd90] sm:$0xff]
        %v4400 = vld [vmem:[%s391 + $0xd98] sm:$0xff]
        %v4401 = vld [vmem:[%s391 + $0xda0] sm:$0xff]
        %v4402 = vld [vmem:[%s391 + $0xda8] sm:$0xff]
        %v4403 = vld [vmem:[%s391 + $0xdb0] sm:$0xff]
        %v4404 = vld [vmem:[%s391 + $0xdb8] sm:$0xff]
        %v4405 = vld [vmem:[%s391 + $0xdc0] sm:$0xff]
        %v4406 = vld [vmem:[%s391 + $0xdc8] sm:$0xff]
        %v4407 = vld [vmem:[%s391 + $0xdd0] sm:$0xff]
        %v4408 = vld [vmem:[%s391 + $0xdd8] sm:$0xff]
        %v4409 = vld [vmem:[%s391 + $0xde0] sm:$0xff]
        %v4410 = vld [vmem:[%s391 + $0xde8] sm:$0xff]
        %v4411 = vld [vmem:[%s391 + $0xdf0] sm:$0xff]
        %v4412 = vld [vmem:[%s391 + $0xdf8] sm:$0xff]
        %v4413 = vld [vmem:[%s391 + $0xe00] sm:$0xff]
        %v4414 = vld [vmem:[%s391 + $0xe08] sm:$0xff]
        %v4415 = vld [vmem:[%s391 + $0xe10] sm:$0xff]
        %v4416 = vld [vmem:[%s391 + $0xe18] sm:$0xff]
        %v4417 = vld [vmem:[%s391 + $0xe20] sm:$0xff]
        %v4418 = vld [vmem:[%s391 + $0xe28] sm:$0xff]
        %v4419 = vld [vmem:[%s391 + $0xe30] sm:$0xff]
        %v4420 = vld [vmem:[%s391 + $0xe38] sm:$0xff]
        %v4421 = vld [vmem:[%s391 + $0xe40] sm:$0xff]
        %v4422 = vld [vmem:[%s391 + $0xe48] sm:$0xff]
        %v4423 = vld [vmem:[%s391 + $0xe50] sm:$0xff]
        %v4424 = vld [vmem:[%s391 + $0xe58] sm:$0xff]
        %v4425 = vld [vmem:[%s391 + $0xe60] sm:$0xff]
        %v4426 = vld [vmem:[%s391 + $0xe68] sm:$0xff]
        %v4427 = vld [vmem:[%s391 + $0xe70] sm:$0xff]
        %v4428 = vld [vmem:[%s391 + $0xe78] sm:$0xff]
        %v4429 = vld [vmem:[%s391 + $0xe80] sm:$0xff]
        %v4430 = vld [vmem:[%s391 + $0xe88] sm:$0xff]
        %v4431 = vld [vmem:[%s391 + $0xe90] sm:$0xff]
        %v4432 = vld [vmem:[%s391 + $0xe98] sm:$0xff]
        %v4433 = vld [vmem:[%s391 + $0xea0] sm:$0xff]
        %v4434 = vld [vmem:[%s391 + $0xea8] sm:$0xff]
        %v4435 = vld [vmem:[%s391 + $0xeb0] sm:$0xff]
        %v4436 = vld [vmem:[%s391 + $0xeb8] sm:$0xff]
        %v4437 = vld [vmem:[%s391 + $0xec0] sm:$0xff]
        %v4438 = vld [vmem:[%s391 + $0xec8] sm:$0xff]
        %v4439 = vld [vmem:[%s391 + $0xed0] sm:$0xff]
        %v4440 = vld [vmem:[%s391 + $0xed8] sm:$0xff]
        %v4441 = vld [vmem:[%s391 + $0xee0] sm:$0xff]
        %v4442 = vld [vmem:[%s391 + $0xee8] sm:$0xff]
        %v4443 = vld [vmem:[%s391 + $0xef0] sm:$0xff]
        %v4444 = vld [vmem:[%s391 + $0xef8] sm:$0xff]
        %v4445 = vld [vmem:[%s391 + $0xf00] sm:$0xff]
        %v4446 = vld [vmem:[%s391 + $0xf08] sm:$0xff]
        %v4447 = vld [vmem:[%s391 + $0xf10] sm:$0xff]
        %v4448 = vld [vmem:[%s391 + $0xf18] sm:$0xff]
        %v4449 = vld [vmem:[%s391 + $0xf20] sm:$0xff]
        %v4450 = vld [vmem:[%s391 + $0xf28] sm:$0xff]
        %v4451 = vld [vmem:[%s391 + $0xf30] sm:$0xff]
        %v4452 = vld [vmem:[%s391 + $0xf38] sm:$0xff]
        %v4453 = vld [vmem:[%s391 + $0xf40] sm:$0xff]
        %v4454 = vld [vmem:[%s391 + $0xf48] sm:$0xff]
        %v4455 = vld [vmem:[%s391 + $0xf50] sm:$0xff]
        %v4456 = vld [vmem:[%s391 + $0xf58] sm:$0xff]
        %v4457 = vld [vmem:[%s391 + $0xf60] sm:$0xff]
        %v4458 = vld [vmem:[%s391 + $0xf68] sm:$0xff]
        %v4459 = vld [vmem:[%s391 + $0xf70] sm:$0xff]
        %v4460 = vld [vmem:[%s391 + $0xf78] sm:$0xff]
        %v4461 = vld [vmem:[%s391 + $0xf80] sm:$0xff]
        %v4462 = vld [vmem:[%s391 + $0xf88] sm:$0xff]
        %v4463 = vld [vmem:[%s391 + $0xf90] sm:$0xff]
        %v4464 = vld [vmem:[%s391 + $0xf98] sm:$0xff]
        %v4465 = vld [vmem:[%s391 + $0xfa0] sm:$0xff]
        %v4466 = vld [vmem:[%s391 + $0xfa8] sm:$0xff]
        %v4467 = vld [vmem:[%s391 + $0xfb0] sm:$0xff]
        %v4468 = vld [vmem:[%s391 + $0xfb8] sm:$0xff]
        %v4469 = vld [vmem:[%s391 + $0xfc0] sm:$0xff]
        %v4470 = vld [vmem:[%s391 + $0xfc8] sm:$0xff]
        %v4471 = vld [vmem:[%s391 + $0xfd0] sm:$0xff]
        %v4472 = vld [vmem:[%s391 + $0xfd8] sm:$0xff]
        %v4473 = vld [vmem:[%s391 + $0xfe0] sm:$0xff]
        %v4474 = vld [vmem:[%s391 + $0xfe8] sm:$0xff]
        %v4475 = vld [vmem:[%s391 + $0xff0] sm:$0xff]
        %v4476 = vld [vmem:[%s391 + $0xff8] sm:$0xff]
        %v4477 = vld [vmem:[%s391 + $0x1000] sm:$0xff]
        %v4478 = vld [vmem:[%s391 + $0x1008] sm:$0xff]
        %v4479 = vld [vmem:[%s391 + $0x1010] sm:$0xff]
        %v4480 = vld [vmem:[%s391 + $0x1018] sm:$0xff]
        %v4481 = vld [vmem:[%s391 + $0x1020] sm:$0xff]
        %v4482 = vld [vmem:[%s391 + $0x1028] sm:$0xff]
        %v4483 = vld [vmem:[%s391 + $0x1030] sm:$0xff]
        %v4484 = vld [vmem:[%s391 + $0x1038] sm:$0xff]
        %v4485 = vld [vmem:[%s391 + $0x1040] sm:$0xff]
        %v4486 = vld [vmem:[%s391 + $0x1048] sm:$0xff]
        %v4487 = vld [vmem:[%s391 + $0x1050] sm:$0xff]
        %v4488 = vld [vmem:[%s391 + $0x1058] sm:$0xff]
        %v4489 = vld [vmem:[%s391 + $0x1060] sm:$0xff]
        %v4490 = vld [vmem:[%s391 + $0x1068] sm:$0xff]
        %v4491 = vld [vmem:[%s391 + $0x1070] sm:$0xff]
        %v4492 = vld [vmem:[%s391 + $0x1078] sm:$0xff]
        %v4493 = vld [vmem:[%s391 + $0x1080] sm:$0xff]
        %v4494 = vld [vmem:[%s391 + $0x1088] sm:$0xff]
        %v4495 = vld [vmem:[%s391 + $0x1090] sm:$0xff]
        %v4496 = vld [vmem:[%s391 + $0x1098] sm:$0xff]
        %v4497 = vld [vmem:[%s391 + $0x10a0] sm:$0xff]
        %v4498 = vld [vmem:[%s391 + $0x10a8] sm:$0xff]
        %v4499 = vld [vmem:[%s391 + $0x10b0] sm:$0xff]
        %v4500 = vld [vmem:[%s391 + $0x10b8] sm:$0xff]
        %v4501 = vld [vmem:[%s391 + $0x10c0] sm:$0xff]
        %v4502 = vld [vmem:[%s391 + $0x10c8] sm:$0xff]
        %v4503 = vld [vmem:[%s391 + $0x10d0] sm:$0xff]
        %v4504 = vld [vmem:[%s391 + $0x10d8] sm:$0xff]
        %v4505 = vld [vmem:[%s391 + $0x10e0] sm:$0xff]
        %v4506 = vld [vmem:[%s391 + $0x10e8] sm:$0xff]
        %v4507 = vld [vmem:[%s391 + $0x10f0] sm:$0xff]
        %v4508 = vld [vmem:[%s391 + $0x10f8] sm:$0xff]
        %v4509 = vld [vmem:[%s391 + $0x1100] sm:$0xff]
        %v4510 = vld [vmem:[%s391 + $0x1108] sm:$0xff]
        %v4511 = vld [vmem:[%s391 + $0x1110] sm:$0xff]
        %v4512 = vld [vmem:[%s391 + $0x1118] sm:$0xff]
        %v4513 = vld [vmem:[%s391 + $0x1120] sm:$0xff]
        %v4514 = vld [vmem:[%s391 + $0x1128] sm:$0xff]
        %v4515 = vld [vmem:[%s391 + $0x1130] sm:$0xff]
        %v4516 = vld [vmem:[%s391 + $0x1138] sm:$0xff]
        %v4517 = vld [vmem:[%s391 + $0x1140] sm:$0xff]
        %v4518 = vld [vmem:[%s391 + $0x1148] sm:$0xff]
        %v4519 = vld [vmem:[%s391 + $0x1150] sm:$0xff]
        %v4520 = vld [vmem:[%s391 + $0x1158] sm:$0xff]
        %v4521 = vld [vmem:[%s391 + $0x1160] sm:$0xff]
        %v4522 = vld [vmem:[%s391 + $0x1168] sm:$0xff]
        %v4523 = vld [vmem:[%s391 + $0x1170] sm:$0xff]
        %v4524 = vld [vmem:[%s391 + $0x1178] sm:$0xff]
        %v4525 = vld [vmem:[%s391 + $0x1180] sm:$0xff]
        %v4526 = vld [vmem:[%s391 + $0x1188] sm:$0xff]
        %v4527 = vld [vmem:[%s391 + $0x1190] sm:$0xff]
        %v4528 = vld [vmem:[%s391 + $0x1198] sm:$0xff]
        %v4529 = vld [vmem:[%s391 + $0x11a0] sm:$0xff]
        %v4530 = vld [vmem:[%s391 + $0x11a8] sm:$0xff]
        %v4531 = vld [vmem:[%s391 + $0x11b0] sm:$0xff]
        %v4532 = vld [vmem:[%s391 + $0x11b8] sm:$0xff]
        %v4533 = vld [vmem:[%s391 + $0x11c0] sm:$0xff]
        %v4534 = vld [vmem:[%s391 + $0x11c8] sm:$0xff]
        %v4535 = vld [vmem:[%s391 + $0x11d0] sm:$0xff]
        %v4536 = vld [vmem:[%s391 + $0x11d8] sm:$0xff]
        %v4537 = vld [vmem:[%s391 + $0x11e0] sm:$0xff]
        %v4538 = vld [vmem:[%s391 + $0x11e8] sm:$0xff]
        %v4539 = vld [vmem:[%s391 + $0x11f0] sm:$0xff]
        %v4540 = vld [vmem:[%s391 + $0x11f8] sm:$0xff]
        %v4541 = vld [vmem:[%s391 + $0x1200] sm:$0xff]
        %v4542 = vld [vmem:[%s391 + $0x1208] sm:$0xff]
        %v4543 = vld [vmem:[%s391 + $0x1210] sm:$0xff]
        %v4544 = vld [vmem:[%s391 + $0x1218] sm:$0xff]
        %v4545 = vld [vmem:[%s391 + $0x1220] sm:$0xff]
        %v4546 = vld [vmem:[%s391 + $0x1228] sm:$0xff]
        %v4547 = vld [vmem:[%s391 + $0x1230] sm:$0xff]
        %v4548 = vld [vmem:[%s391 + $0x1238] sm:$0xff]
        %v4549 = vld [vmem:[%s391 + $0x1240] sm:$0xff]
        %v4550 = vld [vmem:[%s391 + $0x1248] sm:$0xff]
        %v4551 = vld [vmem:[%s391 + $0x1250] sm:$0xff]
        %v4552 = vld [vmem:[%s391 + $0x1258] sm:$0xff]
        %v4553 = vld [vmem:[%s391 + $0x1260] sm:$0xff]
        %v4554 = vld [vmem:[%s391 + $0x1268] sm:$0xff]
        %v4555 = vld [vmem:[%s391 + $0x1270] sm:$0xff]
        %v4556 = vld [vmem:[%s391 + $0x1278] sm:$0xff]
        %v4557 = vld [vmem:[%s391 + $0x1280] sm:$0xff]
        %v4558 = vld [vmem:[%s391 + $0x1288] sm:$0xff]
        %v4559 = vld [vmem:[%s391 + $0x1290] sm:$0xff]
        %v4560 = vld [vmem:[%s391 + $0x1298] sm:$0xff]
        %v4561 = vld [vmem:[%s391 + $0x12a0] sm:$0xff]
        %v4562 = vld [vmem:[%s391 + $0x12a8] sm:$0xff]
        %v4563 = vld [vmem:[%s391 + $0x12b0] sm:$0xff]
        %v4564 = vld [vmem:[%s391 + $0x12b8] sm:$0xff]
        %v4565 = vld [vmem:[%s391 + $0x12c0] sm:$0xff]
        %v4566 = vld [vmem:[%s391 + $0x12c8] sm:$0xff]
        %v4567 = vld [vmem:[%s391 + $0x12d0] sm:$0xff]
        %v4568 = vld [vmem:[%s391 + $0x12d8] sm:$0xff]
        %v4569 = vld [vmem:[%s391 + $0x12e0] sm:$0xff]
        %v4570 = vld [vmem:[%s391 + $0x12e8] sm:$0xff]
        %v4571 = vld [vmem:[%s391 + $0x12f0] sm:$0xff]
        %v4572 = vld [vmem:[%s391 + $0x12f8] sm:$0xff]
        %v4573 = vld [vmem:[%s391 + $0x1300] sm:$0xff]
        %v4574 = vld [vmem:[%s391 + $0x1308] sm:$0xff]
        %v4575 = vld [vmem:[%s391 + $0x1310] sm:$0xff]
        %v4576 = vld [vmem:[%s391 + $0x1318] sm:$0xff]
        %v4577 = vld [vmem:[%s391 + $0x1320] sm:$0xff]
        %v4578 = vld [vmem:[%s391 + $0x1328] sm:$0xff]
        %v4579 = vld [vmem:[%s391 + $0x1330] sm:$0xff]
        %v4580 = vld [vmem:[%s391 + $0x1338] sm:$0xff]
        %v4581 = vld [vmem:[%s391 + $0x1340] sm:$0xff]
        %v4582 = vld [vmem:[%s391 + $0x1348] sm:$0xff]
        %v4583 = vld [vmem:[%s391 + $0x1350] sm:$0xff]
        %v4584 = vld [vmem:[%s391 + $0x1358] sm:$0xff]
        %v4585 = vld [vmem:[%s391 + $0x1360] sm:$0xff]
        %v4586 = vld [vmem:[%s391 + $0x1368] sm:$0xff]
        %v4587 = vld [vmem:[%s391 + $0x1370] sm:$0xff]
        %v4588 = vld [vmem:[%s391 + $0x1378] sm:$0xff]
        %v4589 = vld [vmem:[%s391 + $0x1380] sm:$0xff]
        %v4590 = vld [vmem:[%s391 + $0x1388] sm:$0xff]
        %v4591 = vld [vmem:[%s391 + $0x1390] sm:$0xff]
        %v4592 = vld [vmem:[%s391 + $0x1398] sm:$0xff]
        %v4593 = vld [vmem:[%s391 + $0x13a0] sm:$0xff]
        %v4594 = vld [vmem:[%s391 + $0x13a8] sm:$0xff]
        %v4595 = vld [vmem:[%s391 + $0x13b0] sm:$0xff]
        %v4596 = vld [vmem:[%s391 + $0x13b8] sm:$0xff]
        %v4597 = vld [vmem:[%s391 + $0x13c0] sm:$0xff]
        %v4598 = vld [vmem:[%s391 + $0x13c8] sm:$0xff]
        %v4599 = vld [vmem:[%s391 + $0x13d0] sm:$0xff]
        %v4600 = vld [vmem:[%s391 + $0x13d8] sm:$0xff]
        %v4601 = vld [vmem:[%s391 + $0x13e0] sm:$0xff]
        %v4602 = vld [vmem:[%s391 + $0x13e8] sm:$0xff]
        %v4603 = vld [vmem:[%s391 + $0x13f0] sm:$0xff]
        %v4604 = vld [vmem:[%s391 + $0x13f8] sm:$0xff]
        %v4605 = vld [vmem:[%s391 + $0x1400] sm:$0xff]
        %v4606 = vld [vmem:[%s391 + $0x1408] sm:$0xff]
        %v4607 = vld [vmem:[%s391 + $0x1410] sm:$0xff]
        %v4608 = vld [vmem:[%s391 + $0x1418] sm:$0xff]
        %v4609 = vld [vmem:[%s391 + $0x1420] sm:$0xff]
        %v4610 = vld [vmem:[%s391 + $0x1428] sm:$0xff]
        %v4611 = vld [vmem:[%s391 + $0x1430] sm:$0xff]
        %v4612 = vld [vmem:[%s391 + $0x1438] sm:$0xff]
        %v4613 = vld [vmem:[%s391 + $0x1440] sm:$0xff]
        %v4614 = vld [vmem:[%s391 + $0x1448] sm:$0xff]
        %v4615 = vld [vmem:[%s391 + $0x1450] sm:$0xff]
        %v4616 = vld [vmem:[%s391 + $0x1458] sm:$0xff]
        %v4617 = vld [vmem:[%s391 + $0x1460] sm:$0xff]
        %v4618 = vld [vmem:[%s391 + $0x1468] sm:$0xff]
        %v4619 = vld [vmem:[%s391 + $0x1470] sm:$0xff]
        %v4620 = vld [vmem:[%s391 + $0x1478] sm:$0xff]
        %v4621 = vld [vmem:[%s391 + $0x1480] sm:$0xff]
        %v4622 = vld [vmem:[%s391 + $0x1488] sm:$0xff]
        %v4623 = vld [vmem:[%s391 + $0x1490] sm:$0xff]
        %v4624 = vld [vmem:[%s391 + $0x1498] sm:$0xff]
        %v4625 = vld [vmem:[%s391 + $0x14a0] sm:$0xff]
        %v4626 = vld [vmem:[%s391 + $0x14a8] sm:$0xff]
        %v4627 = vld [vmem:[%s391 + $0x14b0] sm:$0xff]
        %v4628 = vld [vmem:[%s391 + $0x14b8] sm:$0xff]
        %v4629 = vld [vmem:[%s391 + $0x14c0] sm:$0xff]
        %v4630 = vld [vmem:[%s391 + $0x14c8] sm:$0xff]
        %v4631 = vld [vmem:[%s391 + $0x14d0] sm:$0xff]
        %v4632 = vld [vmem:[%s391 + $0x14d8] sm:$0xff]
        %v4633 = vld [vmem:[%s391 + $0x14e0] sm:$0xff]
        %v4634 = vld [vmem:[%s391 + $0x14e8] sm:$0xff]
        %v4635 = vld [vmem:[%s391 + $0x14f0] sm:$0xff]
        %v4636 = vld [vmem:[%s391 + $0x14f8] sm:$0xff]
        %v4637 = vld [vmem:[%s391 + $0x1500] sm:$0xff]
        %v4638 = vld [vmem:[%s391 + $0x1508] sm:$0xff]
        %v4639 = vld [vmem:[%s391 + $0x1510] sm:$0xff]
        %v4640 = vld [vmem:[%s391 + $0x1518] sm:$0xff]
        %v4641 = vld [vmem:[%s391 + $0x1520] sm:$0xff]
        %v4642 = vld [vmem:[%s391 + $0x1528] sm:$0xff]
        %v4643 = vld [vmem:[%s391 + $0x1530] sm:$0xff]
        %v4644 = vld [vmem:[%s391 + $0x1538] sm:$0xff]
        %v4645 = vld [vmem:[%s391 + $0x1540] sm:$0xff]
        %v4646 = vld [vmem:[%s391 + $0x1548] sm:$0xff]
        %v4647 = vld [vmem:[%s391 + $0x1550] sm:$0xff]
        %v4648 = vld [vmem:[%s391 + $0x1558] sm:$0xff]
        %v4649 = vld [vmem:[%s391 + $0x1560] sm:$0xff]
        %v4650 = vld [vmem:[%s391 + $0x1568] sm:$0xff]
        %v4651 = vld [vmem:[%s391 + $0x1570] sm:$0xff]
        %v4652 = vld [vmem:[%s391 + $0x1578] sm:$0xff]
        %v4653 = vld [vmem:[%s391 + $0x1580] sm:$0xff]
        %v4654 = vld [vmem:[%s391 + $0x1588] sm:$0xff]
        %v4655 = vld [vmem:[%s391 + $0x1590] sm:$0xff]
        %v4656 = vld [vmem:[%s391 + $0x1598] sm:$0xff]
        %v4657 = vld [vmem:[%s391 + $0x15a0] sm:$0xff]
        %v4658 = vld [vmem:[%s391 + $0x15a8] sm:$0xff]
        %v4659 = vld [vmem:[%s391 + $0x15b0] sm:$0xff]
        %v4660 = vld [vmem:[%s391 + $0x15b8] sm:$0xff]
        %v4661 = vld [vmem:[%s391 + $0x15c0] sm:$0xff]
        %v4662 = vld [vmem:[%s391 + $0x15c8] sm:$0xff]
        %v4663 = vld [vmem:[%s391 + $0x15d0] sm:$0xff]
        %v4664 = vld [vmem:[%s391 + $0x15d8] sm:$0xff]
        %v4665 = vld [vmem:[%s391 + $0x15e0] sm:$0xff]
        %v4666 = vld [vmem:[%s391 + $0x15e8] sm:$0xff]
        %v4667 = vld [vmem:[%s391 + $0x15f0] sm:$0xff]
        %v4668 = vld [vmem:[%s391 + $0x15f8] sm:$0xff]
        %v4669 = vld [vmem:[%s391 + $0x1600] sm:$0xff]
        %v4670 = vld [vmem:[%s391 + $0x1608] sm:$0xff]
        %v4671 = vld [vmem:[%s391 + $0x1610] sm:$0xff]
        %v4672 = vld [vmem:[%s391 + $0x1618] sm:$0xff]
        %v4673 = vld [vmem:[%s391 + $0x1620] sm:$0xff]
        %v4674 = vld [vmem:[%s391 + $0x1628] sm:$0xff]
        %v4675 = vld [vmem:[%s391 + $0x1630] sm:$0xff]
        %v4676 = vld [vmem:[%s391 + $0x1638] sm:$0xff]
        %v4677 = vld [vmem:[%s391 + $0x1640] sm:$0xff]
        %v4678 = vld [vmem:[%s391 + $0x1648] sm:$0xff]
        %v4679 = vld [vmem:[%s391 + $0x1650] sm:$0xff]
        %v4680 = vld [vmem:[%s391 + $0x1658] sm:$0xff]
        %v4681 = vld [vmem:[%s391 + $0x1660] sm:$0xff]
        %v4682 = vld [vmem:[%s391 + $0x1668] sm:$0xff]
        %v4683 = vld [vmem:[%s391 + $0x1670] sm:$0xff]
        %v4684 = vld [vmem:[%s391 + $0x1678] sm:$0xff]
        %v4685 = vld [vmem:[%s391 + $0x1680] sm:$0xff]
        %v4686 = vld [vmem:[%s391 + $0x1688] sm:$0xff]
        %v4687 = vld [vmem:[%s391 + $0x1690] sm:$0xff]
        %v4688 = vld [vmem:[%s391 + $0x1698] sm:$0xff]
        %v4689 = vld [vmem:[%s391 + $0x16a0] sm:$0xff]
        %v4690 = vld [vmem:[%s391 + $0x16a8] sm:$0xff]
        %v4691 = vld [vmem:[%s391 + $0x16b0] sm:$0xff]
        %v4692 = vld [vmem:[%s391 + $0x16b8] sm:$0xff]
        %v4693 = vld [vmem:[%s391 + $0x16c0] sm:$0xff]
        %v4694 = vld [vmem:[%s391 + $0x16c8] sm:$0xff]
        %v4695 = vld [vmem:[%s391 + $0x16d0] sm:$0xff]
        %v4696 = vld [vmem:[%s391 + $0x16d8] sm:$0xff]
        %v4697 = vld [vmem:[%s391 + $0x16e0] sm:$0xff]
        %v4698 = vld [vmem:[%s391 + $0x16e8] sm:$0xff]
        %v4699 = vld [vmem:[%s391 + $0x16f0] sm:$0xff]
        %v4700 = vld [vmem:[%s391 + $0x16f8] sm:$0xff]
        %v4701 = vld [vmem:[%s391 + $0x1700] sm:$0xff]
        %v4702 = vld [vmem:[%s391 + $0x1708] sm:$0xff]
        %v4703 = vld [vmem:[%s391 + $0x1710] sm:$0xff]
        %v4704 = vld [vmem:[%s391 + $0x1718] sm:$0xff]
        %v4705 = vld [vmem:[%s391 + $0x1720] sm:$0xff]
        %v4706 = vld [vmem:[%s391 + $0x1728] sm:$0xff]
        %v4707 = vld [vmem:[%s391 + $0x1730] sm:$0xff]
        %v4708 = vld [vmem:[%s391 + $0x1738] sm:$0xff]
        %v4709 = vld [vmem:[%s391 + $0x1740] sm:$0xff]
        %v4710 = vld [vmem:[%s391 + $0x1748] sm:$0xff]
        %v4711 = vld [vmem:[%s391 + $0x1750] sm:$0xff]
        %v4712 = vld [vmem:[%s391 + $0x1758] sm:$0xff]
        %v4713 = vld [vmem:[%s391 + $0x1760] sm:$0xff]
        %v4714 = vld [vmem:[%s391 + $0x1768] sm:$0xff]
        %v4715 = vld [vmem:[%s391 + $0x1770] sm:$0xff]
        %v4716 = vld [vmem:[%s391 + $0x1778] sm:$0xff]
        %v4717 = vld [vmem:[%s391 + $0x1780] sm:$0xff]
        %v4718 = vld [vmem:[%s391 + $0x1788] sm:$0xff]
        %v4719 = vld [vmem:[%s391 + $0x1790] sm:$0xff]
        %v4720 = vld [vmem:[%s391 + $0x1798] sm:$0xff]
        %v4721 = vld [vmem:[%s391 + $0x17a0] sm:$0xff]
        %v4722 = vld [vmem:[%s391 + $0x17a8] sm:$0xff]
        %v4723 = vld [vmem:[%s391 + $0x17b0] sm:$0xff]
        %v4724 = vld [vmem:[%s391 + $0x17b8] sm:$0xff]
        %v4725 = vld [vmem:[%s391 + $0x17c0] sm:$0xff]
        %v4726 = vld [vmem:[%s391 + $0x17c8] sm:$0xff]
        %v4727 = vld [vmem:[%s391 + $0x17d0] sm:$0xff]
        %v4728 = vld [vmem:[%s391 + $0x17d8] sm:$0xff]
        %v4729 = vld [vmem:[%s391 + $0x17e0] sm:$0xff]
        %v4730 = vld [vmem:[%s391 + $0x17e8] sm:$0xff]
        %v4731 = vld [vmem:[%s391 + $0x17f0] sm:$0xff]
        %v4732 = vld [vmem:[%s391 + $0x17f8] sm:$0xff]
        %v5501 = vunpack.c.l.b16 %v3965
        %v5502 = vunpack.c.h.b16 %v3965
        %v5503 = vunpack.c.l.b16 %v3966
        %v5504 = vunpack.c.h.b16 %v3966
        %v5505 = vunpack.c.l.b16 %v3967
        %v5506 = vunpack.c.h.b16 %v3967
        %v5507 = vunpack.c.l.b16 %v3968
        %v5508 = vunpack.c.h.b16 %v3968
        %v5509 = vunpack.c.l.b16 %v3969
        %v5510 = vunpack.c.h.b16 %v3969
        %v5511 = vunpack.c.l.b16 %v3970
        %v5512 = vunpack.c.h.b16 %v3970
        %v5513 = vunpack.c.l.b16 %v3971
        %v5514 = vunpack.c.h.b16 %v3971
        %v5515 = vunpack.c.l.b16 %v3972
        %v5516 = vunpack.c.h.b16 %v3972
        %v5517 = vunpack.c.l.b16 %v3973
        %v5518 = vunpack.c.h.b16 %v3973
        %v5519 = vunpack.c.l.b16 %v3974
        %v5520 = vunpack.c.h.b16 %v3974
        %v5521 = vunpack.c.l.b16 %v3975
        %v5522 = vunpack.c.h.b16 %v3975
        %v5523 = vunpack.c.l.b16 %v3976
        %v5524 = vunpack.c.h.b16 %v3976
        %v5525 = vunpack.c.l.b16 %v3977
        %v5526 = vunpack.c.h.b16 %v3977
        %v5527 = vunpack.c.l.b16 %v3978
        %v5528 = vunpack.c.h.b16 %v3978
        %v5529 = vunpack.c.l.b16 %v3979
        %v5530 = vunpack.c.h.b16 %v3979
        %v5531 = vunpack.c.l.b16 %v3980
        %v5532 = vunpack.c.h.b16 %v3980
        %v5533 = vunpack.c.l.b16 %v3981
        %v5534 = vunpack.c.h.b16 %v3981
        %v5535 = vunpack.c.l.b16 %v3982
        %v5536 = vunpack.c.h.b16 %v3982
        %v5537 = vunpack.c.l.b16 %v3983
        %v5538 = vunpack.c.h.b16 %v3983
        %v5539 = vunpack.c.l.b16 %v3984
        %v5540 = vunpack.c.h.b16 %v3984
        %v5541 = vunpack.c.l.b16 %v3985
        %v5542 = vunpack.c.h.b16 %v3985
        %v5543 = vunpack.c.l.b16 %v3986
        %v5544 = vunpack.c.h.b16 %v3986
        %v5545 = vunpack.c.l.b16 %v3987
        %v5546 = vunpack.c.h.b16 %v3987
        %v5547 = vunpack.c.l.b16 %v3988
        %v5548 = vunpack.c.h.b16 %v3988
        %v5549 = vunpack.c.l.b16 %v3989
        %v5550 = vunpack.c.h.b16 %v3989
        %v5551 = vunpack.c.l.b16 %v3990
        %v5552 = vunpack.c.h.b16 %v3990
        %v5553 = vunpack.c.l.b16 %v3991
        %v5554 = vunpack.c.h.b16 %v3991
        %v5555 = vunpack.c.l.b16 %v3992
        %v5556 = vunpack.c.h.b16 %v3992
        %v5557 = vunpack.c.l.b16 %v3993
        %v5558 = vunpack.c.h.b16 %v3993
        %v5559 = vunpack.c.l.b16 %v3994
        %v5560 = vunpack.c.h.b16 %v3994
        %v5561 = vunpack.c.l.b16 %v3995
        %v5562 = vunpack.c.h.b16 %v3995
        %v5563 = vunpack.c.l.b16 %v3996
        %v5564 = vunpack.c.h.b16 %v3996
        %v5565 = vunpack.c.l.b16 %v3997
        %v5566 = vunpack.c.h.b16 %v3997
        %v5567 = vunpack.c.l.b16 %v3998
        %v5568 = vunpack.c.h.b16 %v3998
        %v5569 = vunpack.c.l.b16 %v3999
        %v5570 = vunpack.c.h.b16 %v3999
        %v5571 = vunpack.c.l.b16 %v4000
        %v5572 = vunpack.c.h.b16 %v4000
        %v5573 = vunpack.c.l.b16 %v4001
        %v5574 = vunpack.c.h.b16 %v4001
        %v5575 = vunpack.c.l.b16 %v4002
        %v5576 = vunpack.c.h.b16 %v4002
        %v5577 = vunpack.c.l.b16 %v4003
        %v5578 = vunpack.c.h.b16 %v4003
        %v5579 = vunpack.c.l.b16 %v4004
        %v5580 = vunpack.c.h.b16 %v4004
        %v5581 = vunpack.c.l.b16 %v4005
        %v5582 = vunpack.c.h.b16 %v4005
        %v5583 = vunpack.c.l.b16 %v4006
        %v5584 = vunpack.c.h.b16 %v4006
        %v5585 = vunpack.c.l.b16 %v4007
        %v5586 = vunpack.c.h.b16 %v4007
        %v5587 = vunpack.c.l.b16 %v4008
        %v5588 = vunpack.c.h.b16 %v4008
        %v5589 = vunpack.c.l.b16 %v4009
        %v5590 = vunpack.c.h.b16 %v4009
        %v5591 = vunpack.c.l.b16 %v4010
        %v5592 = vunpack.c.h.b16 %v4010
        %v5593 = vunpack.c.l.b16 %v4011
        %v5594 = vunpack.c.h.b16 %v4011
        %v5595 = vunpack.c.l.b16 %v4012
        %v5596 = vunpack.c.h.b16 %v4012
        %v5597 = vunpack.c.l.b16 %v4013
        %v5598 = vunpack.c.h.b16 %v4013
        %v5599 = vunpack.c.l.b16 %v4014
        %v5600 = vunpack.c.h.b16 %v4014
        %v5601 = vunpack.c.l.b16 %v4015
        %v5602 = vunpack.c.h.b16 %v4015
        %v5603 = vunpack.c.l.b16 %v4016
        %v5604 = vunpack.c.h.b16 %v4016
        %v5605 = vunpack.c.l.b16 %v4017
        %v5606 = vunpack.c.h.b16 %v4017
        %v5607 = vunpack.c.l.b16 %v4018
        %v5608 = vunpack.c.h.b16 %v4018
        %v5609 = vunpack.c.l.b16 %v4019
        %v5610 = vunpack.c.h.b16 %v4019
        %v5611 = vunpack.c.l.b16 %v4020
        %v5612 = vunpack.c.h.b16 %v4020
        %v5613 = vunpack.c.l.b16 %v4021
        %v5614 = vunpack.c.h.b16 %v4021
        %v5615 = vunpack.c.l.b16 %v4022
        %v5616 = vunpack.c.h.b16 %v4022
        %v5617 = vunpack.c.l.b16 %v4023
        %v5618 = vunpack.c.h.b16 %v4023
        %v5619 = vunpack.c.l.b16 %v4024
        %v5620 = vunpack.c.h.b16 %v4024
        %v5621 = vunpack.c.l.b16 %v4025
        %v5622 = vunpack.c.h.b16 %v4025
        %v5623 = vunpack.c.l.b16 %v4026
        %v5624 = vunpack.c.h.b16 %v4026
        %v5625 = vunpack.c.l.b16 %v4027
        %v5626 = vunpack.c.h.b16 %v4027
        %v5627 = vunpack.c.l.b16 %v4028
        %v5628 = vunpack.c.h.b16 %v4028
        %v5629 = vunpack.c.l.b16 %v4029
        %v5630 = vunpack.c.h.b16 %v4029
        %v5631 = vunpack.c.l.b16 %v4030
        %v5632 = vunpack.c.h.b16 %v4030
        %v5633 = vunpack.c.l.b16 %v4031
        %v5634 = vunpack.c.h.b16 %v4031
        %v5635 = vunpack.c.l.b16 %v4032
        %v5636 = vunpack.c.h.b16 %v4032
        %v5637 = vunpack.c.l.b16 %v4033
        %v5638 = vunpack.c.h.b16 %v4033
        %v5639 = vunpack.c.l.b16 %v4034
        %v5640 = vunpack.c.h.b16 %v4034
        %v5641 = vunpack.c.l.b16 %v4035
        %v5642 = vunpack.c.h.b16 %v4035
        %v5643 = vunpack.c.l.b16 %v4036
        %v5644 = vunpack.c.h.b16 %v4036
        %v5645 = vunpack.c.l.b16 %v4037
        %v5646 = vunpack.c.h.b16 %v4037
        %v5647 = vunpack.c.l.b16 %v4038
        %v5648 = vunpack.c.h.b16 %v4038
        %v5649 = vunpack.c.l.b16 %v4039
        %v5650 = vunpack.c.h.b16 %v4039
        %v5651 = vunpack.c.l.b16 %v4040
        %v5652 = vunpack.c.h.b16 %v4040
        %v5653 = vunpack.c.l.b16 %v4041
        %v5654 = vunpack.c.h.b16 %v4041
        %v5655 = vunpack.c.l.b16 %v4042
        %v5656 = vunpack.c.h.b16 %v4042
        %v5657 = vunpack.c.l.b16 %v4043
        %v5658 = vunpack.c.h.b16 %v4043
        %v5659 = vunpack.c.l.b16 %v4044
        %v5660 = vunpack.c.h.b16 %v4044
        %v5661 = vunpack.c.l.b16 %v4045
        %v5662 = vunpack.c.h.b16 %v4045
        %v5663 = vunpack.c.l.b16 %v4046
        %v5664 = vunpack.c.h.b16 %v4046
        %v5665 = vunpack.c.l.b16 %v4047
        %v5666 = vunpack.c.h.b16 %v4047
        %v5667 = vunpack.c.l.b16 %v4048
        %v5668 = vunpack.c.h.b16 %v4048
        %v5669 = vunpack.c.l.b16 %v4049
        %v5670 = vunpack.c.h.b16 %v4049
        %v5671 = vunpack.c.l.b16 %v4050
        %v5672 = vunpack.c.h.b16 %v4050
        %v5673 = vunpack.c.l.b16 %v4051
        %v5674 = vunpack.c.h.b16 %v4051
        %v5675 = vunpack.c.l.b16 %v4052
        %v5676 = vunpack.c.h.b16 %v4052
        %v5677 = vunpack.c.l.b16 %v4053
        %v5678 = vunpack.c.h.b16 %v4053
        %v5679 = vunpack.c.l.b16 %v4054
        %v5680 = vunpack.c.h.b16 %v4054
        %v5681 = vunpack.c.l.b16 %v4055
        %v5682 = vunpack.c.h.b16 %v4055
        %v5683 = vunpack.c.l.b16 %v4056
        %v5684 = vunpack.c.h.b16 %v4056
        %v5685 = vunpack.c.l.b16 %v4057
        %v5686 = vunpack.c.h.b16 %v4057
        %v5687 = vunpack.c.l.b16 %v4058
        %v5688 = vunpack.c.h.b16 %v4058
        %v5689 = vunpack.c.l.b16 %v4059
        %v5690 = vunpack.c.h.b16 %v4059
        %v5691 = vunpack.c.l.b16 %v4060
        %v5692 = vunpack.c.h.b16 %v4060
        %v5693 = vunpack.c.l.b16 %v4061
        %v5694 = vunpack.c.h.b16 %v4061
        %v5695 = vunpack.c.l.b16 %v4062
        %v5696 = vunpack.c.h.b16 %v4062
        %v5697 = vunpack.c.l.b16 %v4063
        %v5698 = vunpack.c.h.b16 %v4063
        %v5699 = vunpack.c.l.b16 %v4064
        %v5700 = vunpack.c.h.b16 %v4064
        %v5701 = vunpack.c.l.b16 %v4065
        %v5702 = vunpack.c.h.b16 %v4065
        %v5703 = vunpack.c.l.b16 %v4066
        %v5704 = vunpack.c.h.b16 %v4066
        %v5705 = vunpack.c.l.b16 %v4067
        %v5706 = vunpack.c.h.b16 %v4067
        %v5707 = vunpack.c.l.b16 %v4068
        %v5708 = vunpack.c.h.b16 %v4068
        %v5709 = vunpack.c.l.b16 %v4069
        %v5710 = vunpack.c.h.b16 %v4069
        %v5711 = vunpack.c.l.b16 %v4070
        %v5712 = vunpack.c.h.b16 %v4070
        %v5713 = vunpack.c.l.b16 %v4071
        %v5714 = vunpack.c.h.b16 %v4071
        %v5715 = vunpack.c.l.b16 %v4072
        %v5716 = vunpack.c.h.b16 %v4072
        %v5717 = vunpack.c.l.b16 %v4073
        %v5718 = vunpack.c.h.b16 %v4073
        %v5719 = vunpack.c.l.b16 %v4074
        %v5720 = vunpack.c.h.b16 %v4074
        %v5721 = vunpack.c.l.b16 %v4075
        %v5722 = vunpack.c.h.b16 %v4075
        %v5723 = vunpack.c.l.b16 %v4076
        %v5724 = vunpack.c.h.b16 %v4076
        %v5725 = vunpack.c.l.b16 %v4077
        %v5726 = vunpack.c.h.b16 %v4077
        %v5727 = vunpack.c.l.b16 %v4078
        %v5728 = vunpack.c.h.b16 %v4078
        %v5729 = vunpack.c.l.b16 %v4079
        %v5730 = vunpack.c.h.b16 %v4079
        %v5731 = vunpack.c.l.b16 %v4080
        %v5732 = vunpack.c.h.b16 %v4080
        %v5733 = vunpack.c.l.b16 %v4081
        %v5734 = vunpack.c.h.b16 %v4081
        %v5735 = vunpack.c.l.b16 %v4082
        %v5736 = vunpack.c.h.b16 %v4082
        %v5737 = vunpack.c.l.b16 %v4083
        %v5738 = vunpack.c.h.b16 %v4083
        %v5739 = vunpack.c.l.b16 %v4084
        %v5740 = vunpack.c.h.b16 %v4084
        %v5741 = vunpack.c.l.b16 %v4085
        %v5742 = vunpack.c.h.b16 %v4085
        %v5743 = vunpack.c.l.b16 %v4086
        %v5744 = vunpack.c.h.b16 %v4086
        %v5745 = vunpack.c.l.b16 %v4087
        %v5746 = vunpack.c.h.b16 %v4087
        %v5747 = vunpack.c.l.b16 %v4088
        %v5748 = vunpack.c.h.b16 %v4088
        %v5749 = vunpack.c.l.b16 %v4089
        %v5750 = vunpack.c.h.b16 %v4089
        %v5751 = vunpack.c.l.b16 %v4090
        %v5752 = vunpack.c.h.b16 %v4090
        %v5753 = vunpack.c.l.b16 %v4091
        %v5754 = vunpack.c.h.b16 %v4091
        %v5755 = vunpack.c.l.b16 %v4092
        %v5756 = vunpack.c.h.b16 %v4092
        %v5757 = vunpack.c.l.b16 %v4093
        %v5758 = vunpack.c.h.b16 %v4093
        %v5759 = vunpack.c.l.b16 %v4094
        %v5760 = vunpack.c.h.b16 %v4094
        %v5761 = vunpack.c.l.b16 %v4095
        %v5762 = vunpack.c.h.b16 %v4095
        %v5763 = vunpack.c.l.b16 %v4096
        %v5764 = vunpack.c.h.b16 %v4096
        %v5765 = vunpack.c.l.b16 %v4097
        %v5766 = vunpack.c.h.b16 %v4097
        %v5767 = vunpack.c.l.b16 %v4098
        %v5768 = vunpack.c.h.b16 %v4098
        %v5769 = vunpack.c.l.b16 %v4099
        %v5770 = vunpack.c.h.b16 %v4099
        %v5771 = vunpack.c.l.b16 %v4100
        %v5772 = vunpack.c.h.b16 %v4100
        %v5773 = vunpack.c.l.b16 %v4101
        %v5774 = vunpack.c.h.b16 %v4101
        %v5775 = vunpack.c.l.b16 %v4102
        %v5776 = vunpack.c.h.b16 %v4102
        %v5777 = vunpack.c.l.b16 %v4103
        %v5778 = vunpack.c.h.b16 %v4103
        %v5779 = vunpack.c.l.b16 %v4104
        %v5780 = vunpack.c.h.b16 %v4104
        %v5781 = vunpack.c.l.b16 %v4105
        %v5782 = vunpack.c.h.b16 %v4105
        %v5783 = vunpack.c.l.b16 %v4106
        %v5784 = vunpack.c.h.b16 %v4106
        %v5785 = vunpack.c.l.b16 %v4107
        %v5786 = vunpack.c.h.b16 %v4107
        %v5787 = vunpack.c.l.b16 %v4108
        %v5788 = vunpack.c.h.b16 %v4108
        %v5789 = vunpack.c.l.b16 %v4109
        %v5790 = vunpack.c.h.b16 %v4109
        %v5791 = vunpack.c.l.b16 %v4110
        %v5792 = vunpack.c.h.b16 %v4110
        %v5793 = vunpack.c.l.b16 %v4111
        %v5794 = vunpack.c.h.b16 %v4111
        %v5795 = vunpack.c.l.b16 %v4112
        %v5796 = vunpack.c.h.b16 %v4112
        %v5797 = vunpack.c.l.b16 %v4113
        %v5798 = vunpack.c.h.b16 %v4113
        %v5799 = vunpack.c.l.b16 %v4114
        %v5800 = vunpack.c.h.b16 %v4114
        %v5801 = vunpack.c.l.b16 %v4115
        %v5802 = vunpack.c.h.b16 %v4115
        %v5803 = vunpack.c.l.b16 %v4116
        %v5804 = vunpack.c.h.b16 %v4116
        %v5805 = vunpack.c.l.b16 %v4117
        %v5806 = vunpack.c.h.b16 %v4117
        %v5807 = vunpack.c.l.b16 %v4118
        %v5808 = vunpack.c.h.b16 %v4118
        %v5809 = vunpack.c.l.b16 %v4119
        %v5810 = vunpack.c.h.b16 %v4119
        %v5811 = vunpack.c.l.b16 %v4120
        %v5812 = vunpack.c.h.b16 %v4120
        %v5813 = vunpack.c.l.b16 %v4121
        %v5814 = vunpack.c.h.b16 %v4121
        %v5815 = vunpack.c.l.b16 %v4122
        %v5816 = vunpack.c.h.b16 %v4122
        %v5817 = vunpack.c.l.b16 %v4123
        %v5818 = vunpack.c.h.b16 %v4123
        %v5819 = vunpack.c.l.b16 %v4124
        %v5820 = vunpack.c.h.b16 %v4124
        %v5821 = vunpack.c.l.b16 %v4125
        %v5822 = vunpack.c.h.b16 %v4125
        %v5823 = vunpack.c.l.b16 %v4126
        %v5824 = vunpack.c.h.b16 %v4126
        %v5825 = vunpack.c.l.b16 %v4127
        %v5826 = vunpack.c.h.b16 %v4127
        %v5827 = vunpack.c.l.b16 %v4128
        %v5828 = vunpack.c.h.b16 %v4128
        %v5829 = vunpack.c.l.b16 %v4129
        %v5830 = vunpack.c.h.b16 %v4129
        %v5831 = vunpack.c.l.b16 %v4130
        %v5832 = vunpack.c.h.b16 %v4130
        %v5833 = vunpack.c.l.b16 %v4131
        %v5834 = vunpack.c.h.b16 %v4131
        %v5835 = vunpack.c.l.b16 %v4132
        %v5836 = vunpack.c.h.b16 %v4132
        %v5837 = vunpack.c.l.b16 %v4133
        %v5838 = vunpack.c.h.b16 %v4133
        %v5839 = vunpack.c.l.b16 %v4134
        %v5840 = vunpack.c.h.b16 %v4134
        %v5841 = vunpack.c.l.b16 %v4135
        %v5842 = vunpack.c.h.b16 %v4135
        %v5843 = vunpack.c.l.b16 %v4136
        %v5844 = vunpack.c.h.b16 %v4136
        %v5845 = vunpack.c.l.b16 %v4137
        %v5846 = vunpack.c.h.b16 %v4137
        %v5847 = vunpack.c.l.b16 %v4138
        %v5848 = vunpack.c.h.b16 %v4138
        %v5849 = vunpack.c.l.b16 %v4139
        %v5850 = vunpack.c.h.b16 %v4139
        %v5851 = vunpack.c.l.b16 %v4140
        %v5852 = vunpack.c.h.b16 %v4140
        %v5853 = vunpack.c.l.b16 %v4141
        %v5854 = vunpack.c.h.b16 %v4141
        %v5855 = vunpack.c.l.b16 %v4142
        %v5856 = vunpack.c.h.b16 %v4142
        %v5857 = vunpack.c.l.b16 %v4143
        %v5858 = vunpack.c.h.b16 %v4143
        %v5859 = vunpack.c.l.b16 %v4144
        %v5860 = vunpack.c.h.b16 %v4144
        %v5861 = vunpack.c.l.b16 %v4145
        %v5862 = vunpack.c.h.b16 %v4145
        %v5863 = vunpack.c.l.b16 %v4146
        %v5864 = vunpack.c.h.b16 %v4146
        %v5865 = vunpack.c.l.b16 %v4147
        %v5866 = vunpack.c.h.b16 %v4147
        %v5867 = vunpack.c.l.b16 %v4148
        %v5868 = vunpack.c.h.b16 %v4148
        %v5869 = vunpack.c.l.b16 %v4149
        %v5870 = vunpack.c.h.b16 %v4149
        %v5871 = vunpack.c.l.b16 %v4150
        %v5872 = vunpack.c.h.b16 %v4150
        %v5873 = vunpack.c.l.b16 %v4151
        %v5874 = vunpack.c.h.b16 %v4151
        %v5875 = vunpack.c.l.b16 %v4152
        %v5876 = vunpack.c.h.b16 %v4152
        %v5877 = vunpack.c.l.b16 %v4153
        %v5878 = vunpack.c.h.b16 %v4153
        %v5879 = vunpack.c.l.b16 %v4154
        %v5880 = vunpack.c.h.b16 %v4154
        %v5881 = vunpack.c.l.b16 %v4155
        %v5882 = vunpack.c.h.b16 %v4155
        %v5883 = vunpack.c.l.b16 %v4156
        %v5884 = vunpack.c.h.b16 %v4156
        %v5885 = vunpack.c.l.b16 %v4157
        %v5886 = vunpack.c.h.b16 %v4157
        %v5887 = vunpack.c.l.b16 %v4158
        %v5888 = vunpack.c.h.b16 %v4158
        %v5889 = vunpack.c.l.b16 %v4159
        %v5890 = vunpack.c.h.b16 %v4159
        %v5891 = vunpack.c.l.b16 %v4160
        %v5892 = vunpack.c.h.b16 %v4160
        %v5893 = vunpack.c.l.b16 %v4161
        %v5894 = vunpack.c.h.b16 %v4161
        %v5895 = vunpack.c.l.b16 %v4162
        %v5896 = vunpack.c.h.b16 %v4162
        %v5897 = vunpack.c.l.b16 %v4163
        %v5898 = vunpack.c.h.b16 %v4163
        %v5899 = vunpack.c.l.b16 %v4164
        %v5900 = vunpack.c.h.b16 %v4164
        %v5901 = vunpack.c.l.b16 %v4165
        %v5902 = vunpack.c.h.b16 %v4165
        %v5903 = vunpack.c.l.b16 %v4166
        %v5904 = vunpack.c.h.b16 %v4166
        %v5905 = vunpack.c.l.b16 %v4167
        %v5906 = vunpack.c.h.b16 %v4167
        %v5907 = vunpack.c.l.b16 %v4168
        %v5908 = vunpack.c.h.b16 %v4168
        %v5909 = vunpack.c.l.b16 %v4169
        %v5910 = vunpack.c.h.b16 %v4169
        %v5911 = vunpack.c.l.b16 %v4170
        %v5912 = vunpack.c.h.b16 %v4170
        %v5913 = vunpack.c.l.b16 %v4171
        %v5914 = vunpack.c.h.b16 %v4171
        %v5915 = vunpack.c.l.b16 %v4172
        %v5916 = vunpack.c.h.b16 %v4172
        %v5917 = vunpack.c.l.b16 %v4173
        %v5918 = vunpack.c.h.b16 %v4173
        %v5919 = vunpack.c.l.b16 %v4174
        %v5920 = vunpack.c.h.b16 %v4174
        %v5921 = vunpack.c.l.b16 %v4175
        %v5922 = vunpack.c.h.b16 %v4175
        %v5923 = vunpack.c.l.b16 %v4176
        %v5924 = vunpack.c.h.b16 %v4176
        %v5925 = vunpack.c.l.b16 %v4177
        %v5926 = vunpack.c.h.b16 %v4177
        %v5927 = vunpack.c.l.b16 %v4178
        %v5928 = vunpack.c.h.b16 %v4178
        %v5929 = vunpack.c.l.b16 %v4179
        %v5930 = vunpack.c.h.b16 %v4179
        %v5931 = vunpack.c.l.b16 %v4180
        %v5932 = vunpack.c.h.b16 %v4180
        %v5933 = vunpack.c.l.b16 %v4181
        %v5934 = vunpack.c.h.b16 %v4181
        %v5935 = vunpack.c.l.b16 %v4182
        %v5936 = vunpack.c.h.b16 %v4182
        %v5937 = vunpack.c.l.b16 %v4183
        %v5938 = vunpack.c.h.b16 %v4183
        %v5939 = vunpack.c.l.b16 %v4184
        %v5940 = vunpack.c.h.b16 %v4184
        %v5941 = vunpack.c.l.b16 %v4185
        %v5942 = vunpack.c.h.b16 %v4185
        %v5943 = vunpack.c.l.b16 %v4186
        %v5944 = vunpack.c.h.b16 %v4186
        %v5945 = vunpack.c.l.b16 %v4187
        %v5946 = vunpack.c.h.b16 %v4187
        %v5947 = vunpack.c.l.b16 %v4188
        %v5948 = vunpack.c.h.b16 %v4188
        %v5949 = vunpack.c.l.b16 %v4189
        %v5950 = vunpack.c.h.b16 %v4189
        %v5951 = vunpack.c.l.b16 %v4190
        %v5952 = vunpack.c.h.b16 %v4190
        %v5953 = vunpack.c.l.b16 %v4191
        %v5954 = vunpack.c.h.b16 %v4191
        %v5955 = vunpack.c.l.b16 %v4192
        %v5956 = vunpack.c.h.b16 %v4192
        %v5957 = vunpack.c.l.b16 %v4193
        %v5958 = vunpack.c.h.b16 %v4193
        %v5959 = vunpack.c.l.b16 %v4194
        %v5960 = vunpack.c.h.b16 %v4194
        %v5961 = vunpack.c.l.b16 %v4195
        %v5962 = vunpack.c.h.b16 %v4195
        %v5963 = vunpack.c.l.b16 %v4196
        %v5964 = vunpack.c.h.b16 %v4196
        %v5965 = vunpack.c.l.b16 %v4197
        %v5966 = vunpack.c.h.b16 %v4197
        %v5967 = vunpack.c.l.b16 %v4198
        %v5968 = vunpack.c.h.b16 %v4198
        %v5969 = vunpack.c.l.b16 %v4199
        %v5970 = vunpack.c.h.b16 %v4199
        %v5971 = vunpack.c.l.b16 %v4200
        %v5972 = vunpack.c.h.b16 %v4200
        %v5973 = vunpack.c.l.b16 %v4201
        %v5974 = vunpack.c.h.b16 %v4201
        %v5975 = vunpack.c.l.b16 %v4202
        %v5976 = vunpack.c.h.b16 %v4202
        %v5977 = vunpack.c.l.b16 %v4203
        %v5978 = vunpack.c.h.b16 %v4203
        %v5979 = vunpack.c.l.b16 %v4204
        %v5980 = vunpack.c.h.b16 %v4204
        %v5981 = vunpack.c.l.b16 %v4205
        %v5982 = vunpack.c.h.b16 %v4205
        %v5983 = vunpack.c.l.b16 %v4206
        %v5984 = vunpack.c.h.b16 %v4206
        %v5985 = vunpack.c.l.b16 %v4207
        %v5986 = vunpack.c.h.b16 %v4207
        %v5987 = vunpack.c.l.b16 %v4208
        %v5988 = vunpack.c.h.b16 %v4208
        %v5989 = vunpack.c.l.b16 %v4209
        %v5990 = vunpack.c.h.b16 %v4209
        %v5991 = vunpack.c.l.b16 %v4210
        %v5992 = vunpack.c.h.b16 %v4210
        %v5993 = vunpack.c.l.b16 %v4211
        %v5994 = vunpack.c.h.b16 %v4211
        %v5995 = vunpack.c.l.b16 %v4212
        %v5996 = vunpack.c.h.b16 %v4212
        %v5997 = vunpack.c.l.b16 %v4213
        %v5998 = vunpack.c.h.b16 %v4213
        %v5999 = vunpack.c.l.b16 %v4214
        %v6000 = vunpack.c.h.b16 %v4214
        %v6001 = vunpack.c.l.b16 %v4215
        %v6002 = vunpack.c.h.b16 %v4215
        %v6003 = vunpack.c.l.b16 %v4216
        %v6004 = vunpack.c.h.b16 %v4216
        %v6005 = vunpack.c.l.b16 %v4217
        %v6006 = vunpack.c.h.b16 %v4217
        %v6007 = vunpack.c.l.b16 %v4218
        %v6008 = vunpack.c.h.b16 %v4218
        %v6009 = vunpack.c.l.b16 %v4219
        %v6010 = vunpack.c.h.b16 %v4219
        %v6011 = vunpack.c.l.b16 %v4220
        %v6012 = vunpack.c.h.b16 %v4220
        %v6013 = vunpack.c.l.b16 %v4221
        %v6014 = vunpack.c.h.b16 %v4221
        %v6015 = vunpack.c.l.b16 %v4222
        %v6016 = vunpack.c.h.b16 %v4222
        %v6017 = vunpack.c.l.b16 %v4223
        %v6018 = vunpack.c.h.b16 %v4223
        %v6019 = vunpack.c.l.b16 %v4224
        %v6020 = vunpack.c.h.b16 %v4224
        %v6021 = vunpack.c.l.b16 %v4225
        %v6022 = vunpack.c.h.b16 %v4225
        %v6023 = vunpack.c.l.b16 %v4226
        %v6024 = vunpack.c.h.b16 %v4226
        %v6025 = vunpack.c.l.b16 %v4227
        %v6026 = vunpack.c.h.b16 %v4227
        %v6027 = vunpack.c.l.b16 %v4228
        %v6028 = vunpack.c.h.b16 %v4228
        %v6029 = vunpack.c.l.b16 %v4229
        %v6030 = vunpack.c.h.b16 %v4229
        %v6031 = vunpack.c.l.b16 %v4230
        %v6032 = vunpack.c.h.b16 %v4230
        %v6033 = vunpack.c.l.b16 %v4231
        %v6034 = vunpack.c.h.b16 %v4231
        %v6035 = vunpack.c.l.b16 %v4232
        %v6036 = vunpack.c.h.b16 %v4232
        %v6037 = vunpack.c.l.b16 %v4233
        %v6038 = vunpack.c.h.b16 %v4233
        %v6039 = vunpack.c.l.b16 %v4234
        %v6040 = vunpack.c.h.b16 %v4234
        %v6041 = vunpack.c.l.b16 %v4235
        %v6042 = vunpack.c.h.b16 %v4235
        %v6043 = vunpack.c.l.b16 %v4236
        %v6044 = vunpack.c.h.b16 %v4236
        %v6045 = vunpack.c.l.b16 %v4237
        %v6046 = vunpack.c.h.b16 %v4237
        %v6047 = vunpack.c.l.b16 %v4238
        %v6048 = vunpack.c.h.b16 %v4238
        %v6049 = vunpack.c.l.b16 %v4239
        %v6050 = vunpack.c.h.b16 %v4239
        %v6051 = vunpack.c.l.b16 %v4240
        %v6052 = vunpack.c.h.b16 %v4240
        %v6053 = vunpack.c.l.b16 %v4241
        %v6054 = vunpack.c.h.b16 %v4241
        %v6055 = vunpack.c.l.b16 %v4242
        %v6056 = vunpack.c.h.b16 %v4242
        %v6057 = vunpack.c.l.b16 %v4243
        %v6058 = vunpack.c.h.b16 %v4243
        %v6059 = vunpack.c.l.b16 %v4244
        %v6060 = vunpack.c.h.b16 %v4244
        %v6061 = vunpack.c.l.b16 %v4245
        %v6062 = vunpack.c.h.b16 %v4245
        %v6063 = vunpack.c.l.b16 %v4246
        %v6064 = vunpack.c.h.b16 %v4246
        %v6065 = vunpack.c.l.b16 %v4247
        %v6066 = vunpack.c.h.b16 %v4247
        %v6067 = vunpack.c.l.b16 %v4248
        %v6068 = vunpack.c.h.b16 %v4248
        %v6069 = vunpack.c.l.b16 %v4249
        %v6070 = vunpack.c.h.b16 %v4249
        %v6071 = vunpack.c.l.b16 %v4250
        %v6072 = vunpack.c.h.b16 %v4250
        %v6073 = vunpack.c.l.b16 %v4251
        %v6074 = vunpack.c.h.b16 %v4251
        %v6075 = vunpack.c.l.b16 %v4252
        %v6076 = vunpack.c.h.b16 %v4252
        %v6077 = vunpack.c.l.b16 %v4253
        %v6078 = vunpack.c.h.b16 %v4253
        %v6079 = vunpack.c.l.b16 %v4254
        %v6080 = vunpack.c.h.b16 %v4254
        %v6081 = vunpack.c.l.b16 %v4255
        %v6082 = vunpack.c.h.b16 %v4255
        %v6083 = vunpack.c.l.b16 %v4256
        %v6084 = vunpack.c.h.b16 %v4256
        %v6085 = vunpack.c.l.b16 %v4257
        %v6086 = vunpack.c.h.b16 %v4257
        %v6087 = vunpack.c.l.b16 %v4258
        %v6088 = vunpack.c.h.b16 %v4258
        %v6089 = vunpack.c.l.b16 %v4259
        %v6090 = vunpack.c.h.b16 %v4259
        %v6091 = vunpack.c.l.b16 %v4260
        %v6092 = vunpack.c.h.b16 %v4260
        %v6093 = vunpack.c.l.b16 %v4261
        %v6094 = vunpack.c.h.b16 %v4261
        %v6095 = vunpack.c.l.b16 %v4262
        %v6096 = vunpack.c.h.b16 %v4262
        %v6097 = vunpack.c.l.b16 %v4263
        %v6098 = vunpack.c.h.b16 %v4263
        %v6099 = vunpack.c.l.b16 %v4264
        %v6100 = vunpack.c.h.b16 %v4264
        %v6101 = vunpack.c.l.b16 %v4265
        %v6102 = vunpack.c.h.b16 %v4265
        %v6103 = vunpack.c.l.b16 %v4266
        %v6104 = vunpack.c.h.b16 %v4266
        %v6105 = vunpack.c.l.b16 %v4267
        %v6106 = vunpack.c.h.b16 %v4267
        %v6107 = vunpack.c.l.b16 %v4268
        %v6108 = vunpack.c.h.b16 %v4268
        %v6109 = vunpack.c.l.b16 %v4269
        %v6110 = vunpack.c.h.b16 %v4269
        %v6111 = vunpack.c.l.b16 %v4270
        %v6112 = vunpack.c.h.b16 %v4270
        %v6113 = vunpack.c.l.b16 %v4271
        %v6114 = vunpack.c.h.b16 %v4271
        %v6115 = vunpack.c.l.b16 %v4272
        %v6116 = vunpack.c.h.b16 %v4272
        %v6117 = vunpack.c.l.b16 %v4273
        %v6118 = vunpack.c.h.b16 %v4273
        %v6119 = vunpack.c.l.b16 %v4274
        %v6120 = vunpack.c.h.b16 %v4274
        %v6121 = vunpack.c.l.b16 %v4275
        %v6122 = vunpack.c.h.b16 %v4275
        %v6123 = vunpack.c.l.b16 %v4276
        %v6124 = vunpack.c.h.b16 %v4276
        %v6125 = vunpack.c.l.b16 %v4277
        %v6126 = vunpack.c.h.b16 %v4277
        %v6127 = vunpack.c.l.b16 %v4278
        %v6128 = vunpack.c.h.b16 %v4278
        %v6129 = vunpack.c.l.b16 %v4279
        %v6130 = vunpack.c.h.b16 %v4279
        %v6131 = vunpack.c.l.b16 %v4280
        %v6132 = vunpack.c.h.b16 %v4280
        %v6133 = vunpack.c.l.b16 %v4281
        %v6134 = vunpack.c.h.b16 %v4281
        %v6135 = vunpack.c.l.b16 %v4282
        %v6136 = vunpack.c.h.b16 %v4282
        %v6137 = vunpack.c.l.b16 %v4283
        %v6138 = vunpack.c.h.b16 %v4283
        %v6139 = vunpack.c.l.b16 %v4284
        %v6140 = vunpack.c.h.b16 %v4284
        %v6141 = vunpack.c.l.b16 %v4285
        %v6142 = vunpack.c.h.b16 %v4285
        %v6143 = vunpack.c.l.b16 %v4286
        %v6144 = vunpack.c.h.b16 %v4286
        %v6145 = vunpack.c.l.b16 %v4287
        %v6146 = vunpack.c.h.b16 %v4287
        %v6147 = vunpack.c.l.b16 %v4288
        %v6148 = vunpack.c.h.b16 %v4288
        %v6149 = vunpack.c.l.b16 %v4289
        %v6150 = vunpack.c.h.b16 %v4289
        %v6151 = vunpack.c.l.b16 %v4290
        %v6152 = vunpack.c.h.b16 %v4290
        %v6153 = vunpack.c.l.b16 %v4291
        %v6154 = vunpack.c.h.b16 %v4291
        %v6155 = vunpack.c.l.b16 %v4292
        %v6156 = vunpack.c.h.b16 %v4292
        %v6157 = vunpack.c.l.b16 %v4293
        %v6158 = vunpack.c.h.b16 %v4293
        %v6159 = vunpack.c.l.b16 %v4294
        %v6160 = vunpack.c.h.b16 %v4294
        %v6161 = vunpack.c.l.b16 %v4295
        %v6162 = vunpack.c.h.b16 %v4295
        %v6163 = vunpack.c.l.b16 %v4296
        %v6164 = vunpack.c.h.b16 %v4296
        %v6165 = vunpack.c.l.b16 %v4297
        %v6166 = vunpack.c.h.b16 %v4297
        %v6167 = vunpack.c.l.b16 %v4298
        %v6168 = vunpack.c.h.b16 %v4298
        %v6169 = vunpack.c.l.b16 %v4299
        %v6170 = vunpack.c.h.b16 %v4299
        %v6171 = vunpack.c.l.b16 %v4300
        %v6172 = vunpack.c.h.b16 %v4300
        %v6173 = vunpack.c.l.b16 %v4301
        %v6174 = vunpack.c.h.b16 %v4301
        %v6175 = vunpack.c.l.b16 %v4302
        %v6176 = vunpack.c.h.b16 %v4302
        %v6177 = vunpack.c.l.b16 %v4303
        %v6178 = vunpack.c.h.b16 %v4303
        %v6179 = vunpack.c.l.b16 %v4304
        %v6180 = vunpack.c.h.b16 %v4304
        %v6181 = vunpack.c.l.b16 %v4305
        %v6182 = vunpack.c.h.b16 %v4305
        %v6183 = vunpack.c.l.b16 %v4306
        %v6184 = vunpack.c.h.b16 %v4306
        %v6185 = vunpack.c.l.b16 %v4307
        %v6186 = vunpack.c.h.b16 %v4307
        %v6187 = vunpack.c.l.b16 %v4308
        %v6188 = vunpack.c.h.b16 %v4308
        %v6189 = vunpack.c.l.b16 %v4309
        %v6190 = vunpack.c.h.b16 %v4309
        %v6191 = vunpack.c.l.b16 %v4310
        %v6192 = vunpack.c.h.b16 %v4310
        %v6193 = vunpack.c.l.b16 %v4311
        %v6194 = vunpack.c.h.b16 %v4311
        %v6195 = vunpack.c.l.b16 %v4312
        %v6196 = vunpack.c.h.b16 %v4312
        %v6197 = vunpack.c.l.b16 %v4313
        %v6198 = vunpack.c.h.b16 %v4313
        %v6199 = vunpack.c.l.b16 %v4314
        %v6200 = vunpack.c.h.b16 %v4314
        %v6201 = vunpack.c.l.b16 %v4315
        %v6202 = vunpack.c.h.b16 %v4315
        %v6203 = vunpack.c.l.b16 %v4316
        %v6204 = vunpack.c.h.b16 %v4316
        %v6205 = vunpack.c.l.b16 %v4317
        %v6206 = vunpack.c.h.b16 %v4317
        %v6207 = vunpack.c.l.b16 %v4318
        %v6208 = vunpack.c.h.b16 %v4318
        %v6209 = vunpack.c.l.b16 %v4319
        %v6210 = vunpack.c.h.b16 %v4319
        %v6211 = vunpack.c.l.b16 %v4320
        %v6212 = vunpack.c.h.b16 %v4320
        %v6213 = vunpack.c.l.b16 %v4321
        %v6214 = vunpack.c.h.b16 %v4321
        %v6215 = vunpack.c.l.b16 %v4322
        %v6216 = vunpack.c.h.b16 %v4322
        %v6217 = vunpack.c.l.b16 %v4323
        %v6218 = vunpack.c.h.b16 %v4323
        %v6219 = vunpack.c.l.b16 %v4324
        %v6220 = vunpack.c.h.b16 %v4324
        %v6221 = vunpack.c.l.b16 %v4325
        %v6222 = vunpack.c.h.b16 %v4325
        %v6223 = vunpack.c.l.b16 %v4326
        %v6224 = vunpack.c.h.b16 %v4326
        %v6225 = vunpack.c.l.b16 %v4327
        %v6226 = vunpack.c.h.b16 %v4327
        %v6227 = vunpack.c.l.b16 %v4328
        %v6228 = vunpack.c.h.b16 %v4328
        %v6229 = vunpack.c.l.b16 %v4329
        %v6230 = vunpack.c.h.b16 %v4329
        %v6231 = vunpack.c.l.b16 %v4330
        %v6232 = vunpack.c.h.b16 %v4330
        %v6233 = vunpack.c.l.b16 %v4331
        %v6234 = vunpack.c.h.b16 %v4331
        %v6235 = vunpack.c.l.b16 %v4332
        %v6236 = vunpack.c.h.b16 %v4332
        %v6237 = vunpack.c.l.b16 %v4333
        %v6238 = vunpack.c.h.b16 %v4333
        %v6239 = vunpack.c.l.b16 %v4334
        %v6240 = vunpack.c.h.b16 %v4334
        %v6241 = vunpack.c.l.b16 %v4335
        %v6242 = vunpack.c.h.b16 %v4335
        %v6243 = vunpack.c.l.b16 %v4336
        %v6244 = vunpack.c.h.b16 %v4336
        %v6245 = vunpack.c.l.b16 %v4337
        %v6246 = vunpack.c.h.b16 %v4337
        %v6247 = vunpack.c.l.b16 %v4338
        %v6248 = vunpack.c.h.b16 %v4338
        %v6249 = vunpack.c.l.b16 %v4339
        %v6250 = vunpack.c.h.b16 %v4339
        %v6251 = vunpack.c.l.b16 %v4340
        %v6252 = vunpack.c.h.b16 %v4340
        %v6253 = vunpack.c.l.b16 %v4341
        %v6254 = vunpack.c.h.b16 %v4341
        %v6255 = vunpack.c.l.b16 %v4342
        %v6256 = vunpack.c.h.b16 %v4342
        %v6257 = vunpack.c.l.b16 %v4343
        %v6258 = vunpack.c.h.b16 %v4343
        %v6259 = vunpack.c.l.b16 %v4344
        %v6260 = vunpack.c.h.b16 %v4344
        %v6261 = vunpack.c.l.b16 %v4345
        %v6262 = vunpack.c.h.b16 %v4345
        %v6263 = vunpack.c.l.b16 %v4346
        %v6264 = vunpack.c.h.b16 %v4346
        %v6265 = vunpack.c.l.b16 %v4347
        %v6266 = vunpack.c.h.b16 %v4347
        %v6267 = vunpack.c.l.b16 %v4348
        %v6268 = vunpack.c.h.b16 %v4348
        %v6269 = vunpack.c.l.b16 %v4349
        %v6270 = vunpack.c.h.b16 %v4349
        %v6271 = vunpack.c.l.b16 %v4350
        %v6272 = vunpack.c.h.b16 %v4350
        %v6273 = vunpack.c.l.b16 %v4351
        %v6274 = vunpack.c.h.b16 %v4351
        %v6275 = vunpack.c.l.b16 %v4352
        %v6276 = vunpack.c.h.b16 %v4352
        %v6277 = vunpack.c.l.b16 %v4353
        %v6278 = vunpack.c.h.b16 %v4353
        %v6279 = vunpack.c.l.b16 %v4354
        %v6280 = vunpack.c.h.b16 %v4354
        %v6281 = vunpack.c.l.b16 %v4355
        %v6282 = vunpack.c.h.b16 %v4355
        %v6283 = vunpack.c.l.b16 %v4356
        %v6284 = vunpack.c.h.b16 %v4356
        %v6285 = vunpack.c.l.b16 %v4357
        %v6286 = vunpack.c.h.b16 %v4357
        %v6287 = vunpack.c.l.b16 %v4358
        %v6288 = vunpack.c.h.b16 %v4358
        %v6289 = vunpack.c.l.b16 %v4359
        %v6290 = vunpack.c.h.b16 %v4359
        %v6291 = vunpack.c.l.b16 %v4360
        %v6292 = vunpack.c.h.b16 %v4360
        %v6293 = vunpack.c.l.b16 %v4361
        %v6294 = vunpack.c.h.b16 %v4361
        %v6295 = vunpack.c.l.b16 %v4362
        %v6296 = vunpack.c.h.b16 %v4362
        %v6297 = vunpack.c.l.b16 %v4363
        %v6298 = vunpack.c.h.b16 %v4363
        %v6299 = vunpack.c.l.b16 %v4364
        %v6300 = vunpack.c.h.b16 %v4364
        %v6301 = vunpack.c.l.b16 %v4365
        %v6302 = vunpack.c.h.b16 %v4365
        %v6303 = vunpack.c.l.b16 %v4366
        %v6304 = vunpack.c.h.b16 %v4366
        %v6305 = vunpack.c.l.b16 %v4367
        %v6306 = vunpack.c.h.b16 %v4367
        %v6307 = vunpack.c.l.b16 %v4368
        %v6308 = vunpack.c.h.b16 %v4368
        %v6309 = vunpack.c.l.b16 %v4369
        %v6310 = vunpack.c.h.b16 %v4369
        %v6311 = vunpack.c.l.b16 %v4370
        %v6312 = vunpack.c.h.b16 %v4370
        %v6313 = vunpack.c.l.b16 %v4371
        %v6314 = vunpack.c.h.b16 %v4371
        %v6315 = vunpack.c.l.b16 %v4372
        %v6316 = vunpack.c.h.b16 %v4372
        %v6317 = vunpack.c.l.b16 %v4373
        %v6318 = vunpack.c.h.b16 %v4373
        %v6319 = vunpack.c.l.b16 %v4374
        %v6320 = vunpack.c.h.b16 %v4374
        %v6321 = vunpack.c.l.b16 %v4375
        %v6322 = vunpack.c.h.b16 %v4375
        %v6323 = vunpack.c.l.b16 %v4376
        %v6324 = vunpack.c.h.b16 %v4376
        %v6325 = vunpack.c.l.b16 %v4377
        %v6326 = vunpack.c.h.b16 %v4377
        %v6327 = vunpack.c.l.b16 %v4378
        %v6328 = vunpack.c.h.b16 %v4378
        %v6329 = vunpack.c.l.b16 %v4379
        %v6330 = vunpack.c.h.b16 %v4379
        %v6331 = vunpack.c.l.b16 %v4380
        %v6332 = vunpack.c.h.b16 %v4380
        %v6333 = vunpack.c.l.b16 %v4381
        %v6334 = vunpack.c.h.b16 %v4381
        %v6335 = vunpack.c.l.b16 %v4382
        %v6336 = vunpack.c.h.b16 %v4382
        %v6337 = vunpack.c.l.b16 %v4383
        %v6338 = vunpack.c.h.b16 %v4383
        %v6339 = vunpack.c.l.b16 %v4384
        %v6340 = vunpack.c.h.b16 %v4384
        %v6341 = vunpack.c.l.b16 %v4385
        %v6342 = vunpack.c.h.b16 %v4385
        %v6343 = vunpack.c.l.b16 %v4386
        %v6344 = vunpack.c.h.b16 %v4386
        %v6345 = vunpack.c.l.b16 %v4387
        %v6346 = vunpack.c.h.b16 %v4387
        %v6347 = vunpack.c.l.b16 %v4388
        %v6348 = vunpack.c.h.b16 %v4388
        %v6349 = vunpack.c.l.b16 %v4389
        %v6350 = vunpack.c.h.b16 %v4389
        %v6351 = vunpack.c.l.b16 %v4390
        %v6352 = vunpack.c.h.b16 %v4390
        %v6353 = vunpack.c.l.b16 %v4391
        %v6354 = vunpack.c.h.b16 %v4391
        %v6355 = vunpack.c.l.b16 %v4392
        %v6356 = vunpack.c.h.b16 %v4392
        %v6357 = vunpack.c.l.b16 %v4393
        %v6358 = vunpack.c.h.b16 %v4393
        %v6359 = vunpack.c.l.b16 %v4394
        %v6360 = vunpack.c.h.b16 %v4394
        %v6361 = vunpack.c.l.b16 %v4395
        %v6362 = vunpack.c.h.b16 %v4395
        %v6363 = vunpack.c.l.b16 %v4396
        %v6364 = vunpack.c.h.b16 %v4396
        %v6365 = vunpack.c.l.b16 %v4397
        %v6366 = vunpack.c.h.b16 %v4397
        %v6367 = vunpack.c.l.b16 %v4398
        %v6368 = vunpack.c.h.b16 %v4398
        %v6369 = vunpack.c.l.b16 %v4399
        %v6370 = vunpack.c.h.b16 %v4399
        %v6371 = vunpack.c.l.b16 %v4400
        %v6372 = vunpack.c.h.b16 %v4400
        %v6373 = vunpack.c.l.b16 %v4401
        %v6374 = vunpack.c.h.b16 %v4401
        %v6375 = vunpack.c.l.b16 %v4402
        %v6376 = vunpack.c.h.b16 %v4402
        %v6377 = vunpack.c.l.b16 %v4403
        %v6378 = vunpack.c.h.b16 %v4403
        %v6379 = vunpack.c.l.b16 %v4404
        %v6380 = vunpack.c.h.b16 %v4404
        %v6381 = vunpack.c.l.b16 %v4405
        %v6382 = vunpack.c.h.b16 %v4405
        %v6383 = vunpack.c.l.b16 %v4406
        %v6384 = vunpack.c.h.b16 %v4406
        %v6385 = vunpack.c.l.b16 %v4407
        %v6386 = vunpack.c.h.b16 %v4407
        %v6387 = vunpack.c.l.b16 %v4408
        %v6388 = vunpack.c.h.b16 %v4408
        %v6389 = vunpack.c.l.b16 %v4409
        %v6390 = vunpack.c.h.b16 %v4409
        %v6391 = vunpack.c.l.b16 %v4410
        %v6392 = vunpack.c.h.b16 %v4410
        %v6393 = vunpack.c.l.b16 %v4411
        %v6394 = vunpack.c.h.b16 %v4411
        %v6395 = vunpack.c.l.b16 %v4412
        %v6396 = vunpack.c.h.b16 %v4412
        %v6397 = vunpack.c.l.b16 %v4413
        %v6398 = vunpack.c.h.b16 %v4413
        %v6399 = vunpack.c.l.b16 %v4414
        %v6400 = vunpack.c.h.b16 %v4414
        %v6401 = vunpack.c.l.b16 %v4415
        %v6402 = vunpack.c.h.b16 %v4415
        %v6403 = vunpack.c.l.b16 %v4416
        %v6404 = vunpack.c.h.b16 %v4416
        %v6405 = vunpack.c.l.b16 %v4417
        %v6406 = vunpack.c.h.b16 %v4417
        %v6407 = vunpack.c.l.b16 %v4418
        %v6408 = vunpack.c.h.b16 %v4418
        %v6409 = vunpack.c.l.b16 %v4419
        %v6410 = vunpack.c.h.b16 %v4419
        %v6411 = vunpack.c.l.b16 %v4420
        %v6412 = vunpack.c.h.b16 %v4420
        %v6413 = vunpack.c.l.b16 %v4421
        %v6414 = vunpack.c.h.b16 %v4421
        %v6415 = vunpack.c.l.b16 %v4422
        %v6416 = vunpack.c.h.b16 %v4422
        %v6417 = vunpack.c.l.b16 %v4423
        %v6418 = vunpack.c.h.b16 %v4423
        %v6419 = vunpack.c.l.b16 %v4424
        %v6420 = vunpack.c.h.b16 %v4424
        %v6421 = vunpack.c.l.b16 %v4425
        %v6422 = vunpack.c.h.b16 %v4425
        %v6423 = vunpack.c.l.b16 %v4426
        %v6424 = vunpack.c.h.b16 %v4426
        %v6425 = vunpack.c.l.b16 %v4427
        %v6426 = vunpack.c.h.b16 %v4427
        %v6427 = vunpack.c.l.b16 %v4428
        %v6428 = vunpack.c.h.b16 %v4428
        %v6429 = vunpack.c.l.b16 %v4429
        %v6430 = vunpack.c.h.b16 %v4429
        %v6431 = vunpack.c.l.b16 %v4430
        %v6432 = vunpack.c.h.b16 %v4430
        %v6433 = vunpack.c.l.b16 %v4431
        %v6434 = vunpack.c.h.b16 %v4431
        %v6435 = vunpack.c.l.b16 %v4432
        %v6436 = vunpack.c.h.b16 %v4432
        %v6437 = vunpack.c.l.b16 %v4433
        %v6438 = vunpack.c.h.b16 %v4433
        %v6439 = vunpack.c.l.b16 %v4434
        %v6440 = vunpack.c.h.b16 %v4434
        %v6441 = vunpack.c.l.b16 %v4435
        %v6442 = vunpack.c.h.b16 %v4435
        %v6443 = vunpack.c.l.b16 %v4436
        %v6444 = vunpack.c.h.b16 %v4436
        %v6445 = vunpack.c.l.b16 %v4437
        %v6446 = vunpack.c.h.b16 %v4437
        %v6447 = vunpack.c.l.b16 %v4438
        %v6448 = vunpack.c.h.b16 %v4438
        %v6449 = vunpack.c.l.b16 %v4439
        %v6450 = vunpack.c.h.b16 %v4439
        %v6451 = vunpack.c.l.b16 %v4440
        %v6452 = vunpack.c.h.b16 %v4440
        %v6453 = vunpack.c.l.b16 %v4441
        %v6454 = vunpack.c.h.b16 %v4441
        %v6455 = vunpack.c.l.b16 %v4442
        %v6456 = vunpack.c.h.b16 %v4442
        %v6457 = vunpack.c.l.b16 %v4443
        %v6458 = vunpack.c.h.b16 %v4443
        %v6459 = vunpack.c.l.b16 %v4444
        %v6460 = vunpack.c.h.b16 %v4444
        %v6461 = vunpack.c.l.b16 %v4445
        %v6462 = vunpack.c.h.b16 %v4445
        %v6463 = vunpack.c.l.b16 %v4446
        %v6464 = vunpack.c.h.b16 %v4446
        %v6465 = vunpack.c.l.b16 %v4447
        %v6466 = vunpack.c.h.b16 %v4447
        %v6467 = vunpack.c.l.b16 %v4448
        %v6468 = vunpack.c.h.b16 %v4448
        %v6469 = vunpack.c.l.b16 %v4449
        %v6470 = vunpack.c.h.b16 %v4449
        %v6471 = vunpack.c.l.b16 %v4450
        %v6472 = vunpack.c.h.b16 %v4450
        %v6473 = vunpack.c.l.b16 %v4451
        %v6474 = vunpack.c.h.b16 %v4451
        %v6475 = vunpack.c.l.b16 %v4452
        %v6476 = vunpack.c.h.b16 %v4452
        %v6477 = vunpack.c.l.b16 %v4453
        %v6478 = vunpack.c.h.b16 %v4453
        %v6479 = vunpack.c.l.b16 %v4454
        %v6480 = vunpack.c.h.b16 %v4454
        %v6481 = vunpack.c.l.b16 %v4455
        %v6482 = vunpack.c.h.b16 %v4455
        %v6483 = vunpack.c.l.b16 %v4456
        %v6484 = vunpack.c.h.b16 %v4456
        %v6485 = vunpack.c.l.b16 %v4457
        %v6486 = vunpack.c.h.b16 %v4457
        %v6487 = vunpack.c.l.b16 %v4458
        %v6488 = vunpack.c.h.b16 %v4458
        %v6489 = vunpack.c.l.b16 %v4459
        %v6490 = vunpack.c.h.b16 %v4459
        %v6491 = vunpack.c.l.b16 %v4460
        %v6492 = vunpack.c.h.b16 %v4460
        %v6493 = vunpack.c.l.b16 %v4461
        %v6494 = vunpack.c.h.b16 %v4461
        %v6495 = vunpack.c.l.b16 %v4462
        %v6496 = vunpack.c.h.b16 %v4462
        %v6497 = vunpack.c.l.b16 %v4463
        %v6498 = vunpack.c.h.b16 %v4463
        %v6499 = vunpack.c.l.b16 %v4464
        %v6500 = vunpack.c.h.b16 %v4464
        %v6501 = vunpack.c.l.b16 %v4465
        %v6502 = vunpack.c.h.b16 %v4465
        %v6503 = vunpack.c.l.b16 %v4466
        %v6504 = vunpack.c.h.b16 %v4466
        %v6505 = vunpack.c.l.b16 %v4467
        %v6506 = vunpack.c.h.b16 %v4467
        %v6507 = vunpack.c.l.b16 %v4468
        %v6508 = vunpack.c.h.b16 %v4468
        %v6509 = vunpack.c.l.b16 %v4469
        %v6510 = vunpack.c.h.b16 %v4469
        %v6511 = vunpack.c.l.b16 %v4470
        %v6512 = vunpack.c.h.b16 %v4470
        %v6513 = vunpack.c.l.b16 %v4471
        %v6514 = vunpack.c.h.b16 %v4471
        %v6515 = vunpack.c.l.b16 %v4472
        %v6516 = vunpack.c.h.b16 %v4472
        %v6517 = vunpack.c.l.b16 %v4473
        %v6518 = vunpack.c.h.b16 %v4473
        %v6519 = vunpack.c.l.b16 %v4474
        %v6520 = vunpack.c.h.b16 %v4474
        %v6521 = vunpack.c.l.b16 %v4475
        %v6522 = vunpack.c.h.b16 %v4475
        %v6523 = vunpack.c.l.b16 %v4476
        %v6524 = vunpack.c.h.b16 %v4476
        %v6525 = vunpack.c.l.b16 %v4477
        %v6526 = vunpack.c.h.b16 %v4477
        %v6527 = vunpack.c.l.b16 %v4478
        %v6528 = vunpack.c.h.b16 %v4478
        %v6529 = vunpack.c.l.b16 %v4479
        %v6530 = vunpack.c.h.b16 %v4479
        %v6531 = vunpack.c.l.b16 %v4480
        %v6532 = vunpack.c.h.b16 %v4480
        %v6533 = vunpack.c.l.b16 %v4481
        %v6534 = vunpack.c.h.b16 %v4481
        %v6535 = vunpack.c.l.b16 %v4482
        %v6536 = vunpack.c.h.b16 %v4482
        %v6537 = vunpack.c.l.b16 %v4483
        %v6538 = vunpack.c.h.b16 %v4483
        %v6539 = vunpack.c.l.b16 %v4484
        %v6540 = vunpack.c.h.b16 %v4484
        %v6541 = vunpack.c.l.b16 %v4485
        %v6542 = vunpack.c.h.b16 %v4485
        %v6543 = vunpack.c.l.b16 %v4486
        %v6544 = vunpack.c.h.b16 %v4486
        %v6545 = vunpack.c.l.b16 %v4487
        %v6546 = vunpack.c.h.b16 %v4487
        %v6547 = vunpack.c.l.b16 %v4488
        %v6548 = vunpack.c.h.b16 %v4488
        %v6549 = vunpack.c.l.b16 %v4489
        %v6550 = vunpack.c.h.b16 %v4489
        %v6551 = vunpack.c.l.b16 %v4490
        %v6552 = vunpack.c.h.b16 %v4490
        %v6553 = vunpack.c.l.b16 %v4491
        %v6554 = vunpack.c.h.b16 %v4491
        %v6555 = vunpack.c.l.b16 %v4492
        %v6556 = vunpack.c.h.b16 %v4492
        %v6557 = vunpack.c.l.b16 %v4493
        %v6558 = vunpack.c.h.b16 %v4493
        %v6559 = vunpack.c.l.b16 %v4494
        %v6560 = vunpack.c.h.b16 %v4494
        %v6561 = vunpack.c.l.b16 %v4495
        %v6562 = vunpack.c.h.b16 %v4495
        %v6563 = vunpack.c.l.b16 %v4496
        %v6564 = vunpack.c.h.b16 %v4496
        %v6565 = vunpack.c.l.b16 %v4497
        %v6566 = vunpack.c.h.b16 %v4497
        %v6567 = vunpack.c.l.b16 %v4498
        %v6568 = vunpack.c.h.b16 %v4498
        %v6569 = vunpack.c.l.b16 %v4499
        %v6570 = vunpack.c.h.b16 %v4499
        %v6571 = vunpack.c.l.b16 %v4500
        %v6572 = vunpack.c.h.b16 %v4500
        %v6573 = vunpack.c.l.b16 %v4501
        %v6574 = vunpack.c.h.b16 %v4501
        %v6575 = vunpack.c.l.b16 %v4502
        %v6576 = vunpack.c.h.b16 %v4502
        %v6577 = vunpack.c.l.b16 %v4503
        %v6578 = vunpack.c.h.b16 %v4503
        %v6579 = vunpack.c.l.b16 %v4504
        %v6580 = vunpack.c.h.b16 %v4504
        %v6581 = vunpack.c.l.b16 %v4505
        %v6582 = vunpack.c.h.b16 %v4505
        %v6583 = vunpack.c.l.b16 %v4506
        %v6584 = vunpack.c.h.b16 %v4506
        %v6585 = vunpack.c.l.b16 %v4507
        %v6586 = vunpack.c.h.b16 %v4507
        %v6587 = vunpack.c.l.b16 %v4508
        %v6588 = vunpack.c.h.b16 %v4508
        %v6589 = vunpack.c.l.b16 %v4509
        %v6590 = vunpack.c.h.b16 %v4509
        %v6591 = vunpack.c.l.b16 %v4510
        %v6592 = vunpack.c.h.b16 %v4510
        %v6593 = vunpack.c.l.b16 %v4511
        %v6594 = vunpack.c.h.b16 %v4511
        %v6595 = vunpack.c.l.b16 %v4512
        %v6596 = vunpack.c.h.b16 %v4512
        %v6597 = vunpack.c.l.b16 %v4513
        %v6598 = vunpack.c.h.b16 %v4513
        %v6599 = vunpack.c.l.b16 %v4514
        %v6600 = vunpack.c.h.b16 %v4514
        %v6601 = vunpack.c.l.b16 %v4515
        %v6602 = vunpack.c.h.b16 %v4515
        %v6603 = vunpack.c.l.b16 %v4516
        %v6604 = vunpack.c.h.b16 %v4516
        %v6605 = vunpack.c.l.b16 %v4517
        %v6606 = vunpack.c.h.b16 %v4517
        %v6607 = vunpack.c.l.b16 %v4518
        %v6608 = vunpack.c.h.b16 %v4518
        %v6609 = vunpack.c.l.b16 %v4519
        %v6610 = vunpack.c.h.b16 %v4519
        %v6611 = vunpack.c.l.b16 %v4520
        %v6612 = vunpack.c.h.b16 %v4520
        %v6613 = vunpack.c.l.b16 %v4521
        %v6614 = vunpack.c.h.b16 %v4521
        %v6615 = vunpack.c.l.b16 %v4522
        %v6616 = vunpack.c.h.b16 %v4522
        %v6617 = vunpack.c.l.b16 %v4523
        %v6618 = vunpack.c.h.b16 %v4523
        %v6619 = vunpack.c.l.b16 %v4524
        %v6620 = vunpack.c.h.b16 %v4524
        %v6621 = vunpack.c.l.b16 %v4525
        %v6622 = vunpack.c.h.b16 %v4525
        %v6623 = vunpack.c.l.b16 %v4526
        %v6624 = vunpack.c.h.b16 %v4526
        %v6625 = vunpack.c.l.b16 %v4527
        %v6626 = vunpack.c.h.b16 %v4527
        %v6627 = vunpack.c.l.b16 %v4528
        %v6628 = vunpack.c.h.b16 %v4528
        %v6629 = vunpack.c.l.b16 %v4529
        %v6630 = vunpack.c.h.b16 %v4529
        %v6631 = vunpack.c.l.b16 %v4530
        %v6632 = vunpack.c.h.b16 %v4530
        %v6633 = vunpack.c.l.b16 %v4531
        %v6634 = vunpack.c.h.b16 %v4531
        %v6635 = vunpack.c.l.b16 %v4532
        %v6636 = vunpack.c.h.b16 %v4532
        %v6637 = vunpack.c.l.b16 %v4533
        %v6638 = vunpack.c.h.b16 %v4533
        %v6639 = vunpack.c.l.b16 %v4534
        %v6640 = vunpack.c.h.b16 %v4534
        %v6641 = vunpack.c.l.b16 %v4535
        %v6642 = vunpack.c.h.b16 %v4535
        %v6643 = vunpack.c.l.b16 %v4536
        %v6644 = vunpack.c.h.b16 %v4536
        %v6645 = vunpack.c.l.b16 %v4537
        %v6646 = vunpack.c.h.b16 %v4537
        %v6647 = vunpack.c.l.b16 %v4538
        %v6648 = vunpack.c.h.b16 %v4538
        %v6649 = vunpack.c.l.b16 %v4539
        %v6650 = vunpack.c.h.b16 %v4539
        %v6651 = vunpack.c.l.b16 %v4540
        %v6652 = vunpack.c.h.b16 %v4540
        %v6653 = vunpack.c.l.b16 %v4541
        %v6654 = vunpack.c.h.b16 %v4541
        %v6655 = vunpack.c.l.b16 %v4542
        %v6656 = vunpack.c.h.b16 %v4542
        %v6657 = vunpack.c.l.b16 %v4543
        %v6658 = vunpack.c.h.b16 %v4543
        %v6659 = vunpack.c.l.b16 %v4544
        %v6660 = vunpack.c.h.b16 %v4544
        %v6661 = vunpack.c.l.b16 %v4545
        %v6662 = vunpack.c.h.b16 %v4545
        %v6663 = vunpack.c.l.b16 %v4546
        %v6664 = vunpack.c.h.b16 %v4546
        %v6665 = vunpack.c.l.b16 %v4547
        %v6666 = vunpack.c.h.b16 %v4547
        %v6667 = vunpack.c.l.b16 %v4548
        %v6668 = vunpack.c.h.b16 %v4548
        %v6669 = vunpack.c.l.b16 %v4549
        %v6670 = vunpack.c.h.b16 %v4549
        %v6671 = vunpack.c.l.b16 %v4550
        %v6672 = vunpack.c.h.b16 %v4550
        %v6673 = vunpack.c.l.b16 %v4551
        %v6674 = vunpack.c.h.b16 %v4551
        %v6675 = vunpack.c.l.b16 %v4552
        %v6676 = vunpack.c.h.b16 %v4552
        %v6677 = vunpack.c.l.b16 %v4553
        %v6678 = vunpack.c.h.b16 %v4553
        %v6679 = vunpack.c.l.b16 %v4554
        %v6680 = vunpack.c.h.b16 %v4554
        %v6681 = vunpack.c.l.b16 %v4555
        %v6682 = vunpack.c.h.b16 %v4555
        %v6683 = vunpack.c.l.b16 %v4556
        %v6684 = vunpack.c.h.b16 %v4556
        %v6685 = vunpack.c.l.b16 %v4557
        %v6686 = vunpack.c.h.b16 %v4557
        %v6687 = vunpack.c.l.b16 %v4558
        %v6688 = vunpack.c.h.b16 %v4558
        %v6689 = vunpack.c.l.b16 %v4559
        %v6690 = vunpack.c.h.b16 %v4559
        %v6691 = vunpack.c.l.b16 %v4560
        %v6692 = vunpack.c.h.b16 %v4560
        %v6693 = vunpack.c.l.b16 %v4561
        %v6694 = vunpack.c.h.b16 %v4561
        %v6695 = vunpack.c.l.b16 %v4562
        %v6696 = vunpack.c.h.b16 %v4562
        %v6697 = vunpack.c.l.b16 %v4563
        %v6698 = vunpack.c.h.b16 %v4563
        %v6699 = vunpack.c.l.b16 %v4564
        %v6700 = vunpack.c.h.b16 %v4564
        %v6701 = vunpack.c.l.b16 %v4565
        %v6702 = vunpack.c.h.b16 %v4565
        %v6703 = vunpack.c.l.b16 %v4566
        %v6704 = vunpack.c.h.b16 %v4566
        %v6705 = vunpack.c.l.b16 %v4567
        %v6706 = vunpack.c.h.b16 %v4567
        %v6707 = vunpack.c.l.b16 %v4568
        %v6708 = vunpack.c.h.b16 %v4568
        %v6709 = vunpack.c.l.b16 %v4569
        %v6710 = vunpack.c.h.b16 %v4569
        %v6711 = vunpack.c.l.b16 %v4570
        %v6712 = vunpack.c.h.b16 %v4570
        %v6713 = vunpack.c.l.b16 %v4571
        %v6714 = vunpack.c.h.b16 %v4571
        %v6715 = vunpack.c.l.b16 %v4572
        %v6716 = vunpack.c.h.b16 %v4572
        %v6717 = vunpack.c.l.b16 %v4573
        %v6718 = vunpack.c.h.b16 %v4573
        %v6719 = vunpack.c.l.b16 %v4574
        %v6720 = vunpack.c.h.b16 %v4574
        %v6721 = vunpack.c.l.b16 %v4575
        %v6722 = vunpack.c.h.b16 %v4575
        %v6723 = vunpack.c.l.b16 %v4576
        %v6724 = vunpack.c.h.b16 %v4576
        %v6725 = vunpack.c.l.b16 %v4577
        %v6726 = vunpack.c.h.b16 %v4577
        %v6727 = vunpack.c.l.b16 %v4578
        %v6728 = vunpack.c.h.b16 %v4578
        %v6729 = vunpack.c.l.b16 %v4579
        %v6730 = vunpack.c.h.b16 %v4579
        %v6731 = vunpack.c.l.b16 %v4580
        %v6732 = vunpack.c.h.b16 %v4580
        %v6733 = vunpack.c.l.b16 %v4581
        %v6734 = vunpack.c.h.b16 %v4581
        %v6735 = vunpack.c.l.b16 %v4582
        %v6736 = vunpack.c.h.b16 %v4582
        %v6737 = vunpack.c.l.b16 %v4583
        %v6738 = vunpack.c.h.b16 %v4583
        %v6739 = vunpack.c.l.b16 %v4584
        %v6740 = vunpack.c.h.b16 %v4584
        %v6741 = vunpack.c.l.b16 %v4585
        %v6742 = vunpack.c.h.b16 %v4585
        %v6743 = vunpack.c.l.b16 %v4586
        %v6744 = vunpack.c.h.b16 %v4586
        %v6745 = vunpack.c.l.b16 %v4587
        %v6746 = vunpack.c.h.b16 %v4587
        %v6747 = vunpack.c.l.b16 %v4588
        %v6748 = vunpack.c.h.b16 %v4588
        %v6749 = vunpack.c.l.b16 %v4589
        %v6750 = vunpack.c.h.b16 %v4589
        %v6751 = vunpack.c.l.b16 %v4590
        %v6752 = vunpack.c.h.b16 %v4590
        %v6753 = vunpack.c.l.b16 %v4591
        %v6754 = vunpack.c.h.b16 %v4591
        %v6755 = vunpack.c.l.b16 %v4592
        %v6756 = vunpack.c.h.b16 %v4592
        %v6757 = vunpack.c.l.b16 %v4593
        %v6758 = vunpack.c.h.b16 %v4593
        %v6759 = vunpack.c.l.b16 %v4594
        %v6760 = vunpack.c.h.b16 %v4594
        %v6761 = vunpack.c.l.b16 %v4595
        %v6762 = vunpack.c.h.b16 %v4595
        %v6763 = vunpack.c.l.b16 %v4596
        %v6764 = vunpack.c.h.b16 %v4596
        %v6765 = vunpack.c.l.b16 %v4597
        %v6766 = vunpack.c.h.b16 %v4597
        %v6767 = vunpack.c.l.b16 %v4598
        %v6768 = vunpack.c.h.b16 %v4598
        %v6769 = vunpack.c.l.b16 %v4599
        %v6770 = vunpack.c.h.b16 %v4599
        %v6771 = vunpack.c.l.b16 %v4600
        %v6772 = vunpack.c.h.b16 %v4600
        %v6773 = vunpack.c.l.b16 %v4601
        %v6774 = vunpack.c.h.b16 %v4601
        %v6775 = vunpack.c.l.b16 %v4602
        %v6776 = vunpack.c.h.b16 %v4602
        %v6777 = vunpack.c.l.b16 %v4603
        %v6778 = vunpack.c.h.b16 %v4603
        %v6779 = vunpack.c.l.b16 %v4604
        %v6780 = vunpack.c.h.b16 %v4604
        %v6781 = vunpack.c.l.b16 %v4605
        %v6782 = vunpack.c.h.b16 %v4605
        %v6783 = vunpack.c.l.b16 %v4606
        %v6784 = vunpack.c.h.b16 %v4606
        %v6785 = vunpack.c.l.b16 %v4607
        %v6786 = vunpack.c.h.b16 %v4607
        %v6787 = vunpack.c.l.b16 %v4608
        %v6788 = vunpack.c.h.b16 %v4608
        %v6789 = vunpack.c.l.b16 %v4609
        %v6790 = vunpack.c.h.b16 %v4609
        %v6791 = vunpack.c.l.b16 %v4610
        %v6792 = vunpack.c.h.b16 %v4610
        %v6793 = vunpack.c.l.b16 %v4611
        %v6794 = vunpack.c.h.b16 %v4611
        %v6795 = vunpack.c.l.b16 %v4612
        %v6796 = vunpack.c.h.b16 %v4612
        %v6797 = vunpack.c.l.b16 %v4613
        %v6798 = vunpack.c.h.b16 %v4613
        %v6799 = vunpack.c.l.b16 %v4614
        %v6800 = vunpack.c.h.b16 %v4614
        %v6801 = vunpack.c.l.b16 %v4615
        %v6802 = vunpack.c.h.b16 %v4615
        %v6803 = vunpack.c.l.b16 %v4616
        %v6804 = vunpack.c.h.b16 %v4616
        %v6805 = vunpack.c.l.b16 %v4617
        %v6806 = vunpack.c.h.b16 %v4617
        %v6807 = vunpack.c.l.b16 %v4618
        %v6808 = vunpack.c.h.b16 %v4618
        %v6809 = vunpack.c.l.b16 %v4619
        %v6810 = vunpack.c.h.b16 %v4619
        %v6811 = vunpack.c.l.b16 %v4620
        %v6812 = vunpack.c.h.b16 %v4620
        %v6813 = vunpack.c.l.b16 %v4621
        %v6814 = vunpack.c.h.b16 %v4621
        %v6815 = vunpack.c.l.b16 %v4622
        %v6816 = vunpack.c.h.b16 %v4622
        %v6817 = vunpack.c.l.b16 %v4623
        %v6818 = vunpack.c.h.b16 %v4623
        %v6819 = vunpack.c.l.b16 %v4624
        %v6820 = vunpack.c.h.b16 %v4624
        %v6821 = vunpack.c.l.b16 %v4625
        %v6822 = vunpack.c.h.b16 %v4625
        %v6823 = vunpack.c.l.b16 %v4626
        %v6824 = vunpack.c.h.b16 %v4626
        %v6825 = vunpack.c.l.b16 %v4627
        %v6826 = vunpack.c.h.b16 %v4627
        %v6827 = vunpack.c.l.b16 %v4628
        %v6828 = vunpack.c.h.b16 %v4628
        %v6829 = vunpack.c.l.b16 %v4629
        %v6830 = vunpack.c.h.b16 %v4629
        %v6831 = vunpack.c.l.b16 %v4630
        %v6832 = vunpack.c.h.b16 %v4630
        %v6833 = vunpack.c.l.b16 %v4631
        %v6834 = vunpack.c.h.b16 %v4631
        %v6835 = vunpack.c.l.b16 %v4632
        %v6836 = vunpack.c.h.b16 %v4632
        %v6837 = vunpack.c.l.b16 %v4633
        %v6838 = vunpack.c.h.b16 %v4633
        %v6839 = vunpack.c.l.b16 %v4634
        %v6840 = vunpack.c.h.b16 %v4634
        %v6841 = vunpack.c.l.b16 %v4635
        %v6842 = vunpack.c.h.b16 %v4635
        %v6843 = vunpack.c.l.b16 %v4636
        %v6844 = vunpack.c.h.b16 %v4636
        %v6845 = vunpack.c.l.b16 %v4637
        %v6846 = vunpack.c.h.b16 %v4637
        %v6847 = vunpack.c.l.b16 %v4638
        %v6848 = vunpack.c.h.b16 %v4638
        %v6849 = vunpack.c.l.b16 %v4639
        %v6850 = vunpack.c.h.b16 %v4639
        %v6851 = vunpack.c.l.b16 %v4640
        %v6852 = vunpack.c.h.b16 %v4640
        %v6853 = vunpack.c.l.b16 %v4641
        %v6854 = vunpack.c.h.b16 %v4641
        %v6855 = vunpack.c.l.b16 %v4642
        %v6856 = vunpack.c.h.b16 %v4642
        %v6857 = vunpack.c.l.b16 %v4643
        %v6858 = vunpack.c.h.b16 %v4643
        %v6859 = vunpack.c.l.b16 %v4644
        %v6860 = vunpack.c.h.b16 %v4644
        %v6861 = vunpack.c.l.b16 %v4645
        %v6862 = vunpack.c.h.b16 %v4645
        %v6863 = vunpack.c.l.b16 %v4646
        %v6864 = vunpack.c.h.b16 %v4646
        %v6865 = vunpack.c.l.b16 %v4647
        %v6866 = vunpack.c.h.b16 %v4647
        %v6867 = vunpack.c.l.b16 %v4648
        %v6868 = vunpack.c.h.b16 %v4648
        %v6869 = vunpack.c.l.b16 %v4649
        %v6870 = vunpack.c.h.b16 %v4649
        %v6871 = vunpack.c.l.b16 %v4650
        %v6872 = vunpack.c.h.b16 %v4650
        %v6873 = vunpack.c.l.b16 %v4651
        %v6874 = vunpack.c.h.b16 %v4651
        %v6875 = vunpack.c.l.b16 %v4652
        %v6876 = vunpack.c.h.b16 %v4652
        %v6877 = vunpack.c.l.b16 %v4653
        %v6878 = vunpack.c.h.b16 %v4653
        %v6879 = vunpack.c.l.b16 %v4654
        %v6880 = vunpack.c.h.b16 %v4654
        %v6881 = vunpack.c.l.b16 %v4655
        %v6882 = vunpack.c.h.b16 %v4655
        %v6883 = vunpack.c.l.b16 %v4656
        %v6884 = vunpack.c.h.b16 %v4656
        %v6885 = vunpack.c.l.b16 %v4657
        %v6886 = vunpack.c.h.b16 %v4657
        %v6887 = vunpack.c.l.b16 %v4658
        %v6888 = vunpack.c.h.b16 %v4658
        %v6889 = vunpack.c.l.b16 %v4659
        %v6890 = vunpack.c.h.b16 %v4659
        %v6891 = vunpack.c.l.b16 %v4660
        %v6892 = vunpack.c.h.b16 %v4660
        %v6893 = vunpack.c.l.b16 %v4661
        %v6894 = vunpack.c.h.b16 %v4661
        %v6895 = vunpack.c.l.b16 %v4662
        %v6896 = vunpack.c.h.b16 %v4662
        %v6897 = vunpack.c.l.b16 %v4663
        %v6898 = vunpack.c.h.b16 %v4663
        %v6899 = vunpack.c.l.b16 %v4664
        %v6900 = vunpack.c.h.b16 %v4664
        %v6901 = vunpack.c.l.b16 %v4665
        %v6902 = vunpack.c.h.b16 %v4665
        %v6903 = vunpack.c.l.b16 %v4666
        %v6904 = vunpack.c.h.b16 %v4666
        %v6905 = vunpack.c.l.b16 %v4667
        %v6906 = vunpack.c.h.b16 %v4667
        %v6907 = vunpack.c.l.b16 %v4668
        %v6908 = vunpack.c.h.b16 %v4668
        %v6909 = vunpack.c.l.b16 %v4669
        %v6910 = vunpack.c.h.b16 %v4669
        %v6911 = vunpack.c.l.b16 %v4670
        %v6912 = vunpack.c.h.b16 %v4670
        %v6913 = vunpack.c.l.b16 %v4671
        %v6914 = vunpack.c.h.b16 %v4671
        %v6915 = vunpack.c.l.b16 %v4672
        %v6916 = vunpack.c.h.b16 %v4672
        %v6917 = vunpack.c.l.b16 %v4673
        %v6918 = vunpack.c.h.b16 %v4673
        %v6919 = vunpack.c.l.b16 %v4674
        %v6920 = vunpack.c.h.b16 %v4674
        %v6921 = vunpack.c.l.b16 %v4675
        %v6922 = vunpack.c.h.b16 %v4675
        %v6923 = vunpack.c.l.b16 %v4676
        %v6924 = vunpack.c.h.b16 %v4676
        %v6925 = vunpack.c.l.b16 %v4677
        %v6926 = vunpack.c.h.b16 %v4677
        %v6927 = vunpack.c.l.b16 %v4678
        %v6928 = vunpack.c.h.b16 %v4678
        %v6929 = vunpack.c.l.b16 %v4679
        %v6930 = vunpack.c.h.b16 %v4679
        %v6931 = vunpack.c.l.b16 %v4680
        %v6932 = vunpack.c.h.b16 %v4680
        %v6933 = vunpack.c.l.b16 %v4681
        %v6934 = vunpack.c.h.b16 %v4681
        %v6935 = vunpack.c.l.b16 %v4682
        %v6936 = vunpack.c.h.b16 %v4682
        %v6937 = vunpack.c.l.b16 %v4683
        %v6938 = vunpack.c.h.b16 %v4683
        %v6939 = vunpack.c.l.b16 %v4684
        %v6940 = vunpack.c.h.b16 %v4684
        %v6941 = vunpack.c.l.b16 %v4685
        %v6942 = vunpack.c.h.b16 %v4685
        %v6943 = vunpack.c.l.b16 %v4686
        %v6944 = vunpack.c.h.b16 %v4686
        %v6945 = vunpack.c.l.b16 %v4687
        %v6946 = vunpack.c.h.b16 %v4687
        %v6947 = vunpack.c.l.b16 %v4688
        %v6948 = vunpack.c.h.b16 %v4688
        %v6949 = vunpack.c.l.b16 %v4689
        %v6950 = vunpack.c.h.b16 %v4689
        %v6951 = vunpack.c.l.b16 %v4690
        %v6952 = vunpack.c.h.b16 %v4690
        %v6953 = vunpack.c.l.b16 %v4691
        %v6954 = vunpack.c.h.b16 %v4691
        %v6955 = vunpack.c.l.b16 %v4692
        %v6956 = vunpack.c.h.b16 %v4692
        %v6957 = vunpack.c.l.b16 %v4693
        %v6958 = vunpack.c.h.b16 %v4693
        %v6959 = vunpack.c.l.b16 %v4694
        %v6960 = vunpack.c.h.b16 %v4694
        %v6961 = vunpack.c.l.b16 %v4695
        %v6962 = vunpack.c.h.b16 %v4695
        %v6963 = vunpack.c.l.b16 %v4696
        %v6964 = vunpack.c.h.b16 %v4696
        %v6965 = vunpack.c.l.b16 %v4697
        %v6966 = vunpack.c.h.b16 %v4697
        %v6967 = vunpack.c.l.b16 %v4698
        %v6968 = vunpack.c.h.b16 %v4698
        %v6969 = vunpack.c.l.b16 %v4699
        %v6970 = vunpack.c.h.b16 %v4699
        %v6971 = vunpack.c.l.b16 %v4700
        %v6972 = vunpack.c.h.b16 %v4700
        %v6973 = vunpack.c.l.b16 %v4701
        %v6974 = vunpack.c.h.b16 %v4701
        %v6975 = vunpack.c.l.b16 %v4702
        %v6976 = vunpack.c.h.b16 %v4702
        %v6977 = vunpack.c.l.b16 %v4703
        %v6978 = vunpack.c.h.b16 %v4703
        %v6979 = vunpack.c.l.b16 %v4704
        %v6980 = vunpack.c.h.b16 %v4704
        %v6981 = vunpack.c.l.b16 %v4705
        %v6982 = vunpack.c.h.b16 %v4705
        %v6983 = vunpack.c.l.b16 %v4706
        %v6984 = vunpack.c.h.b16 %v4706
        %v6985 = vunpack.c.l.b16 %v4707
        %v6986 = vunpack.c.h.b16 %v4707
        %v6987 = vunpack.c.l.b16 %v4708
        %v6988 = vunpack.c.h.b16 %v4708
        %v6989 = vunpack.c.l.b16 %v4709
        %v6990 = vunpack.c.h.b16 %v4709
        %v6991 = vunpack.c.l.b16 %v4710
        %v6992 = vunpack.c.h.b16 %v4710
        %v6993 = vunpack.c.l.b16 %v4711
        %v6994 = vunpack.c.h.b16 %v4711
        %v6995 = vunpack.c.l.b16 %v4712
        %v6996 = vunpack.c.h.b16 %v4712
        %v6997 = vunpack.c.l.b16 %v4713
        %v6998 = vunpack.c.h.b16 %v4713
        %v6999 = vunpack.c.l.b16 %v4714
        %v7000 = vunpack.c.h.b16 %v4714
        %v7001 = vunpack.c.l.b16 %v4715
        %v7002 = vunpack.c.h.b16 %v4715
        %v7003 = vunpack.c.l.b16 %v4716
        %v7004 = vunpack.c.h.b16 %v4716
        %v7005 = vunpack.c.l.b16 %v4717
        %v7006 = vunpack.c.h.b16 %v4717
        %v7007 = vunpack.c.l.b16 %v4718
        %v7008 = vunpack.c.h.b16 %v4718
        %v7009 = vunpack.c.l.b16 %v4719
        %v7010 = vunpack.c.h.b16 %v4719
        %v7011 = vunpack.c.l.b16 %v4720
        %v7012 = vunpack.c.h.b16 %v4720
        %v7013 = vunpack.c.l.b16 %v4721
        %v7014 = vunpack.c.h.b16 %v4721
        %v7015 = vunpack.c.l.b16 %v4722
        %v7016 = vunpack.c.h.b16 %v4722
        %v7017 = vunpack.c.l.b16 %v4723
        %v7018 = vunpack.c.h.b16 %v4723
        %v7019 = vunpack.c.l.b16 %v4724
        %v7020 = vunpack.c.h.b16 %v4724
        %v7021 = vunpack.c.l.b16 %v4725
        %v7022 = vunpack.c.h.b16 %v4725
        %v7023 = vunpack.c.l.b16 %v4726
        %v7024 = vunpack.c.h.b16 %v4726
        %v7025 = vunpack.c.l.b16 %v4727
        %v7026 = vunpack.c.h.b16 %v4727
        %v7027 = vunpack.c.l.b16 %v4728
        %v7028 = vunpack.c.h.b16 %v4728
        %v7029 = vunpack.c.l.b16 %v4729
        %v7030 = vunpack.c.h.b16 %v4729
        %v7031 = vunpack.c.l.b16 %v4730
        %v7032 = vunpack.c.h.b16 %v4730
        %v7033 = vunpack.c.l.b16 %v4731
        %v7034 = vunpack.c.h.b16 %v4731
        %v7035 = vunpack.c.l.b16 %v4732
        %v7036 = vunpack.c.h.b16 %v4732
        %v7037 = vpack.c.b16 %v5517, %v5501
        %v7038 = vpack.c.b16 %v5518, %v5502
        %v7039 = vpack.c.b16 %v5519, %v5503
        %v7040 = vpack.c.b16 %v5520, %v5504
        %v7041 = vpack.c.b16 %v5521, %v5505
        %v7042 = vpack.c.b16 %v5522, %v5506
        %v7043 = vpack.c.b16 %v5523, %v5507
        %v7044 = vpack.c.b16 %v5524, %v5508
        %v7045 = vpack.c.b16 %v5525, %v5509
        %v7046 = vpack.c.b16 %v5526, %v5510
        %v7047 = vpack.c.b16 %v5527, %v5511
        %v7048 = vpack.c.b16 %v5528, %v5512
        %v7049 = vpack.c.b16 %v5529, %v5513
        %v7050 = vpack.c.b16 %v5530, %v5514
        %v7051 = vpack.c.b16 %v5531, %v5515
        %v7052 = vpack.c.b16 %v5532, %v5516
        %v7053 = vpack.c.b16 %v5549, %v5533
        %v7054 = vpack.c.b16 %v5550, %v5534
        %v7055 = vpack.c.b16 %v5551, %v5535
        %v7056 = vpack.c.b16 %v5552, %v5536
        %v7057 = vpack.c.b16 %v5553, %v5537
        %v7058 = vpack.c.b16 %v5554, %v5538
        %v7059 = vpack.c.b16 %v5555, %v5539
        %v7060 = vpack.c.b16 %v5556, %v5540
        %v7061 = vpack.c.b16 %v5557, %v5541
        %v7062 = vpack.c.b16 %v5558, %v5542
        %v7063 = vpack.c.b16 %v5559, %v5543
        %v7064 = vpack.c.b16 %v5560, %v5544
        %v7065 = vpack.c.b16 %v5561, %v5545
        %v7066 = vpack.c.b16 %v5562, %v5546
        %v7067 = vpack.c.b16 %v5563, %v5547
        %v7068 = vpack.c.b16 %v5564, %v5548
        %v7069 = vpack.c.b16 %v5581, %v5565
        %v7070 = vpack.c.b16 %v5582, %v5566
        %v7071 = vpack.c.b16 %v5583, %v5567
        %v7072 = vpack.c.b16 %v5584, %v5568
        %v7073 = vpack.c.b16 %v5585, %v5569
        %v7074 = vpack.c.b16 %v5586, %v5570
        %v7075 = vpack.c.b16 %v5587, %v5571
        %v7076 = vpack.c.b16 %v5588, %v5572
        %v7077 = vpack.c.b16 %v5589, %v5573
        %v7078 = vpack.c.b16 %v5590, %v5574
        %v7079 = vpack.c.b16 %v5591, %v5575
        %v7080 = vpack.c.b16 %v5592, %v5576
        %v7081 = vpack.c.b16 %v5593, %v5577
        %v7082 = vpack.c.b16 %v5594, %v5578
        %v7083 = vpack.c.b16 %v5595, %v5579
        %v7084 = vpack.c.b16 %v5596, %v5580
        %v7085 = vpack.c.b16 %v5613, %v5597
        %v7086 = vpack.c.b16 %v5614, %v5598
        %v7087 = vpack.c.b16 %v5615, %v5599
        %v7088 = vpack.c.b16 %v5616, %v5600
        %v7089 = vpack.c.b16 %v5617, %v5601
        %v7090 = vpack.c.b16 %v5618, %v5602
        %v7091 = vpack.c.b16 %v5619, %v5603
        %v7092 = vpack.c.b16 %v5620, %v5604
        %v7093 = vpack.c.b16 %v5621, %v5605
        %v7094 = vpack.c.b16 %v5622, %v5606
        %v7095 = vpack.c.b16 %v5623, %v5607
        %v7096 = vpack.c.b16 %v5624, %v5608
        %v7097 = vpack.c.b16 %v5625, %v5609
        %v7098 = vpack.c.b16 %v5626, %v5610
        %v7099 = vpack.c.b16 %v5627, %v5611
        %v7100 = vpack.c.b16 %v5628, %v5612
        %v7101 = vpack.c.b16 %v5645, %v5629
        %v7102 = vpack.c.b16 %v5646, %v5630
        %v7103 = vpack.c.b16 %v5647, %v5631
        %v7104 = vpack.c.b16 %v5648, %v5632
        %v7105 = vpack.c.b16 %v5649, %v5633
        %v7106 = vpack.c.b16 %v5650, %v5634
        %v7107 = vpack.c.b16 %v5651, %v5635
        %v7108 = vpack.c.b16 %v5652, %v5636
        %v7109 = vpack.c.b16 %v5653, %v5637
        %v7110 = vpack.c.b16 %v5654, %v5638
        %v7111 = vpack.c.b16 %v5655, %v5639
        %v7112 = vpack.c.b16 %v5656, %v5640
        %v7113 = vpack.c.b16 %v5657, %v5641
        %v7114 = vpack.c.b16 %v5658, %v5642
        %v7115 = vpack.c.b16 %v5659, %v5643
        %v7116 = vpack.c.b16 %v5660, %v5644
        %v7117 = vpack.c.b16 %v5677, %v5661
        %v7118 = vpack.c.b16 %v5678, %v5662
        %v7119 = vpack.c.b16 %v5679, %v5663
        %v7120 = vpack.c.b16 %v5680, %v5664
        %v7121 = vpack.c.b16 %v5681, %v5665
        %v7122 = vpack.c.b16 %v5682, %v5666
        %v7123 = vpack.c.b16 %v5683, %v5667
        %v7124 = vpack.c.b16 %v5684, %v5668
        %v7125 = vpack.c.b16 %v5685, %v5669
        %v7126 = vpack.c.b16 %v5686, %v5670
        %v7127 = vpack.c.b16 %v5687, %v5671
        %v7128 = vpack.c.b16 %v5688, %v5672
        %v7129 = vpack.c.b16 %v5689, %v5673
        %v7130 = vpack.c.b16 %v5690, %v5674
        %v7131 = vpack.c.b16 %v5691, %v5675
        %v7132 = vpack.c.b16 %v5692, %v5676
        %v7133 = vpack.c.b16 %v5709, %v5693
        %v7134 = vpack.c.b16 %v5710, %v5694
        %v7135 = vpack.c.b16 %v5711, %v5695
        %v7136 = vpack.c.b16 %v5712, %v5696
        %v7137 = vpack.c.b16 %v5713, %v5697
        %v7138 = vpack.c.b16 %v5714, %v5698
        %v7139 = vpack.c.b16 %v5715, %v5699
        %v7140 = vpack.c.b16 %v5716, %v5700
        %v7141 = vpack.c.b16 %v5717, %v5701
        %v7142 = vpack.c.b16 %v5718, %v5702
        %v7143 = vpack.c.b16 %v5719, %v5703
        %v7144 = vpack.c.b16 %v5720, %v5704
        %v7145 = vpack.c.b16 %v5721, %v5705
        %v7146 = vpack.c.b16 %v5722, %v5706
        %v7147 = vpack.c.b16 %v5723, %v5707
        %v7148 = vpack.c.b16 %v5724, %v5708
        %v7149 = vpack.c.b16 %v5741, %v5725
        %v7150 = vpack.c.b16 %v5742, %v5726
        %v7151 = vpack.c.b16 %v5743, %v5727
        %v7152 = vpack.c.b16 %v5744, %v5728
        %v7153 = vpack.c.b16 %v5745, %v5729
        %v7154 = vpack.c.b16 %v5746, %v5730
        %v7155 = vpack.c.b16 %v5747, %v5731
        %v7156 = vpack.c.b16 %v5748, %v5732
        %v7157 = vpack.c.b16 %v5749, %v5733
        %v7158 = vpack.c.b16 %v5750, %v5734
        %v7159 = vpack.c.b16 %v5751, %v5735
        %v7160 = vpack.c.b16 %v5752, %v5736
        %v7161 = vpack.c.b16 %v5753, %v5737
        %v7162 = vpack.c.b16 %v5754, %v5738
        %v7163 = vpack.c.b16 %v5755, %v5739
        %v7164 = vpack.c.b16 %v5756, %v5740
        %v7165 = vpack.c.b16 %v5773, %v5757
        %v7166 = vpack.c.b16 %v5774, %v5758
        %v7167 = vpack.c.b16 %v5775, %v5759
        %v7168 = vpack.c.b16 %v5776, %v5760
        %v7169 = vpack.c.b16 %v5777, %v5761
        %v7170 = vpack.c.b16 %v5778, %v5762
        %v7171 = vpack.c.b16 %v5779, %v5763
        %v7172 = vpack.c.b16 %v5780, %v5764
        %v7173 = vpack.c.b16 %v5781, %v5765
        %v7174 = vpack.c.b16 %v5782, %v5766
        %v7175 = vpack.c.b16 %v5783, %v5767
        %v7176 = vpack.c.b16 %v5784, %v5768
        %v7177 = vpack.c.b16 %v5785, %v5769
        %v7178 = vpack.c.b16 %v5786, %v5770
        %v7179 = vpack.c.b16 %v5787, %v5771
        %v7180 = vpack.c.b16 %v5788, %v5772
        %v7181 = vpack.c.b16 %v5805, %v5789
        %v7182 = vpack.c.b16 %v5806, %v5790
        %v7183 = vpack.c.b16 %v5807, %v5791
        %v7184 = vpack.c.b16 %v5808, %v5792
        %v7185 = vpack.c.b16 %v5809, %v5793
        %v7186 = vpack.c.b16 %v5810, %v5794
        %v7187 = vpack.c.b16 %v5811, %v5795
        %v7188 = vpack.c.b16 %v5812, %v5796
        %v7189 = vpack.c.b16 %v5813, %v5797
        %v7190 = vpack.c.b16 %v5814, %v5798
        %v7191 = vpack.c.b16 %v5815, %v5799
        %v7192 = vpack.c.b16 %v5816, %v5800
        %v7193 = vpack.c.b16 %v5817, %v5801
        %v7194 = vpack.c.b16 %v5818, %v5802
        %v7195 = vpack.c.b16 %v5819, %v5803
        %v7196 = vpack.c.b16 %v5820, %v5804
        %v7197 = vpack.c.b16 %v5837, %v5821
        %v7198 = vpack.c.b16 %v5838, %v5822
        %v7199 = vpack.c.b16 %v5839, %v5823
        %v7200 = vpack.c.b16 %v5840, %v5824
        %v7201 = vpack.c.b16 %v5841, %v5825
        %v7202 = vpack.c.b16 %v5842, %v5826
        %v7203 = vpack.c.b16 %v5843, %v5827
        %v7204 = vpack.c.b16 %v5844, %v5828
        %v7205 = vpack.c.b16 %v5845, %v5829
        %v7206 = vpack.c.b16 %v5846, %v5830
        %v7207 = vpack.c.b16 %v5847, %v5831
        %v7208 = vpack.c.b16 %v5848, %v5832
        %v7209 = vpack.c.b16 %v5849, %v5833
        %v7210 = vpack.c.b16 %v5850, %v5834
        %v7211 = vpack.c.b16 %v5851, %v5835
        %v7212 = vpack.c.b16 %v5852, %v5836
        %v7213 = vpack.c.b16 %v5869, %v5853
        %v7214 = vpack.c.b16 %v5870, %v5854
        %v7215 = vpack.c.b16 %v5871, %v5855
        %v7216 = vpack.c.b16 %v5872, %v5856
        %v7217 = vpack.c.b16 %v5873, %v5857
        %v7218 = vpack.c.b16 %v5874, %v5858
        %v7219 = vpack.c.b16 %v5875, %v5859
        %v7220 = vpack.c.b16 %v5876, %v5860
        %v7221 = vpack.c.b16 %v5877, %v5861
        %v7222 = vpack.c.b16 %v5878, %v5862
        %v7223 = vpack.c.b16 %v5879, %v5863
        %v7224 = vpack.c.b16 %v5880, %v5864
        %v7225 = vpack.c.b16 %v5881, %v5865
        %v7226 = vpack.c.b16 %v5882, %v5866
        %v7227 = vpack.c.b16 %v5883, %v5867
        %v7228 = vpack.c.b16 %v5884, %v5868
        %v7229 = vpack.c.b16 %v5901, %v5885
        %v7230 = vpack.c.b16 %v5902, %v5886
        %v7231 = vpack.c.b16 %v5903, %v5887
        %v7232 = vpack.c.b16 %v5904, %v5888
        %v7233 = vpack.c.b16 %v5905, %v5889
        %v7234 = vpack.c.b16 %v5906, %v5890
        %v7235 = vpack.c.b16 %v5907, %v5891
        %v7236 = vpack.c.b16 %v5908, %v5892
        %v7237 = vpack.c.b16 %v5909, %v5893
        %v7238 = vpack.c.b16 %v5910, %v5894
        %v7239 = vpack.c.b16 %v5911, %v5895
        %v7240 = vpack.c.b16 %v5912, %v5896
        %v7241 = vpack.c.b16 %v5913, %v5897
        %v7242 = vpack.c.b16 %v5914, %v5898
        %v7243 = vpack.c.b16 %v5915, %v5899
        %v7244 = vpack.c.b16 %v5916, %v5900
        %v7245 = vpack.c.b16 %v5933, %v5917
        %v7246 = vpack.c.b16 %v5934, %v5918
        %v7247 = vpack.c.b16 %v5935, %v5919
        %v7248 = vpack.c.b16 %v5936, %v5920
        %v7249 = vpack.c.b16 %v5937, %v5921
        %v7250 = vpack.c.b16 %v5938, %v5922
        %v7251 = vpack.c.b16 %v5939, %v5923
        %v7252 = vpack.c.b16 %v5940, %v5924
        %v7253 = vpack.c.b16 %v5941, %v5925
        %v7254 = vpack.c.b16 %v5942, %v5926
        %v7255 = vpack.c.b16 %v5943, %v5927
        %v7256 = vpack.c.b16 %v5944, %v5928
        %v7257 = vpack.c.b16 %v5945, %v5929
        %v7258 = vpack.c.b16 %v5946, %v5930
        %v7259 = vpack.c.b16 %v5947, %v5931
        %v7260 = vpack.c.b16 %v5948, %v5932
        %v7261 = vpack.c.b16 %v5965, %v5949
        %v7262 = vpack.c.b16 %v5966, %v5950
        %v7263 = vpack.c.b16 %v5967, %v5951
        %v7264 = vpack.c.b16 %v5968, %v5952
        %v7265 = vpack.c.b16 %v5969, %v5953
        %v7266 = vpack.c.b16 %v5970, %v5954
        %v7267 = vpack.c.b16 %v5971, %v5955
        %v7268 = vpack.c.b16 %v5972, %v5956
        %v7269 = vpack.c.b16 %v5973, %v5957
        %v7270 = vpack.c.b16 %v5974, %v5958
        %v7271 = vpack.c.b16 %v5975, %v5959
        %v7272 = vpack.c.b16 %v5976, %v5960
        %v7273 = vpack.c.b16 %v5977, %v5961
        %v7274 = vpack.c.b16 %v5978, %v5962
        %v7275 = vpack.c.b16 %v5979, %v5963
        %v7276 = vpack.c.b16 %v5980, %v5964
        %v7277 = vpack.c.b16 %v5997, %v5981
        %v7278 = vpack.c.b16 %v5998, %v5982
        %v7279 = vpack.c.b16 %v5999, %v5983
        %v7280 = vpack.c.b16 %v6000, %v5984
        %v7281 = vpack.c.b16 %v6001, %v5985
        %v7282 = vpack.c.b16 %v6002, %v5986
        %v7283 = vpack.c.b16 %v6003, %v5987
        %v7284 = vpack.c.b16 %v6004, %v5988
        %v7285 = vpack.c.b16 %v6005, %v5989
        %v7286 = vpack.c.b16 %v6006, %v5990
        %v7287 = vpack.c.b16 %v6007, %v5991
        %v7288 = vpack.c.b16 %v6008, %v5992
        %v7289 = vpack.c.b16 %v6009, %v5993
        %v7290 = vpack.c.b16 %v6010, %v5994
        %v7291 = vpack.c.b16 %v6011, %v5995
        %v7292 = vpack.c.b16 %v6012, %v5996
        %v7293 = vpack.c.b16 %v6029, %v6013
        %v7294 = vpack.c.b16 %v6030, %v6014
        %v7295 = vpack.c.b16 %v6031, %v6015
        %v7296 = vpack.c.b16 %v6032, %v6016
        %v7297 = vpack.c.b16 %v6033, %v6017
        %v7298 = vpack.c.b16 %v6034, %v6018
        %v7299 = vpack.c.b16 %v6035, %v6019
        %v7300 = vpack.c.b16 %v6036, %v6020
        %v7301 = vpack.c.b16 %v6037, %v6021
        %v7302 = vpack.c.b16 %v6038, %v6022
        %v7303 = vpack.c.b16 %v6039, %v6023
        %v7304 = vpack.c.b16 %v6040, %v6024
        %v7305 = vpack.c.b16 %v6041, %v6025
        %v7306 = vpack.c.b16 %v6042, %v6026
        %v7307 = vpack.c.b16 %v6043, %v6027
        %v7308 = vpack.c.b16 %v6044, %v6028
        %v7309 = vpack.c.b16 %v6061, %v6045
        %v7310 = vpack.c.b16 %v6062, %v6046
        %v7311 = vpack.c.b16 %v6063, %v6047
        %v7312 = vpack.c.b16 %v6064, %v6048
        %v7313 = vpack.c.b16 %v6065, %v6049
        %v7314 = vpack.c.b16 %v6066, %v6050
        %v7315 = vpack.c.b16 %v6067, %v6051
        %v7316 = vpack.c.b16 %v6068, %v6052
        %v7317 = vpack.c.b16 %v6069, %v6053
        %v7318 = vpack.c.b16 %v6070, %v6054
        %v7319 = vpack.c.b16 %v6071, %v6055
        %v7320 = vpack.c.b16 %v6072, %v6056
        %v7321 = vpack.c.b16 %v6073, %v6057
        %v7322 = vpack.c.b16 %v6074, %v6058
        %v7323 = vpack.c.b16 %v6075, %v6059
        %v7324 = vpack.c.b16 %v6076, %v6060
        %v7325 = vpack.c.b16 %v6093, %v6077
        %v7326 = vpack.c.b16 %v6094, %v6078
        %v7327 = vpack.c.b16 %v6095, %v6079
        %v7328 = vpack.c.b16 %v6096, %v6080
        %v7329 = vpack.c.b16 %v6097, %v6081
        %v7330 = vpack.c.b16 %v6098, %v6082
        %v7331 = vpack.c.b16 %v6099, %v6083
        %v7332 = vpack.c.b16 %v6100, %v6084
        %v7333 = vpack.c.b16 %v6101, %v6085
        %v7334 = vpack.c.b16 %v6102, %v6086
        %v7335 = vpack.c.b16 %v6103, %v6087
        %v7336 = vpack.c.b16 %v6104, %v6088
        %v7337 = vpack.c.b16 %v6105, %v6089
        %v7338 = vpack.c.b16 %v6106, %v6090
        %v7339 = vpack.c.b16 %v6107, %v6091
        %v7340 = vpack.c.b16 %v6108, %v6092
        %v7341 = vpack.c.b16 %v6125, %v6109
        %v7342 = vpack.c.b16 %v6126, %v6110
        %v7343 = vpack.c.b16 %v6127, %v6111
        %v7344 = vpack.c.b16 %v6128, %v6112
        %v7345 = vpack.c.b16 %v6129, %v6113
        %v7346 = vpack.c.b16 %v6130, %v6114
        %v7347 = vpack.c.b16 %v6131, %v6115
        %v7348 = vpack.c.b16 %v6132, %v6116
        %v7349 = vpack.c.b16 %v6133, %v6117
        %v7350 = vpack.c.b16 %v6134, %v6118
        %v7351 = vpack.c.b16 %v6135, %v6119
        %v7352 = vpack.c.b16 %v6136, %v6120
        %v7353 = vpack.c.b16 %v6137, %v6121
        %v7354 = vpack.c.b16 %v6138, %v6122
        %v7355 = vpack.c.b16 %v6139, %v6123
        %v7356 = vpack.c.b16 %v6140, %v6124
        %v7357 = vpack.c.b16 %v6157, %v6141
        %v7358 = vpack.c.b16 %v6158, %v6142
        %v7359 = vpack.c.b16 %v6159, %v6143
        %v7360 = vpack.c.b16 %v6160, %v6144
        %v7361 = vpack.c.b16 %v6161, %v6145
        %v7362 = vpack.c.b16 %v6162, %v6146
        %v7363 = vpack.c.b16 %v6163, %v6147
        %v7364 = vpack.c.b16 %v6164, %v6148
        %v7365 = vpack.c.b16 %v6165, %v6149
        %v7366 = vpack.c.b16 %v6166, %v6150
        %v7367 = vpack.c.b16 %v6167, %v6151
        %v7368 = vpack.c.b16 %v6168, %v6152
        %v7369 = vpack.c.b16 %v6169, %v6153
        %v7370 = vpack.c.b16 %v6170, %v6154
        %v7371 = vpack.c.b16 %v6171, %v6155
        %v7372 = vpack.c.b16 %v6172, %v6156
        %v7373 = vpack.c.b16 %v6189, %v6173
        %v7374 = vpack.c.b16 %v6190, %v6174
        %v7375 = vpack.c.b16 %v6191, %v6175
        %v7376 = vpack.c.b16 %v6192, %v6176
        %v7377 = vpack.c.b16 %v6193, %v6177
        %v7378 = vpack.c.b16 %v6194, %v6178
        %v7379 = vpack.c.b16 %v6195, %v6179
        %v7380 = vpack.c.b16 %v6196, %v6180
        %v7381 = vpack.c.b16 %v6197, %v6181
        %v7382 = vpack.c.b16 %v6198, %v6182
        %v7383 = vpack.c.b16 %v6199, %v6183
        %v7384 = vpack.c.b16 %v6200, %v6184
        %v7385 = vpack.c.b16 %v6201, %v6185
        %v7386 = vpack.c.b16 %v6202, %v6186
        %v7387 = vpack.c.b16 %v6203, %v6187
        %v7388 = vpack.c.b16 %v6204, %v6188
        %v7389 = vpack.c.b16 %v6221, %v6205
        %v7390 = vpack.c.b16 %v6222, %v6206
        %v7391 = vpack.c.b16 %v6223, %v6207
        %v7392 = vpack.c.b16 %v6224, %v6208
        %v7393 = vpack.c.b16 %v6225, %v6209
        %v7394 = vpack.c.b16 %v6226, %v6210
        %v7395 = vpack.c.b16 %v6227, %v6211
        %v7396 = vpack.c.b16 %v6228, %v6212
        %v7397 = vpack.c.b16 %v6229, %v6213
        %v7398 = vpack.c.b16 %v6230, %v6214
        %v7399 = vpack.c.b16 %v6231, %v6215
        %v7400 = vpack.c.b16 %v6232, %v6216
        %v7401 = vpack.c.b16 %v6233, %v6217
        %v7402 = vpack.c.b16 %v6234, %v6218
        %v7403 = vpack.c.b16 %v6235, %v6219
        %v7404 = vpack.c.b16 %v6236, %v6220
        %v7405 = vpack.c.b16 %v6253, %v6237
        %v7406 = vpack.c.b16 %v6254, %v6238
        %v7407 = vpack.c.b16 %v6255, %v6239
        %v7408 = vpack.c.b16 %v6256, %v6240
        %v7409 = vpack.c.b16 %v6257, %v6241
        %v7410 = vpack.c.b16 %v6258, %v6242
        %v7411 = vpack.c.b16 %v6259, %v6243
        %v7412 = vpack.c.b16 %v6260, %v6244
        %v7413 = vpack.c.b16 %v6261, %v6245
        %v7414 = vpack.c.b16 %v6262, %v6246
        %v7415 = vpack.c.b16 %v6263, %v6247
        %v7416 = vpack.c.b16 %v6264, %v6248
        %v7417 = vpack.c.b16 %v6265, %v6249
        %v7418 = vpack.c.b16 %v6266, %v6250
        %v7419 = vpack.c.b16 %v6267, %v6251
        %v7420 = vpack.c.b16 %v6268, %v6252
        %v7421 = vpack.c.b16 %v6285, %v6269
        %v7422 = vpack.c.b16 %v6286, %v6270
        %v7423 = vpack.c.b16 %v6287, %v6271
        %v7424 = vpack.c.b16 %v6288, %v6272
        %v7425 = vpack.c.b16 %v6289, %v6273
        %v7426 = vpack.c.b16 %v6290, %v6274
        %v7427 = vpack.c.b16 %v6291, %v6275
        %v7428 = vpack.c.b16 %v6292, %v6276
        %v7429 = vpack.c.b16 %v6293, %v6277
        %v7430 = vpack.c.b16 %v6294, %v6278
        %v7431 = vpack.c.b16 %v6295, %v6279
        %v7432 = vpack.c.b16 %v6296, %v6280
        %v7433 = vpack.c.b16 %v6297, %v6281
        %v7434 = vpack.c.b16 %v6298, %v6282
        %v7435 = vpack.c.b16 %v6299, %v6283
        %v7436 = vpack.c.b16 %v6300, %v6284
        %v7437 = vpack.c.b16 %v6317, %v6301
        %v7438 = vpack.c.b16 %v6318, %v6302
        %v7439 = vpack.c.b16 %v6319, %v6303
        %v7440 = vpack.c.b16 %v6320, %v6304
        %v7441 = vpack.c.b16 %v6321, %v6305
        %v7442 = vpack.c.b16 %v6322, %v6306
        %v7443 = vpack.c.b16 %v6323, %v6307
        %v7444 = vpack.c.b16 %v6324, %v6308
        %v7445 = vpack.c.b16 %v6325, %v6309
        %v7446 = vpack.c.b16 %v6326, %v6310
        %v7447 = vpack.c.b16 %v6327, %v6311
        %v7448 = vpack.c.b16 %v6328, %v6312
        %v7449 = vpack.c.b16 %v6329, %v6313
        %v7450 = vpack.c.b16 %v6330, %v6314
        %v7451 = vpack.c.b16 %v6331, %v6315
        %v7452 = vpack.c.b16 %v6332, %v6316
        %v7453 = vpack.c.b16 %v6349, %v6333
        %v7454 = vpack.c.b16 %v6350, %v6334
        %v7455 = vpack.c.b16 %v6351, %v6335
        %v7456 = vpack.c.b16 %v6352, %v6336
        %v7457 = vpack.c.b16 %v6353, %v6337
        %v7458 = vpack.c.b16 %v6354, %v6338
        %v7459 = vpack.c.b16 %v6355, %v6339
        %v7460 = vpack.c.b16 %v6356, %v6340
        %v7461 = vpack.c.b16 %v6357, %v6341
        %v7462 = vpack.c.b16 %v6358, %v6342
        %v7463 = vpack.c.b16 %v6359, %v6343
        %v7464 = vpack.c.b16 %v6360, %v6344
        %v7465 = vpack.c.b16 %v6361, %v6345
        %v7466 = vpack.c.b16 %v6362, %v6346
        %v7467 = vpack.c.b16 %v6363, %v6347
        %v7468 = vpack.c.b16 %v6364, %v6348
        %v7469 = vpack.c.b16 %v6381, %v6365
        %v7470 = vpack.c.b16 %v6382, %v6366
        %v7471 = vpack.c.b16 %v6383, %v6367
        %v7472 = vpack.c.b16 %v6384, %v6368
        %v7473 = vpack.c.b16 %v6385, %v6369
        %v7474 = vpack.c.b16 %v6386, %v6370
        %v7475 = vpack.c.b16 %v6387, %v6371
        %v7476 = vpack.c.b16 %v6388, %v6372
        %v7477 = vpack.c.b16 %v6389, %v6373
        %v7478 = vpack.c.b16 %v6390, %v6374
        %v7479 = vpack.c.b16 %v6391, %v6375
        %v7480 = vpack.c.b16 %v6392, %v6376
        %v7481 = vpack.c.b16 %v6393, %v6377
        %v7482 = vpack.c.b16 %v6394, %v6378
        %v7483 = vpack.c.b16 %v6395, %v6379
        %v7484 = vpack.c.b16 %v6396, %v6380
        %v7485 = vpack.c.b16 %v6413, %v6397
        %v7486 = vpack.c.b16 %v6414, %v6398
        %v7487 = vpack.c.b16 %v6415, %v6399
        %v7488 = vpack.c.b16 %v6416, %v6400
        %v7489 = vpack.c.b16 %v6417, %v6401
        %v7490 = vpack.c.b16 %v6418, %v6402
        %v7491 = vpack.c.b16 %v6419, %v6403
        %v7492 = vpack.c.b16 %v6420, %v6404
        %v7493 = vpack.c.b16 %v6421, %v6405
        %v7494 = vpack.c.b16 %v6422, %v6406
        %v7495 = vpack.c.b16 %v6423, %v6407
        %v7496 = vpack.c.b16 %v6424, %v6408
        %v7497 = vpack.c.b16 %v6425, %v6409
        %v7498 = vpack.c.b16 %v6426, %v6410
        %v7499 = vpack.c.b16 %v6427, %v6411
        %v7500 = vpack.c.b16 %v6428, %v6412
        %v7501 = vpack.c.b16 %v6445, %v6429
        %v7502 = vpack.c.b16 %v6446, %v6430
        %v7503 = vpack.c.b16 %v6447, %v6431
        %v7504 = vpack.c.b16 %v6448, %v6432
        %v7505 = vpack.c.b16 %v6449, %v6433
        %v7506 = vpack.c.b16 %v6450, %v6434
        %v7507 = vpack.c.b16 %v6451, %v6435
        %v7508 = vpack.c.b16 %v6452, %v6436
        %v7509 = vpack.c.b16 %v6453, %v6437
        %v7510 = vpack.c.b16 %v6454, %v6438
        %v7511 = vpack.c.b16 %v6455, %v6439
        %v7512 = vpack.c.b16 %v6456, %v6440
        %v7513 = vpack.c.b16 %v6457, %v6441
        %v7514 = vpack.c.b16 %v6458, %v6442
        %v7515 = vpack.c.b16 %v6459, %v6443
        %v7516 = vpack.c.b16 %v6460, %v6444
        %v7517 = vpack.c.b16 %v6477, %v6461
        %v7518 = vpack.c.b16 %v6478, %v6462
        %v7519 = vpack.c.b16 %v6479, %v6463
        %v7520 = vpack.c.b16 %v6480, %v6464
        %v7521 = vpack.c.b16 %v6481, %v6465
        %v7522 = vpack.c.b16 %v6482, %v6466
        %v7523 = vpack.c.b16 %v6483, %v6467
        %v7524 = vpack.c.b16 %v6484, %v6468
        %v7525 = vpack.c.b16 %v6485, %v6469
        %v7526 = vpack.c.b16 %v6486, %v6470
        %v7527 = vpack.c.b16 %v6487, %v6471
        %v7528 = vpack.c.b16 %v6488, %v6472
        %v7529 = vpack.c.b16 %v6489, %v6473
        %v7530 = vpack.c.b16 %v6490, %v6474
        %v7531 = vpack.c.b16 %v6491, %v6475
        %v7532 = vpack.c.b16 %v6492, %v6476
        %v7533 = vpack.c.b16 %v6509, %v6493
        %v7534 = vpack.c.b16 %v6510, %v6494
        %v7535 = vpack.c.b16 %v6511, %v6495
        %v7536 = vpack.c.b16 %v6512, %v6496
        %v7537 = vpack.c.b16 %v6513, %v6497
        %v7538 = vpack.c.b16 %v6514, %v6498
        %v7539 = vpack.c.b16 %v6515, %v6499
        %v7540 = vpack.c.b16 %v6516, %v6500
        %v7541 = vpack.c.b16 %v6517, %v6501
        %v7542 = vpack.c.b16 %v6518, %v6502
        %v7543 = vpack.c.b16 %v6519, %v6503
        %v7544 = vpack.c.b16 %v6520, %v6504
        %v7545 = vpack.c.b16 %v6521, %v6505
        %v7546 = vpack.c.b16 %v6522, %v6506
        %v7547 = vpack.c.b16 %v6523, %v6507
        %v7548 = vpack.c.b16 %v6524, %v6508
        %v7549 = vpack.c.b16 %v6541, %v6525
        %v7550 = vpack.c.b16 %v6542, %v6526
        %v7551 = vpack.c.b16 %v6543, %v6527
        %v7552 = vpack.c.b16 %v6544, %v6528
        %v7553 = vpack.c.b16 %v6545, %v6529
        %v7554 = vpack.c.b16 %v6546, %v6530
        %v7555 = vpack.c.b16 %v6547, %v6531
        %v7556 = vpack.c.b16 %v6548, %v6532
        %v7557 = vpack.c.b16 %v6549, %v6533
        %v7558 = vpack.c.b16 %v6550, %v6534
        %v7559 = vpack.c.b16 %v6551, %v6535
        %v7560 = vpack.c.b16 %v6552, %v6536
        %v7561 = vpack.c.b16 %v6553, %v6537
        %v7562 = vpack.c.b16 %v6554, %v6538
        %v7563 = vpack.c.b16 %v6555, %v6539
        %v7564 = vpack.c.b16 %v6556, %v6540
        %v7565 = vpack.c.b16 %v6573, %v6557
        %v7566 = vpack.c.b16 %v6574, %v6558
        %v7567 = vpack.c.b16 %v6575, %v6559
        %v7568 = vpack.c.b16 %v6576, %v6560
        %v7569 = vpack.c.b16 %v6577, %v6561
        %v7570 = vpack.c.b16 %v6578, %v6562
        %v7571 = vpack.c.b16 %v6579, %v6563
        %v7572 = vpack.c.b16 %v6580, %v6564
        %v7573 = vpack.c.b16 %v6581, %v6565
        %v7574 = vpack.c.b16 %v6582, %v6566
        %v7575 = vpack.c.b16 %v6583, %v6567
        %v7576 = vpack.c.b16 %v6584, %v6568
        %v7577 = vpack.c.b16 %v6585, %v6569
        %v7578 = vpack.c.b16 %v6586, %v6570
        %v7579 = vpack.c.b16 %v6587, %v6571
        %v7580 = vpack.c.b16 %v6588, %v6572
        %v7581 = vpack.c.b16 %v6605, %v6589
        %v7582 = vpack.c.b16 %v6606, %v6590
        %v7583 = vpack.c.b16 %v6607, %v6591
        %v7584 = vpack.c.b16 %v6608, %v6592
        %v7585 = vpack.c.b16 %v6609, %v6593
        %v7586 = vpack.c.b16 %v6610, %v6594
        %v7587 = vpack.c.b16 %v6611, %v6595
        %v7588 = vpack.c.b16 %v6612, %v6596
        %v7589 = vpack.c.b16 %v6613, %v6597
        %v7590 = vpack.c.b16 %v6614, %v6598
        %v7591 = vpack.c.b16 %v6615, %v6599
        %v7592 = vpack.c.b16 %v6616, %v6600
        %v7593 = vpack.c.b16 %v6617, %v6601
        %v7594 = vpack.c.b16 %v6618, %v6602
        %v7595 = vpack.c.b16 %v6619, %v6603
        %v7596 = vpack.c.b16 %v6620, %v6604
        %v7597 = vpack.c.b16 %v6637, %v6621
        %v7598 = vpack.c.b16 %v6638, %v6622
        %v7599 = vpack.c.b16 %v6639, %v6623
        %v7600 = vpack.c.b16 %v6640, %v6624
        %v7601 = vpack.c.b16 %v6641, %v6625
        %v7602 = vpack.c.b16 %v6642, %v6626
        %v7603 = vpack.c.b16 %v6643, %v6627
        %v7604 = vpack.c.b16 %v6644, %v6628
        %v7605 = vpack.c.b16 %v6645, %v6629
        %v7606 = vpack.c.b16 %v6646, %v6630
        %v7607 = vpack.c.b16 %v6647, %v6631
        %v7608 = vpack.c.b16 %v6648, %v6632
        %v7609 = vpack.c.b16 %v6649, %v6633
        %v7610 = vpack.c.b16 %v6650, %v6634
        %v7611 = vpack.c.b16 %v6651, %v6635
        %v7612 = vpack.c.b16 %v6652, %v6636
        %v7613 = vpack.c.b16 %v6669, %v6653
        %v7614 = vpack.c.b16 %v6670, %v6654
        %v7615 = vpack.c.b16 %v6671, %v6655
        %v7616 = vpack.c.b16 %v6672, %v6656
        %v7617 = vpack.c.b16 %v6673, %v6657
        %v7618 = vpack.c.b16 %v6674, %v6658
        %v7619 = vpack.c.b16 %v6675, %v6659
        %v7620 = vpack.c.b16 %v6676, %v6660
        %v7621 = vpack.c.b16 %v6677, %v6661
        %v7622 = vpack.c.b16 %v6678, %v6662
        %v7623 = vpack.c.b16 %v6679, %v6663
        %v7624 = vpack.c.b16 %v6680, %v6664
        %v7625 = vpack.c.b16 %v6681, %v6665
        %v7626 = vpack.c.b16 %v6682, %v6666
        %v7627 = vpack.c.b16 %v6683, %v6667
        %v7628 = vpack.c.b16 %v6684, %v6668
        %v7629 = vpack.c.b16 %v6701, %v6685
        %v7630 = vpack.c.b16 %v6702, %v6686
        %v7631 = vpack.c.b16 %v6703, %v6687
        %v7632 = vpack.c.b16 %v6704, %v6688
        %v7633 = vpack.c.b16 %v6705, %v6689
        %v7634 = vpack.c.b16 %v6706, %v6690
        %v7635 = vpack.c.b16 %v6707, %v6691
        %v7636 = vpack.c.b16 %v6708, %v6692
        %v7637 = vpack.c.b16 %v6709, %v6693
        %v7638 = vpack.c.b16 %v6710, %v6694
        %v7639 = vpack.c.b16 %v6711, %v6695
        %v7640 = vpack.c.b16 %v6712, %v6696
        %v7641 = vpack.c.b16 %v6713, %v6697
        %v7642 = vpack.c.b16 %v6714, %v6698
        %v7643 = vpack.c.b16 %v6715, %v6699
        %v7644 = vpack.c.b16 %v6716, %v6700
        %v7645 = vpack.c.b16 %v6733, %v6717
        %v7646 = vpack.c.b16 %v6734, %v6718
        %v7647 = vpack.c.b16 %v6735, %v6719
        %v7648 = vpack.c.b16 %v6736, %v6720
        %v7649 = vpack.c.b16 %v6737, %v6721
        %v7650 = vpack.c.b16 %v6738, %v6722
        %v7651 = vpack.c.b16 %v6739, %v6723
        %v7652 = vpack.c.b16 %v6740, %v6724
        %v7653 = vpack.c.b16 %v6741, %v6725
        %v7654 = vpack.c.b16 %v6742, %v6726
        %v7655 = vpack.c.b16 %v6743, %v6727
        %v7656 = vpack.c.b16 %v6744, %v6728
        %v7657 = vpack.c.b16 %v6745, %v6729
        %v7658 = vpack.c.b16 %v6746, %v6730
        %v7659 = vpack.c.b16 %v6747, %v6731
        %v7660 = vpack.c.b16 %v6748, %v6732
        %v7661 = vpack.c.b16 %v6765, %v6749
        %v7662 = vpack.c.b16 %v6766, %v6750
        %v7663 = vpack.c.b16 %v6767, %v6751
        %v7664 = vpack.c.b16 %v6768, %v6752
        %v7665 = vpack.c.b16 %v6769, %v6753
        %v7666 = vpack.c.b16 %v6770, %v6754
        %v7667 = vpack.c.b16 %v6771, %v6755
        %v7668 = vpack.c.b16 %v6772, %v6756
        %v7669 = vpack.c.b16 %v6773, %v6757
        %v7670 = vpack.c.b16 %v6774, %v6758
        %v7671 = vpack.c.b16 %v6775, %v6759
        %v7672 = vpack.c.b16 %v6776, %v6760
        %v7673 = vpack.c.b16 %v6777, %v6761
        %v7674 = vpack.c.b16 %v6778, %v6762
        %v7675 = vpack.c.b16 %v6779, %v6763
        %v7676 = vpack.c.b16 %v6780, %v6764
        %v7677 = vpack.c.b16 %v6797, %v6781
        %v7678 = vpack.c.b16 %v6798, %v6782
        %v7679 = vpack.c.b16 %v6799, %v6783
        %v7680 = vpack.c.b16 %v6800, %v6784
        %v7681 = vpack.c.b16 %v6801, %v6785
        %v7682 = vpack.c.b16 %v6802, %v6786
        %v7683 = vpack.c.b16 %v6803, %v6787
        %v7684 = vpack.c.b16 %v6804, %v6788
        %v7685 = vpack.c.b16 %v6805, %v6789
        %v7686 = vpack.c.b16 %v6806, %v6790
        %v7687 = vpack.c.b16 %v6807, %v6791
        %v7688 = vpack.c.b16 %v6808, %v6792
        %v7689 = vpack.c.b16 %v6809, %v6793
        %v7690 = vpack.c.b16 %v6810, %v6794
        %v7691 = vpack.c.b16 %v6811, %v6795
        %v7692 = vpack.c.b16 %v6812, %v6796
        %v7693 = vpack.c.b16 %v6829, %v6813
        %v7694 = vpack.c.b16 %v6830, %v6814
        %v7695 = vpack.c.b16 %v6831, %v6815
        %v7696 = vpack.c.b16 %v6832, %v6816
        %v7697 = vpack.c.b16 %v6833, %v6817
        %v7698 = vpack.c.b16 %v6834, %v6818
        %v7699 = vpack.c.b16 %v6835, %v6819
        %v7700 = vpack.c.b16 %v6836, %v6820
        %v7701 = vpack.c.b16 %v6837, %v6821
        %v7702 = vpack.c.b16 %v6838, %v6822
        %v7703 = vpack.c.b16 %v6839, %v6823
        %v7704 = vpack.c.b16 %v6840, %v6824
        %v7705 = vpack.c.b16 %v6841, %v6825
        %v7706 = vpack.c.b16 %v6842, %v6826
        %v7707 = vpack.c.b16 %v6843, %v6827
        %v7708 = vpack.c.b16 %v6844, %v6828
        %v7709 = vpack.c.b16 %v6861, %v6845
        %v7710 = vpack.c.b16 %v6862, %v6846
        %v7711 = vpack.c.b16 %v6863, %v6847
        %v7712 = vpack.c.b16 %v6864, %v6848
        %v7713 = vpack.c.b16 %v6865, %v6849
        %v7714 = vpack.c.b16 %v6866, %v6850
        %v7715 = vpack.c.b16 %v6867, %v6851
        %v7716 = vpack.c.b16 %v6868, %v6852
        %v7717 = vpack.c.b16 %v6869, %v6853
        %v7718 = vpack.c.b16 %v6870, %v6854
        %v7719 = vpack.c.b16 %v6871, %v6855
        %v7720 = vpack.c.b16 %v6872, %v6856
        %v7721 = vpack.c.b16 %v6873, %v6857
        %v7722 = vpack.c.b16 %v6874, %v6858
        %v7723 = vpack.c.b16 %v6875, %v6859
        %v7724 = vpack.c.b16 %v6876, %v6860
        %v7725 = vpack.c.b16 %v6893, %v6877
        %v7726 = vpack.c.b16 %v6894, %v6878
        %v7727 = vpack.c.b16 %v6895, %v6879
        %v7728 = vpack.c.b16 %v6896, %v6880
        %v7729 = vpack.c.b16 %v6897, %v6881
        %v7730 = vpack.c.b16 %v6898, %v6882
        %v7731 = vpack.c.b16 %v6899, %v6883
        %v7732 = vpack.c.b16 %v6900, %v6884
        %v7733 = vpack.c.b16 %v6901, %v6885
        %v7734 = vpack.c.b16 %v6902, %v6886
        %v7735 = vpack.c.b16 %v6903, %v6887
        %v7736 = vpack.c.b16 %v6904, %v6888
        %v7737 = vpack.c.b16 %v6905, %v6889
        %v7738 = vpack.c.b16 %v6906, %v6890
        %v7739 = vpack.c.b16 %v6907, %v6891
        %v7740 = vpack.c.b16 %v6908, %v6892
        %v7741 = vpack.c.b16 %v6925, %v6909
        %v7742 = vpack.c.b16 %v6926, %v6910
        %v7743 = vpack.c.b16 %v6927, %v6911
        %v7744 = vpack.c.b16 %v6928, %v6912
        %v7745 = vpack.c.b16 %v6929, %v6913
        %v7746 = vpack.c.b16 %v6930, %v6914
        %v7747 = vpack.c.b16 %v6931, %v6915
        %v7748 = vpack.c.b16 %v6932, %v6916
        %v7749 = vpack.c.b16 %v6933, %v6917
        %v7750 = vpack.c.b16 %v6934, %v6918
        %v7751 = vpack.c.b16 %v6935, %v6919
        %v7752 = vpack.c.b16 %v6936, %v6920
        %v7753 = vpack.c.b16 %v6937, %v6921
        %v7754 = vpack.c.b16 %v6938, %v6922
        %v7755 = vpack.c.b16 %v6939, %v6923
        %v7756 = vpack.c.b16 %v6940, %v6924
        %v7757 = vpack.c.b16 %v6957, %v6941
        %v7758 = vpack.c.b16 %v6958, %v6942
        %v7759 = vpack.c.b16 %v6959, %v6943
        %v7760 = vpack.c.b16 %v6960, %v6944
        %v7761 = vpack.c.b16 %v6961, %v6945
        %v7762 = vpack.c.b16 %v6962, %v6946
        %v7763 = vpack.c.b16 %v6963, %v6947
        %v7764 = vpack.c.b16 %v6964, %v6948
        %v7765 = vpack.c.b16 %v6965, %v6949
        %v7766 = vpack.c.b16 %v6966, %v6950
        %v7767 = vpack.c.b16 %v6967, %v6951
        %v7768 = vpack.c.b16 %v6968, %v6952
        %v7769 = vpack.c.b16 %v6969, %v6953
        %v7770 = vpack.c.b16 %v6970, %v6954
        %v7771 = vpack.c.b16 %v6971, %v6955
        %v7772 = vpack.c.b16 %v6972, %v6956
        %v7773 = vpack.c.b16 %v6989, %v6973
        %v7774 = vpack.c.b16 %v6990, %v6974
        %v7775 = vpack.c.b16 %v6991, %v6975
        %v7776 = vpack.c.b16 %v6992, %v6976
        %v7777 = vpack.c.b16 %v6993, %v6977
        %v7778 = vpack.c.b16 %v6994, %v6978
        %v7779 = vpack.c.b16 %v6995, %v6979
        %v7780 = vpack.c.b16 %v6996, %v6980
        %v7781 = vpack.c.b16 %v6997, %v6981
        %v7782 = vpack.c.b16 %v6998, %v6982
        %v7783 = vpack.c.b16 %v6999, %v6983
        %v7784 = vpack.c.b16 %v7000, %v6984
        %v7785 = vpack.c.b16 %v7001, %v6985
        %v7786 = vpack.c.b16 %v7002, %v6986
        %v7787 = vpack.c.b16 %v7003, %v6987
        %v7788 = vpack.c.b16 %v7004, %v6988
        %v7789 = vpack.c.b16 %v7021, %v7005
        %v7790 = vpack.c.b16 %v7022, %v7006
        %v7791 = vpack.c.b16 %v7023, %v7007
        %v7792 = vpack.c.b16 %v7024, %v7008
        %v7793 = vpack.c.b16 %v7025, %v7009
        %v7794 = vpack.c.b16 %v7026, %v7010
        %v7795 = vpack.c.b16 %v7027, %v7011
        %v7796 = vpack.c.b16 %v7028, %v7012
        %v7797 = vpack.c.b16 %v7029, %v7013
        %v7798 = vpack.c.b16 %v7030, %v7014
        %v7799 = vpack.c.b16 %v7031, %v7015
        %v7800 = vpack.c.b16 %v7032, %v7016
        %v7801 = vpack.c.b16 %v7033, %v7017
        %v7802 = vpack.c.b16 %v7034, %v7018
        %v7803 = vpack.c.b16 %v7035, %v7019
        %v7804 = vpack.c.b16 %v7036, %v7020
        %8573 = vmatprep.subr.bf16.mxu0 %v7038
        %8574 = vmatpush1.bf16.msra.mxu0 %v7037
        %8575 = vmatprep.subr.bf16.mxu0 %v7054
        %8576 = vmatpush1.bf16.msra.mxu0 %v7053
        %8577 = vmatprep.subr.bf16.mxu0 %v7070
        %8578 = vmatpush1.bf16.msra.mxu0 %v7069
        %8579 = vmatprep.subr.bf16.mxu0 %v7086
        %8580 = vmatpush1.bf16.msra.mxu0 %v7085
        %8581 = vmatprep.subr.bf16.mxu0 %v7102
        %8582 = vmatpush1.bf16.msra.mxu0 %v7101
        %8583 = vmatprep.subr.bf16.mxu0 %v7118
        %8584 = vmatpush1.bf16.msra.mxu0 %v7117
        %8585 = vmatprep.subr.bf16.mxu0 %v7134
        %8586 = vmatpush1.bf16.msra.mxu0 %v7133
        %8587 = vmatprep.subr.bf16.mxu0 %v7150
        %8588 = vmatpush1.bf16.msra.mxu0 %v7149
        %8589 = vmatprep.subr.bf16.mxu0 %v7166
        %8590 = vmatpush1.bf16.msra.mxu0 %v7165
        %8591 = vmatprep.subr.bf16.mxu0 %v7182
        %8592 = vmatpush1.bf16.msra.mxu0 %v7181
        %8593 = vmatprep.subr.bf16.mxu0 %v7198
        %8594 = vmatpush1.bf16.msra.mxu0 %v7197
        %8595 = vmatprep.subr.bf16.mxu0 %v7214
        %8596 = vmatpush1.bf16.msra.mxu0 %v7213
        %8597 = vmatprep.subr.bf16.mxu0 %v7230
        %8598 = vmatpush1.bf16.msra.mxu0 %v7229
        %8599 = vmatprep.subr.bf16.mxu0 %v7246
        %8600 = vmatpush1.bf16.msra.mxu0 %v7245
        %8601 = vmatprep.subr.bf16.mxu0 %v7262
        %8602 = vmatpush1.bf16.msra.mxu0 %v7261
        %8603 = vmatprep.subr.bf16.mxu0 %v7278
        %8604 = vmatpush1.bf16.msra.mxu0 %v7277
        %8605 = vmatprep.mubr.bf16.mxu0 %v3960
        %8606 = vmatmul.mubr.bf16.gmra.mrb[0].mxu0 %v3959
        %v8607 = vpop.f32.mrb[0].mxu0
        %v8608 = vadd.f32 0.0, %v8607
        %v8609 = vpop.f32.mrb[0].mxu0
        %v8610 = vadd.f32 0.0, %v8609
        %v8611 = vpop.f32.mrb[0].mxu0
        %v8612 = vpop.f32.mrb[0].mxu0
        %8613 = vdwg.mxu0
        %8614 = vmatprep.subr.bf16.mxu0 %v7294
        %8615 = vmatpush1.bf16.msra.mxu0 %v7293
        %8616 = vmatprep.subr.bf16.mxu0 %v7310
        %8617 = vmatpush1.bf16.msra.mxu0 %v7309
        %8618 = vmatprep.subr.bf16.mxu0 %v7326
        %8619 = vmatpush1.bf16.msra.mxu0 %v7325
        %8620 = vmatprep.subr.bf16.mxu0 %v7342
        %8621 = vmatpush1.bf16.msra.mxu0 %v7341
        %8622 = vmatprep.subr.bf16.mxu0 %v7358
        %8623 = vmatpush1.bf16.msra.mxu0 %v7357
        %8624 = vmatprep.subr.bf16.mxu0 %v7374
        %8625 = vmatpush1.bf16.msra.mxu0 %v7373
        %8626 = vmatprep.subr.bf16.mxu0 %v7390
        %8627 = vmatpush1.bf16.msra.mxu0 %v7389
        %8628 = vmatprep.subr.bf16.mxu0 %v7406
        %8629 = vmatpush1.bf16.msra.mxu0 %v7405
        %8630 = vmatprep.subr.bf16.mxu0 %v7422
        %8631 = vmatpush1.bf16.msra.mxu0 %v7421
        %8632 = vmatprep.subr.bf16.mxu0 %v7438
        %8633 = vmatpush1.bf16.msra.mxu0 %v7437
        %8634 = vmatprep.subr.bf16.mxu0 %v7454
        %8635 = vmatpush1.bf16.msra.mxu0 %v7453
        %8636 = vmatprep.subr.bf16.mxu0 %v7470
        %8637 = vmatpush1.bf16.msra.mxu0 %v7469
        %8638 = vmatprep.subr.bf16.mxu0 %v7486
        %8639 = vmatpush1.bf16.msra.mxu0 %v7485
        %8640 = vmatprep.subr.bf16.mxu0 %v7502
        %8641 = vmatpush1.bf16.msra.mxu0 %v7501
        %8642 = vmatprep.subr.bf16.mxu0 %v7518
        %8643 = vmatpush1.bf16.msra.mxu0 %v7517
        %8644 = vmatprep.subr.bf16.mxu0 %v7534
        %8645 = vmatpush1.bf16.msra.mxu0 %v7533
        %8646 = vmatprep.mubr.bf16.mxu0 %v3962
        %8647 = vmatmul.mubr.bf16.gmra.mrb[0].mxu0 %v3961
        %v8648 = vpop.f32.mrb[0].mxu0
        %v8649 = vadd.f32 %v8608, %v8648
        %v8650 = vpop.f32.mrb[0].mxu0
        %v8651 = vadd.f32 %v8610, %v8650
        %v8652 = vpop.f32.mrb[0].mxu0
        %v8653 = vpop.f32.mrb[0].mxu0
        %8654 = vdwg.mxu0
        %8655 = vmatprep.subr.bf16.mxu0 %v7550
        %8656 = vmatpush1.bf16.msra.mxu0 %v7549
        %8657 = vmatprep.subr.bf16.mxu0 %v7566
        %8658 = vmatpush1.bf16.msra.mxu0 %v7565
        %8659 = vmatprep.subr.bf16.mxu0 %v7582
        %8660 = vmatpush1.bf16.msra.mxu0 %v7581
        %8661 = vmatprep.subr.bf16.mxu0 %v7598
        %8662 = vmatpush1.bf16.msra.mxu0 %v7597
        %8663 = vmatprep.subr.bf16.mxu0 %v7614
        %8664 = vmatpush1.bf16.msra.mxu0 %v7613
        %8665 = vmatprep.subr.bf16.mxu0 %v7630
        %8666 = vmatpush1.bf16.msra.mxu0 %v7629
        %8667 = vmatprep.subr.bf16.mxu0 %v7646
        %8668 = vmatpush1.bf16.msra.mxu0 %v7645
        %8669 = vmatprep.subr.bf16.mxu0 %v7662
        %8670 = vmatpush1.bf16.msra.mxu0 %v7661
        %8671 = vmatprep.subr.bf16.mxu0 %v7678
        %8672 = vmatpush1.bf16.msra.mxu0 %v7677
        %8673 = vmatprep.subr.bf16.mxu0 %v7694
        %8674 = vmatpush1.bf16.msra.mxu0 %v7693
        %8675 = vmatprep.subr.bf16.mxu0 %v7710
        %8676 = vmatpush1.bf16.msra.mxu0 %v7709
        %8677 = vmatprep.subr.bf16.mxu0 %v7726
        %8678 = vmatpush1.bf16.msra.mxu0 %v7725
        %8679 = vmatprep.subr.bf16.mxu0 %v7742
        %8680 = vmatpush1.bf16.msra.mxu0 %v7741
        %8681 = vmatprep.subr.bf16.mxu0 %v7758
        %8682 = vmatpush1.bf16.msra.mxu0 %v7757
        %8683 = vmatprep.subr.bf16.mxu0 %v7774
        %8684 = vmatpush1.bf16.msra.mxu0 %v7773
        %8685 = vmatprep.subr.bf16.mxu0 %v7790
        %8686 = vmatpush1.bf16.msra.mxu0 %v7789
        %8687 = vmatprep.mubr.bf16.mxu0 %v3964
        %8688 = vmatmul.mubr.bf16.gmra.mrb[0].mxu0 %v3963
        %v8689 = vpop.f32.mrb[0].mxu0
        %v8690 = vadd.f32 %v8649, %v8689
        %v8691 = vpop.f32.mrb[0].mxu0
        %v8692 = vadd.f32 %v8651, %v8691
        %v8693 = vpop.f32.mrb[0].mxu0
        %v8694 = vpop.f32.mrb[0].mxu0
        %8695 = vdwg.mxu0
        %8696 = vmatprep.subr.bf16.mxu0 %v7040
        %8697 = vmatpush1.bf16.msra.mxu0 %v7039
        %8698 = vmatprep.subr.bf16.mxu0 %v7056
        %8699 = vmatpush1.bf16.msra.mxu0 %v7055
        %8700 = vmatprep.subr.bf16.mxu0 %v7072
        %8701 = vmatpush1.bf16.msra.mxu0 %v7071
        %8702 = vmatprep.subr.bf16.mxu0 %v7088
        %8703 = vmatpush1.bf16.msra.mxu0 %v7087
        %8704 = vmatprep.subr.bf16.mxu0 %v7104
        %8705 = vmatpush1.bf16.msra.mxu0 %v7103
        %8706 = vmatprep.subr.bf16.mxu0 %v7120
        %8707 = vmatpush1.bf16.msra.mxu0 %v7119
        %8708 = vmatprep.subr.bf16.mxu0 %v7136
        %8709 = vmatpush1.bf16.msra.mxu0 %v7135
        %8710 = vmatprep.subr.bf16.mxu0 %v7152
        %8711 = vmatpush1.bf16.msra.mxu0 %v7151
        %8712 = vmatprep.subr.bf16.mxu0 %v7168
        %8713 = vmatpush1.bf16.msra.mxu0 %v7167
        %8714 = vmatprep.subr.bf16.mxu0 %v7184
        %8715 = vmatpush1.bf16.msra.mxu0 %v7183
        %8716 = vmatprep.subr.bf16.mxu0 %v7200
        %8717 = vmatpush1.bf16.msra.mxu0 %v7199
        %8718 = vmatprep.subr.bf16.mxu0 %v7216
        %8719 = vmatpush1.bf16.msra.mxu0 %v7215
        %8720 = vmatprep.subr.bf16.mxu0 %v7232
        %8721 = vmatpush1.bf16.msra.mxu0 %v7231
        %8722 = vmatprep.subr.bf16.mxu0 %v7248
        %8723 = vmatpush1.bf16.msra.mxu0 %v7247
        %8724 = vmatprep.subr.bf16.mxu0 %v7264
        %8725 = vmatpush1.bf16.msra.mxu0 %v7263
        %8726 = vmatprep.subr.bf16.mxu0 %v7280
        %8727 = vmatpush1.bf16.msra.mxu0 %v7279
        %8728 = vmatprep.mubr.bf16.mxu0 %v3960
        %8729 = vmatmul.mubr.bf16.gmra.mrb[0].mxu0 %v3959
        %v8730 = vpop.f32.mrb[0].mxu0
        %v8731 = vadd.f32 0.0, %v8730
        %v8732 = vpop.f32.mrb[0].mxu0
        %v8733 = vadd.f32 0.0, %v8732
        %v8734 = vpop.f32.mrb[0].mxu0
        %v8735 = vpop.f32.mrb[0].mxu0
        %8736 = vdwg.mxu0
        %8737 = vmatprep.subr.bf16.mxu0 %v7296
        %8738 = vmatpush1.bf16.msra.mxu0 %v7295
        %8739 = vmatprep.subr.bf16.mxu0 %v7312
        %8740 = vmatpush1.bf16.msra.mxu0 %v7311
        %8741 = vmatprep.subr.bf16.mxu0 %v7328
        %8742 = vmatpush1.bf16.msra.mxu0 %v7327
        %8743 = vmatprep.subr.bf16.mxu0 %v7344
        %8744 = vmatpush1.bf16.msra.mxu0 %v7343
        %8745 = vmatprep.subr.bf16.mxu0 %v7360
        %8746 = vmatpush1.bf16.msra.mxu0 %v7359
        %8747 = vmatprep.subr.bf16.mxu0 %v7376
        %8748 = vmatpush1.bf16.msra.mxu0 %v7375
        %8749 = vmatprep.subr.bf16.mxu0 %v7392
        %8750 = vmatpush1.bf16.msra.mxu0 %v7391
        %8751 = vmatprep.subr.bf16.mxu0 %v7408
        %8752 = vmatpush1.bf16.msra.mxu0 %v7407
        %8753 = vmatprep.subr.bf16.mxu0 %v7424
        %8754 = vmatpush1.bf16.msra.mxu0 %v7423
        %8755 = vmatprep.subr.bf16.mxu0 %v7440
        %8756 = vmatpush1.bf16.msra.mxu0 %v7439
        %8757 = vmatprep.subr.bf16.mxu0 %v7456
        %8758 = vmatpush1.bf16.msra.mxu0 %v7455
        %8759 = vmatprep.subr.bf16.mxu0 %v7472
        %8760 = vmatpush1.bf16.msra.mxu0 %v7471
        %8761 = vmatprep.subr.bf16.mxu0 %v7488
        %8762 = vmatpush1.bf16.msra.mxu0 %v7487
        %8763 = vmatprep.subr.bf16.mxu0 %v7504
        %8764 = vmatpush1.bf16.msra.mxu0 %v7503
        %8765 = vmatprep.subr.bf16.mxu0 %v7520
        %8766 = vmatpush1.bf16.msra.mxu0 %v7519
        %8767 = vmatprep.subr.bf16.mxu0 %v7536
        %8768 = vmatpush1.bf16.msra.mxu0 %v7535
        %8769 = vmatprep.mubr.bf16.mxu0 %v3962
        %8770 = vmatmul.mubr.bf16.gmra.mrb[0].mxu0 %v3961
        %v8771 = vpop.f32.mrb[0].mxu0
        %v8772 = vadd.f32 %v8731, %v8771
        %v8773 = vpop.f32.mrb[0].mxu0
        %v8774 = vadd.f32 %v8733, %v8773
        %v8775 = vpop.f32.mrb[0].mxu0
        %v8776 = vpop.f32.mrb[0].mxu0
        %8777 = vdwg.mxu0
        %8778 = vmatprep.subr.bf16.mxu0 %v7552
        %8779 = vmatpush1.bf16.msra.mxu0 %v7551
        %8780 = vmatprep.subr.bf16.mxu0 %v7568
        %8781 = vmatpush1.bf16.msra.mxu0 %v7567
        %8782 = vmatprep.subr.bf16.mxu0 %v7584
        %8783 = vmatpush1.bf16.msra.mxu0 %v7583
        %8784 = vmatprep.subr.bf16.mxu0 %v7600
        %8785 = vmatpush1.bf16.msra.mxu0 %v7599
        %8786 = vmatprep.subr.bf16.mxu0 %v7616
        %8787 = vmatpush1.bf16.msra.mxu0 %v7615
        %8788 = vmatprep.subr.bf16.mxu0 %v7632
        %8789 = vmatpush1.bf16.msra.mxu0 %v7631
        %8790 = vmatprep.subr.bf16.mxu0 %v7648
        %8791 = vmatpush1.bf16.msra.mxu0 %v7647
        %8792 = vmatprep.subr.bf16.mxu0 %v7664
        %8793 = vmatpush1.bf16.msra.mxu0 %v7663
        %8794 = vmatprep.subr.bf16.mxu0 %v7680
        %8795 = vmatpush1.bf16.msra.mxu0 %v7679
        %8796 = vmatprep.subr.bf16.mxu0 %v7696
        %8797 = vmatpush1.bf16.msra.mxu0 %v7695
        %8798 = vmatprep.subr.bf16.mxu0 %v7712
        %8799 = vmatpush1.bf16.msra.mxu0 %v7711
        %8800 = vmatprep.subr.bf16.mxu0 %v7728
        %8801 = vmatpush1.bf16.msra.mxu0 %v7727
        %8802 = vmatprep.subr.bf16.mxu0 %v7744
        %8803 = vmatpush1.bf16.msra.mxu0 %v7743
        %8804 = vmatprep.subr.bf16.mxu0 %v7760
        %8805 = vmatpush1.bf16.msra.mxu0 %v7759
        %8806 = vmatprep.subr.bf16.mxu0 %v7776
        %8807 = vmatpush1.bf16.msra.mxu0 %v7775
        %8808 = vmatprep.subr.bf16.mxu0 %v7792
        %8809 = vmatpush1.bf16.msra.mxu0 %v7791
        %8810 = vmatprep.mubr.bf16.mxu0 %v3964
        %8811 = vmatmul.mubr.bf16.gmra.mrb[0].mxu0 %v3963
        %v8812 = vpop.f32.mrb[0].mxu0
        %v8813 = vadd.f32 %v8772, %v8812
        %v8814 = vpop.f32.mrb[0].mxu0
        %v8815 = vadd.f32 %v8774, %v8814
        %v8816 = vpop.f32.mrb[0].mxu0
        %v8817 = vpop.f32.mrb[0].mxu0
        %8818 = vdwg.mxu0
        %8819 = vmatprep.subr.bf16.mxu0 %v7042
        %8820 = vmatpush1.bf16.msra.mxu0 %v7041
        %8821 = vmatprep.subr.bf16.mxu0 %v7058
        %8822 = vmatpush1.bf16.msra.mxu0 %v7057
        %8823 = vmatprep.subr.bf16.mxu0 %v7074
        %8824 = vmatpush1.bf16.msra.mxu0 %v7073
        %8825 = vmatprep.subr.bf16.mxu0 %v7090
        %8826 = vmatpush1.bf16.msra.mxu0 %v7089
        %8827 = vmatprep.subr.bf16.mxu0 %v7106
        %8828 = vmatpush1.bf16.msra.mxu0 %v7105
        %8829 = vmatprep.subr.bf16.mxu0 %v7122
        %8830 = vmatpush1.bf16.msra.mxu0 %v7121
        %8831 = vmatprep.subr.bf16.mxu0 %v7138
        %8832 = vmatpush1.bf16.msra.mxu0 %v7137
        %8833 = vmatprep.subr.bf16.mxu0 %v7154
        %8834 = vmatpush1.bf16.msra.mxu0 %v7153
        %8835 = vmatprep.subr.bf16.mxu0 %v7170
        %8836 = vmatpush1.bf16.msra.mxu0 %v7169
        %8837 = vmatprep.subr.bf16.mxu0 %v7186
        %8838 = vmatpush1.bf16.msra.mxu0 %v7185
        %8839 = vmatprep.subr.bf16.mxu0 %v7202
        %8840 = vmatpush1.bf16.msra.mxu0 %v7201
        %8841 = vmatprep.subr.bf16.mxu0 %v7218
        %8842 = vmatpush1.bf16.msra.mxu0 %v7217
        %8843 = vmatprep.subr.bf16.mxu0 %v7234
        %8844 = vmatpush1.bf16.msra.mxu0 %v7233
        %8845 = vmatprep.subr.bf16.mxu0 %v7250
        %8846 = vmatpush1.bf16.msra.mxu0 %v7249
        %8847 = vmatprep.subr.bf16.mxu0 %v7266
        %8848 = vmatpush1.bf16.msra.mxu0 %v7265
        %8849 = vmatprep.subr.bf16.mxu0 %v7282
        %8850 = vmatpush1.bf16.msra.mxu0 %v7281
        %8851 = vmatprep.mubr.bf16.mxu0 %v3960
        %8852 = vmatmul.mubr.bf16.gmra.mrb[0].mxu0 %v3959
        %v8853 = vpop.f32.mrb[0].mxu0
        %v8854 = vadd.f32 0.0, %v8853
        %v8855 = vpop.f32.mrb[0].mxu0
        %v8856 = vadd.f32 0.0, %v8855
        %v8857 = vpop.f32.mrb[0].mxu0
        %v8858 = vpop.f32.mrb[0].mxu0
        %8859 = vdwg.mxu0
        %8860 = vmatprep.subr.bf16.mxu0 %v7298
        %8861 = vmatpush1.bf16.msra.mxu0 %v7297
        %8862 = vmatprep.subr.bf16.mxu0 %v7314
        %8863 = vmatpush1.bf16.msra.mxu0 %v7313
        %8864 = vmatprep.subr.bf16.mxu0 %v7330
        %8865 = vmatpush1.bf16.msra.mxu0 %v7329
        %8866 = vmatprep.subr.bf16.mxu0 %v7346
        %8867 = vmatpush1.bf16.msra.mxu0 %v7345
        %8868 = vmatprep.subr.bf16.mxu0 %v7362
        %8869 = vmatpush1.bf16.msra.mxu0 %v7361
        %8870 = vmatprep.subr.bf16.mxu0 %v7378
        %8871 = vmatpush1.bf16.msra.mxu0 %v7377
        %8872 = vmatprep.subr.bf16.mxu0 %v7394
        %8873 = vmatpush1.bf16.msra.mxu0 %v7393
        %8874 = vmatprep.subr.bf16.mxu0 %v7410
        %8875 = vmatpush1.bf16.msra.mxu0 %v7409
        %8876 = vmatprep.subr.bf16.mxu0 %v7426
        %8877 = vmatpush1.bf16.msra.mxu0 %v7425
        %8878 = vmatprep.subr.bf16.mxu0 %v7442
        %8879 = vmatpush1.bf16.msra.mxu0 %v7441
        %8880 = vmatprep.subr.bf16.mxu0 %v7458
        %8881 = vmatpush1.bf16.msra.mxu0 %v7457
        %8882 = vmatprep.subr.bf16.mxu0 %v7474
        %8883 = vmatpush1.bf16.msra.mxu0 %v7473
        %8884 = vmatprep.subr.bf16.mxu0 %v7490
        %8885 = vmatpush1.bf16.msra.mxu0 %v7489
        %8886 = vmatprep.subr.bf16.mxu0 %v7506
        %8887 = vmatpush1.bf16.msra.mxu0 %v7505
        %8888 = vmatprep.subr.bf16.mxu0 %v7522
        %8889 = vmatpush1.bf16.msra.mxu0 %v7521
        %8890 = vmatprep.subr.bf16.mxu0 %v7538
        %8891 = vmatpush1.bf16.msra.mxu0 %v7537
        %8892 = vmatprep.mubr.bf16.mxu0 %v3962
        %8893 = vmatmul.mubr.bf16.gmra.mrb[0].mxu0 %v3961
        %v8894 = vpop.f32.mrb[0].mxu0
        %v8895 = vadd.f32 %v8854, %v8894
        %v8896 = vpop.f32.mrb[0].mxu0
        %v8897 = vadd.f32 %v8856, %v8896
        %v8898 = vpop.f32.mrb[0].mxu0
        %v8899 = vpop.f32.mrb[0].mxu0
        %8900 = vdwg.mxu0
        %8901 = vmatprep.subr.bf16.mxu0 %v7554
        %8902 = vmatpush1.bf16.msra.mxu0 %v7553
        %8903 = vmatprep.subr.bf16.mxu0 %v7570
        %8904 = vmatpush1.bf16.msra.mxu0 %v7569
        %8905 = vmatprep.subr.bf16.mxu0 %v7586
        %8906 = vmatpush1.bf16.msra.mxu0 %v7585
        %8907 = vmatprep.subr.bf16.mxu0 %v7602
        %8908 = vmatpush1.bf16.msra.mxu0 %v7601
        %8909 = vmatprep.subr.bf16.mxu0 %v7618
        %8910 = vmatpush1.bf16.msra.mxu0 %v7617
        %8911 = vmatprep.subr.bf16.mxu0 %v7634
        %8912 = vmatpush1.bf16.msra.mxu0 %v7633
        %8913 = vmatprep.subr.bf16.mxu0 %v7650
        %8914 = vmatpush1.bf16.msra.mxu0 %v7649
        %8915 = vmatprep.subr.bf16.mxu0 %v7666
        %8916 = vmatpush1.bf16.msra.mxu0 %v7665
        %8917 = vmatprep.subr.bf16.mxu0 %v7682
        %8918 = vmatpush1.bf16.msra.mxu0 %v7681
        %8919 = vmatprep.subr.bf16.mxu0 %v7698
        %8920 = vmatpush1.bf16.msra.mxu0 %v7697
        %8921 = vmatprep.subr.bf16.mxu0 %v7714
        %8922 = vmatpush1.bf16.msra.mxu0 %v7713
        %8923 = vmatprep.subr.bf16.mxu0 %v7730
        %8924 = vmatpush1.bf16.msra.mxu0 %v7729
        %8925 = vmatprep.subr.bf16.mxu0 %v7746
        %8926 = vmatpush1.bf16.msra.mxu0 %v7745
        %8927 = vmatprep.subr.bf16.mxu0 %v7762
        %8928 = vmatpush1.bf16.msra.mxu0 %v7761
        %8929 = vmatprep.subr.bf16.mxu0 %v7778
        %8930 = vmatpush1.bf16.msra.mxu0 %v7777
        %8931 = vmatprep.subr.bf16.mxu0 %v7794
        %8932 = vmatpush1.bf16.msra.mxu0 %v7793
        %8933 = vmatprep.mubr.bf16.mxu0 %v3964
        %8934 = vmatmul.mubr.bf16.gmra.mrb[0].mxu0 %v3963
        %v8935 = vpop.f32.mrb[0].mxu0
        %v8936 = vadd.f32 %v8895, %v8935
        %v8937 = vpop.f32.mrb[0].mxu0
        %v8938 = vadd.f32 %v8897, %v8937
        %v8939 = vpop.f32.mrb[0].mxu0
        %v8940 = vpop.f32.mrb[0].mxu0
        %8941 = vdwg.mxu0
        %8942 = vmatprep.subr.bf16.mxu0 %v7044
        %8943 = vmatpush1.bf16.msra.mxu0 %v7043
        %8944 = vmatprep.subr.bf16.mxu0 %v7060
        %8945 = vmatpush1.bf16.msra.mxu0 %v7059
        %8946 = vmatprep.subr.bf16.mxu0 %v7076
        %8947 = vmatpush1.bf16.msra.mxu0 %v7075
        %8948 = vmatprep.subr.bf16.mxu0 %v7092
        %8949 = vmatpush1.bf16.msra.mxu0 %v7091
        %8950 = vmatprep.subr.bf16.mxu0 %v7108
        %8951 = vmatpush1.bf16.msra.mxu0 %v7107
        %8952 = vmatprep.subr.bf16.mxu0 %v7124
        %8953 = vmatpush1.bf16.msra.mxu0 %v7123
        %8954 = vmatprep.subr.bf16.mxu0 %v7140
        %8955 = vmatpush1.bf16.msra.mxu0 %v7139
        %8956 = vmatprep.subr.bf16.mxu0 %v7156
        %8957 = vmatpush1.bf16.msra.mxu0 %v7155
        %8958 = vmatprep.subr.bf16.mxu0 %v7172
        %8959 = vmatpush1.bf16.msra.mxu0 %v7171
        %8960 = vmatprep.subr.bf16.mxu0 %v7188
        %8961 = vmatpush1.bf16.msra.mxu0 %v7187
        %8962 = vmatprep.subr.bf16.mxu0 %v7204
        %8963 = vmatpush1.bf16.msra.mxu0 %v7203
        %8964 = vmatprep.subr.bf16.mxu0 %v7220
        %8965 = vmatpush1.bf16.msra.mxu0 %v7219
        %8966 = vmatprep.subr.bf16.mxu0 %v7236
        %8967 = vmatpush1.bf16.msra.mxu0 %v7235
        %8968 = vmatprep.subr.bf16.mxu0 %v7252
        %8969 = vmatpush1.bf16.msra.mxu0 %v7251
        %8970 = vmatprep.subr.bf16.mxu0 %v7268
        %8971 = vmatpush1.bf16.msra.mxu0 %v7267
        %8972 = vmatprep.subr.bf16.mxu0 %v7284
        %8973 = vmatpush1.bf16.msra.mxu0 %v7283
        %8974 = vmatprep.mubr.bf16.mxu0 %v3960
        %8975 = vmatmul.mubr.bf16.gmra.mrb[0].mxu0 %v3959
        %v8976 = vpop.f32.mrb[0].mxu0
        %v8977 = vadd.f32 0.0, %v8976
        %v8978 = vpop.f32.mrb[0].mxu0
        %v8979 = vadd.f32 0.0, %v8978
        %v8980 = vpop.f32.mrb[0].mxu0
        %v8981 = vpop.f32.mrb[0].mxu0
        %8982 = vdwg.mxu0
        %8983 = vmatprep.subr.bf16.mxu0 %v7300
        %8984 = vmatpush1.bf16.msra.mxu0 %v7299
        %8985 = vmatprep.subr.bf16.mxu0 %v7316
        %8986 = vmatpush1.bf16.msra.mxu0 %v7315
        %8987 = vmatprep.subr.bf16.mxu0 %v7332
        %8988 = vmatpush1.bf16.msra.mxu0 %v7331
        %8989 = vmatprep.subr.bf16.mxu0 %v7348
        %8990 = vmatpush1.bf16.msra.mxu0 %v7347
        %8991 = vmatprep.subr.bf16.mxu0 %v7364
        %8992 = vmatpush1.bf16.msra.mxu0 %v7363
        %8993 = vmatprep.subr.bf16.mxu0 %v7380
        %8994 = vmatpush1.bf16.msra.mxu0 %v7379
        %8995 = vmatprep.subr.bf16.mxu0 %v7396
        %8996 = vmatpush1.bf16.msra.mxu0 %v7395
        %8997 = vmatprep.subr.bf16.mxu0 %v7412
        %8998 = vmatpush1.bf16.msra.mxu0 %v7411
        %8999 = vmatprep.subr.bf16.mxu0 %v7428
        %9000 = vmatpush1.bf16.msra.mxu0 %v7427
        %9001 = vmatprep.subr.bf16.mxu0 %v7444
        %9002 = vmatpush1.bf16.msra.mxu0 %v7443
        %9003 = vmatprep.subr.bf16.mxu0 %v7460
        %9004 = vmatpush1.bf16.msra.mxu0 %v7459
        %9005 = vmatprep.subr.bf16.mxu0 %v7476
        %9006 = vmatpush1.bf16.msra.mxu0 %v7475
        %9007 = vmatprep.subr.bf16.mxu0 %v7492
        %9008 = vmatpush1.bf16.msra.mxu0 %v7491
        %9009 = vmatprep.subr.bf16.mxu0 %v7508
        %9010 = vmatpush1.bf16.msra.mxu0 %v7507
        %9011 = vmatprep.subr.bf16.mxu0 %v7524
        %9012 = vmatpush1.bf16.msra.mxu0 %v7523
        %9013 = vmatprep.subr.bf16.mxu0 %v7540
        %9014 = vmatpush1.bf16.msra.mxu0 %v7539
        %9015 = vmatprep.mubr.bf16.mxu0 %v3962
        %9016 = vmatmul.mubr.bf16.gmra.mrb[0].mxu0 %v3961
        %v9017 = vpop.f32.mrb[0].mxu0
        %v9018 = vadd.f32 %v8977, %v9017
        %v9019 = vpop.f32.mrb[0].mxu0
        %v9020 = vadd.f32 %v8979, %v9019
        %v9021 = vpop.f32.mrb[0].mxu0
        %v9022 = vpop.f32.mrb[0].mxu0
        %9023 = vdwg.mxu0
        %9024 = vmatprep.subr.bf16.mxu0 %v7556
        %9025 = vmatpush1.bf16.msra.mxu0 %v7555
        %9026 = vmatprep.subr.bf16.mxu0 %v7572
        %9027 = vmatpush1.bf16.msra.mxu0 %v7571
        %9028 = vmatprep.subr.bf16.mxu0 %v7588
        %9029 = vmatpush1.bf16.msra.mxu0 %v7587
        %9030 = vmatprep.subr.bf16.mxu0 %v7604
        %9031 = vmatpush1.bf16.msra.mxu0 %v7603
        %9032 = vmatprep.subr.bf16.mxu0 %v7620
        %9033 = vmatpush1.bf16.msra.mxu0 %v7619
        %9034 = vmatprep.subr.bf16.mxu0 %v7636
        %9035 = vmatpush1.bf16.msra.mxu0 %v7635
        %9036 = vmatprep.subr.bf16.mxu0 %v7652
        %9037 = vmatpush1.bf16.msra.mxu0 %v7651
        %9038 = vmatprep.subr.bf16.mxu0 %v7668
        %9039 = vmatpush1.bf16.msra.mxu0 %v7667
        %9040 = vmatprep.subr.bf16.mxu0 %v7684
        %9041 = vmatpush1.bf16.msra.mxu0 %v7683
        %9042 = vmatprep.subr.bf16.mxu0 %v7700
        %9043 = vmatpush1.bf16.msra.mxu0 %v7699
        %9044 = vmatprep.subr.bf16.mxu0 %v7716
        %9045 = vmatpush1.bf16.msra.mxu0 %v7715
        %9046 = vmatprep.subr.bf16.mxu0 %v7732
        %9047 = vmatpush1.bf16.msra.mxu0 %v7731
        %9048 = vmatprep.subr.bf16.mxu0 %v7748
        %9049 = vmatpush1.bf16.msra.mxu0 %v7747
        %9050 = vmatprep.subr.bf16.mxu0 %v7764
        %9051 = vmatpush1.bf16.msra.mxu0 %v7763
        %9052 = vmatprep.subr.bf16.mxu0 %v7780
        %9053 = vmatpush1.bf16.msra.mxu0 %v7779
        %9054 = vmatprep.subr.bf16.mxu0 %v7796
        %9055 = vmatpush1.bf16.msra.mxu0 %v7795
        %9056 = vmatprep.mubr.bf16.mxu0 %v3964
        %9057 = vmatmul.mubr.bf16.gmra.mrb[0].mxu0 %v3963
        %v9058 = vpop.f32.mrb[0].mxu0
        %v9059 = vadd.f32 %v9018, %v9058
        %v9060 = vpop.f32.mrb[0].mxu0
        %v9061 = vadd.f32 %v9020, %v9060
        %v9062 = vpop.f32.mrb[0].mxu0
        %v9063 = vpop.f32.mrb[0].mxu0
        %9064 = vdwg.mxu0
        %9065 = vmatprep.subr.bf16.mxu0 %v7046
        %9066 = vmatpush1.bf16.msra.mxu0 %v7045
        %9067 = vmatprep.subr.bf16.mxu0 %v7062
        %9068 = vmatpush1.bf16.msra.mxu0 %v7061
        %9069 = vmatprep.subr.bf16.mxu0 %v7078
        %9070 = vmatpush1.bf16.msra.mxu0 %v7077
        %9071 = vmatprep.subr.bf16.mxu0 %v7094
        %9072 = vmatpush1.bf16.msra.mxu0 %v7093
        %9073 = vmatprep.subr.bf16.mxu0 %v7110
        %9074 = vmatpush1.bf16.msra.mxu0 %v7109
        %9075 = vmatprep.subr.bf16.mxu0 %v7126
        %9076 = vmatpush1.bf16.msra.mxu0 %v7125
        %9077 = vmatprep.subr.bf16.mxu0 %v7142
        %9078 = vmatpush1.bf16.msra.mxu0 %v7141
        %9079 = vmatprep.subr.bf16.mxu0 %v7158
        %9080 = vmatpush1.bf16.msra.mxu0 %v7157
        %9081 = vmatprep.subr.bf16.mxu0 %v7174
        %9082 = vmatpush1.bf16.msra.mxu0 %v7173
        %9083 = vmatprep.subr.bf16.mxu0 %v7190
        %9084 = vmatpush1.bf16.msra.mxu0 %v7189
        %9085 = vmatprep.subr.bf16.mxu0 %v7206
        %9086 = vmatpush1.bf16.msra.mxu0 %v7205
        %9087 = vmatprep.subr.bf16.mxu0 %v7222
        %9088 = vmatpush1.bf16.msra.mxu0 %v7221
        %9089 = vmatprep.subr.bf16.mxu0 %v7238
        %9090 = vmatpush1.bf16.msra.mxu0 %v7237
        %9091 = vmatprep.subr.bf16.mxu0 %v7254
        %9092 = vmatpush1.bf16.msra.mxu0 %v7253
        %9093 = vmatprep.subr.bf16.mxu0 %v7270
        %9094 = vmatpush1.bf16.msra.mxu0 %v7269
        %9095 = vmatprep.subr.bf16.mxu0 %v7286
        %9096 = vmatpush1.bf16.msra.mxu0 %v7285
        %9097 = vmatprep.mubr.bf16.mxu0 %v3960
        %9098 = vmatmul.mubr.bf16.gmra.mrb[0].mxu0 %v3959
        %v9099 = vpop.f32.mrb[0].mxu0
        %v9100 = vadd.f32 0.0, %v9099
        %v9101 = vpop.f32.mrb[0].mxu0
        %v9102 = vadd.f32 0.0, %v9101
        %v9103 = vpop.f32.mrb[0].mxu0
        %v9104 = vpop.f32.mrb[0].mxu0
        %9105 = vdwg.mxu0
        %9106 = vmatprep.subr.bf16.mxu0 %v7302
        %9107 = vmatpush1.bf16.msra.mxu0 %v7301
        %9108 = vmatprep.subr.bf16.mxu0 %v7318
        %9109 = vmatpush1.bf16.msra.mxu0 %v7317
        %9110 = vmatprep.subr.bf16.mxu0 %v7334
        %9111 = vmatpush1.bf16.msra.mxu0 %v7333
        %9112 = vmatprep.subr.bf16.mxu0 %v7350
        %9113 = vmatpush1.bf16.msra.mxu0 %v7349
        %9114 = vmatprep.subr.bf16.mxu0 %v7366
        %9115 = vmatpush1.bf16.msra.mxu0 %v7365
        %9116 = vmatprep.subr.bf16.mxu0 %v7382
        %9117 = vmatpush1.bf16.msra.mxu0 %v7381
        %9118 = vmatprep.subr.bf16.mxu0 %v7398
        %9119 = vmatpush1.bf16.msra.mxu0 %v7397
        %9120 = vmatprep.subr.bf16.mxu0 %v7414
        %9121 = vmatpush1.bf16.msra.mxu0 %v7413
        %9122 = vmatprep.subr.bf16.mxu0 %v7430
        %9123 = vmatpush1.bf16.msra.mxu0 %v7429
        %9124 = vmatprep.subr.bf16.mxu0 %v7446
        %9125 = vmatpush1.bf16.msra.mxu0 %v7445
        %9126 = vmatprep.subr.bf16.mxu0 %v7462
        %9127 = vmatpush1.bf16.msra.mxu0 %v7461
        %9128 = vmatprep.subr.bf16.mxu0 %v7478
        %9129 = vmatpush1.bf16.msra.mxu0 %v7477
        %9130 = vmatprep.subr.bf16.mxu0 %v7494
        %9131 = vmatpush1.bf16.msra.mxu0 %v7493
        %9132 = vmatprep.subr.bf16.mxu0 %v7510
        %9133 = vmatpush1.bf16.msra.mxu0 %v7509
        %9134 = vmatprep.subr.bf16.mxu0 %v7526
        %9135 = vmatpush1.bf16.msra.mxu0 %v7525
        %9136 = vmatprep.subr.bf16.mxu0 %v7542
        %9137 = vmatpush1.bf16.msra.mxu0 %v7541
        %9138 = vmatprep.mubr.bf16.mxu0 %v3962
        %9139 = vmatmul.mubr.bf16.gmra.mrb[0].mxu0 %v3961
        %v9140 = vpop.f32.mrb[0].mxu0
        %v9141 = vadd.f32 %v9100, %v9140
        %v9142 = vpop.f32.mrb[0].mxu0
        %v9143 = vadd.f32 %v9102, %v9142
        %v9144 = vpop.f32.mrb[0].mxu0
        %v9145 = vpop.f32.mrb[0].mxu0
        %9146 = vdwg.mxu0
        %9147 = vmatprep.subr.bf16.mxu0 %v7558
        %9148 = vmatpush1.bf16.msra.mxu0 %v7557
        %9149 = vmatprep.subr.bf16.mxu0 %v7574
        %9150 = vmatpush1.bf16.msra.mxu0 %v7573
        %9151 = vmatprep.subr.bf16.mxu0 %v7590
        %9152 = vmatpush1.bf16.msra.mxu0 %v7589
        %9153 = vmatprep.subr.bf16.mxu0 %v7606
        %9154 = vmatpush1.bf16.msra.mxu0 %v7605
        %9155 = vmatprep.subr.bf16.mxu0 %v7622
        %9156 = vmatpush1.bf16.msra.mxu0 %v7621
        %9157 = vmatprep.subr.bf16.mxu0 %v7638
        %9158 = vmatpush1.bf16.msra.mxu0 %v7637
        %9159 = vmatprep.subr.bf16.mxu0 %v7654
        %9160 = vmatpush1.bf16.msra.mxu0 %v7653
        %9161 = vmatprep.subr.bf16.mxu0 %v7670
        %9162 = vmatpush1.bf16.msra.mxu0 %v7669
        %9163 = vmatprep.subr.bf16.mxu0 %v7686
        %9164 = vmatpush1.bf16.msra.mxu0 %v7685
        %9165 = vmatprep.subr.bf16.mxu0 %v7702
        %9166 = vmatpush1.bf16.msra.mxu0 %v7701
        %9167 = vmatprep.subr.bf16.mxu0 %v7718
        %9168 = vmatpush1.bf16.msra.mxu0 %v7717
        %9169 = vmatprep.subr.bf16.mxu0 %v7734
        %9170 = vmatpush1.bf16.msra.mxu0 %v7733
        %9171 = vmatprep.subr.bf16.mxu0 %v7750
        %9172 = vmatpush1.bf16.msra.mxu0 %v7749
        %9173 = vmatprep.subr.bf16.mxu0 %v7766
        %9174 = vmatpush1.bf16.msra.mxu0 %v7765
        %9175 = vmatprep.subr.bf16.mxu0 %v7782
        %9176 = vmatpush1.bf16.msra.mxu0 %v7781
        %9177 = vmatprep.subr.bf16.mxu0 %v7798
        %9178 = vmatpush1.bf16.msra.mxu0 %v7797
        %9179 = vmatprep.mubr.bf16.mxu0 %v3964
        %9180 = vmatmul.mubr.bf16.gmra.mrb[0].mxu0 %v3963
        %v9181 = vpop.f32.mrb[0].mxu0
        %v9182 = vadd.f32 %v9141, %v9181
        %v9183 = vpop.f32.mrb[0].mxu0
        %v9184 = vadd.f32 %v9143, %v9183
        %v9185 = vpop.f32.mrb[0].mxu0
        %v9186 = vpop.f32.mrb[0].mxu0
        %9187 = vdwg.mxu0
        %9188 = vmatprep.subr.bf16.mxu0 %v7048
        %9189 = vmatpush1.bf16.msra.mxu0 %v7047
        %9190 = vmatprep.subr.bf16.mxu0 %v7064
        %9191 = vmatpush1.bf16.msra.mxu0 %v7063
        %9192 = vmatprep.subr.bf16.mxu0 %v7080
        %9193 = vmatpush1.bf16.msra.mxu0 %v7079
        %9194 = vmatprep.subr.bf16.mxu0 %v7096
        %9195 = vmatpush1.bf16.msra.mxu0 %v7095
        %9196 = vmatprep.subr.bf16.mxu0 %v7112
        %9197 = vmatpush1.bf16.msra.mxu0 %v7111
        %9198 = vmatprep.subr.bf16.mxu0 %v7128
        %9199 = vmatpush1.bf16.msra.mxu0 %v7127
        %9200 = vmatprep.subr.bf16.mxu0 %v7144
        %9201 = vmatpush1.bf16.msra.mxu0 %v7143
        %9202 = vmatprep.subr.bf16.mxu0 %v7160
        %9203 = vmatpush1.bf16.msra.mxu0 %v7159
        %9204 = vmatprep.subr.bf16.mxu0 %v7176
        %9205 = vmatpush1.bf16.msra.mxu0 %v7175
        %9206 = vmatprep.subr.bf16.mxu0 %v7192
        %9207 = vmatpush1.bf16.msra.mxu0 %v7191
        %9208 = vmatprep.subr.bf16.mxu0 %v7208
        %9209 = vmatpush1.bf16.msra.mxu0 %v7207
        %9210 = vmatprep.subr.bf16.mxu0 %v7224
        %9211 = vmatpush1.bf16.msra.mxu0 %v7223
        %9212 = vmatprep.subr.bf16.mxu0 %v7240
        %9213 = vmatpush1.bf16.msra.mxu0 %v7239
        %9214 = vmatprep.subr.bf16.mxu0 %v7256
        %9215 = vmatpush1.bf16.msra.mxu0 %v7255
        %9216 = vmatprep.subr.bf16.mxu0 %v7272
        %9217 = vmatpush1.bf16.msra.mxu0 %v7271
        %9218 = vmatprep.subr.bf16.mxu0 %v7288
        %9219 = vmatpush1.bf16.msra.mxu0 %v7287
        %9220 = vmatprep.mubr.bf16.mxu0 %v3960
        %9221 = vmatmul.mubr.bf16.gmra.mrb[0].mxu0 %v3959
        %v9222 = vpop.f32.mrb[0].mxu0
        %v9223 = vadd.f32 0.0, %v9222
        %v9224 = vpop.f32.mrb[0].mxu0
        %v9225 = vadd.f32 0.0, %v9224
        %v9226 = vpop.f32.mrb[0].mxu0
        %v9227 = vpop.f32.mrb[0].mxu0
        %9228 = vdwg.mxu0
        %9229 = vmatprep.subr.bf16.mxu0 %v7304
        %9230 = vmatpush1.bf16.msra.mxu0 %v7303
        %9231 = vmatprep.subr.bf16.mxu0 %v7320
        %9232 = vmatpush1.bf16.msra.mxu0 %v7319
        %9233 = vmatprep.subr.bf16.mxu0 %v7336
        %9234 = vmatpush1.bf16.msra.mxu0 %v7335
        %9235 = vmatprep.subr.bf16.mxu0 %v7352
        %9236 = vmatpush1.bf16.msra.mxu0 %v7351
        %9237 = vmatprep.subr.bf16.mxu0 %v7368
        %9238 = vmatpush1.bf16.msra.mxu0 %v7367
        %9239 = vmatprep.subr.bf16.mxu0 %v7384
        %9240 = vmatpush1.bf16.msra.mxu0 %v7383
        %9241 = vmatprep.subr.bf16.mxu0 %v7400
        %9242 = vmatpush1.bf16.msra.mxu0 %v7399
        %9243 = vmatprep.subr.bf16.mxu0 %v7416
        %9244 = vmatpush1.bf16.msra.mxu0 %v7415
        %9245 = vmatprep.subr.bf16.mxu0 %v7432
        %9246 = vmatpush1.bf16.msra.mxu0 %v7431
        %9247 = vmatprep.subr.bf16.mxu0 %v7448
        %9248 = vmatpush1.bf16.msra.mxu0 %v7447
        %9249 = vmatprep.subr.bf16.mxu0 %v7464
        %9250 = vmatpush1.bf16.msra.mxu0 %v7463
        %9251 = vmatprep.subr.bf16.mxu0 %v7480
        %9252 = vmatpush1.bf16.msra.mxu0 %v7479
        %9253 = vmatprep.subr.bf16.mxu0 %v7496
        %9254 = vmatpush1.bf16.msra.mxu0 %v7495
        %9255 = vmatprep.subr.bf16.mxu0 %v7512
        %9256 = vmatpush1.bf16.msra.mxu0 %v7511
        %9257 = vmatprep.subr.bf16.mxu0 %v7528
        %9258 = vmatpush1.bf16.msra.mxu0 %v7527
        %9259 = vmatprep.subr.bf16.mxu0 %v7544
        %9260 = vmatpush1.bf16.msra.mxu0 %v7543
        %9261 = vmatprep.mubr.bf16.mxu0 %v3962
        %9262 = vmatmul.mubr.bf16.gmra.mrb[0].mxu0 %v3961
        %v9263 = vpop.f32.mrb[0].mxu0
        %v9264 = vadd.f32 %v9223, %v9263
        %v9265 = vpop.f32.mrb[0].mxu0
        %v9266 = vadd.f32 %v9225, %v9265
        %v9267 = vpop.f32.mrb[0].mxu0
        %v9268 = vpop.f32.mrb[0].mxu0
        %9269 = vdwg.mxu0
        %9270 = vmatprep.subr.bf16.mxu0 %v7560
        %9271 = vmatpush1.bf16.msra.mxu0 %v7559
        %9272 = vmatprep.subr.bf16.mxu0 %v7576
        %9273 = vmatpush1.bf16.msra.mxu0 %v7575
        %9274 = vmatprep.subr.bf16.mxu0 %v7592
        %9275 = vmatpush1.bf16.msra.mxu0 %v7591
        %9276 = vmatprep.subr.bf16.mxu0 %v7608
        %9277 = vmatpush1.bf16.msra.mxu0 %v7607
        %9278 = vmatprep.subr.bf16.mxu0 %v7624
        %9279 = vmatpush1.bf16.msra.mxu0 %v7623
        %9280 = vmatprep.subr.bf16.mxu0 %v7640
        %9281 = vmatpush1.bf16.msra.mxu0 %v7639
        %9282 = vmatprep.subr.bf16.mxu0 %v7656
        %9283 = vmatpush1.bf16.msra.mxu0 %v7655
        %9284 = vmatprep.subr.bf16.mxu0 %v7672
        %9285 = vmatpush1.bf16.msra.mxu0 %v7671
        %9286 = vmatprep.subr.bf16.mxu0 %v7688
        %9287 = vmatpush1.bf16.msra.mxu0 %v7687
        %9288 = vmatprep.subr.bf16.mxu0 %v7704
        %9289 = vmatpush1.bf16.msra.mxu0 %v7703
        %9290 = vmatprep.subr.bf16.mxu0 %v7720
        %9291 = vmatpush1.bf16.msra.mxu0 %v7719
        %9292 = vmatprep.subr.bf16.mxu0 %v7736
        %9293 = vmatpush1.bf16.msra.mxu0 %v7735
        %9294 = vmatprep.subr.bf16.mxu0 %v7752
        %9295 = vmatpush1.bf16.msra.mxu0 %v7751
        %9296 = vmatprep.subr.bf16.mxu0 %v7768
        %9297 = vmatpush1.bf16.msra.mxu0 %v7767
        %9298 = vmatprep.subr.bf16.mxu0 %v7784
        %9299 = vmatpush1.bf16.msra.mxu0 %v7783
        %9300 = vmatprep.subr.bf16.mxu0 %v7800
        %9301 = vmatpush1.bf16.msra.mxu0 %v7799
        %9302 = vmatprep.mubr.bf16.mxu0 %v3964
        %9303 = vmatmul.mubr.bf16.gmra.mrb[0].mxu0 %v3963
        %v9304 = vpop.f32.mrb[0].mxu0
        %v9305 = vadd.f32 %v9264, %v9304
        %v9306 = vpop.f32.mrb[0].mxu0
        %v9307 = vadd.f32 %v9266, %v9306
        %v9308 = vpop.f32.mrb[0].mxu0
        %v9309 = vpop.f32.mrb[0].mxu0
        %9310 = vdwg.mxu0
        %9311 = vmatprep.subr.bf16.mxu0 %v7050
        %9312 = vmatpush1.bf16.msra.mxu0 %v7049
        %9313 = vmatprep.subr.bf16.mxu0 %v7066
        %9314 = vmatpush1.bf16.msra.mxu0 %v7065
        %9315 = vmatprep.subr.bf16.mxu0 %v7082
        %9316 = vmatpush1.bf16.msra.mxu0 %v7081
        %9317 = vmatprep.subr.bf16.mxu0 %v7098
        %9318 = vmatpush1.bf16.msra.mxu0 %v7097
        %9319 = vmatprep.subr.bf16.mxu0 %v7114
        %9320 = vmatpush1.bf16.msra.mxu0 %v7113
        %9321 = vmatprep.subr.bf16.mxu0 %v7130
        %9322 = vmatpush1.bf16.msra.mxu0 %v7129
        %9323 = vmatprep.subr.bf16.mxu0 %v7146
        %9324 = vmatpush1.bf16.msra.mxu0 %v7145
        %9325 = vmatprep.subr.bf16.mxu0 %v7162
        %9326 = vmatpush1.bf16.msra.mxu0 %v7161
        %9327 = vmatprep.subr.bf16.mxu0 %v7178
        %9328 = vmatpush1.bf16.msra.mxu0 %v7177
        %9329 = vmatprep.subr.bf16.mxu0 %v7194
        %9330 = vmatpush1.bf16.msra.mxu0 %v7193
        %9331 = vmatprep.subr.bf16.mxu0 %v7210
        %9332 = vmatpush1.bf16.msra.mxu0 %v7209
        %9333 = vmatprep.subr.bf16.mxu0 %v7226
        %9334 = vmatpush1.bf16.msra.mxu0 %v7225
        %9335 = vmatprep.subr.bf16.mxu0 %v7242
        %9336 = vmatpush1.bf16.msra.mxu0 %v7241
        %9337 = vmatprep.subr.bf16.mxu0 %v7258
        %9338 = vmatpush1.bf16.msra.mxu0 %v7257
        %9339 = vmatprep.subr.bf16.mxu0 %v7274
        %9340 = vmatpush1.bf16.msra.mxu0 %v7273
        %9341 = vmatprep.subr.bf16.mxu0 %v7290
        %9342 = vmatpush1.bf16.msra.mxu0 %v7289
        %9343 = vmatprep.mubr.bf16.mxu0 %v3960
        %9344 = vmatmul.mubr.bf16.gmra.mrb[0].mxu0 %v3959
        %v9345 = vpop.f32.mrb[0].mxu0
        %v9346 = vadd.f32 0.0, %v9345
        %v9347 = vpop.f32.mrb[0].mxu0
        %v9348 = vadd.f32 0.0, %v9347
        %v9349 = vpop.f32.mrb[0].mxu0
        %v9350 = vpop.f32.mrb[0].mxu0
        %9351 = vdwg.mxu0
        %9352 = vmatprep.subr.bf16.mxu0 %v7306
        %9353 = vmatpush1.bf16.msra.mxu0 %v7305
        %9354 = vmatprep.subr.bf16.mxu0 %v7322
        %9355 = vmatpush1.bf16.msra.mxu0 %v7321
        %9356 = vmatprep.subr.bf16.mxu0 %v7338
        %9357 = vmatpush1.bf16.msra.mxu0 %v7337
        %9358 = vmatprep.subr.bf16.mxu0 %v7354
        %9359 = vmatpush1.bf16.msra.mxu0 %v7353
        %9360 = vmatprep.subr.bf16.mxu0 %v7370
        %9361 = vmatpush1.bf16.msra.mxu0 %v7369
        %9362 = vmatprep.subr.bf16.mxu0 %v7386
        %9363 = vmatpush1.bf16.msra.mxu0 %v7385
        %9364 = vmatprep.subr.bf16.mxu0 %v7402
        %9365 = vmatpush1.bf16.msra.mxu0 %v7401
        %9366 = vmatprep.subr.bf16.mxu0 %v7418
        %9367 = vmatpush1.bf16.msra.mxu0 %v7417
        %9368 = vmatprep.subr.bf16.mxu0 %v7434
        %9369 = vmatpush1.bf16.msra.mxu0 %v7433
        %9370 = vmatprep.subr.bf16.mxu0 %v7450
        %9371 = vmatpush1.bf16.msra.mxu0 %v7449
        %9372 = vmatprep.subr.bf16.mxu0 %v7466
        %9373 = vmatpush1.bf16.msra.mxu0 %v7465
        %9374 = vmatprep.subr.bf16.mxu0 %v7482
        %9375 = vmatpush1.bf16.msra.mxu0 %v7481
        %9376 = vmatprep.subr.bf16.mxu0 %v7498
        %9377 = vmatpush1.bf16.msra.mxu0 %v7497
        %9378 = vmatprep.subr.bf16.mxu0 %v7514
        %9379 = vmatpush1.bf16.msra.mxu0 %v7513
        %9380 = vmatprep.subr.bf16.mxu0 %v7530
        %9381 = vmatpush1.bf16.msra.mxu0 %v7529
        %9382 = vmatprep.subr.bf16.mxu0 %v7546
        %9383 = vmatpush1.bf16.msra.mxu0 %v7545
        %9384 = vmatprep.mubr.bf16.mxu0 %v3962
        %9385 = vmatmul.mubr.bf16.gmra.mrb[0].mxu0 %v3961
        %v9386 = vpop.f32.mrb[0].mxu0
        %v9387 = vadd.f32 %v9346, %v9386
        %v9388 = vpop.f32.mrb[0].mxu0
        %v9389 = vadd.f32 %v9348, %v9388
        %v9390 = vpop.f32.mrb[0].mxu0
        %v9391 = vpop.f32.mrb[0].mxu0
        %9392 = vdwg.mxu0
        %9393 = vmatprep.subr.bf16.mxu0 %v7562
        %9394 = vmatpush1.bf16.msra.mxu0 %v7561
        %9395 = vmatprep.subr.bf16.mxu0 %v7578
        %9396 = vmatpush1.bf16.msra.mxu0 %v7577
        %9397 = vmatprep.subr.bf16.mxu0 %v7594
        %9398 = vmatpush1.bf16.msra.mxu0 %v7593
        %9399 = vmatprep.subr.bf16.mxu0 %v7610
        %9400 = vmatpush1.bf16.msra.mxu0 %v7609
        %9401 = vmatprep.subr.bf16.mxu0 %v7626
        %9402 = vmatpush1.bf16.msra.mxu0 %v7625
        %9403 = vmatprep.subr.bf16.mxu0 %v7642
        %9404 = vmatpush1.bf16.msra.mxu0 %v7641
        %9405 = vmatprep.subr.bf16.mxu0 %v7658
        %9406 = vmatpush1.bf16.msra.mxu0 %v7657
        %9407 = vmatprep.subr.bf16.mxu0 %v7674
        %9408 = vmatpush1.bf16.msra.mxu0 %v7673
        %9409 = vmatprep.subr.bf16.mxu0 %v7690
        %9410 = vmatpush1.bf16.msra.mxu0 %v7689
        %9411 = vmatprep.subr.bf16.mxu0 %v7706
        %9412 = vmatpush1.bf16.msra.mxu0 %v7705
        %9413 = vmatprep.subr.bf16.mxu0 %v7722
        %9414 = vmatpush1.bf16.msra.mxu0 %v7721
        %9415 = vmatprep.subr.bf16.mxu0 %v7738
        %9416 = vmatpush1.bf16.msra.mxu0 %v7737
        %9417 = vmatprep.subr.bf16.mxu0 %v7754
        %9418 = vmatpush1.bf16.msra.mxu0 %v7753
        %9419 = vmatprep.subr.bf16.mxu0 %v7770
        %9420 = vmatpush1.bf16.msra.mxu0 %v7769
        %9421 = vmatprep.subr.bf16.mxu0 %v7786
        %9422 = vmatpush1.bf16.msra.mxu0 %v7785
        %9423 = vmatprep.subr.bf16.mxu0 %v7802
        %9424 = vmatpush1.bf16.msra.mxu0 %v7801
        %9425 = vmatprep.mubr.bf16.mxu0 %v3964
        %9426 = vmatmul.mubr.bf16.gmra.mrb[0].mxu0 %v3963
        %v9427 = vpop.f32.mrb[0].mxu0
        %v9428 = vadd.f32 %v9387, %v9427
        %v9429 = vpop.f32.mrb[0].mxu0
        %v9430 = vadd.f32 %v9389, %v9429
        %v9431 = vpop.f32.mrb[0].mxu0
        %v9432 = vpop.f32.mrb[0].mxu0
        %9433 = vdwg.mxu0
        %9434 = vmatprep.subr.bf16.mxu0 %v7052
        %9435 = vmatpush1.bf16.msra.mxu0 %v7051
        %9436 = vmatprep.subr.bf16.mxu0 %v7068
        %9437 = vmatpush1.bf16.msra.mxu0 %v7067
        %9438 = vmatprep.subr.bf16.mxu0 %v7084
        %9439 = vmatpush1.bf16.msra.mxu0 %v7083
        %9440 = vmatprep.subr.bf16.mxu0 %v7100
        %9441 = vmatpush1.bf16.msra.mxu0 %v7099
        %9442 = vmatprep.subr.bf16.mxu0 %v7116
        %9443 = vmatpush1.bf16.msra.mxu0 %v7115
        %9444 = vmatprep.subr.bf16.mxu0 %v7132
        %9445 = vmatpush1.bf16.msra.mxu0 %v7131
        %9446 = vmatprep.subr.bf16.mxu0 %v7148
        %9447 = vmatpush1.bf16.msra.mxu0 %v7147
        %9448 = vmatprep.subr.bf16.mxu0 %v7164
        %9449 = vmatpush1.bf16.msra.mxu0 %v7163
        %9450 = vmatprep.subr.bf16.mxu0 %v7180
        %9451 = vmatpush1.bf16.msra.mxu0 %v7179
        %9452 = vmatprep.subr.bf16.mxu0 %v7196
        %9453 = vmatpush1.bf16.msra.mxu0 %v7195
        %9454 = vmatprep.subr.bf16.mxu0 %v7212
        %9455 = vmatpush1.bf16.msra.mxu0 %v7211
        %9456 = vmatprep.subr.bf16.mxu0 %v7228
        %9457 = vmatpush1.bf16.msra.mxu0 %v7227
        %9458 = vmatprep.subr.bf16.mxu0 %v7244
        %9459 = vmatpush1.bf16.msra.mxu0 %v7243
        %9460 = vmatprep.subr.bf16.mxu0 %v7260
        %9461 = vmatpush1.bf16.msra.mxu0 %v7259
        %9462 = vmatprep.subr.bf16.mxu0 %v7276
        %9463 = vmatpush1.bf16.msra.mxu0 %v7275
        %9464 = vmatprep.subr.bf16.mxu0 %v7292
        %9465 = vmatpush1.bf16.msra.mxu0 %v7291
        %9466 = vmatprep.mubr.bf16.mxu0 %v3960
        %9467 = vmatmul.mubr.bf16.gmra.mrb[0].mxu0 %v3959
        %v9468 = vpop.f32.mrb[0].mxu0
        %v9469 = vadd.f32 0.0, %v9468
        %v9470 = vpop.f32.mrb[0].mxu0
        %v9471 = vadd.f32 0.0, %v9470
        %v9472 = vpop.f32.mrb[0].mxu0
        %v9473 = vpop.f32.mrb[0].mxu0
        %9474 = vdwg.mxu0
        %9475 = vmatprep.subr.bf16.mxu0 %v7308
        %9476 = vmatpush1.bf16.msra.mxu0 %v7307
        %9477 = vmatprep.subr.bf16.mxu0 %v7324
        %9478 = vmatpush1.bf16.msra.mxu0 %v7323
        %9479 = vmatprep.subr.bf16.mxu0 %v7340
        %9480 = vmatpush1.bf16.msra.mxu0 %v7339
        %9481 = vmatprep.subr.bf16.mxu0 %v7356
        %9482 = vmatpush1.bf16.msra.mxu0 %v7355
        %9483 = vmatprep.subr.bf16.mxu0 %v7372
        %9484 = vmatpush1.bf16.msra.mxu0 %v7371
        %9485 = vmatprep.subr.bf16.mxu0 %v7388
        %9486 = vmatpush1.bf16.msra.mxu0 %v7387
        %9487 = vmatprep.subr.bf16.mxu0 %v7404
        %9488 = vmatpush1.bf16.msra.mxu0 %v7403
        %9489 = vmatprep.subr.bf16.mxu0 %v7420
        %9490 = vmatpush1.bf16.msra.mxu0 %v7419
        %9491 = vmatprep.subr.bf16.mxu0 %v7436
        %9492 = vmatpush1.bf16.msra.mxu0 %v7435
        %9493 = vmatprep.subr.bf16.mxu0 %v7452
        %9494 = vmatpush1.bf16.msra.mxu0 %v7451
        %9495 = vmatprep.subr.bf16.mxu0 %v7468
        %9496 = vmatpush1.bf16.msra.mxu0 %v7467
        %9497 = vmatprep.subr.bf16.mxu0 %v7484
        %9498 = vmatpush1.bf16.msra.mxu0 %v7483
        %9499 = vmatprep.subr.bf16.mxu0 %v7500
        %9500 = vmatpush1.bf16.msra.mxu0 %v7499
        %9501 = vmatprep.subr.bf16.mxu0 %v7516
        %9502 = vmatpush1.bf16.msra.mxu0 %v7515
        %9503 = vmatprep.subr.bf16.mxu0 %v7532
        %9504 = vmatpush1.bf16.msra.mxu0 %v7531
        %9505 = vmatprep.subr.bf16.mxu0 %v7548
        %9506 = vmatpush1.bf16.msra.mxu0 %v7547
        %9507 = vmatprep.mubr.bf16.mxu0 %v3962
        %9508 = vmatmul.mubr.bf16.gmra.mrb[0].mxu0 %v3961
        %v9509 = vpop.f32.mrb[0].mxu0
        %v9510 = vadd.f32 %v9469, %v9509
        %v9511 = vpop.f32.mrb[0].mxu0
        %v9512 = vadd.f32 %v9471, %v9511
        %v9513 = vpop.f32.mrb[0].mxu0
        %v9514 = vpop.f32.mrb[0].mxu0
        %9515 = vdwg.mxu0
        %9516 = vmatprep.subr.bf16.mxu0 %v7564
        %9517 = vmatpush1.bf16.msra.mxu0 %v7563
        %9518 = vmatprep.subr.bf16.mxu0 %v7580
        %9519 = vmatpush1.bf16.msra.mxu0 %v7579
        %9520 = vmatprep.subr.bf16.mxu0 %v7596
        %9521 = vmatpush1.bf16.msra.mxu0 %v7595
        %9522 = vmatprep.subr.bf16.mxu0 %v7612
        %9523 = vmatpush1.bf16.msra.mxu0 %v7611
        %9524 = vmatprep.subr.bf16.mxu0 %v7628
        %9525 = vmatpush1.bf16.msra.mxu0 %v7627
        %9526 = vmatprep.subr.bf16.mxu0 %v7644
        %9527 = vmatpush1.bf16.msra.mxu0 %v7643
        %9528 = vmatprep.subr.bf16.mxu0 %v7660
        %9529 = vmatpush1.bf16.msra.mxu0 %v7659
        %9530 = vmatprep.subr.bf16.mxu0 %v7676
        %9531 = vmatpush1.bf16.msra.mxu0 %v7675
        %9532 = vmatprep.subr.bf16.mxu0 %v7692
        %9533 = vmatpush1.bf16.msra.mxu0 %v7691
        %9534 = vmatprep.subr.bf16.mxu0 %v7708
        %9535 = vmatpush1.bf16.msra.mxu0 %v7707
        %9536 = vmatprep.subr.bf16.mxu0 %v7724
        %9537 = vmatpush1.bf16.msra.mxu0 %v7723
        %9538 = vmatprep.subr.bf16.mxu0 %v7740
        %9539 = vmatpush1.bf16.msra.mxu0 %v7739
        %9540 = vmatprep.subr.bf16.mxu0 %v7756
        %9541 = vmatpush1.bf16.msra.mxu0 %v7755
        %9542 = vmatprep.subr.bf16.mxu0 %v7772
        %9543 = vmatpush1.bf16.msra.mxu0 %v7771
        %9544 = vmatprep.subr.bf16.mxu0 %v7788
        %9545 = vmatpush1.bf16.msra.mxu0 %v7787
        %9546 = vmatprep.subr.bf16.mxu0 %v7804
        %9547 = vmatpush1.bf16.msra.mxu0 %v7803
        %9548 = vmatprep.mubr.bf16.mxu0 %v3964
        %9549 = vmatmul.mubr.bf16.gmra.mrb[0].mxu0 %v3963
        %v9550 = vpop.f32.mrb[0].mxu0
        %v9551 = vadd.f32 %v9510, %v9550
        %v9552 = vpop.f32.mrb[0].mxu0
        %v9553 = vadd.f32 %v9512, %v9552
        %v9554 = vpop.f32.mrb[0].mxu0
        %v9555 = vpop.f32.mrb[0].mxu0
        %9556 = vdwg.mxu0
        %v9557 = vadd.f32 %v3943, %v8690
        %v9558 = vadd.f32 %v3944, %v8692
        %v9559 = vadd.f32 %v3945, %v8813
        %v9560 = vadd.f32 %v3946, %v8815
        %v9561 = vadd.f32 %v3947, %v8936
        %v9562 = vadd.f32 %v3948, %v8938
        %v9563 = vadd.f32 %v3949, %v9059
        %v9564 = vadd.f32 %v3950, %v9061
        %v9565 = vadd.f32 %v3951, %v9182
        %v9566 = vadd.f32 %v3952, %v9184
        %v9567 = vadd.f32 %v3953, %v9305
        %v9568 = vadd.f32 %v3954, %v9307
        %v9569 = vadd.f32 %v3955, %v9428
        %v9570 = vadd.f32 %v3956, %v9430
        %v9571 = vadd.f32 %v3957, %v9551
        %v9572 = vadd.f32 %v3958, %v9553
        %9573 = vst [vmem:[#allocation2] sm:$0xff] %v9557
        %9574 = vst [vmem:[#allocation2 + $0x8] sm:$0xff] %v9558
        %9575 = vst [vmem:[#allocation2 + $0x10] sm:$0xff] %v9559
        %9576 = vst [vmem:[#allocation2 + $0x18] sm:$0xff] %v9560
        %9577 = vst [vmem:[#allocation2 + $0x20] sm:$0xff] %v9561
        %9578 = vst [vmem:[#allocation2 + $0x28] sm:$0xff] %v9562
        %9579 = vst [vmem:[#allocation2 + $0x30] sm:$0xff] %v9563
        %9580 = vst [vmem:[#allocation2 + $0x38] sm:$0xff] %v9564
        %9581 = vst [vmem:[#allocation2 + $0x40] sm:$0xff] %v9565
        %9582 = vst [vmem:[#allocation2 + $0x48] sm:$0xff] %v9566
        %9583 = vst [vmem:[#allocation2 + $0x50] sm:$0xff] %v9567
        %9584 = vst [vmem:[#allocation2 + $0x58] sm:$0xff] %v9568
        %9585 = vst [vmem:[#allocation2 + $0x60] sm:$0xff] %v9569
        %9586 = vst [vmem:[#allocation2 + $0x68] sm:$0xff] %v9570
        %9587 = vst [vmem:[#allocation2 + $0x70] sm:$0xff] %v9571
        %9588 = vst [vmem:[#allocation2 + $0x78] sm:$0xff] %v9572
        %p9589 = scmp.eq.s32.totalorder %s28, 3
        // Predicated region
        $region81: #{svhn_label_predictor.1} parent=51 // pred_check
          %p9590 = pneg %p9589
        $region82: #{svhn_label_predictor.1} parent=51 // pred_check_branch
          %9592 = sbr.rel (%p9590) target = $region84
        $region83: #{svhn_label_predictor.1} parent=51 // pred_region
          %v9593 = vld [vmem:[#allocation2] sm:$0xff]
          %v9594 = vld [vmem:[#allocation2 + $0x8] sm:$0xff]
          %v9595 = vld [vmem:[#allocation2 + $0x10] sm:$0xff]
          %v9596 = vld [vmem:[#allocation2 + $0x18] sm:$0xff]
          %v9597 = vld [vmem:[#allocation2 + $0x20] sm:$0xff]
          %v9598 = vld [vmem:[#allocation2 + $0x28] sm:$0xff]
          %v9599 = vld [vmem:[#allocation2 + $0x30] sm:$0xff]
          %v9600 = vld [vmem:[#allocation2 + $0x38] sm:$0xff]
          %v9601 = vld [vmem:[#allocation2 + $0x40] sm:$0xff]
          %v9602 = vld [vmem:[#allocation2 + $0x48] sm:$0xff]
          %v9603 = vld [vmem:[#allocation2 + $0x50] sm:$0xff]
          %v9604 = vld [vmem:[#allocation2 + $0x58] sm:$0xff]
          %v9605 = vld [vmem:[#allocation2 + $0x60] sm:$0xff]
          %v9606 = vld [vmem:[#allocation2 + $0x68] sm:$0xff]
          %v9607 = vld [vmem:[#allocation2 + $0x70] sm:$0xff]
          %v9608 = vld [vmem:[#allocation2 + $0x78] sm:$0xff]
          %v9609 = vld [vmem:[#allocation11] ss:$4 sm:$0xff]
          %s9610 = scalar_lea.vmem [#allocation11], 32
          %v9611 = vld [vmem:[%s9610] ss:$4 sm:$0xff]
          %v9614 = vlaneseq
          %v9615 = vshrl.u32 %v9614, 7
          %v9616 = vsub.s32 0, %v9615
          %v9617 = vrot.slane %v9609, %v9616
          %v9618 = vlaneseq
          %v9619 = vshrl.u32 %v9618, 7
          %v9620 = vsub.s32 1, %v9619
          %v9621 = vrot.slane %v9609, %v9620
          %v9622 = vlaneseq
          %v9623 = vshrl.u32 %v9622, 7
          %v9624 = vsub.s32 2, %v9623
          %v9625 = vrot.slane %v9609, %v9624
          %v9626 = vlaneseq
          %v9627 = vshrl.u32 %v9626, 7
          %v9628 = vsub.s32 3, %v9627
          %v9629 = vrot.slane %v9609, %v9628
          %v9630 = vlaneseq
          %v9631 = vshrl.u32 %v9630, 7
          %v9632 = vsub.s32 4, %v9631
          %v9633 = vrot.slane %v9609, %v9632
          %v9634 = vlaneseq
          %v9635 = vshrl.u32 %v9634, 7
          %v9636 = vsub.s32 5, %v9635
          %v9637 = vrot.slane %v9609, %v9636
          %v9638 = vlaneseq
          %v9639 = vshrl.u32 %v9638, 7
          %v9640 = vsub.s32 6, %v9639
          %v9641 = vrot.slane %v9609, %v9640
          %v9642 = vlaneseq
          %v9643 = vshrl.u32 %v9642, 7
          %v9644 = vsub.s32 7, %v9643
          %v9645 = vrot.slane %v9609, %v9644
          %v9646 = vlaneseq
          %v9647 = vshrl.u32 %v9646, 7
          %v9648 = vsub.s32 0, %v9647
          %v9649 = vrot.slane %v9611, %v9648
          %v9650 = vlaneseq
          %v9651 = vshrl.u32 %v9650, 7
          %v9652 = vsub.s32 1, %v9651
          %v9653 = vrot.slane %v9611, %v9652
          %v9654 = vlaneseq
          %v9655 = vshrl.u32 %v9654, 7
          %v9656 = vsub.s32 2, %v9655
          %v9657 = vrot.slane %v9611, %v9656
          %v9658 = vlaneseq
          %v9659 = vshrl.u32 %v9658, 7
          %v9660 = vsub.s32 3, %v9659
          %v9661 = vrot.slane %v9611, %v9660
          %v9662 = vlaneseq
          %v9663 = vshrl.u32 %v9662, 7
          %v9664 = vsub.s32 4, %v9663
          %v9665 = vrot.slane %v9611, %v9664
          %v9666 = vlaneseq
          %v9667 = vshrl.u32 %v9666, 7
          %v9668 = vsub.s32 5, %v9667
          %v9669 = vrot.slane %v9611, %v9668
          %v9670 = vlaneseq
          %v9671 = vshrl.u32 %v9670, 7
          %v9672 = vsub.s32 6, %v9671
          %v9673 = vrot.slane %v9611, %v9672
          %v9674 = vlaneseq
          %v9675 = vshrl.u32 %v9674, 7
          %v9676 = vsub.s32 7, %v9675
          %v9677 = vrot.slane %v9611, %v9676
          %v9694 = vadd.f32 %v9593, %v9617
          %v9695 = vadd.f32 %v9594, %v9621
          %v9696 = vadd.f32 %v9595, %v9625
          %v9697 = vadd.f32 %v9596, %v9629
          %v9698 = vadd.f32 %v9597, %v9633
          %v9699 = vadd.f32 %v9598, %v9637
          %v9700 = vadd.f32 %v9599, %v9641
          %v9701 = vadd.f32 %v9600, %v9645
          %v9702 = vadd.f32 %v9601, %v9649
          %v9703 = vadd.f32 %v9602, %v9653
          %v9704 = vadd.f32 %v9603, %v9657
          %v9705 = vadd.f32 %v9604, %v9661
          %v9706 = vadd.f32 %v9605, %v9665
          %v9707 = vadd.f32 %v9606, %v9669
          %v9708 = vadd.f32 %v9607, %v9673
          %v9709 = vadd.f32 %v9608, %v9677
          %v9710 = vrot.slane %v9694, 4
          %v9711 = vadd.f32 %v9694, %v9710
          %v9712 = vrot.slane %v9711, 2
          %v9713 = vadd.f32 %v9711, %v9712
          %v9714 = vrot.slane %v9713, 1
          %v9715 = vadd.f32 %v9713, %v9714
          %v9716 = vrot.slane %v9695, 4
          %v9717 = vadd.f32 %v9695, %v9716
          %v9718 = vrot.slane %v9717, 2
          %v9719 = vadd.f32 %v9717, %v9718
          %v9720 = vrot.slane %v9719, 1
          %v9721 = vadd.f32 %v9719, %v9720
          %v9722 = vrot.slane %v9696, 4
          %v9723 = vadd.f32 %v9696, %v9722
          %v9724 = vrot.slane %v9723, 2
          %v9725 = vadd.f32 %v9723, %v9724
          %v9726 = vrot.slane %v9725, 1
          %v9727 = vadd.f32 %v9725, %v9726
          %v9728 = vrot.slane %v9697, 4
          %v9729 = vadd.f32 %v9697, %v9728
          %v9730 = vrot.slane %v9729, 2
          %v9731 = vadd.f32 %v9729, %v9730
          %v9732 = vrot.slane %v9731, 1
          %v9733 = vadd.f32 %v9731, %v9732
          %v9734 = vrot.slane %v9698, 4
          %v9735 = vadd.f32 %v9698, %v9734
          %v9736 = vrot.slane %v9735, 2
          %v9737 = vadd.f32 %v9735, %v9736
          %v9738 = vrot.slane %v9737, 1
          %v9739 = vadd.f32 %v9737, %v9738
          %v9740 = vrot.slane %v9699, 4
          %v9741 = vadd.f32 %v9699, %v9740
          %v9742 = vrot.slane %v9741, 2
          %v9743 = vadd.f32 %v9741, %v9742
          %v9744 = vrot.slane %v9743, 1
          %v9745 = vadd.f32 %v9743, %v9744
          %v9746 = vrot.slane %v9700, 4
          %v9747 = vadd.f32 %v9700, %v9746
          %v9748 = vrot.slane %v9747, 2
          %v9749 = vadd.f32 %v9747, %v9748
          %v9750 = vrot.slane %v9749, 1
          %v9751 = vadd.f32 %v9749, %v9750
          %v9752 = vrot.slane %v9701, 4
          %v9753 = vadd.f32 %v9701, %v9752
          %v9754 = vrot.slane %v9753, 2
          %v9755 = vadd.f32 %v9753, %v9754
          %v9756 = vrot.slane %v9755, 1
          %v9757 = vadd.f32 %v9755, %v9756
          %v9758 = vrot.slane %v9702, 4
          %v9759 = vadd.f32 %v9702, %v9758
          %v9760 = vrot.slane %v9759, 2
          %v9761 = vadd.f32 %v9759, %v9760
          %v9762 = vrot.slane %v9761, 1
          %v9763 = vadd.f32 %v9761, %v9762
          %v9764 = vrot.slane %v9703, 4
          %v9765 = vadd.f32 %v9703, %v9764
          %v9766 = vrot.slane %v9765, 2
          %v9767 = vadd.f32 %v9765, %v9766
          %v9768 = vrot.slane %v9767, 1
          %v9769 = vadd.f32 %v9767, %v9768
          %v9770 = vrot.slane %v9704, 4
          %v9771 = vadd.f32 %v9704, %v9770
          %v9772 = vrot.slane %v9771, 2
          %v9773 = vadd.f32 %v9771, %v9772
          %v9774 = vrot.slane %v9773, 1
          %v9775 = vadd.f32 %v9773, %v9774
          %v9776 = vrot.slane %v9705, 4
          %v9777 = vadd.f32 %v9705, %v9776
          %v9778 = vrot.slane %v9777, 2
          %v9779 = vadd.f32 %v9777, %v9778
          %v9780 = vrot.slane %v9779, 1
          %v9781 = vadd.f32 %v9779, %v9780
          %v9782 = vrot.slane %v9706, 4
          %v9783 = vadd.f32 %v9706, %v9782
          %v9784 = vrot.slane %v9783, 2
          %v9785 = vadd.f32 %v9783, %v9784
          %v9786 = vrot.slane %v9785, 1
          %v9787 = vadd.f32 %v9785, %v9786
          %v9788 = vrot.slane %v9707, 4
          %v9789 = vadd.f32 %v9707, %v9788
          %v9790 = vrot.slane %v9789, 2
          %v9791 = vadd.f32 %v9789, %v9790
          %v9792 = vrot.slane %v9791, 1
          %v9793 = vadd.f32 %v9791, %v9792
          %v9794 = vrot.slane %v9708, 4
          %v9795 = vadd.f32 %v9708, %v9794
          %v9796 = vrot.slane %v9795, 2
          %v9797 = vadd.f32 %v9795, %v9796
          %v9798 = vrot.slane %v9797, 1
          %v9799 = vadd.f32 %v9797, %v9798
          %v9800 = vrot.slane %v9709, 4
          %v9801 = vadd.f32 %v9709, %v9800
          %v9802 = vrot.slane %v9801, 2
          %v9803 = vadd.f32 %v9801, %v9802
          %v9804 = vrot.slane %v9803, 1
          %v9805 = vadd.f32 %v9803, %v9804
          %v9806 = vmul.f32 %v9715, %v3765
          %v9807 = vmul.f32 %v9721, %v3765
          %v9808 = vmul.f32 %v9727, %v3765
          %v9809 = vmul.f32 %v9733, %v3765
          %v9810 = vmul.f32 %v9739, %v3765
          %v9811 = vmul.f32 %v9745, %v3765
          %v9812 = vmul.f32 %v9751, %v3765
          %v9813 = vmul.f32 %v9757, %v3765
          %v9814 = vmul.f32 %v9763, %v3765
          %v9815 = vmul.f32 %v9769, %v3765
          %v9816 = vmul.f32 %v9775, %v3765
          %v9817 = vmul.f32 %v9781, %v3765
          %v9818 = vmul.f32 %v9787, %v3765
          %v9819 = vmul.f32 %v9793, %v3765
          %v9820 = vmul.f32 %v9799, %v3765
          %v9821 = vmul.f32 %v9805, %v3765
          %v9822 = vsub.f32 %v9694, %v9806
          %v9823 = vsub.f32 %v9695, %v9807
          %v9824 = vsub.f32 %v9696, %v9808
          %v9825 = vsub.f32 %v9697, %v9809
          %v9826 = vsub.f32 %v9698, %v9810
          %v9827 = vsub.f32 %v9699, %v9811
          %v9828 = vsub.f32 %v9700, %v9812
          %v9829 = vsub.f32 %v9701, %v9813
          %v9830 = vsub.f32 %v9702, %v9814
          %v9831 = vsub.f32 %v9703, %v9815
          %v9832 = vsub.f32 %v9704, %v9816
          %v9833 = vsub.f32 %v9705, %v9817
          %v9834 = vsub.f32 %v9706, %v9818
          %v9835 = vsub.f32 %v9707, %v9819
          %v9836 = vsub.f32 %v9708, %v9820
          %v9837 = vsub.f32 %v9709, %v9821
          %v9838 = vmul.f32 %v9822, %v9822
          %v9839 = vmul.f32 %v9823, %v9823
          %v9840 = vmul.f32 %v9824, %v9824
          %v9841 = vmul.f32 %v9825, %v9825
          %v9842 = vmul.f32 %v9826, %v9826
          %v9843 = vmul.f32 %v9827, %v9827
          %v9844 = vmul.f32 %v9828, %v9828
          %v9845 = vmul.f32 %v9829, %v9829
          %v9846 = vmul.f32 %v9830, %v9830
          %v9847 = vmul.f32 %v9831, %v9831
          %v9848 = vmul.f32 %v9832, %v9832
          %v9849 = vmul.f32 %v9833, %v9833
          %v9850 = vmul.f32 %v9834, %v9834
          %v9851 = vmul.f32 %v9835, %v9835
          %v9852 = vmul.f32 %v9836, %v9836
          %v9853 = vmul.f32 %v9837, %v9837
          %v9854 = vrot.slane %v9838, 4
          %v9855 = vadd.f32 %v9838, %v9854
          %v9856 = vrot.slane %v9855, 2
          %v9857 = vadd.f32 %v9855, %v9856
          %v9858 = vrot.slane %v9857, 1
          %v9859 = vadd.f32 %v9857, %v9858
          %v9860 = vrot.slane %v9839, 4
          %v9861 = vadd.f32 %v9839, %v9860
          %v9862 = vrot.slane %v9861, 2
          %v9863 = vadd.f32 %v9861, %v9862
          %v9864 = vrot.slane %v9863, 1
          %v9865 = vadd.f32 %v9863, %v9864
          %v9866 = vrot.slane %v9840, 4
          %v9867 = vadd.f32 %v9840, %v9866
          %v9868 = vrot.slane %v9867, 2
          %v9869 = vadd.f32 %v9867, %v9868
          %v9870 = vrot.slane %v9869, 1
          %v9871 = vadd.f32 %v9869, %v9870
          %v9872 = vrot.slane %v9841, 4
          %v9873 = vadd.f32 %v9841, %v9872
          %v9874 = vrot.slane %v9873, 2
          %v9875 = vadd.f32 %v9873, %v9874
          %v9876 = vrot.slane %v9875, 1
          %v9877 = vadd.f32 %v9875, %v9876
          %v9878 = vrot.slane %v9842, 4
          %v9879 = vadd.f32 %v9842, %v9878
          %v9880 = vrot.slane %v9879, 2
          %v9881 = vadd.f32 %v9879, %v9880
          %v9882 = vrot.slane %v9881, 1
          %v9883 = vadd.f32 %v9881, %v9882
          %v9884 = vrot.slane %v9843, 4
          %v9885 = vadd.f32 %v9843, %v9884
          %v9886 = vrot.slane %v9885, 2
          %v9887 = vadd.f32 %v9885, %v9886
          %v9888 = vrot.slane %v9887, 1
          %v9889 = vadd.f32 %v9887, %v9888
          %v9890 = vrot.slane %v9844, 4
          %v9891 = vadd.f32 %v9844, %v9890
          %v9892 = vrot.slane %v9891, 2
          %v9893 = vadd.f32 %v9891, %v9892
          %v9894 = vrot.slane %v9893, 1
          %v9895 = vadd.f32 %v9893, %v9894
          %v9896 = vrot.slane %v9845, 4
          %v9897 = vadd.f32 %v9845, %v9896
          %v9898 = vrot.slane %v9897, 2
          %v9899 = vadd.f32 %v9897, %v9898
          %v9900 = vrot.slane %v9899, 1
          %v9901 = vadd.f32 %v9899, %v9900
          %v9902 = vrot.slane %v9846, 4
          %v9903 = vadd.f32 %v9846, %v9902
          %v9904 = vrot.slane %v9903, 2
          %v9905 = vadd.f32 %v9903, %v9904
          %v9906 = vrot.slane %v9905, 1
          %v9907 = vadd.f32 %v9905, %v9906
          %v9908 = vrot.slane %v9847, 4
          %v9909 = vadd.f32 %v9847, %v9908
          %v9910 = vrot.slane %v9909, 2
          %v9911 = vadd.f32 %v9909, %v9910
          %v9912 = vrot.slane %v9911, 1
          %v9913 = vadd.f32 %v9911, %v9912
          %v9914 = vrot.slane %v9848, 4
          %v9915 = vadd.f32 %v9848, %v9914
          %v9916 = vrot.slane %v9915, 2
          %v9917 = vadd.f32 %v9915, %v9916
          %v9918 = vrot.slane %v9917, 1
          %v9919 = vadd.f32 %v9917, %v9918
          %v9920 = vrot.slane %v9849, 4
          %v9921 = vadd.f32 %v9849, %v9920
          %v9922 = vrot.slane %v9921, 2
          %v9923 = vadd.f32 %v9921, %v9922
          %v9924 = vrot.slane %v9923, 1
          %v9925 = vadd.f32 %v9923, %v9924
          %v9926 = vrot.slane %v9850, 4
          %v9927 = vadd.f32 %v9850, %v9926
          %v9928 = vrot.slane %v9927, 2
          %v9929 = vadd.f32 %v9927, %v9928
          %v9930 = vrot.slane %v9929, 1
          %v9931 = vadd.f32 %v9929, %v9930
          %v9932 = vrot.slane %v9851, 4
          %v9933 = vadd.f32 %v9851, %v9932
          %v9934 = vrot.slane %v9933, 2
          %v9935 = vadd.f32 %v9933, %v9934
          %v9936 = vrot.slane %v9935, 1
          %v9937 = vadd.f32 %v9935, %v9936
          %v9938 = vrot.slane %v9852, 4
          %v9939 = vadd.f32 %v9852, %v9938
          %v9940 = vrot.slane %v9939, 2
          %v9941 = vadd.f32 %v9939, %v9940
          %v9942 = vrot.slane %v9941, 1
          %v9943 = vadd.f32 %v9941, %v9942
          %v9944 = vrot.slane %v9853, 4
          %v9945 = vadd.f32 %v9853, %v9944
          %v9946 = vrot.slane %v9945, 2
          %v9947 = vadd.f32 %v9945, %v9946
          %v9948 = vrot.slane %v9947, 1
          %v9949 = vadd.f32 %v9947, %v9948
          %v9950 = vmul.f32 %v9859, %v3765
          %v9951 = vmul.f32 %v9865, %v3765
          %v9952 = vmul.f32 %v9871, %v3765
          %v9953 = vmul.f32 %v9877, %v3765
          %v9954 = vmul.f32 %v9883, %v3765
          %v9955 = vmul.f32 %v9889, %v3765
          %v9956 = vmul.f32 %v9895, %v3765
          %v9957 = vmul.f32 %v9901, %v3765
          %v9958 = vmul.f32 %v9907, %v3765
          %v9959 = vmul.f32 %v9913, %v3765
          %v9960 = vmul.f32 %v9919, %v3765
          %v9961 = vmul.f32 %v9925, %v3765
          %v9962 = vmul.f32 %v9931, %v3765
          %v9963 = vmul.f32 %v9937, %v3765
          %v9964 = vmul.f32 %v9943, %v3765
          %v9965 = vmul.f32 %v9949, %v3765
          %v9966 = vadd.f32 %v9950, 1e-05
          %v9967 = vadd.f32 %v9951, 1e-05
          %v9968 = vadd.f32 %v9952, 1e-05
          %v9969 = vadd.f32 %v9953, 1e-05
          %v9970 = vadd.f32 %v9954, 1e-05
          %v9971 = vadd.f32 %v9955, 1e-05
          %v9972 = vadd.f32 %v9956, 1e-05
          %v9973 = vadd.f32 %v9957, 1e-05
          %v9974 = vadd.f32 %v9958, 1e-05
          %v9975 = vadd.f32 %v9959, 1e-05
          %v9976 = vadd.f32 %v9960, 1e-05
          %v9977 = vadd.f32 %v9961, 1e-05
          %v9978 = vadd.f32 %v9962, 1e-05
          %v9979 = vadd.f32 %v9963, 1e-05
          %v9980 = vadd.f32 %v9964, 1e-05
          %v9981 = vadd.f32 %v9965, 1e-05
          %v9982 = vrsqrt.pop %v9966
          %v9983 = vrsqrt.pop %v9967
          %v9984 = vrsqrt.pop %v9968
          %v9985 = vrsqrt.pop %v9969
          %v9986 = vrsqrt.pop %v9970
          %v9987 = vrsqrt.pop %v9971
          %v9988 = vrsqrt.pop %v9972
          %v9989 = vrsqrt.pop %v9973
          %v9990 = vrsqrt.pop %v9974
          %v9991 = vrsqrt.pop %v9975
          %v9992 = vrsqrt.pop %v9976
          %v9993 = vrsqrt.pop %v9977
          %v9994 = vrsqrt.pop %v9978
          %v9995 = vrsqrt.pop %v9979
          %v9996 = vrsqrt.pop %v9980
          %v9997 = vrsqrt.pop %v9981
          %v9998 = vmul.f32 %v9822, %v9982
          %v9999 = vmul.f32 %v9823, %v9983
          %v10000 = vmul.f32 %v9824, %v9984
          %v10001 = vmul.f32 %v9825, %v9985
          %v10002 = vmul.f32 %v9826, %v9986
          %v10003 = vmul.f32 %v9827, %v9987
          %v10004 = vmul.f32 %v9828, %v9988
          %v10005 = vmul.f32 %v9829, %v9989
          %v10006 = vmul.f32 %v9830, %v9990
          %v10007 = vmul.f32 %v9831, %v9991
          %v10008 = vmul.f32 %v9832, %v9992
          %v10009 = vmul.f32 %v9833, %v9993
          %v10010 = vmul.f32 %v9834, %v9994
          %v10011 = vmul.f32 %v9835, %v9995
          %v10012 = vmul.f32 %v9836, %v9996
          %v10013 = vmul.f32 %v9837, %v9997
          %s10014 = scalar_lea.vmem [#allocation11], 1
          %v10015 = vld [vmem:[%s10014] ss:$4 sm:$0xff]
          %s10016 = scalar_lea.vmem [#allocation11], 33
          %v10017 = vld [vmem:[%s10016] ss:$4 sm:$0xff]
          %v10020 = vlaneseq
          %v10021 = vshrl.u32 %v10020, 7
          %v10022 = vsub.s32 0, %v10021
          %v10023 = vrot.slane %v10015, %v10022
          %v10024 = vlaneseq
          %v10025 = vshrl.u32 %v10024, 7
          %v10026 = vsub.s32 1, %v10025
          %v10027 = vrot.slane %v10015, %v10026
          %v10028 = vlaneseq
          %v10029 = vshrl.u32 %v10028, 7
          %v10030 = vsub.s32 2, %v10029
          %v10031 = vrot.slane %v10015, %v10030
          %v10032 = vlaneseq
          %v10033 = vshrl.u32 %v10032, 7
          %v10034 = vsub.s32 3, %v10033
          %v10035 = vrot.slane %v10015, %v10034
          %v10036 = vlaneseq
          %v10037 = vshrl.u32 %v10036, 7
          %v10038 = vsub.s32 4, %v10037
          %v10039 = vrot.slane %v10015, %v10038
          %v10040 = vlaneseq
          %v10041 = vshrl.u32 %v10040, 7
          %v10042 = vsub.s32 5, %v10041
          %v10043 = vrot.slane %v10015, %v10042
          %v10044 = vlaneseq
          %v10045 = vshrl.u32 %v10044, 7
          %v10046 = vsub.s32 6, %v10045
          %v10047 = vrot.slane %v10015, %v10046
          %v10048 = vlaneseq
          %v10049 = vshrl.u32 %v10048, 7
          %v10050 = vsub.s32 7, %v10049
          %v10051 = vrot.slane %v10015, %v10050
          %v10052 = vlaneseq
          %v10053 = vshrl.u32 %v10052, 7
          %v10054 = vsub.s32 0, %v10053
          %v10055 = vrot.slane %v10017, %v10054
          %v10056 = vlaneseq
          %v10057 = vshrl.u32 %v10056, 7
          %v10058 = vsub.s32 1, %v10057
          %v10059 = vrot.slane %v10017, %v10058
          %v10060 = vlaneseq
          %v10061 = vshrl.u32 %v10060, 7
          %v10062 = vsub.s32 2, %v10061
          %v10063 = vrot.slane %v10017, %v10062
          %v10064 = vlaneseq
          %v10065 = vshrl.u32 %v10064, 7
          %v10066 = vsub.s32 3, %v10065
          %v10067 = vrot.slane %v10017, %v10066
          %v10068 = vlaneseq
          %v10069 = vshrl.u32 %v10068, 7
          %v10070 = vsub.s32 4, %v10069
          %v10071 = vrot.slane %v10017, %v10070
          %v10072 = vlaneseq
          %v10073 = vshrl.u32 %v10072, 7
          %v10074 = vsub.s32 5, %v10073
          %v10075 = vrot.slane %v10017, %v10074
          %v10076 = vlaneseq
          %v10077 = vshrl.u32 %v10076, 7
          %v10078 = vsub.s32 6, %v10077
          %v10079 = vrot.slane %v10017, %v10078
          %v10080 = vlaneseq
          %v10081 = vshrl.u32 %v10080, 7
          %v10082 = vsub.s32 7, %v10081
          %v10083 = vrot.slane %v10017, %v10082
          %v10100 = vmul.f32 %v9998, %v10023
          %v10101 = vmul.f32 %v9999, %v10027
          %v10102 = vmul.f32 %v10000, %v10031
          %v10103 = vmul.f32 %v10001, %v10035
          %v10104 = vmul.f32 %v10002, %v10039
          %v10105 = vmul.f32 %v10003, %v10043
          %v10106 = vmul.f32 %v10004, %v10047
          %v10107 = vmul.f32 %v10005, %v10051
          %v10108 = vmul.f32 %v10006, %v10055
          %v10109 = vmul.f32 %v10007, %v10059
          %v10110 = vmul.f32 %v10008, %v10063
          %v10111 = vmul.f32 %v10009, %v10067
          %v10112 = vmul.f32 %v10010, %v10071
          %v10113 = vmul.f32 %v10011, %v10075
          %v10114 = vmul.f32 %v10012, %v10079
          %v10115 = vmul.f32 %v10013, %v10083
          %s10116 = scalar_lea.vmem [#allocation11], 2
          %v10117 = vld [vmem:[%s10116] ss:$4 sm:$0xff]
          %s10118 = scalar_lea.vmem [#allocation11], 34
          %v10119 = vld [vmem:[%s10118] ss:$4 sm:$0xff]
          %v10122 = vlaneseq
          %v10123 = vshrl.u32 %v10122, 7
          %v10124 = vsub.s32 0, %v10123
          %v10125 = vrot.slane %v10117, %v10124
          %v10126 = vlaneseq
          %v10127 = vshrl.u32 %v10126, 7
          %v10128 = vsub.s32 1, %v10127
          %v10129 = vrot.slane %v10117, %v10128
          %v10130 = vlaneseq
          %v10131 = vshrl.u32 %v10130, 7
          %v10132 = vsub.s32 2, %v10131
          %v10133 = vrot.slane %v10117, %v10132
          %v10134 = vlaneseq
          %v10135 = vshrl.u32 %v10134, 7
          %v10136 = vsub.s32 3, %v10135
          %v10137 = vrot.slane %v10117, %v10136
          %v10138 = vlaneseq
          %v10139 = vshrl.u32 %v10138, 7
          %v10140 = vsub.s32 4, %v10139
          %v10141 = vrot.slane %v10117, %v10140
          %v10142 = vlaneseq
          %v10143 = vshrl.u32 %v10142, 7
          %v10144 = vsub.s32 5, %v10143
          %v10145 = vrot.slane %v10117, %v10144
          %v10146 = vlaneseq
          %v10147 = vshrl.u32 %v10146, 7
          %v10148 = vsub.s32 6, %v10147
          %v10149 = vrot.slane %v10117, %v10148
          %v10150 = vlaneseq
          %v10151 = vshrl.u32 %v10150, 7
          %v10152 = vsub.s32 7, %v10151
          %v10153 = vrot.slane %v10117, %v10152
          %v10154 = vlaneseq
          %v10155 = vshrl.u32 %v10154, 7
          %v10156 = vsub.s32 0, %v10155
          %v10157 = vrot.slane %v10119, %v10156
          %v10158 = vlaneseq
          %v10159 = vshrl.u32 %v10158, 7
          %v10160 = vsub.s32 1, %v10159
          %v10161 = vrot.slane %v10119, %v10160
          %v10162 = vlaneseq
          %v10163 = vshrl.u32 %v10162, 7
          %v10164 = vsub.s32 2, %v10163
          %v10165 = vrot.slane %v10119, %v10164
          %v10166 = vlaneseq
          %v10167 = vshrl.u32 %v10166, 7
          %v10168 = vsub.s32 3, %v10167
          %v10169 = vrot.slane %v10119, %v10168
          %v10170 = vlaneseq
          %v10171 = vshrl.u32 %v10170, 7
          %v10172 = vsub.s32 4, %v10171
          %v10173 = vrot.slane %v10119, %v10172
          %v10174 = vlaneseq
          %v10175 = vshrl.u32 %v10174, 7
          %v10176 = vsub.s32 5, %v10175
          %v10177 = vrot.slane %v10119, %v10176
          %v10178 = vlaneseq
          %v10179 = vshrl.u32 %v10178, 7
          %v10180 = vsub.s32 6, %v10179
          %v10181 = vrot.slane %v10119, %v10180
          %v10182 = vlaneseq
          %v10183 = vshrl.u32 %v10182, 7
          %v10184 = vsub.s32 7, %v10183
          %v10185 = vrot.slane %v10119, %v10184
          %v10202 = vadd.f32 %v10100, %v10125
          %v10203 = vadd.f32 %v10101, %v10129
          %v10204 = vadd.f32 %v10102, %v10133
          %v10205 = vadd.f32 %v10103, %v10137
          %v10206 = vadd.f32 %v10104, %v10141
          %v10207 = vadd.f32 %v10105, %v10145
          %v10208 = vadd.f32 %v10106, %v10149
          %v10209 = vadd.f32 %v10107, %v10153
          %v10210 = vadd.f32 %v10108, %v10157
          %v10211 = vadd.f32 %v10109, %v10161
          %v10212 = vadd.f32 %v10110, %v10165
          %v10213 = vadd.f32 %v10111, %v10169
          %v10214 = vadd.f32 %v10112, %v10173
          %v10215 = vadd.f32 %v10113, %v10177
          %v10216 = vadd.f32 %v10114, %v10181
          %v10217 = vadd.f32 %v10115, %v10185
          %v10218 = vmax.f32 %v10202, 0.0
          %v10219 = vmax.f32 %v10203, 0.0
          %v10220 = vmax.f32 %v10204, 0.0
          %v10221 = vmax.f32 %v10205, 0.0
          %v10222 = vmax.f32 %v10206, 0.0
          %v10223 = vmax.f32 %v10207, 0.0
          %v10224 = vmax.f32 %v10208, 0.0
          %v10225 = vmax.f32 %v10209, 0.0
          %v10226 = vmax.f32 %v10210, 0.0
          %v10227 = vmax.f32 %v10211, 0.0
          %v10228 = vmax.f32 %v10212, 0.0
          %v10229 = vmax.f32 %v10213, 0.0
          %v10230 = vmax.f32 %v10214, 0.0
          %v10231 = vmax.f32 %v10215, 0.0
          %v10232 = vmax.f32 %v10216, 0.0
          %v10233 = vmax.f32 %v10217, 0.0
          %v10234 = vpack.c.bf16 %v10218, %v10218
          %v10235 = vpack.c.bf16 %v10219, %v10219
          %v10236 = vpack.c.bf16 %v10220, %v10220
          %v10237 = vpack.c.bf16 %v10221, %v10221
          %v10238 = vpack.c.bf16 %v10222, %v10222
          %v10239 = vpack.c.bf16 %v10223, %v10223
          %v10240 = vpack.c.bf16 %v10224, %v10224
          %v10241 = vpack.c.bf16 %v10225, %v10225
          %v10242 = vpack.c.bf16 %v10226, %v10226
          %v10243 = vpack.c.bf16 %v10227, %v10227
          %v10244 = vpack.c.bf16 %v10228, %v10228
          %v10245 = vpack.c.bf16 %v10229, %v10229
          %v10246 = vpack.c.bf16 %v10230, %v10230
          %v10247 = vpack.c.bf16 %v10231, %v10231
          %v10248 = vpack.c.bf16 %v10232, %v10232
          %v10249 = vpack.c.bf16 %v10233, %v10233
          %v10250 = vld [vmem:[%s6] sm:$0xf]
          %v10251 = vld [vmem:[%s6 + $0x4] sm:$0xf]
          %v10252 = vld [vmem:[%s6 + $0x8] sm:$0xf]
          %v10253 = vld [vmem:[%s6 + $0xc] sm:$0xf]
          %v10254 = vld [vmem:[%s6 + $0x10] sm:$0xf]
          %v10255 = vld [vmem:[%s6 + $0x14] sm:$0xf]
          %v10256 = vld [vmem:[%s6 + $0x18] sm:$0xf]
          %v10257 = vld [vmem:[%s6 + $0x1c] sm:$0xf]
          %v10258 = vld [vmem:[%s6 + $0x20] sm:$0xf]
          %v10259 = vld [vmem:[%s6 + $0x24] sm:$0xf]
          %v10260 = vld [vmem:[%s6 + $0x28] sm:$0xf]
          %v10261 = vld [vmem:[%s6 + $0x2c] sm:$0xf]
          %v10262 = vld [vmem:[%s6 + $0x30] sm:$0xf]
          %v10263 = vld [vmem:[%s6 + $0x34] sm:$0xf]
          %v10264 = vld [vmem:[%s6 + $0x38] sm:$0xf]
          %v10265 = vld [vmem:[%s6 + $0x3c] sm:$0xf]
          %v10266 = vld [vmem:[%s6 + $0x40] sm:$0xf]
          %v10267 = vld [vmem:[%s6 + $0x44] sm:$0xf]
          %v10268 = vld [vmem:[%s6 + $0x48] sm:$0xf]
          %v10269 = vld [vmem:[%s6 + $0x4c] sm:$0xf]
          %v10270 = vld [vmem:[%s6 + $0x50] sm:$0xf]
          %v10271 = vld [vmem:[%s6 + $0x54] sm:$0xf]
          %v10272 = vld [vmem:[%s6 + $0x58] sm:$0xf]
          %v10273 = vld [vmem:[%s6 + $0x5c] sm:$0xf]
          %v10274 = vld [vmem:[%s6 + $0x60] sm:$0xf]
          %v10275 = vld [vmem:[%s6 + $0x64] sm:$0xf]
          %v10276 = vld [vmem:[%s6 + $0x68] sm:$0xf]
          %v10277 = vld [vmem:[%s6 + $0x6c] sm:$0xf]
          %v10278 = vld [vmem:[%s6 + $0x70] sm:$0xf]
          %v10279 = vld [vmem:[%s6 + $0x74] sm:$0xf]
          %v10280 = vld [vmem:[%s6 + $0x78] sm:$0xf]
          %v10281 = vld [vmem:[%s6 + $0x7c] sm:$0xf]
          %v10282 = vld [vmem:[%s6 + $0x80] sm:$0xf]
          %v10283 = vld [vmem:[%s6 + $0x84] sm:$0xf]
          %v10284 = vld [vmem:[%s6 + $0x88] sm:$0xf]
          %v10285 = vld [vmem:[%s6 + $0x8c] sm:$0xf]
          %v10286 = vld [vmem:[%s6 + $0x90] sm:$0xf]
          %v10287 = vld [vmem:[%s6 + $0x94] sm:$0xf]
          %v10288 = vld [vmem:[%s6 + $0x98] sm:$0xf]
          %v10289 = vld [vmem:[%s6 + $0x9c] sm:$0xf]
          %v10290 = vld [vmem:[%s6 + $0xa0] sm:$0xf]
          %v10291 = vld [vmem:[%s6 + $0xa4] sm:$0xf]
          %v10292 = vld [vmem:[%s6 + $0xa8] sm:$0xf]
          %v10293 = vld [vmem:[%s6 + $0xac] sm:$0xf]
          %v10294 = vld [vmem:[%s6 + $0xb0] sm:$0xf]
          %v10295 = vld [vmem:[%s6 + $0xb4] sm:$0xf]
          %v10296 = vld [vmem:[%s6 + $0xb8] sm:$0xf]
          %v10297 = vld [vmem:[%s6 + $0xbc] sm:$0xf]
          %v10298 = vld [vmem:[%s6 + $0xc0] sm:$0xf]
          %v10299 = vld [vmem:[%s6 + $0xc4] sm:$0xf]
          %v10300 = vld [vmem:[%s6 + $0xc8] sm:$0xf]
          %v10301 = vld [vmem:[%s6 + $0xcc] sm:$0xf]
          %v10302 = vld [vmem:[%s6 + $0xd0] sm:$0xf]
          %v10303 = vld [vmem:[%s6 + $0xd4] sm:$0xf]
          %v10304 = vld [vmem:[%s6 + $0xd8] sm:$0xf]
          %v10305 = vld [vmem:[%s6 + $0xdc] sm:$0xf]
          %v10306 = vld [vmem:[%s6 + $0xe0] sm:$0xf]
          %v10307 = vld [vmem:[%s6 + $0xe4] sm:$0xf]
          %v10308 = vld [vmem:[%s6 + $0xe8] sm:$0xf]
          %v10309 = vld [vmem:[%s6 + $0xec] sm:$0xf]
          %v10310 = vld [vmem:[%s6 + $0xf0] sm:$0xf]
          %v10311 = vld [vmem:[%s6 + $0xf4] sm:$0xf]
          %v10312 = vld [vmem:[%s6 + $0xf8] sm:$0xf]
          %v10313 = vld [vmem:[%s6 + $0xfc] sm:$0xf]
          %v10314 = vld [vmem:[%s6 + $0x100] sm:$0xf]
          %v10315 = vld [vmem:[%s6 + $0x104] sm:$0xf]
          %v10316 = vld [vmem:[%s6 + $0x108] sm:$0xf]
          %v10317 = vld [vmem:[%s6 + $0x10c] sm:$0xf]
          %v10318 = vld [vmem:[%s6 + $0x110] sm:$0xf]
          %v10319 = vld [vmem:[%s6 + $0x114] sm:$0xf]
          %v10320 = vld [vmem:[%s6 + $0x118] sm:$0xf]
          %v10321 = vld [vmem:[%s6 + $0x11c] sm:$0xf]
          %v10322 = vld [vmem:[%s6 + $0x120] sm:$0xf]
          %v10323 = vld [vmem:[%s6 + $0x124] sm:$0xf]
          %v10324 = vld [vmem:[%s6 + $0x128] sm:$0xf]
          %v10325 = vld [vmem:[%s6 + $0x12c] sm:$0xf]
          %v10326 = vld [vmem:[%s6 + $0x130] sm:$0xf]
          %v10327 = vld [vmem:[%s6 + $0x134] sm:$0xf]
          %v10328 = vld [vmem:[%s6 + $0x138] sm:$0xf]
          %v10329 = vld [vmem:[%s6 + $0x13c] sm:$0xf]
          %v10330 = vld [vmem:[%s6 + $0x140] sm:$0xf]
          %v10331 = vld [vmem:[%s6 + $0x144] sm:$0xf]
          %v10332 = vld [vmem:[%s6 + $0x148] sm:$0xf]
          %v10333 = vld [vmem:[%s6 + $0x14c] sm:$0xf]
          %v10334 = vld [vmem:[%s6 + $0x150] sm:$0xf]
          %v10335 = vld [vmem:[%s6 + $0x154] sm:$0xf]
          %v10336 = vld [vmem:[%s6 + $0x158] sm:$0xf]
          %v10337 = vld [vmem:[%s6 + $0x15c] sm:$0xf]
          %v10338 = vld [vmem:[%s6 + $0x160] sm:$0xf]
          %v10339 = vld [vmem:[%s6 + $0x164] sm:$0xf]
          %v10340 = vld [vmem:[%s6 + $0x168] sm:$0xf]
          %v10341 = vld [vmem:[%s6 + $0x16c] sm:$0xf]
          %v10342 = vld [vmem:[%s6 + $0x170] sm:$0xf]
          %v10343 = vld [vmem:[%s6 + $0x174] sm:$0xf]
          %v10344 = vld [vmem:[%s6 + $0x178] sm:$0xf]
          %v10345 = vld [vmem:[%s6 + $0x17c] sm:$0xf]
          %v10346 = vld [vmem:[%s6 + $0x180] sm:$0xf]
          %v10347 = vld [vmem:[%s6 + $0x184] sm:$0xf]
          %v10348 = vld [vmem:[%s6 + $0x188] sm:$0xf]
          %v10349 = vld [vmem:[%s6 + $0x18c] sm:$0xf]
          %v10350 = vld [vmem:[%s6 + $0x190] sm:$0xf]
          %v10351 = vld [vmem:[%s6 + $0x194] sm:$0xf]
          %v10352 = vld [vmem:[%s6 + $0x198] sm:$0xf]
          %v10353 = vld [vmem:[%s6 + $0x19c] sm:$0xf]
          %v10354 = vld [vmem:[%s6 + $0x1a0] sm:$0xf]
          %v10355 = vld [vmem:[%s6 + $0x1a4] sm:$0xf]
          %v10356 = vld [vmem:[%s6 + $0x1a8] sm:$0xf]
          %v10357 = vld [vmem:[%s6 + $0x1ac] sm:$0xf]
          %v10358 = vld [vmem:[%s6 + $0x1b0] sm:$0xf]
          %v10359 = vld [vmem:[%s6 + $0x1b4] sm:$0xf]
          %v10360 = vld [vmem:[%s6 + $0x1b8] sm:$0xf]
          %v10361 = vld [vmem:[%s6 + $0x1bc] sm:$0xf]
          %v10362 = vld [vmem:[%s6 + $0x1c0] sm:$0xf]
          %v10363 = vld [vmem:[%s6 + $0x1c4] sm:$0xf]
          %v10364 = vld [vmem:[%s6 + $0x1c8] sm:$0xf]
          %v10365 = vld [vmem:[%s6 + $0x1cc] sm:$0xf]
          %v10366 = vld [vmem:[%s6 + $0x1d0] sm:$0xf]
          %v10367 = vld [vmem:[%s6 + $0x1d4] sm:$0xf]
          %v10368 = vld [vmem:[%s6 + $0x1d8] sm:$0xf]
          %v10369 = vld [vmem:[%s6 + $0x1dc] sm:$0xf]
          %v10370 = vld [vmem:[%s6 + $0x1e0] sm:$0xf]
          %v10371 = vld [vmem:[%s6 + $0x1e4] sm:$0xf]
          %v10372 = vld [vmem:[%s6 + $0x1e8] sm:$0xf]
          %v10373 = vld [vmem:[%s6 + $0x1ec] sm:$0xf]
          %v10374 = vld [vmem:[%s6 + $0x1f0] sm:$0xf]
          %v10375 = vld [vmem:[%s6 + $0x1f4] sm:$0xf]
          %v10376 = vld [vmem:[%s6 + $0x1f8] sm:$0xf]
          %v10377 = vld [vmem:[%s6 + $0x1fc] sm:$0xf]
          %v10378 = vld [vmem:[%s6 + $0x200] sm:$0xf]
          %v10379 = vld [vmem:[%s6 + $0x204] sm:$0xf]
          %v10380 = vld [vmem:[%s6 + $0x208] sm:$0xf]
          %v10381 = vld [vmem:[%s6 + $0x20c] sm:$0xf]
          %v10382 = vld [vmem:[%s6 + $0x210] sm:$0xf]
          %v10383 = vld [vmem:[%s6 + $0x214] sm:$0xf]
          %v10384 = vld [vmem:[%s6 + $0x218] sm:$0xf]
          %v10385 = vld [vmem:[%s6 + $0x21c] sm:$0xf]
          %v10386 = vld [vmem:[%s6 + $0x220] sm:$0xf]
          %v10387 = vld [vmem:[%s6 + $0x224] sm:$0xf]
          %v10388 = vld [vmem:[%s6 + $0x228] sm:$0xf]
          %v10389 = vld [vmem:[%s6 + $0x22c] sm:$0xf]
          %v10390 = vld [vmem:[%s6 + $0x230] sm:$0xf]
          %v10391 = vld [vmem:[%s6 + $0x234] sm:$0xf]
          %v10392 = vld [vmem:[%s6 + $0x238] sm:$0xf]
          %v10393 = vld [vmem:[%s6 + $0x23c] sm:$0xf]
          %v10394 = vld [vmem:[%s6 + $0x240] sm:$0xf]
          %v10395 = vld [vmem:[%s6 + $0x244] sm:$0xf]
          %v10396 = vld [vmem:[%s6 + $0x248] sm:$0xf]
          %v10397 = vld [vmem:[%s6 + $0x24c] sm:$0xf]
          %v10398 = vld [vmem:[%s6 + $0x250] sm:$0xf]
          %v10399 = vld [vmem:[%s6 + $0x254] sm:$0xf]
          %v10400 = vld [vmem:[%s6 + $0x258] sm:$0xf]
          %v10401 = vld [vmem:[%s6 + $0x25c] sm:$0xf]
          %v10402 = vld [vmem:[%s6 + $0x260] sm:$0xf]
          %v10403 = vld [vmem:[%s6 + $0x264] sm:$0xf]
          %v10404 = vld [vmem:[%s6 + $0x268] sm:$0xf]
          %v10405 = vld [vmem:[%s6 + $0x26c] sm:$0xf]
          %v10406 = vld [vmem:[%s6 + $0x270] sm:$0xf]
          %v10407 = vld [vmem:[%s6 + $0x274] sm:$0xf]
          %v10408 = vld [vmem:[%s6 + $0x278] sm:$0xf]
          %v10409 = vld [vmem:[%s6 + $0x27c] sm:$0xf]
          %v10410 = vld [vmem:[%s6 + $0x280] sm:$0xf]
          %v10411 = vld [vmem:[%s6 + $0x284] sm:$0xf]
          %v10412 = vld [vmem:[%s6 + $0x288] sm:$0xf]
          %v10413 = vld [vmem:[%s6 + $0x28c] sm:$0xf]
          %v10414 = vld [vmem:[%s6 + $0x290] sm:$0xf]
          %v10415 = vld [vmem:[%s6 + $0x294] sm:$0xf]
          %v10416 = vld [vmem:[%s6 + $0x298] sm:$0xf]
          %v10417 = vld [vmem:[%s6 + $0x29c] sm:$0xf]
          %v10418 = vld [vmem:[%s6 + $0x2a0] sm:$0xf]
          %v10419 = vld [vmem:[%s6 + $0x2a4] sm:$0xf]
          %v10420 = vld [vmem:[%s6 + $0x2a8] sm:$0xf]
          %v10421 = vld [vmem:[%s6 + $0x2ac] sm:$0xf]
          %v10422 = vld [vmem:[%s6 + $0x2b0] sm:$0xf]
          %v10423 = vld [vmem:[%s6 + $0x2b4] sm:$0xf]
          %v10424 = vld [vmem:[%s6 + $0x2b8] sm:$0xf]
          %v10425 = vld [vmem:[%s6 + $0x2bc] sm:$0xf]
          %v10426 = vld [vmem:[%s6 + $0x2c0] sm:$0xf]
          %v10427 = vld [vmem:[%s6 + $0x2c4] sm:$0xf]
          %v10428 = vld [vmem:[%s6 + $0x2c8] sm:$0xf]
          %v10429 = vld [vmem:[%s6 + $0x2cc] sm:$0xf]
          %v10430 = vld [vmem:[%s6 + $0x2d0] sm:$0xf]
          %v10431 = vld [vmem:[%s6 + $0x2d4] sm:$0xf]
          %v10432 = vld [vmem:[%s6 + $0x2d8] sm:$0xf]
          %v10433 = vld [vmem:[%s6 + $0x2dc] sm:$0xf]
          %v10434 = vld [vmem:[%s6 + $0x2e0] sm:$0xf]
          %v10435 = vld [vmem:[%s6 + $0x2e4] sm:$0xf]
          %v10436 = vld [vmem:[%s6 + $0x2e8] sm:$0xf]
          %v10437 = vld [vmem:[%s6 + $0x2ec] sm:$0xf]
          %v10438 = vld [vmem:[%s6 + $0x2f0] sm:$0xf]
          %v10439 = vld [vmem:[%s6 + $0x2f4] sm:$0xf]
          %v10440 = vld [vmem:[%s6 + $0x2f8] sm:$0xf]
          %v10441 = vld [vmem:[%s6 + $0x2fc] sm:$0xf]
          %v10442 = vld [vmem:[%s6 + $0x300] sm:$0xf]
          %v10443 = vld [vmem:[%s6 + $0x304] sm:$0xf]
          %v10444 = vld [vmem:[%s6 + $0x308] sm:$0xf]
          %v10445 = vld [vmem:[%s6 + $0x30c] sm:$0xf]
          %v10446 = vld [vmem:[%s6 + $0x310] sm:$0xf]
          %v10447 = vld [vmem:[%s6 + $0x314] sm:$0xf]
          %v10448 = vld [vmem:[%s6 + $0x318] sm:$0xf]
          %v10449 = vld [vmem:[%s6 + $0x31c] sm:$0xf]
          %v10450 = vld [vmem:[%s6 + $0x320] sm:$0xf]
          %v10451 = vld [vmem:[%s6 + $0x324] sm:$0xf]
          %v10452 = vld [vmem:[%s6 + $0x328] sm:$0xf]
          %v10453 = vld [vmem:[%s6 + $0x32c] sm:$0xf]
          %v10454 = vld [vmem:[%s6 + $0x330] sm:$0xf]
          %v10455 = vld [vmem:[%s6 + $0x334] sm:$0xf]
          %v10456 = vld [vmem:[%s6 + $0x338] sm:$0xf]
          %v10457 = vld [vmem:[%s6 + $0x33c] sm:$0xf]
          %v10458 = vld [vmem:[%s6 + $0x340] sm:$0xf]
          %v10459 = vld [vmem:[%s6 + $0x344] sm:$0xf]
          %v10460 = vld [vmem:[%s6 + $0x348] sm:$0xf]
          %v10461 = vld [vmem:[%s6 + $0x34c] sm:$0xf]
          %v10462 = vld [vmem:[%s6 + $0x350] sm:$0xf]
          %v10463 = vld [vmem:[%s6 + $0x354] sm:$0xf]
          %v10464 = vld [vmem:[%s6 + $0x358] sm:$0xf]
          %v10465 = vld [vmem:[%s6 + $0x35c] sm:$0xf]
          %v10466 = vld [vmem:[%s6 + $0x360] sm:$0xf]
          %v10467 = vld [vmem:[%s6 + $0x364] sm:$0xf]
          %v10468 = vld [vmem:[%s6 + $0x368] sm:$0xf]
          %v10469 = vld [vmem:[%s6 + $0x36c] sm:$0xf]
          %v10470 = vld [vmem:[%s6 + $0x370] sm:$0xf]
          %v10471 = vld [vmem:[%s6 + $0x374] sm:$0xf]
          %v10472 = vld [vmem:[%s6 + $0x378] sm:$0xf]
          %v10473 = vld [vmem:[%s6 + $0x37c] sm:$0xf]
          %v10474 = vld [vmem:[%s6 + $0x380] sm:$0xf]
          %v10475 = vld [vmem:[%s6 + $0x384] sm:$0xf]
          %v10476 = vld [vmem:[%s6 + $0x388] sm:$0xf]
          %v10477 = vld [vmem:[%s6 + $0x38c] sm:$0xf]
          %v10478 = vld [vmem:[%s6 + $0x390] sm:$0xf]
          %v10479 = vld [vmem:[%s6 + $0x394] sm:$0xf]
          %v10480 = vld [vmem:[%s6 + $0x398] sm:$0xf]
          %v10481 = vld [vmem:[%s6 + $0x39c] sm:$0xf]
          %v10482 = vld [vmem:[%s6 + $0x3a0] sm:$0xf]
          %v10483 = vld [vmem:[%s6 + $0x3a4] sm:$0xf]
          %v10484 = vld [vmem:[%s6 + $0x3a8] sm:$0xf]
          %v10485 = vld [vmem:[%s6 + $0x3ac] sm:$0xf]
          %v10486 = vld [vmem:[%s6 + $0x3b0] sm:$0xf]
          %v10487 = vld [vmem:[%s6 + $0x3b4] sm:$0xf]
          %v10488 = vld [vmem:[%s6 + $0x3b8] sm:$0xf]
          %v10489 = vld [vmem:[%s6 + $0x3bc] sm:$0xf]
          %v10490 = vld [vmem:[%s6 + $0x3c0] sm:$0xf]
          %v10491 = vld [vmem:[%s6 + $0x3c4] sm:$0xf]
          %v10492 = vld [vmem:[%s6 + $0x3c8] sm:$0xf]
          %v10493 = vld [vmem:[%s6 + $0x3cc] sm:$0xf]
          %v10494 = vld [vmem:[%s6 + $0x3d0] sm:$0xf]
          %v10495 = vld [vmem:[%s6 + $0x3d4] sm:$0xf]
          %v10496 = vld [vmem:[%s6 + $0x3d8] sm:$0xf]
          %v10497 = vld [vmem:[%s6 + $0x3dc] sm:$0xf]
          %v10498 = vld [vmem:[%s6 + $0x3e0] sm:$0xf]
          %v10499 = vld [vmem:[%s6 + $0x3e4] sm:$0xf]
          %v10500 = vld [vmem:[%s6 + $0x3e8] sm:$0xf]
          %v10501 = vld [vmem:[%s6 + $0x3ec] sm:$0xf]
          %v10502 = vld [vmem:[%s6 + $0x3f0] sm:$0xf]
          %v10503 = vld [vmem:[%s6 + $0x3f4] sm:$0xf]
          %v10504 = vld [vmem:[%s6 + $0x3f8] sm:$0xf]
          %v10505 = vld [vmem:[%s6 + $0x3fc] sm:$0xf]
          %v10506 = vld [vmem:[#allocation12] sm:$0x1]
          %v10508 = vlaneseq
          %v10509 = vshrl.u32 %v10508, 7
          %v10510 = vsub.s32 0, %v10509
          %v10511 = vrot.slane %v10506, %v10510
          %v10769 = vunpack.c.l.b16 %v10250
          %v10770 = vunpack.c.l.b16 %v10251
          %v10771 = vunpack.c.l.b16 %v10252
          %v10772 = vunpack.c.l.b16 %v10253
          %v10773 = vunpack.c.l.b16 %v10254
          %v10774 = vunpack.c.l.b16 %v10255
          %v10775 = vunpack.c.l.b16 %v10256
          %v10776 = vunpack.c.l.b16 %v10257
          %v10777 = vunpack.c.l.b16 %v10258
          %v10778 = vunpack.c.l.b16 %v10259
          %v10779 = vunpack.c.l.b16 %v10260
          %v10780 = vunpack.c.l.b16 %v10261
          %v10781 = vunpack.c.l.b16 %v10262
          %v10782 = vunpack.c.l.b16 %v10263
          %v10783 = vunpack.c.l.b16 %v10264
          %v10784 = vunpack.c.l.b16 %v10265
          %v10785 = vunpack.c.l.b16 %v10266
          %v10786 = vunpack.c.l.b16 %v10267
          %v10787 = vunpack.c.l.b16 %v10268
          %v10788 = vunpack.c.l.b16 %v10269
          %v10789 = vunpack.c.l.b16 %v10270
          %v10790 = vunpack.c.l.b16 %v10271
          %v10791 = vunpack.c.l.b16 %v10272
          %v10792 = vunpack.c.l.b16 %v10273
          %v10793 = vunpack.c.l.b16 %v10274
          %v10794 = vunpack.c.l.b16 %v10275
          %v10795 = vunpack.c.l.b16 %v10276
          %v10796 = vunpack.c.l.b16 %v10277
          %v10797 = vunpack.c.l.b16 %v10278
          %v10798 = vunpack.c.l.b16 %v10279
          %v10799 = vunpack.c.l.b16 %v10280
          %v10800 = vunpack.c.l.b16 %v10281
          %v10801 = vunpack.c.l.b16 %v10282
          %v10802 = vunpack.c.l.b16 %v10283
          %v10803 = vunpack.c.l.b16 %v10284
          %v10804 = vunpack.c.l.b16 %v10285
          %v10805 = vunpack.c.l.b16 %v10286
          %v10806 = vunpack.c.l.b16 %v10287
          %v10807 = vunpack.c.l.b16 %v10288
          %v10808 = vunpack.c.l.b16 %v10289
          %v10809 = vunpack.c.l.b16 %v10290
          %v10810 = vunpack.c.l.b16 %v10291
          %v10811 = vunpack.c.l.b16 %v10292
          %v10812 = vunpack.c.l.b16 %v10293
          %v10813 = vunpack.c.l.b16 %v10294
          %v10814 = vunpack.c.l.b16 %v10295
          %v10815 = vunpack.c.l.b16 %v10296
          %v10816 = vunpack.c.l.b16 %v10297
          %v10817 = vunpack.c.l.b16 %v10298
          %v10818 = vunpack.c.l.b16 %v10299
          %v10819 = vunpack.c.l.b16 %v10300
          %v10820 = vunpack.c.l.b16 %v10301
          %v10821 = vunpack.c.l.b16 %v10302
          %v10822 = vunpack.c.l.b16 %v10303
          %v10823 = vunpack.c.l.b16 %v10304
          %v10824 = vunpack.c.l.b16 %v10305
          %v10825 = vunpack.c.l.b16 %v10306
          %v10826 = vunpack.c.l.b16 %v10307
          %v10827 = vunpack.c.l.b16 %v10308
          %v10828 = vunpack.c.l.b16 %v10309
          %v10829 = vunpack.c.l.b16 %v10310
          %v10830 = vunpack.c.l.b16 %v10311
          %v10831 = vunpack.c.l.b16 %v10312
          %v10832 = vunpack.c.l.b16 %v10313
          %v10833 = vunpack.c.l.b16 %v10314
          %v10834 = vunpack.c.l.b16 %v10315
          %v10835 = vunpack.c.l.b16 %v10316
          %v10836 = vunpack.c.l.b16 %v10317
          %v10837 = vunpack.c.l.b16 %v10318
          %v10838 = vunpack.c.l.b16 %v10319
          %v10839 = vunpack.c.l.b16 %v10320
          %v10840 = vunpack.c.l.b16 %v10321
          %v10841 = vunpack.c.l.b16 %v10322
          %v10842 = vunpack.c.l.b16 %v10323
          %v10843 = vunpack.c.l.b16 %v10324
          %v10844 = vunpack.c.l.b16 %v10325
          %v10845 = vunpack.c.l.b16 %v10326
          %v10846 = vunpack.c.l.b16 %v10327
          %v10847 = vunpack.c.l.b16 %v10328
          %v10848 = vunpack.c.l.b16 %v10329
          %v10849 = vunpack.c.l.b16 %v10330
          %v10850 = vunpack.c.l.b16 %v10331
          %v10851 = vunpack.c.l.b16 %v10332
          %v10852 = vunpack.c.l.b16 %v10333
          %v10853 = vunpack.c.l.b16 %v10334
          %v10854 = vunpack.c.l.b16 %v10335
          %v10855 = vunpack.c.l.b16 %v10336
          %v10856 = vunpack.c.l.b16 %v10337
          %v10857 = vunpack.c.l.b16 %v10338
          %v10858 = vunpack.c.l.b16 %v10339
          %v10859 = vunpack.c.l.b16 %v10340
          %v10860 = vunpack.c.l.b16 %v10341
          %v10861 = vunpack.c.l.b16 %v10342
          %v10862 = vunpack.c.l.b16 %v10343
          %v10863 = vunpack.c.l.b16 %v10344
          %v10864 = vunpack.c.l.b16 %v10345
          %v10865 = vunpack.c.l.b16 %v10346
          %v10866 = vunpack.c.l.b16 %v10347
          %v10867 = vunpack.c.l.b16 %v10348
          %v10868 = vunpack.c.l.b16 %v10349
          %v10869 = vunpack.c.l.b16 %v10350
          %v10870 = vunpack.c.l.b16 %v10351
          %v10871 = vunpack.c.l.b16 %v10352
          %v10872 = vunpack.c.l.b16 %v10353
          %v10873 = vunpack.c.l.b16 %v10354
          %v10874 = vunpack.c.l.b16 %v10355
          %v10875 = vunpack.c.l.b16 %v10356
          %v10876 = vunpack.c.l.b16 %v10357
          %v10877 = vunpack.c.l.b16 %v10358
          %v10878 = vunpack.c.l.b16 %v10359
          %v10879 = vunpack.c.l.b16 %v10360
          %v10880 = vunpack.c.l.b16 %v10361
          %v10881 = vunpack.c.l.b16 %v10362
          %v10882 = vunpack.c.l.b16 %v10363
          %v10883 = vunpack.c.l.b16 %v10364
          %v10884 = vunpack.c.l.b16 %v10365
          %v10885 = vunpack.c.l.b16 %v10366
          %v10886 = vunpack.c.l.b16 %v10367
          %v10887 = vunpack.c.l.b16 %v10368
          %v10888 = vunpack.c.l.b16 %v10369
          %v10889 = vunpack.c.l.b16 %v10370
          %v10890 = vunpack.c.l.b16 %v10371
          %v10891 = vunpack.c.l.b16 %v10372
          %v10892 = vunpack.c.l.b16 %v10373
          %v10893 = vunpack.c.l.b16 %v10374
          %v10894 = vunpack.c.l.b16 %v10375
          %v10895 = vunpack.c.l.b16 %v10376
          %v10896 = vunpack.c.l.b16 %v10377
          %v10897 = vunpack.c.l.b16 %v10378
          %v10898 = vunpack.c.l.b16 %v10379
          %v10899 = vunpack.c.l.b16 %v10380
          %v10900 = vunpack.c.l.b16 %v10381
          %v10901 = vunpack.c.l.b16 %v10382
          %v10902 = vunpack.c.l.b16 %v10383
          %v10903 = vunpack.c.l.b16 %v10384
          %v10904 = vunpack.c.l.b16 %v10385
          %v10905 = vunpack.c.l.b16 %v10386
          %v10906 = vunpack.c.l.b16 %v10387
          %v10907 = vunpack.c.l.b16 %v10388
          %v10908 = vunpack.c.l.b16 %v10389
          %v10909 = vunpack.c.l.b16 %v10390
          %v10910 = vunpack.c.l.b16 %v10391
          %v10911 = vunpack.c.l.b16 %v10392
          %v10912 = vunpack.c.l.b16 %v10393
          %v10913 = vunpack.c.l.b16 %v10394
          %v10914 = vunpack.c.l.b16 %v10395
          %v10915 = vunpack.c.l.b16 %v10396
          %v10916 = vunpack.c.l.b16 %v10397
          %v10917 = vunpack.c.l.b16 %v10398
          %v10918 = vunpack.c.l.b16 %v10399
          %v10919 = vunpack.c.l.b16 %v10400
          %v10920 = vunpack.c.l.b16 %v10401
          %v10921 = vunpack.c.l.b16 %v10402
          %v10922 = vunpack.c.l.b16 %v10403
          %v10923 = vunpack.c.l.b16 %v10404
          %v10924 = vunpack.c.l.b16 %v10405
          %v10925 = vunpack.c.l.b16 %v10406
          %v10926 = vunpack.c.l.b16 %v10407
          %v10927 = vunpack.c.l.b16 %v10408
          %v10928 = vunpack.c.l.b16 %v10409
          %v10929 = vunpack.c.l.b16 %v10410
          %v10930 = vunpack.c.l.b16 %v10411
          %v10931 = vunpack.c.l.b16 %v10412
          %v10932 = vunpack.c.l.b16 %v10413
          %v10933 = vunpack.c.l.b16 %v10414
          %v10934 = vunpack.c.l.b16 %v10415
          %v10935 = vunpack.c.l.b16 %v10416
          %v10936 = vunpack.c.l.b16 %v10417
          %v10937 = vunpack.c.l.b16 %v10418
          %v10938 = vunpack.c.l.b16 %v10419
          %v10939 = vunpack.c.l.b16 %v10420
          %v10940 = vunpack.c.l.b16 %v10421
          %v10941 = vunpack.c.l.b16 %v10422
          %v10942 = vunpack.c.l.b16 %v10423
          %v10943 = vunpack.c.l.b16 %v10424
          %v10944 = vunpack.c.l.b16 %v10425
          %v10945 = vunpack.c.l.b16 %v10426
          %v10946 = vunpack.c.l.b16 %v10427
          %v10947 = vunpack.c.l.b16 %v10428
          %v10948 = vunpack.c.l.b16 %v10429
          %v10949 = vunpack.c.l.b16 %v10430
          %v10950 = vunpack.c.l.b16 %v10431
          %v10951 = vunpack.c.l.b16 %v10432
          %v10952 = vunpack.c.l.b16 %v10433
          %v10953 = vunpack.c.l.b16 %v10434
          %v10954 = vunpack.c.l.b16 %v10435
          %v10955 = vunpack.c.l.b16 %v10436
          %v10956 = vunpack.c.l.b16 %v10437
          %v10957 = vunpack.c.l.b16 %v10438
          %v10958 = vunpack.c.l.b16 %v10439
          %v10959 = vunpack.c.l.b16 %v10440
          %v10960 = vunpack.c.l.b16 %v10441
          %v10961 = vunpack.c.l.b16 %v10442
          %v10962 = vunpack.c.l.b16 %v10443
          %v10963 = vunpack.c.l.b16 %v10444
          %v10964 = vunpack.c.l.b16 %v10445
          %v10965 = vunpack.c.l.b16 %v10446
          %v10966 = vunpack.c.l.b16 %v10447
          %v10967 = vunpack.c.l.b16 %v10448
          %v10968 = vunpack.c.l.b16 %v10449
          %v10969 = vunpack.c.l.b16 %v10450
          %v10970 = vunpack.c.l.b16 %v10451
          %v10971 = vunpack.c.l.b16 %v10452
          %v10972 = vunpack.c.l.b16 %v10453
          %v10973 = vunpack.c.l.b16 %v10454
          %v10974 = vunpack.c.l.b16 %v10455
          %v10975 = vunpack.c.l.b16 %v10456
          %v10976 = vunpack.c.l.b16 %v10457
          %v10977 = vunpack.c.l.b16 %v10458
          %v10978 = vunpack.c.l.b16 %v10459
          %v10979 = vunpack.c.l.b16 %v10460
          %v10980 = vunpack.c.l.b16 %v10461
          %v10981 = vunpack.c.l.b16 %v10462
          %v10982 = vunpack.c.l.b16 %v10463
          %v10983 = vunpack.c.l.b16 %v10464
          %v10984 = vunpack.c.l.b16 %v10465
          %v10985 = vunpack.c.l.b16 %v10466
          %v10986 = vunpack.c.l.b16 %v10467
          %v10987 = vunpack.c.l.b16 %v10468
          %v10988 = vunpack.c.l.b16 %v10469
          %v10989 = vunpack.c.l.b16 %v10470
          %v10990 = vunpack.c.l.b16 %v10471
          %v10991 = vunpack.c.l.b16 %v10472
          %v10992 = vunpack.c.l.b16 %v10473
          %v10993 = vunpack.c.l.b16 %v10474
          %v10994 = vunpack.c.l.b16 %v10475
          %v10995 = vunpack.c.l.b16 %v10476
          %v10996 = vunpack.c.l.b16 %v10477
          %v10997 = vunpack.c.l.b16 %v10478
          %v10998 = vunpack.c.l.b16 %v10479
          %v10999 = vunpack.c.l.b16 %v10480
          %v11000 = vunpack.c.l.b16 %v10481
          %v11001 = vunpack.c.l.b16 %v10482
          %v11002 = vunpack.c.l.b16 %v10483
          %v11003 = vunpack.c.l.b16 %v10484
          %v11004 = vunpack.c.l.b16 %v10485
          %v11005 = vunpack.c.l.b16 %v10486
          %v11006 = vunpack.c.l.b16 %v10487
          %v11007 = vunpack.c.l.b16 %v10488
          %v11008 = vunpack.c.l.b16 %v10489
          %v11009 = vunpack.c.l.b16 %v10490
          %v11010 = vunpack.c.l.b16 %v10491
          %v11011 = vunpack.c.l.b16 %v10492
          %v11012 = vunpack.c.l.b16 %v10493
          %v11013 = vunpack.c.l.b16 %v10494
          %v11014 = vunpack.c.l.b16 %v10495
          %v11015 = vunpack.c.l.b16 %v10496
          %v11016 = vunpack.c.l.b16 %v10497
          %v11017 = vunpack.c.l.b16 %v10498
          %v11018 = vunpack.c.l.b16 %v10499
          %v11019 = vunpack.c.l.b16 %v10500
          %v11020 = vunpack.c.l.b16 %v10501
          %v11021 = vunpack.c.l.b16 %v10502
          %v11022 = vunpack.c.l.b16 %v10503
          %v11023 = vunpack.c.l.b16 %v10504
          %v11024 = vunpack.c.l.b16 %v10505
          %v11025 = vpack.c.b16 %v10770, %v10769
          %v11026 = vpack.c.b16 %v10772, %v10771
          %v11027 = vpack.c.b16 %v10774, %v10773
          %v11028 = vpack.c.b16 %v10776, %v10775
          %v11029 = vpack.c.b16 %v10778, %v10777
          %v11030 = vpack.c.b16 %v10780, %v10779
          %v11031 = vpack.c.b16 %v10782, %v10781
          %v11032 = vpack.c.b16 %v10784, %v10783
          %v11033 = vpack.c.b16 %v10786, %v10785
          %v11034 = vpack.c.b16 %v10788, %v10787
          %v11035 = vpack.c.b16 %v10790, %v10789
          %v11036 = vpack.c.b16 %v10792, %v10791
          %v11037 = vpack.c.b16 %v10794, %v10793
          %v11038 = vpack.c.b16 %v10796, %v10795
          %v11039 = vpack.c.b16 %v10798, %v10797
          %v11040 = vpack.c.b16 %v10800, %v10799
          %v11041 = vpack.c.b16 %v10802, %v10801
          %v11042 = vpack.c.b16 %v10804, %v10803
          %v11043 = vpack.c.b16 %v10806, %v10805
          %v11044 = vpack.c.b16 %v10808, %v10807
          %v11045 = vpack.c.b16 %v10810, %v10809
          %v11046 = vpack.c.b16 %v10812, %v10811
          %v11047 = vpack.c.b16 %v10814, %v10813
          %v11048 = vpack.c.b16 %v10816, %v10815
          %v11049 = vpack.c.b16 %v10818, %v10817
          %v11050 = vpack.c.b16 %v10820, %v10819
          %v11051 = vpack.c.b16 %v10822, %v10821
          %v11052 = vpack.c.b16 %v10824, %v10823
          %v11053 = vpack.c.b16 %v10826, %v10825
          %v11054 = vpack.c.b16 %v10828, %v10827
          %v11055 = vpack.c.b16 %v10830, %v10829
          %v11056 = vpack.c.b16 %v10832, %v10831
          %v11057 = vpack.c.b16 %v10834, %v10833
          %v11058 = vpack.c.b16 %v10836, %v10835
          %v11059 = vpack.c.b16 %v10838, %v10837
          %v11060 = vpack.c.b16 %v10840, %v10839
          %v11061 = vpack.c.b16 %v10842, %v10841
          %v11062 = vpack.c.b16 %v10844, %v10843
          %v11063 = vpack.c.b16 %v10846, %v10845
          %v11064 = vpack.c.b16 %v10848, %v10847
          %v11065 = vpack.c.b16 %v10850, %v10849
          %v11066 = vpack.c.b16 %v10852, %v10851
          %v11067 = vpack.c.b16 %v10854, %v10853
          %v11068 = vpack.c.b16 %v10856, %v10855
          %v11069 = vpack.c.b16 %v10858, %v10857
          %v11070 = vpack.c.b16 %v10860, %v10859
          %v11071 = vpack.c.b16 %v10862, %v10861
          %v11072 = vpack.c.b16 %v10864, %v10863
          %v11073 = vpack.c.b16 %v10866, %v10865
          %v11074 = vpack.c.b16 %v10868, %v10867
          %v11075 = vpack.c.b16 %v10870, %v10869
          %v11076 = vpack.c.b16 %v10872, %v10871
          %v11077 = vpack.c.b16 %v10874, %v10873
          %v11078 = vpack.c.b16 %v10876, %v10875
          %v11079 = vpack.c.b16 %v10878, %v10877
          %v11080 = vpack.c.b16 %v10880, %v10879
          %v11081 = vpack.c.b16 %v10882, %v10881
          %v11082 = vpack.c.b16 %v10884, %v10883
          %v11083 = vpack.c.b16 %v10886, %v10885
          %v11084 = vpack.c.b16 %v10888, %v10887
          %v11085 = vpack.c.b16 %v10890, %v10889
          %v11086 = vpack.c.b16 %v10892, %v10891
          %v11087 = vpack.c.b16 %v10894, %v10893
          %v11088 = vpack.c.b16 %v10896, %v10895
          %v11089 = vpack.c.b16 %v10898, %v10897
          %v11090 = vpack.c.b16 %v10900, %v10899
          %v11091 = vpack.c.b16 %v10902, %v10901
          %v11092 = vpack.c.b16 %v10904, %v10903
          %v11093 = vpack.c.b16 %v10906, %v10905
          %v11094 = vpack.c.b16 %v10908, %v10907
          %v11095 = vpack.c.b16 %v10910, %v10909
          %v11096 = vpack.c.b16 %v10912, %v10911
          %v11097 = vpack.c.b16 %v10914, %v10913
          %v11098 = vpack.c.b16 %v10916, %v10915
          %v11099 = vpack.c.b16 %v10918, %v10917
          %v11100 = vpack.c.b16 %v10920, %v10919
          %v11101 = vpack.c.b16 %v10922, %v10921
          %v11102 = vpack.c.b16 %v10924, %v10923
          %v11103 = vpack.c.b16 %v10926, %v10925
          %v11104 = vpack.c.b16 %v10928, %v10927
          %v11105 = vpack.c.b16 %v10930, %v10929
          %v11106 = vpack.c.b16 %v10932, %v10931
          %v11107 = vpack.c.b16 %v10934, %v10933
          %v11108 = vpack.c.b16 %v10936, %v10935
          %v11109 = vpack.c.b16 %v10938, %v10937
          %v11110 = vpack.c.b16 %v10940, %v10939
          %v11111 = vpack.c.b16 %v10942, %v10941
          %v11112 = vpack.c.b16 %v10944, %v10943
          %v11113 = vpack.c.b16 %v10946, %v10945
          %v11114 = vpack.c.b16 %v10948, %v10947
          %v11115 = vpack.c.b16 %v10950, %v10949
          %v11116 = vpack.c.b16 %v10952, %v10951
          %v11117 = vpack.c.b16 %v10954, %v10953
          %v11118 = vpack.c.b16 %v10956, %v10955
          %v11119 = vpack.c.b16 %v10958, %v10957
          %v11120 = vpack.c.b16 %v10960, %v10959
          %v11121 = vpack.c.b16 %v10962, %v10961
          %v11122 = vpack.c.b16 %v10964, %v10963
          %v11123 = vpack.c.b16 %v10966, %v10965
          %v11124 = vpack.c.b16 %v10968, %v10967
          %v11125 = vpack.c.b16 %v10970, %v10969
          %v11126 = vpack.c.b16 %v10972, %v10971
          %v11127 = vpack.c.b16 %v10974, %v10973
          %v11128 = vpack.c.b16 %v10976, %v10975
          %v11129 = vpack.c.b16 %v10978, %v10977
          %v11130 = vpack.c.b16 %v10980, %v10979
          %v11131 = vpack.c.b16 %v10982, %v10981
          %v11132 = vpack.c.b16 %v10984, %v10983
          %v11133 = vpack.c.b16 %v10986, %v10985
          %v11134 = vpack.c.b16 %v10988, %v10987
          %v11135 = vpack.c.b16 %v10990, %v10989
          %v11136 = vpack.c.b16 %v10992, %v10991
          %v11137 = vpack.c.b16 %v10994, %v10993
          %v11138 = vpack.c.b16 %v10996, %v10995
          %v11139 = vpack.c.b16 %v10998, %v10997
          %v11140 = vpack.c.b16 %v11000, %v10999
          %v11141 = vpack.c.b16 %v11002, %v11001
          %v11142 = vpack.c.b16 %v11004, %v11003
          %v11143 = vpack.c.b16 %v11006, %v11005
          %v11144 = vpack.c.b16 %v11008, %v11007
          %v11145 = vpack.c.b16 %v11010, %v11009
          %v11146 = vpack.c.b16 %v11012, %v11011
          %v11147 = vpack.c.b16 %v11014, %v11013
          %v11148 = vpack.c.b16 %v11016, %v11015
          %v11149 = vpack.c.b16 %v11018, %v11017
          %v11150 = vpack.c.b16 %v11020, %v11019
          %v11151 = vpack.c.b16 %v11022, %v11021
          %v11152 = vpack.c.b16 %v11024, %v11023
          %11281 = vmatprep.subr.bf16.mxu0 0
          %11282 = vmatpush1.bf16.msra.mxu0 %v11025
          %11283 = vmatprep.subr.bf16.mxu0 0
          %11284 = vmatpush1.bf16.msra.mxu0 %v11026
          %11285 = vmatprep.subr.bf16.mxu0 0
          %11286 = vmatpush1.bf16.msra.mxu0 %v11027
          %11287 = vmatprep.subr.bf16.mxu0 0
          %11288 = vmatpush1.bf16.msra.mxu0 %v11028
          %11289 = vmatprep.subr.bf16.mxu0 0
          %11290 = vmatpush1.bf16.msra.mxu0 %v11029
          %11291 = vmatprep.subr.bf16.mxu0 0
          %11292 = vmatpush1.bf16.msra.mxu0 %v11030
          %11293 = vmatprep.subr.bf16.mxu0 0
          %11294 = vmatpush1.bf16.msra.mxu0 %v11031
          %11295 = vmatprep.subr.bf16.mxu0 0
          %11296 = vmatpush1.bf16.msra.mxu0 %v11032
          %11297 = vmatprep.subr.bf16.mxu0 0
          %11298 = vmatpush1.bf16.msra.mxu0 %v11033
          %11299 = vmatprep.subr.bf16.mxu0 0
          %11300 = vmatpush1.bf16.msra.mxu0 %v11034
          %11301 = vmatprep.subr.bf16.mxu0 0
          %11302 = vmatpush1.bf16.msra.mxu0 %v11035
          %11303 = vmatprep.subr.bf16.mxu0 0
          %11304 = vmatpush1.bf16.msra.mxu0 %v11036
          %11305 = vmatprep.subr.bf16.mxu0 0
          %11306 = vmatpush1.bf16.msra.mxu0 %v11037
          %11307 = vmatprep.subr.bf16.mxu0 0
          %11308 = vmatpush1.bf16.msra.mxu0 %v11038
          %11309 = vmatprep.subr.bf16.mxu0 0
          %11310 = vmatpush1.bf16.msra.mxu0 %v11039
          %11311 = vmatprep.subr.bf16.mxu0 0
          %11312 = vmatpush1.bf16.msra.mxu0 %v11040
          %11313 = vmatprep.mubr.bf16.mxu0 %v10235
          %11314 = vmatmul.mubr.bf16.gmra.mrb[0].mxu0 %v10234
          %v11315 = vpop.f32.mrb[0].mxu0
          %v11316 = vadd.f32 %v10511, %v11315
          %v11317 = vpop.f32.mrb[0].mxu0
          %v11318 = vpop.f32.mrb[0].mxu0
          %v11319 = vpop.f32.mrb[0].mxu0
          %11320 = vdwg.mxu0
          %11321 = vmatprep.subr.bf16.mxu0 0
          %11322 = vmatpush1.bf16.msra.mxu0 %v11041
          %11323 = vmatprep.subr.bf16.mxu0 0
          %11324 = vmatpush1.bf16.msra.mxu0 %v11042
          %11325 = vmatprep.subr.bf16.mxu0 0
          %11326 = vmatpush1.bf16.msra.mxu0 %v11043
          %11327 = vmatprep.subr.bf16.mxu0 0
          %11328 = vmatpush1.bf16.msra.mxu0 %v11044
          %11329 = vmatprep.subr.bf16.mxu0 0
          %11330 = vmatpush1.bf16.msra.mxu0 %v11045
          %11331 = vmatprep.subr.bf16.mxu0 0
          %11332 = vmatpush1.bf16.msra.mxu0 %v11046
          %11333 = vmatprep.subr.bf16.mxu0 0
          %11334 = vmatpush1.bf16.msra.mxu0 %v11047
          %11335 = vmatprep.subr.bf16.mxu0 0
          %11336 = vmatpush1.bf16.msra.mxu0 %v11048
          %11337 = vmatprep.subr.bf16.mxu0 0
          %11338 = vmatpush1.bf16.msra.mxu0 %v11049
          %11339 = vmatprep.subr.bf16.mxu0 0
          %11340 = vmatpush1.bf16.msra.mxu0 %v11050
          %11341 = vmatprep.subr.bf16.mxu0 0
          %11342 = vmatpush1.bf16.msra.mxu0 %v11051
          %11343 = vmatprep.subr.bf16.mxu0 0
          %11344 = vmatpush1.bf16.msra.mxu0 %v11052
          %11345 = vmatprep.subr.bf16.mxu0 0
          %11346 = vmatpush1.bf16.msra.mxu0 %v11053
          %11347 = vmatprep.subr.bf16.mxu0 0
          %11348 = vmatpush1.bf16.msra.mxu0 %v11054
          %11349 = vmatprep.subr.bf16.mxu0 0
          %11350 = vmatpush1.bf16.msra.mxu0 %v11055
          %11351 = vmatprep.subr.bf16.mxu0 0
          %11352 = vmatpush1.bf16.msra.mxu0 %v11056
          %11353 = vmatprep.mubr.bf16.mxu0 %v10237
          %11354 = vmatmul.mubr.bf16.gmra.mrb[0].mxu0 %v10236
          %v11355 = vpop.f32.mrb[0].mxu0
          %v11356 = vadd.f32 %v11316, %v11355
          %v11357 = vpop.f32.mrb[0].mxu0
          %v11358 = vpop.f32.mrb[0].mxu0
          %v11359 = vpop.f32.mrb[0].mxu0
          %11360 = vdwg.mxu0
          %11361 = vmatprep.subr.bf16.mxu0 0
          %11362 = vmatpush1.bf16.msra.mxu0 %v11057
          %11363 = vmatprep.subr.bf16.mxu0 0
          %11364 = vmatpush1.bf16.msra.mxu0 %v11058
          %11365 = vmatprep.subr.bf16.mxu0 0
          %11366 = vmatpush1.bf16.msra.mxu0 %v11059
          %11367 = vmatprep.subr.bf16.mxu0 0
          %11368 = vmatpush1.bf16.msra.mxu0 %v11060
          %11369 = vmatprep.subr.bf16.mxu0 0
          %11370 = vmatpush1.bf16.msra.mxu0 %v11061
          %11371 = vmatprep.subr.bf16.mxu0 0
          %11372 = vmatpush1.bf16.msra.mxu0 %v11062
          %11373 = vmatprep.subr.bf16.mxu0 0
          %11374 = vmatpush1.bf16.msra.mxu0 %v11063
          %11375 = vmatprep.subr.bf16.mxu0 0
          %11376 = vmatpush1.bf16.msra.mxu0 %v11064
          %11377 = vmatprep.subr.bf16.mxu0 0
          %11378 = vmatpush1.bf16.msra.mxu0 %v11065
          %11379 = vmatprep.subr.bf16.mxu0 0
          %11380 = vmatpush1.bf16.msra.mxu0 %v11066
          %11381 = vmatprep.subr.bf16.mxu0 0
          %11382 = vmatpush1.bf16.msra.mxu0 %v11067
          %11383 = vmatprep.subr.bf16.mxu0 0
          %11384 = vmatpush1.bf16.msra.mxu0 %v11068
          %11385 = vmatprep.subr.bf16.mxu0 0
          %11386 = vmatpush1.bf16.msra.mxu0 %v11069
          %11387 = vmatprep.subr.bf16.mxu0 0
          %11388 = vmatpush1.bf16.msra.mxu0 %v11070
          %11389 = vmatprep.subr.bf16.mxu0 0
          %11390 = vmatpush1.bf16.msra.mxu0 %v11071
          %11391 = vmatprep.subr.bf16.mxu0 0
          %11392 = vmatpush1.bf16.msra.mxu0 %v11072
          %11393 = vmatprep.mubr.bf16.mxu0 %v10239
          %11394 = vmatmul.mubr.bf16.gmra.mrb[0].mxu0 %v10238
          %v11395 = vpop.f32.mrb[0].mxu0
          %v11396 = vadd.f32 %v11356, %v11395
          %v11397 = vpop.f32.mrb[0].mxu0
          %v11398 = vpop.f32.mrb[0].mxu0
          %v11399 = vpop.f32.mrb[0].mxu0
          %11400 = vdwg.mxu0
          %11401 = vmatprep.subr.bf16.mxu0 0
          %11402 = vmatpush1.bf16.msra.mxu0 %v11073
          %11403 = vmatprep.subr.bf16.mxu0 0
          %11404 = vmatpush1.bf16.msra.mxu0 %v11074
          %11405 = vmatprep.subr.bf16.mxu0 0
          %11406 = vmatpush1.bf16.msra.mxu0 %v11075
          %11407 = vmatprep.subr.bf16.mxu0 0
          %11408 = vmatpush1.bf16.msra.mxu0 %v11076
          %11409 = vmatprep.subr.bf16.mxu0 0
          %11410 = vmatpush1.bf16.msra.mxu0 %v11077
          %11411 = vmatprep.subr.bf16.mxu0 0
          %11412 = vmatpush1.bf16.msra.mxu0 %v11078
          %11413 = vmatprep.subr.bf16.mxu0 0
          %11414 = vmatpush1.bf16.msra.mxu0 %v11079
          %11415 = vmatprep.subr.bf16.mxu0 0
          %11416 = vmatpush1.bf16.msra.mxu0 %v11080
          %11417 = vmatprep.subr.bf16.mxu0 0
          %11418 = vmatpush1.bf16.msra.mxu0 %v11081
          %11419 = vmatprep.subr.bf16.mxu0 0
          %11420 = vmatpush1.bf16.msra.mxu0 %v11082
          %11421 = vmatprep.subr.bf16.mxu0 0
          %11422 = vmatpush1.bf16.msra.mxu0 %v11083
          %11423 = vmatprep.subr.bf16.mxu0 0
          %11424 = vmatpush1.bf16.msra.mxu0 %v11084
          %11425 = vmatprep.subr.bf16.mxu0 0
          %11426 = vmatpush1.bf16.msra.mxu0 %v11085
          %11427 = vmatprep.subr.bf16.mxu0 0
          %11428 = vmatpush1.bf16.msra.mxu0 %v11086
          %11429 = vmatprep.subr.bf16.mxu0 0
          %11430 = vmatpush1.bf16.msra.mxu0 %v11087
          %11431 = vmatprep.subr.bf16.mxu0 0
          %11432 = vmatpush1.bf16.msra.mxu0 %v11088
          %11433 = vmatprep.mubr.bf16.mxu0 %v10241
          %11434 = vmatmul.mubr.bf16.gmra.mrb[0].mxu0 %v10240
          %v11435 = vpop.f32.mrb[0].mxu0
          %v11436 = vadd.f32 %v11396, %v11435
          %v11437 = vpop.f32.mrb[0].mxu0
          %v11438 = vpop.f32.mrb[0].mxu0
          %v11439 = vpop.f32.mrb[0].mxu0
          %11440 = vdwg.mxu0
          %11441 = vmatprep.subr.bf16.mxu0 0
          %11442 = vmatpush1.bf16.msra.mxu0 %v11089
          %11443 = vmatprep.subr.bf16.mxu0 0
          %11444 = vmatpush1.bf16.msra.mxu0 %v11090
          %11445 = vmatprep.subr.bf16.mxu0 0
          %11446 = vmatpush1.bf16.msra.mxu0 %v11091
          %11447 = vmatprep.subr.bf16.mxu0 0
          %11448 = vmatpush1.bf16.msra.mxu0 %v11092
          %11449 = vmatprep.subr.bf16.mxu0 0
          %11450 = vmatpush1.bf16.msra.mxu0 %v11093
          %11451 = vmatprep.subr.bf16.mxu0 0
          %11452 = vmatpush1.bf16.msra.mxu0 %v11094
          %11453 = vmatprep.subr.bf16.mxu0 0
          %11454 = vmatpush1.bf16.msra.mxu0 %v11095
          %11455 = vmatprep.subr.bf16.mxu0 0
          %11456 = vmatpush1.bf16.msra.mxu0 %v11096
          %11457 = vmatprep.subr.bf16.mxu0 0
          %11458 = vmatpush1.bf16.msra.mxu0 %v11097
          %11459 = vmatprep.subr.bf16.mxu0 0
          %11460 = vmatpush1.bf16.msra.mxu0 %v11098
          %11461 = vmatprep.subr.bf16.mxu0 0
          %11462 = vmatpush1.bf16.msra.mxu0 %v11099
          %11463 = vmatprep.subr.bf16.mxu0 0
          %11464 = vmatpush1.bf16.msra.mxu0 %v11100
          %11465 = vmatprep.subr.bf16.mxu0 0
          %11466 = vmatpush1.bf16.msra.mxu0 %v11101
          %11467 = vmatprep.subr.bf16.mxu0 0
          %11468 = vmatpush1.bf16.msra.mxu0 %v11102
          %11469 = vmatprep.subr.bf16.mxu0 0
          %11470 = vmatpush1.bf16.msra.mxu0 %v11103
          %11471 = vmatprep.subr.bf16.mxu0 0
          %11472 = vmatpush1.bf16.msra.mxu0 %v11104
          %11473 = vmatprep.mubr.bf16.mxu0 %v10243
          %11474 = vmatmul.mubr.bf16.gmra.mrb[0].mxu0 %v10242
          %v11475 = vpop.f32.mrb[0].mxu0
          %v11476 = vadd.f32 %v11436, %v11475
          %v11477 = vpop.f32.mrb[0].mxu0
          %v11478 = vpop.f32.mrb[0].mxu0
          %v11479 = vpop.f32.mrb[0].mxu0
          %11480 = vdwg.mxu0
          %11481 = vmatprep.subr.bf16.mxu0 0
          %11482 = vmatpush1.bf16.msra.mxu0 %v11105
          %11483 = vmatprep.subr.bf16.mxu0 0
          %11484 = vmatpush1.bf16.msra.mxu0 %v11106
          %11485 = vmatprep.subr.bf16.mxu0 0
          %11486 = vmatpush1.bf16.msra.mxu0 %v11107
          %11487 = vmatprep.subr.bf16.mxu0 0
          %11488 = vmatpush1.bf16.msra.mxu0 %v11108
          %11489 = vmatprep.subr.bf16.mxu0 0
          %11490 = vmatpush1.bf16.msra.mxu0 %v11109
          %11491 = vmatprep.subr.bf16.mxu0 0
          %11492 = vmatpush1.bf16.msra.mxu0 %v11110
          %11493 = vmatprep.subr.bf16.mxu0 0
          %11494 = vmatpush1.bf16.msra.mxu0 %v11111
          %11495 = vmatprep.subr.bf16.mxu0 0
          %11496 = vmatpush1.bf16.msra.mxu0 %v11112
          %11497 = vmatprep.subr.bf16.mxu0 0
          %11498 = vmatpush1.bf16.msra.mxu0 %v11113
          %11499 = vmatprep.subr.bf16.mxu0 0
          %11500 = vmatpush1.bf16.msra.mxu0 %v11114
          %11501 = vmatprep.subr.bf16.mxu0 0
          %11502 = vmatpush1.bf16.msra.mxu0 %v11115
          %11503 = vmatprep.subr.bf16.mxu0 0
          %11504 = vmatpush1.bf16.msra.mxu0 %v11116
          %11505 = vmatprep.subr.bf16.mxu0 0
          %11506 = vmatpush1.bf16.msra.mxu0 %v11117
          %11507 = vmatprep.subr.bf16.mxu0 0
          %11508 = vmatpush1.bf16.msra.mxu0 %v11118
          %11509 = vmatprep.subr.bf16.mxu0 0
          %11510 = vmatpush1.bf16.msra.mxu0 %v11119
          %11511 = vmatprep.subr.bf16.mxu0 0
          %11512 = vmatpush1.bf16.msra.mxu0 %v11120
          %11513 = vmatprep.mubr.bf16.mxu0 %v10245
          %11514 = vmatmul.mubr.bf16.gmra.mrb[0].mxu0 %v10244
          %v11515 = vpop.f32.mrb[0].mxu0
          %v11516 = vadd.f32 %v11476, %v11515
          %v11517 = vpop.f32.mrb[0].mxu0
          %v11518 = vpop.f32.mrb[0].mxu0
          %v11519 = vpop.f32.mrb[0].mxu0
          %11520 = vdwg.mxu0
          %11521 = vmatprep.subr.bf16.mxu0 0
          %11522 = vmatpush1.bf16.msra.mxu0 %v11121
          %11523 = vmatprep.subr.bf16.mxu0 0
          %11524 = vmatpush1.bf16.msra.mxu0 %v11122
          %11525 = vmatprep.subr.bf16.mxu0 0
          %11526 = vmatpush1.bf16.msra.mxu0 %v11123
          %11527 = vmatprep.subr.bf16.mxu0 0
          %11528 = vmatpush1.bf16.msra.mxu0 %v11124
          %11529 = vmatprep.subr.bf16.mxu0 0
          %11530 = vmatpush1.bf16.msra.mxu0 %v11125
          %11531 = vmatprep.subr.bf16.mxu0 0
          %11532 = vmatpush1.bf16.msra.mxu0 %v11126
          %11533 = vmatprep.subr.bf16.mxu0 0
          %11534 = vmatpush1.bf16.msra.mxu0 %v11127
          %11535 = vmatprep.subr.bf16.mxu0 0
          %11536 = vmatpush1.bf16.msra.mxu0 %v11128
          %11537 = vmatprep.subr.bf16.mxu0 0
          %11538 = vmatpush1.bf16.msra.mxu0 %v11129
          %11539 = vmatprep.subr.bf16.mxu0 0
          %11540 = vmatpush1.bf16.msra.mxu0 %v11130
          %11541 = vmatprep.subr.bf16.mxu0 0
          %11542 = vmatpush1.bf16.msra.mxu0 %v11131
          %11543 = vmatprep.subr.bf16.mxu0 0
          %11544 = vmatpush1.bf16.msra.mxu0 %v11132
          %11545 = vmatprep.subr.bf16.mxu0 0
          %11546 = vmatpush1.bf16.msra.mxu0 %v11133
          %11547 = vmatprep.subr.bf16.mxu0 0
          %11548 = vmatpush1.bf16.msra.mxu0 %v11134
          %11549 = vmatprep.subr.bf16.mxu0 0
          %11550 = vmatpush1.bf16.msra.mxu0 %v11135
          %11551 = vmatprep.subr.bf16.mxu0 0
          %11552 = vmatpush1.bf16.msra.mxu0 %v11136
          %11553 = vmatprep.mubr.bf16.mxu0 %v10247
          %11554 = vmatmul.mubr.bf16.gmra.mrb[0].mxu0 %v10246
          %v11555 = vpop.f32.mrb[0].mxu0
          %v11556 = vadd.f32 %v11516, %v11555
          %v11557 = vpop.f32.mrb[0].mxu0
          %v11558 = vpop.f32.mrb[0].mxu0
          %v11559 = vpop.f32.mrb[0].mxu0
          %11560 = vdwg.mxu0
          %11561 = vmatprep.subr.bf16.mxu0 0
          %11562 = vmatpush1.bf16.msra.mxu0 %v11137
          %11563 = vmatprep.subr.bf16.mxu0 0
          %11564 = vmatpush1.bf16.msra.mxu0 %v11138
          %11565 = vmatprep.subr.bf16.mxu0 0
          %11566 = vmatpush1.bf16.msra.mxu0 %v11139
          %11567 = vmatprep.subr.bf16.mxu0 0
          %11568 = vmatpush1.bf16.msra.mxu0 %v11140
          %11569 = vmatprep.subr.bf16.mxu0 0
          %11570 = vmatpush1.bf16.msra.mxu0 %v11141
          %11571 = vmatprep.subr.bf16.mxu0 0
          %11572 = vmatpush1.bf16.msra.mxu0 %v11142
          %11573 = vmatprep.subr.bf16.mxu0 0
          %11574 = vmatpush1.bf16.msra.mxu0 %v11143
          %11575 = vmatprep.subr.bf16.mxu0 0
          %11576 = vmatpush1.bf16.msra.mxu0 %v11144
          %11577 = vmatprep.subr.bf16.mxu0 0
          %11578 = vmatpush1.bf16.msra.mxu0 %v11145
          %11579 = vmatprep.subr.bf16.mxu0 0
          %11580 = vmatpush1.bf16.msra.mxu0 %v11146
          %11581 = vmatprep.subr.bf16.mxu0 0
          %11582 = vmatpush1.bf16.msra.mxu0 %v11147
          %11583 = vmatprep.subr.bf16.mxu0 0
          %11584 = vmatpush1.bf16.msra.mxu0 %v11148
          %11585 = vmatprep.subr.bf16.mxu0 0
          %11586 = vmatpush1.bf16.msra.mxu0 %v11149
          %11587 = vmatprep.subr.bf16.mxu0 0
          %11588 = vmatpush1.bf16.msra.mxu0 %v11150
          %11589 = vmatprep.subr.bf16.mxu0 0
          %11590 = vmatpush1.bf16.msra.mxu0 %v11151
          %11591 = vmatprep.subr.bf16.mxu0 0
          %11592 = vmatpush1.bf16.msra.mxu0 %v11152
          %11593 = vmatprep.mubr.bf16.mxu0 %v10249
          %11594 = vmatmul.mubr.bf16.gmra.mrb[0].mxu0 %v10248
          %v11595 = vpop.f32.mrb[0].mxu0
          %v11596 = vadd.f32 %v11556, %v11595
          %v11597 = vpop.f32.mrb[0].mxu0
          %v11598 = vpop.f32.mrb[0].mxu0
          %v11599 = vpop.f32.mrb[0].mxu0
          %11600 = vdwg.mxu0
          %vm11601 = vcmask 80896
          %v11602 = vsel %vm11601, %v11596, -inf
          %11603 = vmax.xlane.f32.xlu0 %v11602
          %v11604 = vpop.xlane.xlu0 %11603
          %v11605 = vsub.f32 %v11596, %v11604
          %v11606 = vmul.f32 %v11605, 1.442695
          %v11607 = vpow.pop %v11606
          %v11608 = vsel %vm11601, %v11607, 0.0
          %11609 = vadd.xlane.f32.xlu0 %v11608
          %v11610 = vpop.xlane.xlu0 %11609
          %v11611 = vlog2.pop %v11610
          %v11612 = vmul.f32 %v11611, 0.6931472
          %v11613 = vsub.f32 %v11605, %v11612
          %11614 = vst.msk [vmem:[#allocation14] sm:$0xff] %vm11601, %v11613
        $region84: #{svhn_label_predictor.1} parent=51 // pred_fallthru
          _
        // Predicated region
        $region85: #{svhn_label_predictor.1} parent=51 // pred_check
          %p11615 = pneg %p229
        $region86: #{svhn_label_predictor.1} parent=51 // pred_check_branch
          %11617 = sbr.rel (%p11615) target = $region88
        $region87: #{svhn_label_predictor.1} parent=51 // pred_region
          %s11619 = ssub.s32 128, 128
          %11620 = vsyncadd [#allocation5], %s11619
          %s11622 = sshll.u32 [#allocation14], 4
          %s11623 = int_to_ptr.vmem [resolvable:$true] %s11622
          %11625 = dma.vmem_to_hbm [thread:$0]  %s11623, 128, %s8, [#allocation5]
        $region88: #{svhn_label_predictor.1} parent=51 // pred_fallthru
          _
        // Predicated region
        $region89: #{svhn_label_predictor.1} parent=51 // pred_check
          %p11626 = pneg %p229
        $region90: #{svhn_label_predictor.1} parent=51 // pred_check_branch
          %11628 = sbr.rel (%p11626) target = $region92
        $region91: #{svhn_label_predictor.1} parent=51 // pred_region
          %11629 = dma.done [#allocation5], 128
        $region92: #{svhn_label_predictor.1} parent=51 // pred_fallthru
          _
      $region52: #{svhn_label_predictor.1} parent=5 // pred_fallthru
        _
      %p11630 = scmp.le.s32.totalorder 2, %s23
      // Predicated region
      $region93: #{svhn_label_predictor.1} parent=5 // pred_check
        %p11631 = pneg %p11630
      $region94: #{svhn_label_predictor.1} parent=5 // pred_check_branch
        %11633 = sbr.rel (%p11631) target = $region96
      $region95: #{svhn_label_predictor.1} parent=5 // pred_region
        %s11634 = ssub.s32 %s23, 2
      $region96: #{svhn_label_predictor.1} parent=5 // pred_fallthru
        _
    $region6: #{svhn_label_predictor.1} parent=1 // loop_footer
      %s27 = sadd.s32 1, %s23
    $region7: #{svhn_label_predictor.1} parent=1 // loop_footer_branch
      %22 = sbr.rel target = $region3
    $region8: #{svhn_label_predictor.1} parent=1 // loop_exit
      _
    %11635 = vsyncpa [#allocation4], 1
    %s11636 = scalar_lea.sflag [#allocation4], 1
    %11637 = vsyncpa %s11636, 1
    %11638 = vsyncpa [#allocation7], 1
    %s11639 = scalar_lea.sflag [#allocation7], 1
    %11640 = vsyncpa %s11639, 1
    %11641 = vsyncpa [#allocation10], 1
    %s11642 = scalar_lea.sflag [#allocation10], 1
    %11643 = vsyncpa %s11642, 1
    %11644 = vsyncpa [#allocation13], 1
    %11645 = vsyncpa [#allocation5], 1
    %s11646 = scalar_lea.sflag [#allocation5], 1
    %11647 = vsyncpa %s11646, 1

</llo_original>
